<compile_context>
chip_gen: v7x
topology: tpu7x:2x2x1
jax: 0.10.0
libtpu: 0.0.40
codegen_flags: <defaults>
</compile_context>

<pallas_src>
import functools

import numpy as np
import jax
import jax.numpy as jnp
from jax.experimental import pallas as pl
from jax.experimental.pallas import tpu as pltpu


def _shift(v, off, n):
    """result[..., i] = v[..., (i + off) mod n]; wrapped lanes are zeroed by the caller's mask."""
    s = (-off) % n
    return v if s == 0 else pltpu.roll(v, s, axis=1)


# ---------------------------------------------------------------------------
# Kernel A: fused conv1 + ReLU + conv2 + ReLU + maxpool, one batch block per grid step.
# ---------------------------------------------------------------------------
def _features_kernel(x_ref, mask_ref, w1_ref, b1_ref, w2_ref, b2_ref, selT_ref,
                     o_ref, *, H, W, C, block_b):
    HW = H * W
    N = block_b * HW

    x = x_ref[0]                       # (1, N) f32: block_b images stacked along lanes
    masks = mask_ref[...]              # (9, N) f32 {0,1}: per-tap border validity (resident)

    offs = [(kh - 1) * W + (kw - 1) for kh in range(3) for kw in range(3)]

    # ---- conv1 (1 -> C): one MXU matmul on a (16, N) im2col. --------------------------
    taps = [_shift(x, off, N) * masks[t:t + 1, :] for t, off in enumerate(offs)]
    taps.append(jnp.zeros((16 - 9, N), jnp.float32))                # pad taps 9 -> 16
    x9 = jnp.concatenate(taps, axis=0).astype(jnp.bfloat16)         # (16, N) bf16
    y1 = jnp.dot(w1_ref[...], x9, preferred_element_type=jnp.float32)   # (C, N) f32
    y1 = jnp.maximum(y1 + b1_ref[...], 0.0)

    # ---- conv2 (C -> C): single K=9*C matmul on a stacked (576, N) operand. -----------
    taps = [(_shift(y1, off, N) * masks[t:t + 1, :]).astype(jnp.bfloat16)
            for t, off in enumerate(offs)]
    y9 = jnp.concatenate(taps, axis=0)                               # (9*C, N) bf16
    y2 = jnp.dot(w2_ref[...], y9, preferred_element_type=jnp.float32)    # (C, N) f32
    y2 = jnp.maximum(y2 + b2_ref[...], 0.0)

    # ---- 2x2 / stride-2 max pool: pairwise lane-max, then per-image anchor selection. -
    m = jnp.maximum(y2, _shift(y2, 1, N))        # max over columns  n, n+1
    m = jnp.maximum(m, _shift(m, W, N))          # ... and rows      n+W, n+W+1
    m = m.astype(jnp.bfloat16)
    selT = selT_ref[...]                         # (HW, P) 0/1 anchor picker (resident)
    for b in range(block_b):                     # tiny per-image (64,256)@(256,64) matmuls
        mb = m[:, b * HW:(b + 1) * HW]           # lane-aligned static slice
        pooled = jnp.dot(mb, selT, preferred_element_type=jnp.float32)   # (C, P)
        o_ref[0, b] = pooled.astype(o_ref.dtype)


def lenet_features(x_nchw, p, *, H, W):
    B = x_nchw.shape[0]
    C = 64
    HW = H * W
    P = (H // 2) * (W // 2)
    block_b = p["mask9"].shape[1] // HW
    Bp = ((B + block_b - 1) // block_b) * block_b
    nb = Bp // block_b

    x = x_nchw.reshape(B, HW)                              # free reshape (NCHW row-major)
    if Bp != B:
        x = jnp.pad(x, ((0, Bp - B), (0, 0)))
    x = x.reshape(nb, 1, block_b * HW)                     # lane-stacked batch blocks

    kernel = functools.partial(_features_kernel, H=H, W=W, C=C, block_b=block_b)
    out = pl.pallas_call(
        kernel,
        out_shape=jax.ShapeDtypeStruct((nb, block_b, C, P), jnp.bfloat16),
        grid=(nb,),
        in_specs=[
            pl.BlockSpec((1, 1, block_b * HW), lambda g: (g, 0, 0)),   # images
            pl.BlockSpec((9, block_b * HW), lambda g: (0, 0)),         # border masks (resident)
            pl.BlockSpec((C, 16), lambda g: (0, 0)),                   # conv1 w (resident)
            pl.BlockSpec((C, 1), lambda g: (0, 0)),                    # conv1 b
            pl.BlockSpec((C, 9 * C), lambda g: (0, 0)),                # conv2 w (resident)
            pl.BlockSpec((C, 1), lambda g: (0, 0)),                    # conv2 b
            pl.BlockSpec((HW, P), lambda g: (0, 0)),                   # pool selector (resident)
        ],
        out_specs=pl.BlockSpec((1, block_b, C, P), lambda g: (g, 0, 0, 0)),
        compiler_params=pltpu.CompilerParams(
            dimension_semantics=("parallel",),
            vmem_limit_bytes=32 * 1024 * 1024),
    )(x, p["mask9"], p["conv1_w"], p["conv1_b"], p["conv2_w"], p["conv2_b"], p["selT"])
    # (nb, block_b, C, P) -> (B, C*P): free reshape; (c, ho, wo) order == torch.flatten order.
    return out.reshape(Bp, C * P)[:B]


# ---------------------------------------------------------------------------
# Kernel B: classifier fc1+ReLU -> fc2+ReLU -> fc3, batch-tiled grid, resident weights.
# ---------------------------------------------------------------------------
def _classifier_kernel(x_ref, w1_ref, b1_ref, w2_ref, b2_ref, w3_ref, b3_ref, o_ref):
    x = x_ref[...]                                                       # (Bt, F) bf16
    h = jnp.dot(x, w1_ref[...], preferred_element_type=jnp.float32) + b1_ref[...]
    h = jnp.maximum(h, 0.0).astype(jnp.bfloat16)
    h = jnp.dot(h, w2_ref[...], preferred_element_type=jnp.float32) + b2_ref[...]
    h = jnp.maximum(h, 0.0).astype(jnp.bfloat16)
    out = jnp.dot(h, w3_ref[...], preferred_element_type=jnp.float32) + b3_ref[...]
    o_ref[...] = out


def lenet_classifier(feats, p, *, block_bt=256):
    B, F = feats.shape
    npad = p["fc3_w"].shape[1]
    Bt = min(block_bt, B)
    Bp = ((B + Bt - 1) // Bt) * Bt
    if Bp != B:
        feats = jnp.pad(feats, ((0, Bp - B), (0, 0)))

    out = pl.pallas_call(
        _classifier_kernel,
        out_shape=jax.ShapeDtypeStruct((Bp, npad), jnp.float32),
        grid=(Bp // Bt,),
        in_specs=[
            pl.BlockSpec((Bt, F), lambda i: (i, 0)),          # features, tiled over batch
            pl.BlockSpec((F, 256), lambda i: (0, 0)),         # fc1 w (resident)
            pl.BlockSpec((1, 256), lambda i: (0, 0)),
            pl.BlockSpec((256, 256), lambda i: (0, 0)),       # fc2 w
            pl.BlockSpec((1, 256), lambda i: (0, 0)),
            pl.BlockSpec((256, npad), lambda i: (0, 0)),      # fc3 w (lane-dense padded)
            pl.BlockSpec((1, npad), lambda i: (0, 0)),
        ],
        out_specs=pl.BlockSpec((Bt, npad), lambda i: (i, 0)),
        compiler_params=pltpu.CompilerParams(
            dimension_semantics=("parallel",),
            vmem_limit_bytes=32 * 1024 * 1024),
    )(feats, p["fc1_w"], p["fc1_b"], p["fc2_w"], p["fc2_b"], p["fc3_w"], p["fc3_b"])
    return out[:B]


# ---------------------------------------------------------------------------
# Parameters: PyTorch-layout init + one-time conversion to kernel layout.
# ---------------------------------------------------------------------------
def init_params_torch_layout(key, in_dim, out_dim):
    ks = jax.random.split(key, 10)

    def rnd(k, shape, fan_in):
        return jax.random.normal(k, shape, jnp.float32) / jnp.sqrt(fan_in)

    feat = 64 * (in_dim // 2) ** 2
    return {
        "conv1_w": rnd(ks[0], (64, 1, 3, 3), 9.0),
        "conv1_b": rnd(ks[1], (64,), 9.0),
        "conv2_w": rnd(ks[2], (64, 64, 3, 3), 576.0),
        "conv2_b": rnd(ks[3], (64,), 576.0),
        "fc1_w": rnd(ks[4], (256, feat), float(feat)),   # PyTorch Linear layout (out, in)
        "fc1_b": rnd(ks[5], (256,), float(feat)),
        "fc2_w": rnd(ks[6], (256, 256), 256.0),
        "fc2_b": rnd(ks[7], (256,), 256.0),
        "fc3_w": rnd(ks[8], (out_dim, 256), 256.0),
        "fc3_b": rnd(ks[9], (out_dim,), 256.0),
    }


def _conv_masks(H, W, block_b):
    """(9, block_b*H*W) {0,1} f32: tap validity under padding=1, periodic per image."""
    HW = H * W
    r = np.arange(HW)
    hh, ww = r // W, r % W
    rows = []
    for kh in range(3):
        for kw in range(3):
            dh, dw = kh - 1, kw - 1
            rows.append(((hh + dh >= 0) & (hh + dh < H) &
                         (ww + dw >= 0) & (ww + dw < W)).astype(np.float32))
    m = np.stack(rows, axis=0)
    return jnp.asarray(np.tile(m, (1, block_b)))


def _pool_selector(H, W):
    """(H*W, P) 0/1 bf16: column p picks the 2x2-window anchor pixel (2*ho, 2*wo)."""
    HW, Wo = H * W, W // 2
    P = (H // 2) * Wo
    sel = np.zeros((HW, P), np.float32)
    for p in range(P):
        ho, wo = p // Wo, p % Wo
        sel[(2 * ho) * W + 2 * wo, p] = 1.0
    return jnp.asarray(sel, dtype=jnp.bfloat16)


def prepare_params(tp, in_dim, out_dim, block_b):
    """One-time conversion: conv1 -> (C, 16) taps, conv2 -> (C, 9*C) matching the stacked
    Y9 operand, FC weights pre-transposed to (in, out) bf16, fc3 padded to 128 lanes,
    border masks and pool selector precomputed.  Biases stay f32."""
    assert in_dim % 2 == 0, "2x2/stride-2 maxpool path assumes even H and W"
    C = 64
    H = W = in_dim
    npad = ((out_dim + 127) // 128) * 128

    w1 = tp["conv1_w"].reshape(C, 9)                                   # [c_out, kh*3+kw]
    w1 = jnp.pad(w1, ((0, 0), (0, 16 - 9))).astype(jnp.bfloat16)       # taps 9 -> 16
    w2 = tp["conv2_w"].transpose(0, 2, 3, 1).reshape(C, 9 * C).astype(jnp.bfloat16)
    fc3 = jnp.pad(tp["fc3_w"].T, ((0, 0), (0, npad - out_dim))).astype(jnp.bfloat16)
    b3 = jnp.pad(tp["fc3_b"], (0, npad - out_dim)).reshape(1, npad)

    return {
        "conv1_w": w1,                                  # (C, 16) bf16
        "conv1_b": tp["conv1_b"].reshape(C, 1),         # f32
        "conv2_w": w2,                                  # (C, 576) bf16
        "conv2_b": tp["conv2_b"].reshape(C, 1),
        "mask9": _conv_masks(H, W, block_b),            # (9, block_b*H*W) f32
        "selT": _pool_selector(H, W),                   # (H*W, P) bf16
        "fc1_w": tp["fc1_w"].T.astype(jnp.bfloat16),    # (C*P, 256): torch flatten order
        "fc1_b": tp["fc1_b"].reshape(1, 256),
        "fc2_w": tp["fc2_w"].T.astype(jnp.bfloat16),
        "fc2_b": tp["fc2_b"].reshape(1, 256),
        "fc3_w": fc3,                                   # (256, npad) bf16
        "fc3_b": b3,                                    # (1, npad) f32
    }


def lenet5_forward(params, x_nchw, out_dim):
    B, _, H, W = x_nchw.shape
    feats = lenet_features(x_nchw, params, H=H, W=W)     # (B, 64*(H//2)*(W//2)) bf16
    logits = lenet_classifier(feats, params)             # (B, npad) f32, lane-dense
    return logits[:, :out_dim]


def reference_forward(tp, x):
    """Pure-JAX f32 reference matching the PyTorch module."""
    dn = ("NCHW", "OIHW", "NCHW")
    y = jax.lax.conv_general_dilated(x, tp["conv1_w"], (1, 1), "SAME", dimension_numbers=dn)
    y = jnp.maximum(y + tp["conv1_b"][None, :, None, None], 0.0)
    y = jax.lax.conv_general_dilated(y, tp["conv2_w"], (1, 1), "SAME", dimension_numbers=dn)
    y = jnp.maximum(y + tp["conv2_b"][None, :, None, None], 0.0)
    y = jax.lax.reduce_window(y, -jnp.inf, jax.lax.max, (1, 1, 2, 2), (1, 1, 2, 2), "VALID")
    f = y.reshape(y.shape[0], -1)
    h = jnp.maximum(f @ tp["fc1_w"].T + tp["fc1_b"], 0.0)
    h = jnp.maximum(h @ tp["fc2_w"].T + tp["fc2_b"], 0.0)
    return h @ tp["fc3_w"].T + tp["fc3_b"]


if __name__ == "__main__":
    in_dim, out_dim, batch = 16, 10, 4
    block_b = 4          # images per feature-kernel grid step (use ~8-16 for larger batches)

    key = jax.random.PRNGKey(0)
    pkey, xkey = jax.random.split(key)

    torch_params = init_params_torch_layout(pkey, in_dim, out_dim)
    params = prepare_params(torch_params, in_dim, out_dim, block_b)
    x = jax.random.uniform(xkey, (batch, 1, in_dim, in_dim), dtype=jnp.float32)

    fwd = jax.jit(functools.partial(lenet5_forward, out_dim=out_dim))
    out = jax.block_until_ready(fwd(params, x))

    assert out.shape == (batch, out_dim), out.shape
    assert bool(jnp.all(jnp.isfinite(out)))

    ref = reference_forward(torch_params, x)
    max_err = float(jnp.max(jnp.abs(out - ref)))
    assert max_err < 5e-2, f"max abs error vs reference: {max_err}"

    print("KERNEL_OK")
</pallas_src>

<mosaic_0001>
module attributes {stable_mosaic.version = 11 : i64} {
  func.func @_classifier_kernel(%arg0: i32, %arg1: memref<4x4096xbf16, #tpu.memory_space<vmem>>, %arg2: memref<4096x256xbf16, #tpu.memory_space<vmem>>, %arg3: memref<1x256xf32, #tpu.memory_space<vmem>>, %arg4: memref<256x256xbf16, #tpu.memory_space<vmem>>, %arg5: memref<1x256xf32, #tpu.memory_space<vmem>>, %arg6: memref<256x128xbf16, #tpu.memory_space<vmem>>, %arg7: memref<1x128xf32, #tpu.memory_space<vmem>>, %arg8: memref<4x128xf32, #tpu.memory_space<vmem>>) attributes {dimension_semantics = [#tpu.dimension_semantics<parallel>], iteration_bounds = array<i64: 1>, scalar_prefetch = 0 : i64, scratch_operands = 0 : i64, tpu.core_type = #tpu.core_type<tc>, window_params = [{transform_indices = @transform_0, window_bounds = array<i64: 4, 4096>}, {pipeline_mode = #tpu.pipeline_mode<synchronous>, transform_indices = @transform_1, window_bounds = array<i64: 4096, 256>}, {pipeline_mode = #tpu.pipeline_mode<synchronous>, transform_indices = @transform_2, window_bounds = array<i64: 1, 256>}, {pipeline_mode = #tpu.pipeline_mode<synchronous>, transform_indices = @transform_3, window_bounds = array<i64: 256, 256>}, {pipeline_mode = #tpu.pipeline_mode<synchronous>, transform_indices = @transform_4, window_bounds = array<i64: 1, 256>}, {pipeline_mode = #tpu.pipeline_mode<synchronous>, transform_indices = @transform_5, window_bounds = array<i64: 256, 128>}, {pipeline_mode = #tpu.pipeline_mode<synchronous>, transform_indices = @transform_6, window_bounds = array<i64: 1, 128>}, {transform_indices = @transform_7, window_bounds = array<i64: 4, 128>}]} {
    %c0 = arith.constant 0 : index
    %c0_0 = arith.constant 0 : index
    %0 = vector.load %arg1[%c0, %c0_0] : memref<4x4096xbf16, #tpu.memory_space<vmem>>, vector<4x4096xbf16>
    %c0_1 = arith.constant 0 : index
    %c0_2 = arith.constant 0 : index
    %1 = vector.load %arg2[%c0_1, %c0_2] : memref<4096x256xbf16, #tpu.memory_space<vmem>>, vector<4096x256xbf16>
    %cst = arith.constant dense<0.000000e+00> : vector<4x256xf32>
    %2 = tpu.matmul %0, %1, %cst {dimension_numbers = #tpu.dot_dimension_numbers<[1], [0], [0], [1], [0, 0, 1, 1], [], []>} : vector<4x4096xbf16>, vector<4096x256xbf16>, vector<4x256xf32> -> vector<4x256xf32>
    %c0_3 = arith.constant 0 : index
    %c0_4 = arith.constant 0 : index
    %3 = vector.load %arg3[%c0_3, %c0_4] : memref<1x256xf32, #tpu.memory_space<vmem>>, vector<1x256xf32>
    %4 = vector.broadcast %3 : vector<1x256xf32> to vector<4x256xf32>
    %5 = arith.addf %2, %4 : vector<4x256xf32>
    %cst_5 = arith.constant 0.000000e+00 : f32
    %6 = vector.broadcast %cst_5 : f32 to vector<4x256xf32>
    %7 = arith.maximumf %5, %6 : vector<4x256xf32>
    %8 = arith.truncf %7 : vector<4x256xf32> to vector<4x256xbf16>
    %c0_6 = arith.constant 0 : index
    %c0_7 = arith.constant 0 : index
    %9 = vector.load %arg4[%c0_6, %c0_7] : memref<256x256xbf16, #tpu.memory_space<vmem>>, vector<256x256xbf16>
    %cst_8 = arith.constant dense<0.000000e+00> : vector<4x256xf32>
    %10 = tpu.matmul %8, %9, %cst_8 {dimension_numbers = #tpu.dot_dimension_numbers<[1], [0], [0], [1], [0, 0, 1, 1], [], []>} : vector<4x256xbf16>, vector<256x256xbf16>, vector<4x256xf32> -> vector<4x256xf32>
    %c0_9 = arith.constant 0 : index
    %c0_10 = arith.constant 0 : index
    %11 = vector.load %arg5[%c0_9, %c0_10] : memref<1x256xf32, #tpu.memory_space<vmem>>, vector<1x256xf32>
    %12 = vector.broadcast %11 : vector<1x256xf32> to vector<4x256xf32>
    %13 = arith.addf %10, %12 : vector<4x256xf32>
    %cst_11 = arith.constant 0.000000e+00 : f32
    %14 = vector.broadcast %cst_11 : f32 to vector<4x256xf32>
    %15 = arith.maximumf %13, %14 : vector<4x256xf32>
    %16 = arith.truncf %15 : vector<4x256xf32> to vector<4x256xbf16>
    %c0_12 = arith.constant 0 : index
    %c0_13 = arith.constant 0 : index
    %17 = vector.load %arg6[%c0_12, %c0_13] : memref<256x128xbf16, #tpu.memory_space<vmem>>, vector<256x128xbf16>
    %cst_14 = arith.constant dense<0.000000e+00> : vector<4x128xf32>
    %18 = tpu.matmul %16, %17, %cst_14 {dimension_numbers = #tpu.dot_dimension_numbers<[1], [0], [0], [1], [0, 0, 1, 1], [], []>} : vector<4x256xbf16>, vector<256x128xbf16>, vector<4x128xf32> -> vector<4x128xf32>
    %c0_15 = arith.constant 0 : index
    %c0_16 = arith.constant 0 : index
    %19 = vector.load %arg7[%c0_15, %c0_16] : memref<1x128xf32, #tpu.memory_space<vmem>>, vector<1x128xf32>
    %20 = vector.broadcast %19 : vector<1x128xf32> to vector<4x128xf32>
    %21 = arith.addf %18, %20 : vector<4x128xf32>
    %c0_17 = arith.constant 0 : index
    %c0_18 = arith.constant 0 : index
    %22 = vector.load %arg8[%c0_17, %c0_18] : memref<4x128xf32, #tpu.memory_space<vmem>>, vector<4x128xf32>
    tpu.vector_store %arg8[%c0_17, %c0_18], %21 {strides = array<i32>} : memref<4x128xf32, #tpu.memory_space<vmem>>, vector<4x128xf32>,
    return
  }
  func.func @transform_0(%arg0: i32) -> (i32, i32) {
    %c0_i32 = arith.constant 0 : i32
    %c0_i32_0 = arith.constant 0 : i32
    return %arg0, %c0_i32 : i32, i32
  }
  func.func @transform_1(%arg0: i32) -> (i32, i32) {
    %c0_i32 = arith.constant 0 : i32
    %c0_i32_0 = arith.constant 0 : i32
    %c0_i32_1 = arith.constant 0 : i32
    return %c0_i32, %c0_i32_0 : i32, i32
  }
  func.func @transform_2(%arg0: i32) -> (i32, i32) {
    %c0_i32 = arith.constant 0 : i32
    %c0_i32_0 = arith.constant 0 : i32
    %c0_i32_1 = arith.constant 0 : i32
    return %c0_i32, %c0_i32_0 : i32, i32
  }
  func.func @transform_3(%arg0: i32) -> (i32, i32) {
    %c0_i32 = arith.constant 0 : i32
    %c0_i32_0 = arith.constant 0 : i32
    %c0_i32_1 = arith.constant 0 : i32
    return %c0_i32, %c0_i32_0 : i32, i32
  }
  func.func @transform_4(%arg0: i32) -> (i32, i32) {
    %c0_i32 = arith.constant 0 : i32
    %c0_i32_0 = arith.constant 0 : i32
    %c0_i32_1 = arith.constant 0 : i32
    return %c0_i32, %c0_i32_0 : i32, i32
  }
  func.func @transform_5(%arg0: i32) -> (i32, i32) {
    %c0_i32 = arith.constant 0 : i32
    %c0_i32_0 = arith.constant 0 : i32
    %c0_i32_1 = arith.constant 0 : i32
    return %c0_i32, %c0_i32_0 : i32, i32
  }
  func.func @transform_6(%arg0: i32) -> (i32, i32) {
    %c0_i32 = arith.constant 0 : i32
    %c0_i32_0 = arith.constant 0 : i32
    %c0_i32_1 = arith.constant 0 : i32
    return %c0_i32, %c0_i32_0 : i32, i32
  }
  func.func @transform_7(%arg0: i32) -> (i32, i32) {
    %c0_i32 = arith.constant 0 : i32
    %c0_i32_0 = arith.constant 0 : i32
    return %arg0, %c0_i32 : i32, i32
  }
}

module attributes {stable_mosaic.version = 11 : i64} {
  func.func @_features_kernel(%arg0: i32, %arg1: memref<1x1x1024xf32, #tpu.memory_space<vmem>>, %arg2: memref<9x1024xf32, #tpu.memory_space<vmem>>, %arg3: memref<64x16xbf16, #tpu.memory_space<vmem>>, %arg4: memref<64x1xf32, #tpu.memory_space<vmem>>, %arg5: memref<64x576xbf16, #tpu.memory_space<vmem>>, %arg6: memref<64x1xf32, #tpu.memory_space<vmem>>, %arg7: memref<256x64xbf16, #tpu.memory_space<vmem>>, %arg8: memref<1x4x64x64xbf16, #tpu.memory_space<vmem>>) attributes {dimension_semantics = [#tpu.dimension_semantics<parallel>], iteration_bounds = array<i64: 1>, scalar_prefetch = 0 : i64, scratch_operands = 0 : i64, tpu.core_type = #tpu.core_type<tc>, window_params = [{transform_indices = @transform_0, window_bounds = array<i64: 1, 1, 1024>}, {pipeline_mode = #tpu.pipeline_mode<synchronous>, transform_indices = @transform_1, window_bounds = array<i64: 9, 1024>}, {pipeline_mode = #tpu.pipeline_mode<synchronous>, transform_indices = @transform_2, window_bounds = array<i64: 64, 16>}, {pipeline_mode = #tpu.pipeline_mode<synchronous>, transform_indices = @transform_3, window_bounds = array<i64: 64, 1>}, {pipeline_mode = #tpu.pipeline_mode<synchronous>, transform_indices = @transform_4, window_bounds = array<i64: 64, 576>}, {pipeline_mode = #tpu.pipeline_mode<synchronous>, transform_indices = @transform_5, window_bounds = array<i64: 64, 1>}, {pipeline_mode = #tpu.pipeline_mode<synchronous>, transform_indices = @transform_6, window_bounds = array<i64: 256, 64>}, {transform_indices = @transform_7, window_bounds = array<i64: 1, 4, 64, 64>}]} {
    %c0 = arith.constant 0 : index
    %c0_0 = arith.constant 0 : index
    %c0_1 = arith.constant 0 : index
    %0 = vector.load %arg1[%c0, %c0_0, %c0_1] : memref<1x1x1024xf32, #tpu.memory_space<vmem>>, vector<1x1x1024xf32>
    %1 = vector.shape_cast %0 : vector<1x1x1024xf32> to vector<1x1024xf32>
    %c0_2 = arith.constant 0 : index
    %c0_3 = arith.constant 0 : index
    %2 = vector.load %arg2[%c0_2, %c0_3] : memref<9x1024xf32, #tpu.memory_space<vmem>>, vector<9x1024xf32>
    %c17_i32 = arith.constant 17 : i32
    %3 = tpu.dynamic_rotate %1 by %c17_i32 dim 1 : vector<1x1024xf32>, i32 -> vector<1x1024xf32>
    %4 = vector.extract_strided_slice %2 {offsets = [0, 0], sizes = [1, 1024], strides = [1, 1]} : vector<9x1024xf32> to vector<1x1024xf32>
    %5 = arith.mulf %3, %4 : vector<1x1024xf32>
    %c16_i32 = arith.constant 16 : i32
    %6 = tpu.dynamic_rotate %1 by %c16_i32 dim 1 : vector<1x1024xf32>, i32 -> vector<1x1024xf32>
    %7 = vector.extract_strided_slice %2 {offsets = [1, 0], sizes = [1, 1024], strides = [1, 1]} : vector<9x1024xf32> to vector<1x1024xf32>
    %8 = arith.mulf %6, %7 : vector<1x1024xf32>
    %c15_i32 = arith.constant 15 : i32
    %9 = tpu.dynamic_rotate %1 by %c15_i32 dim 1 : vector<1x1024xf32>, i32 -> vector<1x1024xf32>
    %10 = vector.extract_strided_slice %2 {offsets = [2, 0], sizes = [1, 1024], strides = [1, 1]} : vector<9x1024xf32> to vector<1x1024xf32>
    %11 = arith.mulf %9, %10 : vector<1x1024xf32>
    %c1_i32 = arith.constant 1 : i32
    %12 = tpu.dynamic_rotate %1 by %c1_i32 dim 1 : vector<1x1024xf32>, i32 -> vector<1x1024xf32>
    %13 = vector.extract_strided_slice %2 {offsets = [3, 0], sizes = [1, 1024], strides = [1, 1]} : vector<9x1024xf32> to vector<1x1024xf32>
    %14 = arith.mulf %12, %13 : vector<1x1024xf32>
    %15 = vector.extract_strided_slice %2 {offsets = [4, 0], sizes = [1, 1024], strides = [1, 1]} : vector<9x1024xf32> to vector<1x1024xf32>
    %16 = arith.mulf %1, %15 : vector<1x1024xf32>
    %c1023_i32 = arith.constant 1023 : i32
    %17 = tpu.dynamic_rotate %1 by %c1023_i32 dim 1 : vector<1x1024xf32>, i32 -> vector<1x1024xf32>
    %18 = vector.extract_strided_slice %2 {offsets = [5, 0], sizes = [1, 1024], strides = [1, 1]} : vector<9x1024xf32> to vector<1x1024xf32>
    %19 = arith.mulf %17, %18 : vector<1x1024xf32>
    %c1009_i32 = arith.constant 1009 : i32
    %20 = tpu.dynamic_rotate %1 by %c1009_i32 dim 1 : vector<1x1024xf32>, i32 -> vector<1x1024xf32>
    %21 = vector.extract_strided_slice %2 {offsets = [6, 0], sizes = [1, 1024], strides = [1, 1]} : vector<9x1024xf32> to vector<1x1024xf32>
    %22 = arith.mulf %20, %21 : vector<1x1024xf32>
    %c1008_i32 = arith.constant 1008 : i32
    %23 = tpu.dynamic_rotate %1 by %c1008_i32 dim 1 : vector<1x1024xf32>, i32 -> vector<1x1024xf32>
    %24 = vector.extract_strided_slice %2 {offsets = [7, 0], sizes = [1, 1024], strides = [1, 1]} : vector<9x1024xf32> to vector<1x1024xf32>
    %25 = arith.mulf %23, %24 : vector<1x1024xf32>
    %c1007_i32 = arith.constant 1007 : i32
    %26 = tpu.dynamic_rotate %1 by %c1007_i32 dim 1 : vector<1x1024xf32>, i32 -> vector<1x1024xf32>
    %27 = vector.extract_strided_slice %2 {offsets = [8, 0], sizes = [1, 1024], strides = [1, 1]} : vector<9x1024xf32> to vector<1x1024xf32>
    %28 = arith.mulf %26, %27 : vector<1x1024xf32>
    %cst = arith.constant 0.000000e+00 : f32
    %29 = vector.broadcast %cst : f32 to vector<7x1024xf32>
    %30 = tpu.concatenate %5, %8, %11, %14, %16, %19, %22, %25, %28, %29 in 0 : vector<1x1024xf32>, vector<1x1024xf32>, vector<1x1024xf32>, vector<1x1024xf32>, vector<1x1024xf32>, vector<1x1024xf32>, vector<1x1024xf32>, vector<1x1024xf32>, vector<1x1024xf32>, vector<7x1024xf32> -> vector<16x1024xf32>
    %31 = arith.truncf %30 : vector<16x1024xf32> to vector<16x1024xbf16>
    %c0_4 = arith.constant 0 : index
    %c0_5 = arith.constant 0 : index
    %32 = vector.load %arg3[%c0_4, %c0_5] : memref<64x16xbf16, #tpu.memory_space<vmem>>, vector<64x16xbf16>
    %cst_6 = arith.constant dense<0.000000e+00> : vector<64x1024xf32>
    %33 = tpu.matmul %32, %31, %cst_6 {dimension_numbers = #tpu.dot_dimension_numbers<[1], [0], [0], [1], [0, 0, 1, 1], [], []>} : vector<64x16xbf16>, vector<16x1024xbf16>, vector<64x1024xf32> -> vector<64x1024xf32>
    %c0_7 = arith.constant 0 : index
    %c0_8 = arith.constant 0 : index
    %34 = vector.load %arg4[%c0_7, %c0_8] : memref<64x1xf32, #tpu.memory_space<vmem>>, vector<64x1xf32>
    %35 = vector.broadcast %34 : vector<64x1xf32> to vector<64x1024xf32>
    %36 = arith.addf %33, %35 : vector<64x1024xf32>
    %cst_9 = arith.constant 0.000000e+00 : f32
    %37 = vector.broadcast %cst_9 : f32 to vector<64x1024xf32>
    %38 = arith.maximumf %36, %37 : vector<64x1024xf32>
    %c17_i32_10 = arith.constant 17 : i32
    %39 = tpu.dynamic_rotate %38 by %c17_i32_10 dim 1 : vector<64x1024xf32>, i32 -> vector<64x1024xf32>
    %40 = vector.extract_strided_slice %2 {offsets = [0, 0], sizes = [1, 1024], strides = [1, 1]} : vector<9x1024xf32> to vector<1x1024xf32>
    %41 = vector.broadcast %40 : vector<1x1024xf32> to vector<64x1024xf32>
    %42 = arith.mulf %39, %41 : vector<64x1024xf32>
    %43 = arith.truncf %42 : vector<64x1024xf32> to vector<64x1024xbf16>
    %c16_i32_11 = arith.constant 16 : i32
    %44 = tpu.dynamic_rotate %38 by %c16_i32_11 dim 1 : vector<64x1024xf32>, i32 -> vector<64x1024xf32>
    %45 = vector.extract_strided_slice %2 {offsets = [1, 0], sizes = [1, 1024], strides = [1, 1]} : vector<9x1024xf32> to vector<1x1024xf32>
    %46 = vector.broadcast %45 : vector<1x1024xf32> to vector<64x1024xf32>
    %47 = arith.mulf %44, %46 : vector<64x1024xf32>
    %48 = arith.truncf %47 : vector<64x1024xf32> to vector<64x1024xbf16>
    %c15_i32_12 = arith.constant 15 : i32
    %49 = tpu.dynamic_rotate %38 by %c15_i32_12 dim 1 : vector<64x1024xf32>, i32 -> vector<64x1024xf32>
    %50 = vector.extract_strided_slice %2 {offsets = [2, 0], sizes = [1, 1024], strides = [1, 1]} : vector<9x1024xf32> to vector<1x1024xf32>
    %51 = vector.broadcast %50 : vector<1x1024xf32> to vector<64x1024xf32>
    %52 = arith.mulf %49, %51 : vector<64x1024xf32>
    %53 = arith.truncf %52 : vector<64x1024xf32> to vector<64x1024xbf16>
    %c1_i32_13 = arith.constant 1 : i32
    %54 = tpu.dynamic_rotate %38 by %c1_i32_13 dim 1 : vector<64x1024xf32>, i32 -> vector<64x1024xf32>
    %55 = vector.extract_strided_slice %2 {offsets = [3, 0], sizes = [1, 1024], strides = [1, 1]} : vector<9x1024xf32> to vector<1x1024xf32>
    %56 = vector.broadcast %55 : vector<1x1024xf32> to vector<64x1024xf32>
    %57 = arith.mulf %54, %56 : vector<64x1024xf32>
    %58 = arith.truncf %57 : vector<64x1024xf32> to vector<64x1024xbf16>
    %59 = vector.extract_strided_slice %2 {offsets = [4, 0], sizes = [1, 1024], strides = [1, 1]} : vector<9x1024xf32> to vector<1x1024xf32>
    %60 = vector.broadcast %59 : vector<1x1024xf32> to vector<64x1024xf32>
    %61 = arith.mulf %38, %60 : vector<64x1024xf32>
    %62 = arith.truncf %61 : vector<64x1024xf32> to vector<64x1024xbf16>
    %c1023_i32_14 = arith.constant 1023 : i32
    %63 = tpu.dynamic_rotate %38 by %c1023_i32_14 dim 1 : vector<64x1024xf32>, i32 -> vector<64x1024xf32>
    %64 = vector.extract_strided_slice %2 {offsets = [5, 0], sizes = [1, 1024], strides = [1, 1]} : vector<9x1024xf32> to vector<1x1024xf32>
    %65 = vector.broadcast %64 : vector<1x1024xf32> to vector<64x1024xf32>
    %66 = arith.mulf %63, %65 : vector<64x1024xf32>
    %67 = arith.truncf %66 : vector<64x1024xf32> to vector<64x1024xbf16>
    %c1009_i32_15 = arith.constant 1009 : i32
    %68 = tpu.dynamic_rotate %38 by %c1009_i32_15 dim 1 : vector<64x1024xf32>, i32 -> vector<64x1024xf32>
    %69 = vector.extract_strided_slice %2 {offsets = [6, 0], sizes = [1, 1024], strides = [1, 1]} : vector<9x1024xf32> to vector<1x1024xf32>
    %70 = vector.broadcast %69 : vector<1x1024xf32> to vector<64x1024xf32>
    %71 = arith.mulf %68, %70 : vector<64x1024xf32>
    %72 = arith.truncf %71 : vector<64x1024xf32> to vector<64x1024xbf16>
    %c1008_i32_16 = arith.constant 1008 : i32
    %73 = tpu.dynamic_rotate %38 by %c1008_i32_16 dim 1 : vector<64x1024xf32>, i32 -> vector<64x1024xf32>
    %74 = vector.extract_strided_slice %2 {offsets = [7, 0], sizes = [1, 1024], strides = [1, 1]} : vector<9x1024xf32> to vector<1x1024xf32>
    %75 = vector.broadcast %74 : vector<1x1024xf32> to vector<64x1024xf32>
    %76 = arith.mulf %73, %75 : vector<64x1024xf32>
    %77 = arith.truncf %76 : vector<64x1024xf32> to vector<64x1024xbf16>
    %c1007_i32_17 = arith.constant 1007 : i32
    %78 = tpu.dynamic_rotate %38 by %c1007_i32_17 dim 1 : vector<64x1024xf32>, i32 -> vector<64x1024xf32>
    %79 = vector.extract_strided_slice %2 {offsets = [8, 0], sizes = [1, 1024], strides = [1, 1]} : vector<9x1024xf32> to vector<1x1024xf32>
    %80 = vector.broadcast %79 : vector<1x1024xf32> to vector<64x1024xf32>
    %81 = arith.mulf %78, %80 : vector<64x1024xf32>
    %82 = arith.truncf %81 : vector<64x1024xf32> to vector<64x1024xbf16>
    %83 = tpu.concatenate %43, %48, %53, %58, %62, %67, %72, %77, %82 in 0 : vector<64x1024xbf16>, vector<64x1024xbf16>, vector<64x1024xbf16>, vector<64x1024xbf16>, vector<64x1024xbf16>, vector<64x1024xbf16>, vector<64x1024xbf16>, vector<64x1024xbf16>, vector<64x1024xbf16> -> vector<576x1024xbf16>
    %c0_18 = arith.constant 0 : index
    %c0_19 = arith.constant 0 : index
    %84 = vector.load %arg5[%c0_18, %c0_19] : memref<64x576xbf16, #tpu.memory_space<vmem>>, vector<64x576xbf16>
    %cst_20 = arith.constant dense<0.000000e+00> : vector<64x1024xf32>
    %85 = tpu.matmul %84, %83, %cst_20 {dimension_numbers = #tpu.dot_dimension_numbers<[1], [0], [0], [1], [0, 0, 1, 1], [], []>} : vector<64x576xbf16>, vector<576x1024xbf16>, vector<64x1024xf32> -> vector<64x1024xf32>
    %c0_21 = arith.constant 0 : index
    %c0_22 = arith.constant 0 : index
    %86 = vector.load %arg6[%c0_21, %c0_22] : memref<64x1xf32, #tpu.memory_space<vmem>>, vector<64x1xf32>
    %87 = vector.broadcast %86 : vector<64x1xf32> to vector<64x1024xf32>
    %88 = arith.addf %85, %87 : vector<64x1024xf32>
    %cst_23 = arith.constant 0.000000e+00 : f32
    %89 = vector.broadcast %cst_23 : f32 to vector<64x1024xf32>
    %90 = arith.maximumf %88, %89 : vector<64x1024xf32>
    %c1023_i32_24 = arith.constant 1023 : i32
    %91 = tpu.dynamic_rotate %90 by %c1023_i32_24 dim 1 : vector<64x1024xf32>, i32 -> vector<64x1024xf32>
    %92 = arith.maximumf %90, %91 : vector<64x1024xf32>
    %c1008_i32_25 = arith.constant 1008 : i32
    %93 = tpu.dynamic_rotate %92 by %c1008_i32_25 dim 1 : vector<64x1024xf32>, i32 -> vector<64x1024xf32>
    %94 = arith.maximumf %92, %93 : vector<64x1024xf32>
    %95 = arith.truncf %94 : vector<64x1024xf32> to vector<64x1024xbf16>
    %c0_26 = arith.constant 0 : index
    %c0_27 = arith.constant 0 : index
    %96 = vector.load %arg7[%c0_26, %c0_27] : memref<256x64xbf16, #tpu.memory_space<vmem>>, vector<256x64xbf16>
    %97 = vector.extract_strided_slice %95 {offsets = [0, 0], sizes = [64, 256], strides = [1, 1]} : vector<64x1024xbf16> to vector<64x256xbf16>
    %cst_28 = arith.constant dense<0.000000e+00> : vector<64x64xf32>
    %98 = tpu.matmul %97, %96, %cst_28 {dimension_numbers = #tpu.dot_dimension_numbers<[1], [0], [0], [1], [0, 0, 1, 1], [], []>} : vector<64x256xbf16>, vector<256x64xbf16>, vector<64x64xf32> -> vector<64x64xf32>
    %99 = arith.truncf %98 : vector<64x64xf32> to vector<64x64xbf16>
    %c0_29 = arith.constant 0 : index
    %c0_30 = arith.constant 0 : index
    %c0_31 = arith.constant 0 : index
    %c0_32 = arith.constant 0 : index
    %100 = vector.load %arg8[%c0_29, %c0_30, %c0_31, %c0_32] : memref<1x4x64x64xbf16, #tpu.memory_space<vmem>>, vector<1x1x64x64xbf16>
    %101 = vector.shape_cast %100 : vector<1x1x64x64xbf16> to vector<64x64xbf16>
    %102 = vector.shape_cast %99 : vector<64x64xbf16> to vector<1x1x64x64xbf16>
    tpu.vector_store %arg8[%c0_29, %c0_30, %c0_31, %c0_32], %102 {strides = array<i32>} : memref<1x4x64x64xbf16, #tpu.memory_space<vmem>>, vector<1x1x64x64xbf16>,
    %103 = vector.extract_strided_slice %95 {offsets = [0, 256], sizes = [64, 256], strides = [1, 1]} : vector<64x1024xbf16> to vector<64x256xbf16>
    %cst_33 = arith.constant dense<0.000000e+00> : vector<64x64xf32>
    %104 = tpu.matmul %103, %96, %cst_33 {dimension_numbers = #tpu.dot_dimension_numbers<[1], [0], [0], [1], [0, 0, 1, 1], [], []>} : vector<64x256xbf16>, vector<256x64xbf16>, vector<64x64xf32> -> vector<64x64xf32>
    %105 = arith.truncf %104 : vector<64x64xf32> to vector<64x64xbf16>
    %c0_34 = arith.constant 0 : index
    %c1 = arith.constant 1 : index
    %c0_35 = arith.constant 0 : index
    %c0_36 = arith.constant 0 : index
    %106 = vector.load %arg8[%c0_34, %c1, %c0_35, %c0_36] : memref<1x4x64x64xbf16, #tpu.memory_space<vmem>>, vector<1x1x64x64xbf16>
    %107 = vector.shape_cast %106 : vector<1x1x64x64xbf16> to vector<64x64xbf16>
    %108 = vector.shape_cast %105 : vector<64x64xbf16> to vector<1x1x64x64xbf16>
    tpu.vector_store %arg8[%c0_34, %c1, %c0_35, %c0_36], %108 {strides = array<i32>} : memref<1x4x64x64xbf16, #tpu.memory_space<vmem>>, vector<1x1x64x64xbf16>,
    %109 = vector.extract_strided_slice %95 {offsets = [0, 512], sizes = [64, 256], strides = [1, 1]} : vector<64x1024xbf16> to vector<64x256xbf16>
    %cst_37 = arith.constant dense<0.000000e+00> : vector<64x64xf32>
    %110 = tpu.matmul %109, %96, %cst_37 {dimension_numbers = #tpu.dot_dimension_numbers<[1], [0], [0], [1], [0, 0, 1, 1], [], []>} : vector<64x256xbf16>, vector<256x64xbf16>, vector<64x64xf32> -> vector<64x64xf32>
    %111 = arith.truncf %110 : vector<64x64xf32> to vector<64x64xbf16>
    %c0_38 = arith.constant 0 : index
    %c2 = arith.constant 2 : index
    %c0_39 = arith.constant 0 : index
    %c0_40 = arith.constant 0 : index
    %112 = vector.load %arg8[%c0_38, %c2, %c0_39, %c0_40] : memref<1x4x64x64xbf16, #tpu.memory_space<vmem>>, vector<1x1x64x64xbf16>
    %113 = vector.shape_cast %112 : vector<1x1x64x64xbf16> to vector<64x64xbf16>
    %114 = vector.shape_cast %111 : vector<64x64xbf16> to vector<1x1x64x64xbf16>
    tpu.vector_store %arg8[%c0_38, %c2, %c0_39, %c0_40], %114 {strides = array<i32>} : memref<1x4x64x64xbf16, #tpu.memory_space<vmem>>, vector<1x1x64x64xbf16>,
    %115 = vector.extract_strided_slice %95 {offsets = [0, 768], sizes = [64, 256], strides = [1, 1]} : vector<64x1024xbf16> to vector<64x256xbf16>
    %cst_41 = arith.constant dense<0.000000e+00> : vector<64x64xf32>
    %116 = tpu.matmul %115, %96, %cst_41 {dimension_numbers = #tpu.dot_dimension_numbers<[1], [0], [0], [1], [0, 0, 1, 1], [], []>} : vector<64x256xbf16>, vector<256x64xbf16>, vector<64x64xf32> -> vector<64x64xf32>
    %117 = arith.truncf %116 : vector<64x64xf32> to vector<64x64xbf16>
    %c0_42 = arith.constant 0 : index
    %c3 = arith.constant 3 : index
    %c0_43 = arith.constant 0 : index
    %c0_44 = arith.constant 0 : index
    %118 = vector.load %arg8[%c0_42, %c3, %c0_43, %c0_44] : memref<1x4x64x64xbf16, #tpu.memory_space<vmem>>, vector<1x1x64x64xbf16>
    %119 = vector.shape_cast %118 : vector<1x1x64x64xbf16> to vector<64x64xbf16>
    %120 = vector.shape_cast %117 : vector<64x64xbf16> to vector<1x1x64x64xbf16>
    tpu.vector_store %arg8[%c0_42, %c3, %c0_43, %c0_44], %120 {strides = array<i32>} : memref<1x4x64x64xbf16, #tpu.memory_space<vmem>>, vector<1x1x64x64xbf16>,
    return
  }
  func.func @transform_0(%arg0: i32) -> (i32, i32, i32) {
    %c0_i32 = arith.constant 0 : i32
    %c0_i32_0 = arith.constant 0 : i32
    %c0_i32_1 = arith.constant 0 : i32
    return %arg0, %c0_i32, %c0_i32_0 : i32, i32, i32
  }
  func.func @transform_1(%arg0: i32) -> (i32, i32) {
    %c0_i32 = arith.constant 0 : i32
    %c0_i32_0 = arith.constant 0 : i32
    %c0_i32_1 = arith.constant 0 : i32
    return %c0_i32, %c0_i32_0 : i32, i32
  }
  func.func @transform_2(%arg0: i32) -> (i32, i32) {
    %c0_i32 = arith.constant 0 : i32
    %c0_i32_0 = arith.constant 0 : i32
    %c0_i32_1 = arith.constant 0 : i32
    return %c0_i32, %c0_i32_0 : i32, i32
  }
  func.func @transform_3(%arg0: i32) -> (i32, i32) {
    %c0_i32 = arith.constant 0 : i32
    %c0_i32_0 = arith.constant 0 : i32
    %c0_i32_1 = arith.constant 0 : i32
    return %c0_i32, %c0_i32_0 : i32, i32
  }
  func.func @transform_4(%arg0: i32) -> (i32, i32) {
    %c0_i32 = arith.constant 0 : i32
    %c0_i32_0 = arith.constant 0 : i32
    %c0_i32_1 = arith.constant 0 : i32
    return %c0_i32, %c0_i32_0 : i32, i32
  }
  func.func @transform_5(%arg0: i32) -> (i32, i32) {
    %c0_i32 = arith.constant 0 : i32
    %c0_i32_0 = arith.constant 0 : i32
    %c0_i32_1 = arith.constant 0 : i32
    return %c0_i32, %c0_i32_0 : i32, i32
  }
  func.func @transform_6(%arg0: i32) -> (i32, i32) {
    %c0_i32 = arith.constant 0 : i32
    %c0_i32_0 = arith.constant 0 : i32
    %c0_i32_1 = arith.constant 0 : i32
    return %c0_i32, %c0_i32_0 : i32, i32
  }
  func.func @transform_7(%arg0: i32) -> (i32, i32, i32, i32) {
    %c0_i32 = arith.constant 0 : i32
    %c0_i32_0 = arith.constant 0 : i32
    %c0_i32_1 = arith.constant 0 : i32
    %c0_i32_2 = arith.constant 0 : i32
    return %arg0, %c0_i32, %c0_i32_0, %c0_i32_1 : i32, i32, i32, i32
  }
}

</mosaic_0001>

<llo_original>
// kernel: lenet5_forward.2
$region0: #{lenet5_forward.2}
  #allocation0 [shape = 'u32[]', space=smem, size = 0x4, offset = 0x4, fixed_abs, tag = 'smem constant byte address 0x4 - core index']
  #allocation1 [shape = 'u32[144,128]{1,0:T(1,128)}', space=vmem, size = 0x12000, scoped, tag = 'internal scratch']
  %s0 = inlined_call_operand.vmem [shape: f32[1,1,1024], index: 0, kind: input, shape index: {}]
  %s1 = inlined_call_operand.hbm [shape: f32[9,1024], index: 1, kind: input, shape index: {}]
  %s2 = inlined_call_operand.vmem [shape: bf16[64,16], index: 2, kind: input, shape index: {}]
  %s3 = inlined_call_operand.vmem [shape: f32[64,1], index: 3, kind: input, shape index: {}]
  %s4 = inlined_call_operand.hbm [shape: bf16[64,576], index: 4, kind: input, shape index: {}]
  %s5 = inlined_call_operand.vmem [shape: f32[64,1], index: 5, kind: input, shape index: {}]
  %s6 = inlined_call_operand.vmem [shape: bf16[256,64], index: 6, kind: input, shape index: {}]
  %s7 = inlined_call_operand.vmem [shape: bf16[1,4,64,64], index: 7, kind: output, shape index: {}]
  %s8 = sld [smem:[#allocation0]]
  $region46: #{lenet5_forward.2} parent=0
    _
  %s10 = ssub.s32 1, %s8
  %s11 = scalar_select 0, %s10, %s8
  $region1: #{lenet5_forward.2} parent=0
    #allocation2 [shape = 'u8[65536]{0}', space=vmem, size = 0x10000, scoped, tag = 'input window, operand 1, single buffered']
    #allocation3 [shape = 's32[1]{0}', space=sflag, size = 0x4, scoped, tag = 'scoped memory for lenet5_forward.2']
    #allocation4 [shape = 'u8[81920]{0}', space=vmem, size = 0x14000, scoped, tag = 'input window, operand 4, single buffered']
    #allocation5 [shape = 's32[1]{0}', space=sflag, size = 0x4, scoped, tag = 'scoped memory for lenet5_forward.2']
    %12 = vsyncpa [#allocation3], 0
    %13 = vsyncpa [#allocation5], 0
    // Predicated region
    $region2: #{lenet5_forward.2} parent=1 // pred_check
      _
    $region3: #{lenet5_forward.2} parent=1 // pred_check_branch
      %15 = sbr.rel (0) target = $region5
    $region4: #{lenet5_forward.2} parent=1 // pred_region
      _
    $region5: #{lenet5_forward.2} parent=1 // pred_fallthru
      _
    // Predicated region
    $region6: #{lenet5_forward.2} parent=1 // pred_check
      _
    $region7: #{lenet5_forward.2} parent=1 // pred_check_branch
      %17 = sbr.rel (0) target = $region9
    $region8: #{lenet5_forward.2} parent=1 // pred_region
      %s19 = ssub.s32 2048, 2048
      %20 = vsyncadd [#allocation3], %s19
      %s21 = sshll.u32 [#allocation2], 4
      %s22 = int_to_ptr.vmem [resolvable:$true] %s21
      %27 = dma.hbm_to_vmem [thread:$0]  %s1, 2048, %s22, [#allocation3], 1024, 1024, 64
    $region9: #{lenet5_forward.2} parent=1 // pred_fallthru
      _
    // Predicated region
    $region10: #{lenet5_forward.2} parent=1 // pred_check
      _
    $region11: #{lenet5_forward.2} parent=1 // pred_check_branch
      %29 = sbr.rel (0) target = $region13
    $region12: #{lenet5_forward.2} parent=1 // pred_region
      _
    $region13: #{lenet5_forward.2} parent=1 // pred_fallthru
      _
    // Predicated region
    $region14: #{lenet5_forward.2} parent=1 // pred_check
      _
    $region15: #{lenet5_forward.2} parent=1 // pred_check_branch
      %31 = sbr.rel (0) target = $region17
    $region16: #{lenet5_forward.2} parent=1 // pred_region
      _
    $region17: #{lenet5_forward.2} parent=1 // pred_fallthru
      _
    // Predicated region
    $region18: #{lenet5_forward.2} parent=1 // pred_check
      _
    $region19: #{lenet5_forward.2} parent=1 // pred_check_branch
      %33 = sbr.rel (0) target = $region21
    $region20: #{lenet5_forward.2} parent=1 // pred_region
      %s35 = ssub.s32 2560, 2560
      %36 = vsyncadd [#allocation5], %s35
      %s37 = sshll.u32 [#allocation4], 4
      %s38 = int_to_ptr.vmem [resolvable:$true] %s37
      %43 = dma.hbm_to_vmem [thread:$0]  %s4, 2560, %s38, [#allocation5], 320, 320, 20
    $region21: #{lenet5_forward.2} parent=1 // pred_fallthru
      _
    // Predicated region
    $region22: #{lenet5_forward.2} parent=1 // pred_check
      _
    $region23: #{lenet5_forward.2} parent=1 // pred_check_branch
      %45 = sbr.rel (0) target = $region25
    $region24: #{lenet5_forward.2} parent=1 // pred_region
      _
    $region25: #{lenet5_forward.2} parent=1 // pred_fallthru
      _
    // Predicated region
    $region26: #{lenet5_forward.2} parent=1 // pred_check
      _
    $region27: #{lenet5_forward.2} parent=1 // pred_check_branch
      %47 = sbr.rel (0) target = $region29
    $region28: #{lenet5_forward.2} parent=1 // pred_region
      _
    $region29: #{lenet5_forward.2} parent=1 // pred_fallthru
      _
    // Predicated region
    $region30: #{lenet5_forward.2} parent=1 // pred_check
      _
    $region31: #{lenet5_forward.2} parent=1 // pred_check_branch
      %49 = sbr.rel (0) target = $region33
    $region32: #{lenet5_forward.2} parent=1 // pred_region
      %50 = dma.done [#allocation3], 2048
    $region33: #{lenet5_forward.2} parent=1 // pred_fallthru
      _
    // Predicated region
    $region34: #{lenet5_forward.2} parent=1 // pred_check
      _
    $region35: #{lenet5_forward.2} parent=1 // pred_check_branch
      %52 = sbr.rel (0) target = $region37
    $region36: #{lenet5_forward.2} parent=1 // pred_region
      %53 = dma.done [#allocation5], 2560
    $region37: #{lenet5_forward.2} parent=1 // pred_fallthru
      _
    %v55 = vld [vmem:[%s0] sm:$0xff]
    %v56 = vld [vmem:[#allocation2] sm:$0xff]
    %v57 = vld [vmem:[#allocation2 + $0x8] sm:$0xff]
    %v58 = vld [vmem:[#allocation2 + $0x10] sm:$0xff]
    %v59 = vld [vmem:[#allocation2 + $0x18] sm:$0xff]
    %v60 = vld [vmem:[#allocation2 + $0x20] sm:$0xff]
    %v61 = vld [vmem:[#allocation2 + $0x28] sm:$0xff]
    %v62 = vld [vmem:[#allocation2 + $0x30] sm:$0xff]
    %v63 = vld [vmem:[#allocation2 + $0x38] sm:$0xff]
    %v64 = vld [vmem:[#allocation2 + $0x40] sm:$0x1]
    %v65 = vld [vmem:[#allocation2 + $0x48] sm:$0x1]
    %v66 = vld [vmem:[#allocation2 + $0x50] sm:$0x1]
    %v67 = vld [vmem:[#allocation2 + $0x58] sm:$0x1]
    %v68 = vld [vmem:[#allocation2 + $0x60] sm:$0x1]
    %v69 = vld [vmem:[#allocation2 + $0x68] sm:$0x1]
    %v70 = vld [vmem:[#allocation2 + $0x70] sm:$0x1]
    %v71 = vld [vmem:[#allocation2 + $0x78] sm:$0x1]
    %v73 = vlaneseq
    %v74 = vshrl.u32 %v73, 7
    %v75 = vsub.s32 0, %v74
    %v76 = vrot.slane %v55, %v75
    %v77 = vlaneseq
    %v78 = vshrl.u32 %v77, 7
    %v79 = vsub.s32 1, %v78
    %v80 = vrot.slane %v55, %v79
    %v81 = vlaneseq
    %v82 = vshrl.u32 %v81, 7
    %v83 = vsub.s32 2, %v82
    %v84 = vrot.slane %v55, %v83
    %v85 = vlaneseq
    %v86 = vshrl.u32 %v85, 7
    %v87 = vsub.s32 3, %v86
    %v88 = vrot.slane %v55, %v87
    %v89 = vlaneseq
    %v90 = vshrl.u32 %v89, 7
    %v91 = vsub.s32 4, %v90
    %v92 = vrot.slane %v55, %v91
    %v93 = vlaneseq
    %v94 = vshrl.u32 %v93, 7
    %v95 = vsub.s32 5, %v94
    %v96 = vrot.slane %v55, %v95
    %v97 = vlaneseq
    %v98 = vshrl.u32 %v97, 7
    %v99 = vsub.s32 6, %v98
    %v100 = vrot.slane %v55, %v99
    %v101 = vlaneseq
    %v102 = vshrl.u32 %v101, 7
    %v103 = vsub.s32 7, %v102
    %v104 = vrot.slane %v55, %v103
    %113 = vrot.lane.b32.xlu0 %v76, 17
    %v114 = vpop.permute.xlu0 %113
    %115 = vrot.lane.b32.xlu0 %v80, 17
    %v116 = vpop.permute.xlu0 %115
    %117 = vrot.lane.b32.xlu0 %v84, 17
    %v118 = vpop.permute.xlu0 %117
    %119 = vrot.lane.b32.xlu0 %v88, 17
    %v120 = vpop.permute.xlu0 %119
    %121 = vrot.lane.b32.xlu0 %v92, 17
    %v122 = vpop.permute.xlu0 %121
    %123 = vrot.lane.b32.xlu0 %v96, 17
    %v124 = vpop.permute.xlu0 %123
    %125 = vrot.lane.b32.xlu0 %v100, 17
    %v126 = vpop.permute.xlu0 %125
    %127 = vrot.lane.b32.xlu0 %v104, 17
    %v128 = vpop.permute.xlu0 %127
    %v129 = vlaneseq
    %v130 = vand.u32 %v129, 127
    %vm131 = vcmp.lt.s32.totalorder %v130, 17
    %v132 = vsel %vm131, %v126, %v128
    %v133 = vsel %vm131, %v124, %v126
    %v134 = vsel %vm131, %v122, %v124
    %v135 = vsel %vm131, %v120, %v122
    %v136 = vsel %vm131, %v118, %v120
    %v137 = vsel %vm131, %v116, %v118
    %v138 = vsel %vm131, %v114, %v116
    %v139 = vsel %vm131, %v128, %v114
    %v140 = vmul.f32 %v139, %v56
    %v141 = vmul.f32 %v138, %v57
    %v142 = vmul.f32 %v137, %v58
    %v143 = vmul.f32 %v136, %v59
    %v144 = vmul.f32 %v135, %v60
    %v145 = vmul.f32 %v134, %v61
    %v146 = vmul.f32 %v133, %v62
    %v147 = vmul.f32 %v132, %v63
    %148 = vrot.lane.b32.xlu0 %v76, 16
    %v149 = vpop.permute.xlu0 %148
    %150 = vrot.lane.b32.xlu0 %v80, 16
    %v151 = vpop.permute.xlu0 %150
    %152 = vrot.lane.b32.xlu0 %v84, 16
    %v153 = vpop.permute.xlu0 %152
    %154 = vrot.lane.b32.xlu0 %v88, 16
    %v155 = vpop.permute.xlu0 %154
    %156 = vrot.lane.b32.xlu0 %v92, 16
    %v157 = vpop.permute.xlu0 %156
    %158 = vrot.lane.b32.xlu0 %v96, 16
    %v159 = vpop.permute.xlu0 %158
    %160 = vrot.lane.b32.xlu0 %v100, 16
    %v161 = vpop.permute.xlu0 %160
    %162 = vrot.lane.b32.xlu0 %v104, 16
    %v163 = vpop.permute.xlu0 %162
    %vm164 = vcmp.lt.s32.totalorder %v130, 16
    %v165 = vsel %vm164, %v161, %v163
    %v166 = vsel %vm164, %v159, %v161
    %v167 = vsel %vm164, %v157, %v159
    %v168 = vsel %vm164, %v155, %v157
    %v169 = vsel %vm164, %v153, %v155
    %v170 = vsel %vm164, %v151, %v153
    %v171 = vsel %vm164, %v149, %v151
    %v172 = vsel %vm164, %v163, %v149
    %v181 = vrot.slane %v56, 1
    %v182 = vrot.slane %v57, 1
    %v183 = vrot.slane %v58, 1
    %v184 = vrot.slane %v59, 1
    %v185 = vrot.slane %v60, 1
    %v186 = vrot.slane %v61, 1
    %v187 = vrot.slane %v62, 1
    %v188 = vrot.slane %v63, 1
    %v197 = vmul.f32 %v172, %v181
    %v198 = vmul.f32 %v171, %v182
    %v199 = vmul.f32 %v170, %v183
    %v200 = vmul.f32 %v169, %v184
    %v201 = vmul.f32 %v168, %v185
    %v202 = vmul.f32 %v167, %v186
    %v203 = vmul.f32 %v166, %v187
    %v204 = vmul.f32 %v165, %v188
    %205 = vrot.lane.b32.xlu0 %v76, 15
    %v206 = vpop.permute.xlu0 %205
    %207 = vrot.lane.b32.xlu0 %v80, 15
    %v208 = vpop.permute.xlu0 %207
    %209 = vrot.lane.b32.xlu0 %v84, 15
    %v210 = vpop.permute.xlu0 %209
    %211 = vrot.lane.b32.xlu0 %v88, 15
    %v212 = vpop.permute.xlu0 %211
    %213 = vrot.lane.b32.xlu0 %v92, 15
    %v214 = vpop.permute.xlu0 %213
    %215 = vrot.lane.b32.xlu0 %v96, 15
    %v216 = vpop.permute.xlu0 %215
    %217 = vrot.lane.b32.xlu0 %v100, 15
    %v218 = vpop.permute.xlu0 %217
    %219 = vrot.lane.b32.xlu0 %v104, 15
    %v220 = vpop.permute.xlu0 %219
    %vm221 = vcmp.lt.s32.totalorder %v130, 15
    %v222 = vsel %vm221, %v218, %v220
    %v223 = vsel %vm221, %v216, %v218
    %v224 = vsel %vm221, %v214, %v216
    %v225 = vsel %vm221, %v212, %v214
    %v226 = vsel %vm221, %v210, %v212
    %v227 = vsel %vm221, %v208, %v210
    %v228 = vsel %vm221, %v206, %v208
    %v229 = vsel %vm221, %v220, %v206
    %v230 = vrot.slane %v56, 2
    %v231 = vrot.slane %v57, 2
    %v232 = vrot.slane %v58, 2
    %v233 = vrot.slane %v59, 2
    %v234 = vrot.slane %v60, 2
    %v235 = vrot.slane %v61, 2
    %v236 = vrot.slane %v62, 2
    %v237 = vrot.slane %v63, 2
    %v246 = vmul.f32 %v229, %v230
    %v247 = vmul.f32 %v228, %v231
    %v248 = vmul.f32 %v227, %v232
    %v249 = vmul.f32 %v226, %v233
    %v250 = vmul.f32 %v225, %v234
    %v251 = vmul.f32 %v224, %v235
    %v252 = vmul.f32 %v223, %v236
    %v253 = vmul.f32 %v222, %v237
    %254 = vrot.lane.b32.xlu0 %v76, 1
    %v255 = vpop.permute.xlu0 %254
    %256 = vrot.lane.b32.xlu0 %v80, 1
    %v257 = vpop.permute.xlu0 %256
    %258 = vrot.lane.b32.xlu0 %v84, 1
    %v259 = vpop.permute.xlu0 %258
    %260 = vrot.lane.b32.xlu0 %v88, 1
    %v261 = vpop.permute.xlu0 %260
    %262 = vrot.lane.b32.xlu0 %v92, 1
    %v263 = vpop.permute.xlu0 %262
    %264 = vrot.lane.b32.xlu0 %v96, 1
    %v265 = vpop.permute.xlu0 %264
    %266 = vrot.lane.b32.xlu0 %v100, 1
    %v267 = vpop.permute.xlu0 %266
    %268 = vrot.lane.b32.xlu0 %v104, 1
    %v269 = vpop.permute.xlu0 %268
    %vm270 = vcmp.lt.s32.totalorder %v130, 1
    %v271 = vsel %vm270, %v267, %v269
    %v272 = vsel %vm270, %v265, %v267
    %v273 = vsel %vm270, %v263, %v265
    %v274 = vsel %vm270, %v261, %v263
    %v275 = vsel %vm270, %v259, %v261
    %v276 = vsel %vm270, %v257, %v259
    %v277 = vsel %vm270, %v255, %v257
    %v278 = vsel %vm270, %v269, %v255
    %v279 = vrot.slane %v56, 3
    %v280 = vrot.slane %v57, 3
    %v281 = vrot.slane %v58, 3
    %v282 = vrot.slane %v59, 3
    %v283 = vrot.slane %v60, 3
    %v284 = vrot.slane %v61, 3
    %v285 = vrot.slane %v62, 3
    %v286 = vrot.slane %v63, 3
    %v295 = vmul.f32 %v278, %v279
    %v296 = vmul.f32 %v277, %v280
    %v297 = vmul.f32 %v276, %v281
    %v298 = vmul.f32 %v275, %v282
    %v299 = vmul.f32 %v274, %v283
    %v300 = vmul.f32 %v273, %v284
    %v301 = vmul.f32 %v272, %v285
    %v302 = vmul.f32 %v271, %v286
    %v303 = vcombine.high %v56, %v57
    %v304 = vcombine.high %v58, %v59
    %v305 = vcombine.high %v60, %v61
    %v306 = vcombine.high %v62, %v63
    %v308 = vunpack.c.l.s4 1966171168
    %v309 = vunpack.c.0.s8 %v308
    %v310 = vlaneseq
    %v311 = vshrl.u32 %v310, 7
    %v312 = vsub.s32 %v309, %v311
    %v313 = vrot.slane %v303, %v312
    %v315 = vunpack.c.l.s4 1966171168
    %v316 = vunpack.c.0.s8 %v315
    %v317 = vlaneseq
    %v318 = vshrl.u32 %v317, 7
    %v319 = vsub.s32 %v316, %v318
    %v320 = vrot.slane %v304, %v319
    %v322 = vunpack.c.l.s4 1966171168
    %v323 = vunpack.c.0.s8 %v322
    %v324 = vlaneseq
    %v325 = vshrl.u32 %v324, 7
    %v326 = vsub.s32 %v323, %v325
    %v327 = vrot.slane %v305, %v326
    %v329 = vunpack.c.l.s4 1966171168
    %v330 = vunpack.c.0.s8 %v329
    %v331 = vlaneseq
    %v332 = vshrl.u32 %v331, 7
    %v333 = vsub.s32 %v330, %v332
    %v334 = vrot.slane %v306, %v333
    %v335 = vcombine.low %v313, %v320
    %v336 = vcombine.low %v327, %v334
    %v338 = vunpack.c.l.s4 1966171168
    %v339 = vunpack.c.0.s8 %v338
    %v340 = vlaneseq
    %v341 = vshrl.u32 %v340, 7
    %v342 = vsub.s32 %v339, %v341
    %v343 = vrot.slane %v335, %v342
    %v345 = vunpack.c.l.s4 1966171168
    %v346 = vunpack.c.0.s8 %v345
    %v347 = vlaneseq
    %v348 = vshrl.u32 %v347, 7
    %v349 = vsub.s32 %v346, %v348
    %v350 = vrot.slane %v336, %v349
    %v351 = vcombine.low %v343, %v350
    %v353 = vmul.f32 %v55, %v351
    %354 = vrot.lane.b32.xlu0 %v76, 127
    %v355 = vpop.permute.xlu0 %354
    %356 = vrot.lane.b32.xlu0 %v80, 127
    %v357 = vpop.permute.xlu0 %356
    %358 = vrot.lane.b32.xlu0 %v84, 127
    %v359 = vpop.permute.xlu0 %358
    %360 = vrot.lane.b32.xlu0 %v88, 127
    %v361 = vpop.permute.xlu0 %360
    %362 = vrot.lane.b32.xlu0 %v92, 127
    %v363 = vpop.permute.xlu0 %362
    %364 = vrot.lane.b32.xlu0 %v96, 127
    %v365 = vpop.permute.xlu0 %364
    %366 = vrot.lane.b32.xlu0 %v100, 127
    %v367 = vpop.permute.xlu0 %366
    %368 = vrot.lane.b32.xlu0 %v104, 127
    %v369 = vpop.permute.xlu0 %368
    %vm370 = vcmp.lt.s32.totalorder %v130, 127
    %v371 = vsel %vm370, %v367, %v369
    %v372 = vsel %vm370, %v365, %v367
    %v373 = vsel %vm370, %v363, %v365
    %v374 = vsel %vm370, %v361, %v363
    %v375 = vsel %vm370, %v359, %v361
    %v376 = vsel %vm370, %v357, %v359
    %v377 = vsel %vm370, %v355, %v357
    %v378 = vsel %vm370, %v369, %v355
    %v379 = vrot.slane %v56, 5
    %v380 = vrot.slane %v57, 5
    %v381 = vrot.slane %v58, 5
    %v382 = vrot.slane %v59, 5
    %v383 = vrot.slane %v60, 5
    %v384 = vrot.slane %v61, 5
    %v385 = vrot.slane %v62, 5
    %v386 = vrot.slane %v63, 5
    %v395 = vmul.f32 %v377, %v379
    %v396 = vmul.f32 %v376, %v380
    %v397 = vmul.f32 %v375, %v381
    %v398 = vmul.f32 %v374, %v382
    %v399 = vmul.f32 %v373, %v383
    %v400 = vmul.f32 %v372, %v384
    %v401 = vmul.f32 %v371, %v385
    %v402 = vmul.f32 %v378, %v386
    %403 = vrot.lane.b32.xlu0 %v76, 113
    %v404 = vpop.permute.xlu0 %403
    %405 = vrot.lane.b32.xlu0 %v80, 113
    %v406 = vpop.permute.xlu0 %405
    %407 = vrot.lane.b32.xlu0 %v84, 113
    %v408 = vpop.permute.xlu0 %407
    %409 = vrot.lane.b32.xlu0 %v88, 113
    %v410 = vpop.permute.xlu0 %409
    %411 = vrot.lane.b32.xlu0 %v92, 113
    %v412 = vpop.permute.xlu0 %411
    %413 = vrot.lane.b32.xlu0 %v96, 113
    %v414 = vpop.permute.xlu0 %413
    %415 = vrot.lane.b32.xlu0 %v100, 113
    %v416 = vpop.permute.xlu0 %415
    %417 = vrot.lane.b32.xlu0 %v104, 113
    %v418 = vpop.permute.xlu0 %417
    %vm419 = vcmp.lt.s32.totalorder %v130, 113
    %v420 = vsel %vm419, %v416, %v418
    %v421 = vsel %vm419, %v414, %v416
    %v422 = vsel %vm419, %v412, %v414
    %v423 = vsel %vm419, %v410, %v412
    %v424 = vsel %vm419, %v408, %v410
    %v425 = vsel %vm419, %v406, %v408
    %v426 = vsel %vm419, %v404, %v406
    %v427 = vsel %vm419, %v418, %v404
    %v428 = vrot.slane %v56, 6
    %v429 = vrot.slane %v57, 6
    %v430 = vrot.slane %v58, 6
    %v431 = vrot.slane %v59, 6
    %v432 = vrot.slane %v60, 6
    %v433 = vrot.slane %v61, 6
    %v434 = vrot.slane %v62, 6
    %v435 = vrot.slane %v63, 6
    %v444 = vmul.f32 %v426, %v428
    %v445 = vmul.f32 %v425, %v429
    %v446 = vmul.f32 %v424, %v430
    %v447 = vmul.f32 %v423, %v431
    %v448 = vmul.f32 %v422, %v432
    %v449 = vmul.f32 %v421, %v433
    %v450 = vmul.f32 %v420, %v434
    %v451 = vmul.f32 %v427, %v435
    %452 = vrot.lane.b32.xlu0 %v76, 112
    %v453 = vpop.permute.xlu0 %452
    %454 = vrot.lane.b32.xlu0 %v80, 112
    %v455 = vpop.permute.xlu0 %454
    %456 = vrot.lane.b32.xlu0 %v84, 112
    %v457 = vpop.permute.xlu0 %456
    %458 = vrot.lane.b32.xlu0 %v88, 112
    %v459 = vpop.permute.xlu0 %458
    %460 = vrot.lane.b32.xlu0 %v92, 112
    %v461 = vpop.permute.xlu0 %460
    %462 = vrot.lane.b32.xlu0 %v96, 112
    %v463 = vpop.permute.xlu0 %462
    %464 = vrot.lane.b32.xlu0 %v100, 112
    %v465 = vpop.permute.xlu0 %464
    %466 = vrot.lane.b32.xlu0 %v104, 112
    %v467 = vpop.permute.xlu0 %466
    %vm468 = vcmp.lt.s32.totalorder %v130, 112
    %v469 = vsel %vm468, %v465, %v467
    %v470 = vsel %vm468, %v463, %v465
    %v471 = vsel %vm468, %v461, %v463
    %v472 = vsel %vm468, %v459, %v461
    %v473 = vsel %vm468, %v457, %v459
    %v474 = vsel %vm468, %v455, %v457
    %v475 = vsel %vm468, %v453, %v455
    %v476 = vsel %vm468, %v467, %v453
    %v477 = vrot.slane %v56, 7
    %v478 = vrot.slane %v57, 7
    %v479 = vrot.slane %v58, 7
    %v480 = vrot.slane %v59, 7
    %v481 = vrot.slane %v60, 7
    %v482 = vrot.slane %v61, 7
    %v483 = vrot.slane %v62, 7
    %v484 = vrot.slane %v63, 7
    %v493 = vmul.f32 %v475, %v477
    %v494 = vmul.f32 %v474, %v478
    %v495 = vmul.f32 %v473, %v479
    %v496 = vmul.f32 %v472, %v480
    %v497 = vmul.f32 %v471, %v481
    %v498 = vmul.f32 %v470, %v482
    %v499 = vmul.f32 %v469, %v483
    %v500 = vmul.f32 %v476, %v484
    %501 = vrot.lane.b32.xlu0 %v76, 111
    %v502 = vpop.permute.xlu0 %501
    %503 = vrot.lane.b32.xlu0 %v80, 111
    %v504 = vpop.permute.xlu0 %503
    %505 = vrot.lane.b32.xlu0 %v84, 111
    %v506 = vpop.permute.xlu0 %505
    %507 = vrot.lane.b32.xlu0 %v88, 111
    %v508 = vpop.permute.xlu0 %507
    %509 = vrot.lane.b32.xlu0 %v92, 111
    %v510 = vpop.permute.xlu0 %509
    %511 = vrot.lane.b32.xlu0 %v96, 111
    %v512 = vpop.permute.xlu0 %511
    %513 = vrot.lane.b32.xlu0 %v100, 111
    %v514 = vpop.permute.xlu0 %513
    %515 = vrot.lane.b32.xlu0 %v104, 111
    %v516 = vpop.permute.xlu0 %515
    %vm517 = vcmp.lt.s32.totalorder %v130, 111
    %v518 = vsel %vm517, %v514, %v516
    %v519 = vsel %vm517, %v512, %v514
    %v520 = vsel %vm517, %v510, %v512
    %v521 = vsel %vm517, %v508, %v510
    %v522 = vsel %vm517, %v506, %v508
    %v523 = vsel %vm517, %v504, %v506
    %v524 = vsel %vm517, %v502, %v504
    %v525 = vsel %vm517, %v516, %v502
    %v526 = vmul.f32 %v524, %v64
    %v527 = vmul.f32 %v523, %v65
    %v528 = vmul.f32 %v522, %v66
    %v529 = vmul.f32 %v521, %v67
    %v530 = vmul.f32 %v520, %v68
    %v531 = vmul.f32 %v519, %v69
    %v532 = vmul.f32 %v518, %v70
    %v533 = vmul.f32 %v525, %v71
    %v542 = vrot.slane %v197, 7
    %v543 = vrot.slane %v198, 7
    %v544 = vrot.slane %v199, 7
    %v545 = vrot.slane %v200, 7
    %v546 = vrot.slane %v201, 7
    %v547 = vrot.slane %v202, 7
    %v548 = vrot.slane %v203, 7
    %v549 = vrot.slane %v204, 7
    %v566 = vrot.slane %v246, 6
    %v567 = vrot.slane %v247, 6
    %v568 = vrot.slane %v248, 6
    %v569 = vrot.slane %v249, 6
    %v570 = vrot.slane %v250, 6
    %v571 = vrot.slane %v251, 6
    %v572 = vrot.slane %v252, 6
    %v573 = vrot.slane %v253, 6
    %v590 = vrot.slane %v295, 5
    %v591 = vrot.slane %v296, 5
    %v592 = vrot.slane %v297, 5
    %v593 = vrot.slane %v298, 5
    %v594 = vrot.slane %v299, 5
    %v595 = vrot.slane %v300, 5
    %v596 = vrot.slane %v301, 5
    %v597 = vrot.slane %v302, 5
    %v607 = vlaneseq
    %v608 = vshrl.u32 %v607, 7
    %v609 = vsub.s32 0, %v608
    %v610 = vrot.slane %v353, %v609
    %v611 = vlaneseq
    %v612 = vshrl.u32 %v611, 7
    %v613 = vsub.s32 1, %v612
    %v614 = vrot.slane %v353, %v613
    %v615 = vlaneseq
    %v616 = vshrl.u32 %v615, 7
    %v617 = vsub.s32 2, %v616
    %v618 = vrot.slane %v353, %v617
    %v619 = vlaneseq
    %v620 = vshrl.u32 %v619, 7
    %v621 = vsub.s32 3, %v620
    %v622 = vrot.slane %v353, %v621
    %v623 = vlaneseq
    %v624 = vshrl.u32 %v623, 7
    %v625 = vsub.s32 4, %v624
    %v626 = vrot.slane %v353, %v625
    %v627 = vlaneseq
    %v628 = vshrl.u32 %v627, 7
    %v629 = vsub.s32 5, %v628
    %v630 = vrot.slane %v353, %v629
    %v631 = vlaneseq
    %v632 = vshrl.u32 %v631, 7
    %v633 = vsub.s32 6, %v632
    %v634 = vrot.slane %v353, %v633
    %v635 = vlaneseq
    %v636 = vshrl.u32 %v635, 7
    %v637 = vsub.s32 7, %v636
    %v638 = vrot.slane %v353, %v637
    %v655 = vrot.slane %v395, 3
    %v656 = vrot.slane %v396, 3
    %v657 = vrot.slane %v397, 3
    %v658 = vrot.slane %v398, 3
    %v659 = vrot.slane %v399, 3
    %v660 = vrot.slane %v400, 3
    %v661 = vrot.slane %v401, 3
    %v662 = vrot.slane %v402, 3
    %v679 = vrot.slane %v444, 2
    %v680 = vrot.slane %v445, 2
    %v681 = vrot.slane %v446, 2
    %v682 = vrot.slane %v447, 2
    %v683 = vrot.slane %v448, 2
    %v684 = vrot.slane %v449, 2
    %v685 = vrot.slane %v450, 2
    %v686 = vrot.slane %v451, 2
    %v703 = vrot.slane %v493, 1
    %v704 = vrot.slane %v494, 1
    %v705 = vrot.slane %v495, 1
    %v706 = vrot.slane %v496, 1
    %v707 = vrot.slane %v497, 1
    %v708 = vrot.slane %v498, 1
    %v709 = vrot.slane %v499, 1
    %v710 = vrot.slane %v500, 1
    %vm719 = vcmask 1040384
    %v720 = vsel %vm719, %v140, %v542
    %v721 = vsel %vm719, %v141, %v543
    %v722 = vsel %vm719, %v142, %v544
    %v723 = vsel %vm719, %v143, %v545
    %v724 = vsel %vm719, %v144, %v546
    %v725 = vsel %vm719, %v145, %v547
    %v726 = vsel %vm719, %v146, %v548
    %v727 = vsel %vm719, %v147, %v549
    %vm728 = vcmask 1041408
    %v729 = vsel %vm728, %v720, %v566
    %v730 = vsel %vm728, %v721, %v567
    %v731 = vsel %vm728, %v722, %v568
    %v732 = vsel %vm728, %v723, %v569
    %v733 = vsel %vm728, %v724, %v570
    %v734 = vsel %vm728, %v725, %v571
    %v735 = vsel %vm728, %v726, %v572
    %v736 = vsel %vm728, %v727, %v573
    %vm737 = vcmask 1042432
    %v738 = vsel %vm737, %v729, %v590
    %v739 = vsel %vm737, %v730, %v591
    %v740 = vsel %vm737, %v731, %v592
    %v741 = vsel %vm737, %v732, %v593
    %v742 = vsel %vm737, %v733, %v594
    %v743 = vsel %vm737, %v734, %v595
    %v744 = vsel %vm737, %v735, %v596
    %v745 = vsel %vm737, %v736, %v597
    %vm746 = vcmask 1043456
    %v747 = vsel %vm746, %v738, %v610
    %v748 = vsel %vm746, %v739, %v614
    %v749 = vsel %vm746, %v740, %v618
    %v750 = vsel %vm746, %v741, %v622
    %v751 = vsel %vm746, %v742, %v626
    %v752 = vsel %vm746, %v743, %v630
    %v753 = vsel %vm746, %v744, %v634
    %v754 = vsel %vm746, %v745, %v638
    %vm755 = vcmask 1044480
    %v756 = vsel %vm755, %v747, %v655
    %v757 = vsel %vm755, %v748, %v656
    %v758 = vsel %vm755, %v749, %v657
    %v759 = vsel %vm755, %v750, %v658
    %v760 = vsel %vm755, %v751, %v659
    %v761 = vsel %vm755, %v752, %v660
    %v762 = vsel %vm755, %v753, %v661
    %v763 = vsel %vm755, %v754, %v662
    %vm764 = vcmask 1045504
    %v765 = vsel %vm764, %v756, %v679
    %v766 = vsel %vm764, %v757, %v680
    %v767 = vsel %vm764, %v758, %v681
    %v768 = vsel %vm764, %v759, %v682
    %v769 = vsel %vm764, %v760, %v683
    %v770 = vsel %vm764, %v761, %v684
    %v771 = vsel %vm764, %v762, %v685
    %v772 = vsel %vm764, %v763, %v686
    %vm773 = vcmask 1046528
    %v774 = vsel %vm773, %v765, %v703
    %v775 = vsel %vm773, %v766, %v704
    %v776 = vsel %vm773, %v767, %v705
    %v777 = vsel %vm773, %v768, %v706
    %v778 = vsel %vm773, %v769, %v707
    %v779 = vsel %vm773, %v770, %v708
    %v780 = vsel %vm773, %v771, %v709
    %v781 = vsel %vm773, %v772, %v710
    %v782 = vsel %vm719, %v526, 0.0
    %v783 = vsel %vm719, %v527, 0.0
    %v784 = vsel %vm719, %v528, 0.0
    %v785 = vsel %vm719, %v529, 0.0
    %v786 = vsel %vm719, %v530, 0.0
    %v787 = vsel %vm719, %v531, 0.0
    %v788 = vsel %vm719, %v532, 0.0
    %v789 = vsel %vm719, %v533, 0.0
    %v790 = vpack.c.bf16 %v782, %v774
    %v791 = vpack.c.bf16 %v783, %v775
    %v792 = vpack.c.bf16 %v784, %v776
    %v793 = vpack.c.bf16 %v785, %v777
    %v794 = vpack.c.bf16 %v786, %v778
    %v795 = vpack.c.bf16 %v787, %v779
    %v796 = vpack.c.bf16 %v788, %v780
    %v797 = vpack.c.bf16 %v789, %v781
    %v798 = vld [vmem:[%s2] sm:$0xf]
    %v799 = vld [vmem:[%s2 + $0x4] sm:$0xf]
    %v800 = vld [vmem:[%s2 + $0x8] sm:$0xf]
    %v801 = vld [vmem:[%s2 + $0xc] sm:$0xf]
    %v802 = vld [vmem:[%s2 + $0x10] sm:$0xf]
    %v803 = vld [vmem:[%s2 + $0x14] sm:$0xf]
    %v804 = vld [vmem:[%s2 + $0x18] sm:$0xf]
    %v805 = vld [vmem:[%s2 + $0x1c] sm:$0xf]
    %v806 = vld [vmem:[%s3] sm:$0xff]
    %v807 = vld [vmem:[%s3 + $0x8] sm:$0xff]
    %v808 = vld [vmem:[%s3 + $0x10] sm:$0xff]
    %v809 = vld [vmem:[%s3 + $0x18] sm:$0xff]
    %v810 = vld [vmem:[%s3 + $0x20] sm:$0xff]
    %v811 = vld [vmem:[%s3 + $0x28] sm:$0xff]
    %v812 = vld [vmem:[%s3 + $0x30] sm:$0xff]
    %v813 = vld [vmem:[%s3 + $0x38] sm:$0xff]
    %815 = vset.pattern.permute.xlu0 0
    %816 = vperm.xlu0 %815, %v806
    %v817 = vpop.permute.xlu0 %816
    %820 = vset.pattern.permute.xlu0 0
    %821 = vperm.xlu0 %820, %v807
    %v822 = vpop.permute.xlu0 %821
    %825 = vset.pattern.permute.xlu0 0
    %826 = vperm.xlu0 %825, %v808
    %v827 = vpop.permute.xlu0 %826
    %830 = vset.pattern.permute.xlu0 0
    %831 = vperm.xlu0 %830, %v809
    %v832 = vpop.permute.xlu0 %831
    %835 = vset.pattern.permute.xlu0 0
    %836 = vperm.xlu0 %835, %v810
    %v837 = vpop.permute.xlu0 %836
    %840 = vset.pattern.permute.xlu0 0
    %841 = vperm.xlu0 %840, %v811
    %v842 = vpop.permute.xlu0 %841
    %845 = vset.pattern.permute.xlu0 0
    %846 = vperm.xlu0 %845, %v812
    %v847 = vpop.permute.xlu0 %846
    %850 = vset.pattern.permute.xlu0 0
    %851 = vperm.xlu0 %850, %v813
    %v852 = vpop.permute.xlu0 %851
    %v862 = vunpack.c.l.b16 %v798
    %v863 = vunpack.c.l.b16 %v799
    %v864 = vunpack.c.l.b16 %v800
    %v865 = vunpack.c.l.b16 %v801
    %v866 = vunpack.c.l.b16 %v802
    %v867 = vunpack.c.l.b16 %v803
    %v868 = vunpack.c.l.b16 %v804
    %v869 = vunpack.c.l.b16 %v805
    %v870 = vpack.c.b16 %v863, %v862
    %v871 = vpack.c.b16 %v865, %v864
    %v872 = vpack.c.b16 %v867, %v866
    %v873 = vpack.c.b16 %v869, %v868
    %vm874 = vcmask 130048
    %v876 = vsel %vm874, %v870, 0
    %v879 = vsel %vm874, %v871, 0
    %v882 = vsel %vm874, %v872, 0
    %v885 = vsel %vm874, %v873, 0
    %887 = vmatprep.subr.bf16.mxu0 %v791
    %888 = vmatpush1.bf16.msra.mxu0 %v790
    %889 = vmatprep.subr.bf16.mxu0 0
    %890 = vmatpush1.bf16.msra.mxu0 0
    %891 = vmatprep.subr.bf16.mxu0 0
    %892 = vmatpush1.bf16.msra.mxu0 0
    %893 = vmatprep.subr.bf16.mxu0 0
    %894 = vmatpush1.bf16.msra.mxu0 0
    %895 = vmatprep.subr.bf16.mxu0 0
    %896 = vmatpush1.bf16.msra.mxu0 0
    %897 = vmatprep.subr.bf16.mxu0 0
    %898 = vmatpush1.bf16.msra.mxu0 0
    %899 = vmatprep.subr.bf16.mxu0 0
    %900 = vmatpush1.bf16.msra.mxu0 0
    %901 = vmatprep.subr.bf16.mxu0 0
    %902 = vmatpush1.bf16.msra.mxu0 0
    %903 = vmatprep.subr.bf16.mxu0 0
    %904 = vmatpush1.bf16.msra.mxu0 0
    %905 = vmatprep.subr.bf16.mxu0 0
    %906 = vmatpush1.bf16.msra.mxu0 0
    %907 = vmatprep.subr.bf16.mxu0 0
    %908 = vmatpush1.bf16.msra.mxu0 0
    %909 = vmatprep.subr.bf16.mxu0 0
    %910 = vmatpush1.bf16.msra.mxu0 0
    %911 = vmatprep.subr.bf16.mxu0 0
    %912 = vmatpush1.bf16.msra.mxu0 0
    %913 = vmatprep.subr.bf16.mxu0 0
    %914 = vmatpush1.bf16.msra.mxu0 0
    %915 = vmatprep.subr.bf16.mxu0 0
    %916 = vmatpush1.bf16.msra.mxu0 0
    %917 = vmatprep.subr.bf16.mxu0 0
    %918 = vmatpush1.bf16.msra.mxu0 0
    %919 = vmatprep.mubr.bf16.mxu0 0
    %920 = vmatmul.mubr.bf16.gmra.mrb[0].mxu0 %v876
    %v921 = vpop.f32.mrb[0].mxu0
    %v922 = vadd.f32 %v817, %v921
    %v923 = vpop.f32.mrb[0].mxu0
    %v924 = vadd.f32 %v817, %v923
    %v925 = vpop.f32.mrb[0].mxu0
    %v926 = vadd.f32 %v822, %v925
    %v927 = vpop.f32.mrb[0].mxu0
    %v928 = vadd.f32 %v822, %v927
    %929 = vmatprep.mubr.bf16.mxu0 0
    %930 = vmatmul.mubr.bf16.gmra.mrb[0].mxu0 %v879
    %v931 = vpop.f32.mrb[0].mxu0
    %v932 = vadd.f32 %v827, %v931
    %v933 = vpop.f32.mrb[0].mxu0
    %v934 = vadd.f32 %v827, %v933
    %v935 = vpop.f32.mrb[0].mxu0
    %v936 = vadd.f32 %v832, %v935
    %v937 = vpop.f32.mrb[0].mxu0
    %v938 = vadd.f32 %v832, %v937
    %939 = vmatprep.mubr.bf16.mxu0 0
    %940 = vmatmul.mubr.bf16.gmra.mrb[0].mxu0 %v882
    %v941 = vpop.f32.mrb[0].mxu0
    %v942 = vadd.f32 %v837, %v941
    %v943 = vpop.f32.mrb[0].mxu0
    %v944 = vadd.f32 %v837, %v943
    %v945 = vpop.f32.mrb[0].mxu0
    %v946 = vadd.f32 %v842, %v945
    %v947 = vpop.f32.mrb[0].mxu0
    %v948 = vadd.f32 %v842, %v947
    %949 = vmatprep.mubr.bf16.mxu0 0
    %950 = vmatmul.mubr.bf16.gmra.mrb[0].mxu0 %v885
    %v951 = vpop.f32.mrb[0].mxu0
    %v952 = vadd.f32 %v847, %v951
    %v953 = vpop.f32.mrb[0].mxu0
    %v954 = vadd.f32 %v847, %v953
    %v955 = vpop.f32.mrb[0].mxu0
    %v956 = vadd.f32 %v852, %v955
    %v957 = vpop.f32.mrb[0].mxu0
    %v958 = vadd.f32 %v852, %v957
    %959 = vdwg.mxu0
    %960 = vmatprep.subr.bf16.mxu0 %v793
    %961 = vmatpush1.bf16.msra.mxu0 %v792
    %962 = vmatprep.subr.bf16.mxu0 0
    %963 = vmatpush1.bf16.msra.mxu0 0
    %964 = vmatprep.subr.bf16.mxu0 0
    %965 = vmatpush1.bf16.msra.mxu0 0
    %966 = vmatprep.subr.bf16.mxu0 0
    %967 = vmatpush1.bf16.msra.mxu0 0
    %968 = vmatprep.subr.bf16.mxu0 0
    %969 = vmatpush1.bf16.msra.mxu0 0
    %970 = vmatprep.subr.bf16.mxu0 0
    %971 = vmatpush1.bf16.msra.mxu0 0
    %972 = vmatprep.subr.bf16.mxu0 0
    %973 = vmatpush1.bf16.msra.mxu0 0
    %974 = vmatprep.subr.bf16.mxu0 0
    %975 = vmatpush1.bf16.msra.mxu0 0
    %976 = vmatprep.subr.bf16.mxu0 0
    %977 = vmatpush1.bf16.msra.mxu0 0
    %978 = vmatprep.subr.bf16.mxu0 0
    %979 = vmatpush1.bf16.msra.mxu0 0
    %980 = vmatprep.subr.bf16.mxu0 0
    %981 = vmatpush1.bf16.msra.mxu0 0
    %982 = vmatprep.subr.bf16.mxu0 0
    %983 = vmatpush1.bf16.msra.mxu0 0
    %984 = vmatprep.subr.bf16.mxu0 0
    %985 = vmatpush1.bf16.msra.mxu0 0
    %986 = vmatprep.subr.bf16.mxu0 0
    %987 = vmatpush1.bf16.msra.mxu0 0
    %988 = vmatprep.subr.bf16.mxu0 0
    %989 = vmatpush1.bf16.msra.mxu0 0
    %990 = vmatprep.subr.bf16.mxu0 0
    %991 = vmatpush1.bf16.msra.mxu0 0
    %992 = vmatprep.mubr.bf16.mxu0 0
    %993 = vmatmul.mubr.bf16.gmra.mrb[0].mxu0 %v876
    %v994 = vpop.f32.mrb[0].mxu0
    %v995 = vadd.f32 %v817, %v994
    %v996 = vpop.f32.mrb[0].mxu0
    %v997 = vadd.f32 %v817, %v996
    %v998 = vpop.f32.mrb[0].mxu0
    %v999 = vadd.f32 %v822, %v998
    %v1000 = vpop.f32.mrb[0].mxu0
    %v1001 = vadd.f32 %v822, %v1000
    %1002 = vmatprep.mubr.bf16.mxu0 0
    %1003 = vmatmul.mubr.bf16.gmra.mrb[0].mxu0 %v879
    %v1004 = vpop.f32.mrb[0].mxu0
    %v1005 = vadd.f32 %v827, %v1004
    %v1006 = vpop.f32.mrb[0].mxu0
    %v1007 = vadd.f32 %v827, %v1006
    %v1008 = vpop.f32.mrb[0].mxu0
    %v1009 = vadd.f32 %v832, %v1008
    %v1010 = vpop.f32.mrb[0].mxu0
    %v1011 = vadd.f32 %v832, %v1010
    %1012 = vmatprep.mubr.bf16.mxu0 0
    %1013 = vmatmul.mubr.bf16.gmra.mrb[0].mxu0 %v882
    %v1014 = vpop.f32.mrb[0].mxu0
    %v1015 = vadd.f32 %v837, %v1014
    %v1016 = vpop.f32.mrb[0].mxu0
    %v1017 = vadd.f32 %v837, %v1016
    %v1018 = vpop.f32.mrb[0].mxu0
    %v1019 = vadd.f32 %v842, %v1018
    %v1020 = vpop.f32.mrb[0].mxu0
    %v1021 = vadd.f32 %v842, %v1020
    %1022 = vmatprep.mubr.bf16.mxu0 0
    %1023 = vmatmul.mubr.bf16.gmra.mrb[0].mxu0 %v885
    %v1024 = vpop.f32.mrb[0].mxu0
    %v1025 = vadd.f32 %v847, %v1024
    %v1026 = vpop.f32.mrb[0].mxu0
    %v1027 = vadd.f32 %v847, %v1026
    %v1028 = vpop.f32.mrb[0].mxu0
    %v1029 = vadd.f32 %v852, %v1028
    %v1030 = vpop.f32.mrb[0].mxu0
    %v1031 = vadd.f32 %v852, %v1030
    %1032 = vdwg.mxu0
    %1033 = vmatprep.subr.bf16.mxu0 %v795
    %1034 = vmatpush1.bf16.msra.mxu0 %v794
    %1035 = vmatprep.subr.bf16.mxu0 0
    %1036 = vmatpush1.bf16.msra.mxu0 0
    %1037 = vmatprep.subr.bf16.mxu0 0
    %1038 = vmatpush1.bf16.msra.mxu0 0
    %1039 = vmatprep.subr.bf16.mxu0 0
    %1040 = vmatpush1.bf16.msra.mxu0 0
    %1041 = vmatprep.subr.bf16.mxu0 0
    %1042 = vmatpush1.bf16.msra.mxu0 0
    %1043 = vmatprep.subr.bf16.mxu0 0
    %1044 = vmatpush1.bf16.msra.mxu0 0
    %1045 = vmatprep.subr.bf16.mxu0 0
    %1046 = vmatpush1.bf16.msra.mxu0 0
    %1047 = vmatprep.subr.bf16.mxu0 0
    %1048 = vmatpush1.bf16.msra.mxu0 0
    %1049 = vmatprep.subr.bf16.mxu0 0
    %1050 = vmatpush1.bf16.msra.mxu0 0
    %1051 = vmatprep.subr.bf16.mxu0 0
    %1052 = vmatpush1.bf16.msra.mxu0 0
    %1053 = vmatprep.subr.bf16.mxu0 0
    %1054 = vmatpush1.bf16.msra.mxu0 0
    %1055 = vmatprep.subr.bf16.mxu0 0
    %1056 = vmatpush1.bf16.msra.mxu0 0
    %1057 = vmatprep.subr.bf16.mxu0 0
    %1058 = vmatpush1.bf16.msra.mxu0 0
    %1059 = vmatprep.subr.bf16.mxu0 0
    %1060 = vmatpush1.bf16.msra.mxu0 0
    %1061 = vmatprep.subr.bf16.mxu0 0
    %1062 = vmatpush1.bf16.msra.mxu0 0
    %1063 = vmatprep.subr.bf16.mxu0 0
    %1064 = vmatpush1.bf16.msra.mxu0 0
    %1065 = vmatprep.mubr.bf16.mxu0 0
    %1066 = vmatmul.mubr.bf16.gmra.mrb[0].mxu0 %v876
    %v1067 = vpop.f32.mrb[0].mxu0
    %v1068 = vadd.f32 %v817, %v1067
    %v1069 = vpop.f32.mrb[0].mxu0
    %v1070 = vadd.f32 %v817, %v1069
    %v1071 = vpop.f32.mrb[0].mxu0
    %v1072 = vadd.f32 %v822, %v1071
    %v1073 = vpop.f32.mrb[0].mxu0
    %v1074 = vadd.f32 %v822, %v1073
    %1075 = vmatprep.mubr.bf16.mxu0 0
    %1076 = vmatmul.mubr.bf16.gmra.mrb[0].mxu0 %v879
    %v1077 = vpop.f32.mrb[0].mxu0
    %v1078 = vadd.f32 %v827, %v1077
    %v1079 = vpop.f32.mrb[0].mxu0
    %v1080 = vadd.f32 %v827, %v1079
    %v1081 = vpop.f32.mrb[0].mxu0
    %v1082 = vadd.f32 %v832, %v1081
    %v1083 = vpop.f32.mrb[0].mxu0
    %v1084 = vadd.f32 %v832, %v1083
    %1085 = vmatprep.mubr.bf16.mxu0 0
    %1086 = vmatmul.mubr.bf16.gmra.mrb[0].mxu0 %v882
    %v1087 = vpop.f32.mrb[0].mxu0
    %v1088 = vadd.f32 %v837, %v1087
    %v1089 = vpop.f32.mrb[0].mxu0
    %v1090 = vadd.f32 %v837, %v1089
    %v1091 = vpop.f32.mrb[0].mxu0
    %v1092 = vadd.f32 %v842, %v1091
    %v1093 = vpop.f32.mrb[0].mxu0
    %v1094 = vadd.f32 %v842, %v1093
    %1095 = vmatprep.mubr.bf16.mxu0 0
    %1096 = vmatmul.mubr.bf16.gmra.mrb[0].mxu0 %v885
    %v1097 = vpop.f32.mrb[0].mxu0
    %v1098 = vadd.f32 %v847, %v1097
    %v1099 = vpop.f32.mrb[0].mxu0
    %v1100 = vadd.f32 %v847, %v1099
    %v1101 = vpop.f32.mrb[0].mxu0
    %v1102 = vadd.f32 %v852, %v1101
    %v1103 = vpop.f32.mrb[0].mxu0
    %v1104 = vadd.f32 %v852, %v1103
    %1105 = vdwg.mxu0
    %1106 = vmatprep.subr.bf16.mxu0 %v797
    %1107 = vmatpush1.bf16.msra.mxu0 %v796
    %1108 = vmatprep.subr.bf16.mxu0 0
    %1109 = vmatpush1.bf16.msra.mxu0 0
    %1110 = vmatprep.subr.bf16.mxu0 0
    %1111 = vmatpush1.bf16.msra.mxu0 0
    %1112 = vmatprep.subr.bf16.mxu0 0
    %1113 = vmatpush1.bf16.msra.mxu0 0
    %1114 = vmatprep.subr.bf16.mxu0 0
    %1115 = vmatpush1.bf16.msra.mxu0 0
    %1116 = vmatprep.subr.bf16.mxu0 0
    %1117 = vmatpush1.bf16.msra.mxu0 0
    %1118 = vmatprep.subr.bf16.mxu0 0
    %1119 = vmatpush1.bf16.msra.mxu0 0
    %1120 = vmatprep.subr.bf16.mxu0 0
    %1121 = vmatpush1.bf16.msra.mxu0 0
    %1122 = vmatprep.subr.bf16.mxu0 0
    %1123 = vmatpush1.bf16.msra.mxu0 0
    %1124 = vmatprep.subr.bf16.mxu0 0
    %1125 = vmatpush1.bf16.msra.mxu0 0
    %1126 = vmatprep.subr.bf16.mxu0 0
    %1127 = vmatpush1.bf16.msra.mxu0 0
    %1128 = vmatprep.subr.bf16.mxu0 0
    %1129 = vmatpush1.bf16.msra.mxu0 0
    %1130 = vmatprep.subr.bf16.mxu0 0
    %1131 = vmatpush1.bf16.msra.mxu0 0
    %1132 = vmatprep.subr.bf16.mxu0 0
    %1133 = vmatpush1.bf16.msra.mxu0 0
    %1134 = vmatprep.subr.bf16.mxu0 0
    %1135 = vmatpush1.bf16.msra.mxu0 0
    %1136 = vmatprep.subr.bf16.mxu0 0
    %1137 = vmatpush1.bf16.msra.mxu0 0
    %1138 = vmatprep.mubr.bf16.mxu0 0
    %1139 = vmatmul.mubr.bf16.gmra.mrb[0].mxu0 %v876
    %v1140 = vpop.f32.mrb[0].mxu0
    %v1141 = vadd.f32 %v817, %v1140
    %v1142 = vpop.f32.mrb[0].mxu0
    %v1143 = vadd.f32 %v817, %v1142
    %v1144 = vpop.f32.mrb[0].mxu0
    %v1145 = vadd.f32 %v822, %v1144
    %v1146 = vpop.f32.mrb[0].mxu0
    %v1147 = vadd.f32 %v822, %v1146
    %1148 = vmatprep.mubr.bf16.mxu0 0
    %1149 = vmatmul.mubr.bf16.gmra.mrb[0].mxu0 %v879
    %v1150 = vpop.f32.mrb[0].mxu0
    %v1151 = vadd.f32 %v827, %v1150
    %v1152 = vpop.f32.mrb[0].mxu0
    %v1153 = vadd.f32 %v827, %v1152
    %v1154 = vpop.f32.mrb[0].mxu0
    %v1155 = vadd.f32 %v832, %v1154
    %v1156 = vpop.f32.mrb[0].mxu0
    %v1157 = vadd.f32 %v832, %v1156
    %1158 = vmatprep.mubr.bf16.mxu0 0
    %1159 = vmatmul.mubr.bf16.gmra.mrb[0].mxu0 %v882
    %v1160 = vpop.f32.mrb[0].mxu0
    %v1161 = vadd.f32 %v837, %v1160
    %v1162 = vpop.f32.mrb[0].mxu0
    %v1163 = vadd.f32 %v837, %v1162
    %v1164 = vpop.f32.mrb[0].mxu0
    %v1165 = vadd.f32 %v842, %v1164
    %v1166 = vpop.f32.mrb[0].mxu0
    %v1167 = vadd.f32 %v842, %v1166
    %1168 = vmatprep.mubr.bf16.mxu0 0
    %1169 = vmatmul.mubr.bf16.gmra.mrb[0].mxu0 %v885
    %v1170 = vpop.f32.mrb[0].mxu0
    %v1171 = vadd.f32 %v847, %v1170
    %v1172 = vpop.f32.mrb[0].mxu0
    %v1173 = vadd.f32 %v847, %v1172
    %v1174 = vpop.f32.mrb[0].mxu0
    %v1175 = vadd.f32 %v852, %v1174
    %v1176 = vpop.f32.mrb[0].mxu0
    %v1177 = vadd.f32 %v852, %v1176
    %1178 = vdwg.mxu0
    %v1179 = vmax.f32 %v922, 0.0
    %v1180 = vmax.f32 %v924, 0.0
    %v1181 = vmax.f32 %v995, 0.0
    %v1182 = vmax.f32 %v997, 0.0
    %v1183 = vmax.f32 %v1068, 0.0
    %v1184 = vmax.f32 %v1070, 0.0
    %v1185 = vmax.f32 %v1141, 0.0
    %v1186 = vmax.f32 %v1143, 0.0
    %v1187 = vmax.f32 %v926, 0.0
    %v1188 = vmax.f32 %v928, 0.0
    %v1189 = vmax.f32 %v999, 0.0
    %v1190 = vmax.f32 %v1001, 0.0
    %v1191 = vmax.f32 %v1072, 0.0
    %v1192 = vmax.f32 %v1074, 0.0
    %v1193 = vmax.f32 %v1145, 0.0
    %v1194 = vmax.f32 %v1147, 0.0
    %v1195 = vmax.f32 %v932, 0.0
    %v1196 = vmax.f32 %v934, 0.0
    %v1197 = vmax.f32 %v1005, 0.0
    %v1198 = vmax.f32 %v1007, 0.0
    %v1199 = vmax.f32 %v1078, 0.0
    %v1200 = vmax.f32 %v1080, 0.0
    %v1201 = vmax.f32 %v1151, 0.0
    %v1202 = vmax.f32 %v1153, 0.0
    %v1203 = vmax.f32 %v936, 0.0
    %v1204 = vmax.f32 %v938, 0.0
    %v1205 = vmax.f32 %v1009, 0.0
    %v1206 = vmax.f32 %v1011, 0.0
    %v1207 = vmax.f32 %v1082, 0.0
    %v1208 = vmax.f32 %v1084, 0.0
    %v1209 = vmax.f32 %v1155, 0.0
    %v1210 = vmax.f32 %v1157, 0.0
    %v1211 = vmax.f32 %v942, 0.0
    %v1212 = vmax.f32 %v944, 0.0
    %v1213 = vmax.f32 %v1015, 0.0
    %v1214 = vmax.f32 %v1017, 0.0
    %v1215 = vmax.f32 %v1088, 0.0
    %v1216 = vmax.f32 %v1090, 0.0
    %v1217 = vmax.f32 %v1161, 0.0
    %v1218 = vmax.f32 %v1163, 0.0
    %v1219 = vmax.f32 %v946, 0.0
    %v1220 = vmax.f32 %v948, 0.0
    %v1221 = vmax.f32 %v1019, 0.0
    %v1222 = vmax.f32 %v1021, 0.0
    %v1223 = vmax.f32 %v1092, 0.0
    %v1224 = vmax.f32 %v1094, 0.0
    %v1225 = vmax.f32 %v1165, 0.0
    %v1226 = vmax.f32 %v1167, 0.0
    %v1227 = vmax.f32 %v952, 0.0
    %v1228 = vmax.f32 %v954, 0.0
    %v1229 = vmax.f32 %v1025, 0.0
    %v1230 = vmax.f32 %v1027, 0.0
    %v1231 = vmax.f32 %v1098, 0.0
    %v1232 = vmax.f32 %v1100, 0.0
    %v1233 = vmax.f32 %v1171, 0.0
    %v1234 = vmax.f32 %v1173, 0.0
    %v1235 = vmax.f32 %v956, 0.0
    %v1236 = vmax.f32 %v958, 0.0
    %v1237 = vmax.f32 %v1029, 0.0
    %v1238 = vmax.f32 %v1031, 0.0
    %v1239 = vmax.f32 %v1102, 0.0
    %v1240 = vmax.f32 %v1104, 0.0
    %v1241 = vmax.f32 %v1175, 0.0
    %v1242 = vmax.f32 %v1177, 0.0
    %1243 = vrot.lane.b32.xlu0 %v1179, 17
    %v1244 = vpop.permute.xlu0 %1243
    %1245 = vrot.lane.b32.xlu0 %v1187, 17
    %v1246 = vpop.permute.xlu0 %1245
    %1247 = vrot.lane.b32.xlu0 %v1195, 17
    %v1248 = vpop.permute.xlu0 %1247
    %1249 = vrot.lane.b32.xlu0 %v1203, 17
    %v1250 = vpop.permute.xlu0 %1249
    %1251 = vrot.lane.b32.xlu0 %v1211, 17
    %v1252 = vpop.permute.xlu0 %1251
    %1253 = vrot.lane.b32.xlu0 %v1219, 17
    %v1254 = vpop.permute.xlu0 %1253
    %1255 = vrot.lane.b32.xlu0 %v1227, 17
    %v1256 = vpop.permute.xlu0 %1255
    %1257 = vrot.lane.b32.xlu0 %v1235, 17
    %v1258 = vpop.permute.xlu0 %1257
    %1259 = vrot.lane.b32.xlu0 %v1180, 17
    %v1260 = vpop.permute.xlu0 %1259
    %1261 = vrot.lane.b32.xlu0 %v1188, 17
    %v1262 = vpop.permute.xlu0 %1261
    %1263 = vrot.lane.b32.xlu0 %v1196, 17
    %v1264 = vpop.permute.xlu0 %1263
    %1265 = vrot.lane.b32.xlu0 %v1204, 17
    %v1266 = vpop.permute.xlu0 %1265
    %1267 = vrot.lane.b32.xlu0 %v1212, 17
    %v1268 = vpop.permute.xlu0 %1267
    %1269 = vrot.lane.b32.xlu0 %v1220, 17
    %v1270 = vpop.permute.xlu0 %1269
    %1271 = vrot.lane.b32.xlu0 %v1228, 17
    %v1272 = vpop.permute.xlu0 %1271
    %1273 = vrot.lane.b32.xlu0 %v1236, 17
    %v1274 = vpop.permute.xlu0 %1273
    %1275 = vrot.lane.b32.xlu0 %v1181, 17
    %v1276 = vpop.permute.xlu0 %1275
    %1277 = vrot.lane.b32.xlu0 %v1189, 17
    %v1278 = vpop.permute.xlu0 %1277
    %1279 = vrot.lane.b32.xlu0 %v1197, 17
    %v1280 = vpop.permute.xlu0 %1279
    %1281 = vrot.lane.b32.xlu0 %v1205, 17
    %v1282 = vpop.permute.xlu0 %1281
    %1283 = vrot.lane.b32.xlu0 %v1213, 17
    %v1284 = vpop.permute.xlu0 %1283
    %1285 = vrot.lane.b32.xlu0 %v1221, 17
    %v1286 = vpop.permute.xlu0 %1285
    %1287 = vrot.lane.b32.xlu0 %v1229, 17
    %v1288 = vpop.permute.xlu0 %1287
    %1289 = vrot.lane.b32.xlu0 %v1237, 17
    %v1290 = vpop.permute.xlu0 %1289
    %1291 = vrot.lane.b32.xlu0 %v1182, 17
    %v1292 = vpop.permute.xlu0 %1291
    %1293 = vrot.lane.b32.xlu0 %v1190, 17
    %v1294 = vpop.permute.xlu0 %1293
    %1295 = vrot.lane.b32.xlu0 %v1198, 17
    %v1296 = vpop.permute.xlu0 %1295
    %1297 = vrot.lane.b32.xlu0 %v1206, 17
    %v1298 = vpop.permute.xlu0 %1297
    %1299 = vrot.lane.b32.xlu0 %v1214, 17
    %v1300 = vpop.permute.xlu0 %1299
    %1301 = vrot.lane.b32.xlu0 %v1222, 17
    %v1302 = vpop.permute.xlu0 %1301
    %1303 = vrot.lane.b32.xlu0 %v1230, 17
    %v1304 = vpop.permute.xlu0 %1303
    %1305 = vrot.lane.b32.xlu0 %v1238, 17
    %v1306 = vpop.permute.xlu0 %1305
    %1307 = vrot.lane.b32.xlu0 %v1183, 17
    %v1308 = vpop.permute.xlu0 %1307
    %1309 = vrot.lane.b32.xlu0 %v1191, 17
    %v1310 = vpop.permute.xlu0 %1309
    %1311 = vrot.lane.b32.xlu0 %v1199, 17
    %v1312 = vpop.permute.xlu0 %1311
    %1313 = vrot.lane.b32.xlu0 %v1207, 17
    %v1314 = vpop.permute.xlu0 %1313
    %1315 = vrot.lane.b32.xlu0 %v1215, 17
    %v1316 = vpop.permute.xlu0 %1315
    %1317 = vrot.lane.b32.xlu0 %v1223, 17
    %v1318 = vpop.permute.xlu0 %1317
    %1319 = vrot.lane.b32.xlu0 %v1231, 17
    %v1320 = vpop.permute.xlu0 %1319
    %1321 = vrot.lane.b32.xlu0 %v1239, 17
    %v1322 = vpop.permute.xlu0 %1321
    %1323 = vrot.lane.b32.xlu0 %v1184, 17
    %v1324 = vpop.permute.xlu0 %1323
    %1325 = vrot.lane.b32.xlu0 %v1192, 17
    %v1326 = vpop.permute.xlu0 %1325
    %1327 = vrot.lane.b32.xlu0 %v1200, 17
    %v1328 = vpop.permute.xlu0 %1327
    %1329 = vrot.lane.b32.xlu0 %v1208, 17
    %v1330 = vpop.permute.xlu0 %1329
    %1331 = vrot.lane.b32.xlu0 %v1216, 17
    %v1332 = vpop.permute.xlu0 %1331
    %1333 = vrot.lane.b32.xlu0 %v1224, 17
    %v1334 = vpop.permute.xlu0 %1333
    %1335 = vrot.lane.b32.xlu0 %v1232, 17
    %v1336 = vpop.permute.xlu0 %1335
    %1337 = vrot.lane.b32.xlu0 %v1240, 17
    %v1338 = vpop.permute.xlu0 %1337
    %1339 = vrot.lane.b32.xlu0 %v1185, 17
    %v1340 = vpop.permute.xlu0 %1339
    %1341 = vrot.lane.b32.xlu0 %v1193, 17
    %v1342 = vpop.permute.xlu0 %1341
    %1343 = vrot.lane.b32.xlu0 %v1201, 17
    %v1344 = vpop.permute.xlu0 %1343
    %1345 = vrot.lane.b32.xlu0 %v1209, 17
    %v1346 = vpop.permute.xlu0 %1345
    %1347 = vrot.lane.b32.xlu0 %v1217, 17
    %v1348 = vpop.permute.xlu0 %1347
    %1349 = vrot.lane.b32.xlu0 %v1225, 17
    %v1350 = vpop.permute.xlu0 %1349
    %1351 = vrot.lane.b32.xlu0 %v1233, 17
    %v1352 = vpop.permute.xlu0 %1351
    %1353 = vrot.lane.b32.xlu0 %v1241, 17
    %v1354 = vpop.permute.xlu0 %1353
    %1355 = vrot.lane.b32.xlu0 %v1186, 17
    %v1356 = vpop.permute.xlu0 %1355
    %1357 = vrot.lane.b32.xlu0 %v1194, 17
    %v1358 = vpop.permute.xlu0 %1357
    %1359 = vrot.lane.b32.xlu0 %v1202, 17
    %v1360 = vpop.permute.xlu0 %1359
    %1361 = vrot.lane.b32.xlu0 %v1210, 17
    %v1362 = vpop.permute.xlu0 %1361
    %1363 = vrot.lane.b32.xlu0 %v1218, 17
    %v1364 = vpop.permute.xlu0 %1363
    %1365 = vrot.lane.b32.xlu0 %v1226, 17
    %v1366 = vpop.permute.xlu0 %1365
    %1367 = vrot.lane.b32.xlu0 %v1234, 17
    %v1368 = vpop.permute.xlu0 %1367
    %1369 = vrot.lane.b32.xlu0 %v1242, 17
    %v1370 = vpop.permute.xlu0 %1369
    %v1371 = vsel %vm131, %v1340, %v1356
    %v1372 = vsel %vm131, %v1342, %v1358
    %v1373 = vsel %vm131, %v1344, %v1360
    %v1374 = vsel %vm131, %v1346, %v1362
    %v1375 = vsel %vm131, %v1348, %v1364
    %v1376 = vsel %vm131, %v1350, %v1366
    %v1377 = vsel %vm131, %v1352, %v1368
    %v1378 = vsel %vm131, %v1354, %v1370
    %v1379 = vsel %vm131, %v1324, %v1340
    %v1380 = vsel %vm131, %v1326, %v1342
    %v1381 = vsel %vm131, %v1328, %v1344
    %v1382 = vsel %vm131, %v1330, %v1346
    %v1383 = vsel %vm131, %v1332, %v1348
    %v1384 = vsel %vm131, %v1334, %v1350
    %v1385 = vsel %vm131, %v1336, %v1352
    %v1386 = vsel %vm131, %v1338, %v1354
    %v1387 = vsel %vm131, %v1308, %v1324
    %v1388 = vsel %vm131, %v1310, %v1326
    %v1389 = vsel %vm131, %v1312, %v1328
    %v1390 = vsel %vm131, %v1314, %v1330
    %v1391 = vsel %vm131, %v1316, %v1332
    %v1392 = vsel %vm131, %v1318, %v1334
    %v1393 = vsel %vm131, %v1320, %v1336
    %v1394 = vsel %vm131, %v1322, %v1338
    %v1395 = vsel %vm131, %v1292, %v1308
    %v1396 = vsel %vm131, %v1294, %v1310
    %v1397 = vsel %vm131, %v1296, %v1312
    %v1398 = vsel %vm131, %v1298, %v1314
    %v1399 = vsel %vm131, %v1300, %v1316
    %v1400 = vsel %vm131, %v1302, %v1318
    %v1401 = vsel %vm131, %v1304, %v1320
    %v1402 = vsel %vm131, %v1306, %v1322
    %v1403 = vsel %vm131, %v1276, %v1292
    %v1404 = vsel %vm131, %v1278, %v1294
    %v1405 = vsel %vm131, %v1280, %v1296
    %v1406 = vsel %vm131, %v1282, %v1298
    %v1407 = vsel %vm131, %v1284, %v1300
    %v1408 = vsel %vm131, %v1286, %v1302
    %v1409 = vsel %vm131, %v1288, %v1304
    %v1410 = vsel %vm131, %v1290, %v1306
    %v1411 = vsel %vm131, %v1260, %v1276
    %v1412 = vsel %vm131, %v1262, %v1278
    %v1413 = vsel %vm131, %v1264, %v1280
    %v1414 = vsel %vm131, %v1266, %v1282
    %v1415 = vsel %vm131, %v1268, %v1284
    %v1416 = vsel %vm131, %v1270, %v1286
    %v1417 = vsel %vm131, %v1272, %v1288
    %v1418 = vsel %vm131, %v1274, %v1290
    %v1419 = vsel %vm131, %v1244, %v1260
    %v1420 = vsel %vm131, %v1246, %v1262
    %v1421 = vsel %vm131, %v1248, %v1264
    %v1422 = vsel %vm131, %v1250, %v1266
    %v1423 = vsel %vm131, %v1252, %v1268
    %v1424 = vsel %vm131, %v1254, %v1270
    %v1425 = vsel %vm131, %v1256, %v1272
    %v1426 = vsel %vm131, %v1258, %v1274
    %v1427 = vsel %vm131, %v1356, %v1244
    %v1428 = vsel %vm131, %v1358, %v1246
    %v1429 = vsel %vm131, %v1360, %v1248
    %v1430 = vsel %vm131, %v1362, %v1250
    %v1431 = vsel %vm131, %v1364, %v1252
    %v1432 = vsel %vm131, %v1366, %v1254
    %v1433 = vsel %vm131, %v1368, %v1256
    %v1434 = vsel %vm131, %v1370, %v1258
    %v1435 = vlaneseq
    %v1436 = vshrl.u32 %v1435, 7
    %v1437 = vsub.s32 0, %v1436
    %v1438 = vrot.slane %v56, %v1437
    %v1439 = vlaneseq
    %v1440 = vshrl.u32 %v1439, 7
    %v1441 = vsub.s32 0, %v1440
    %v1442 = vrot.slane %v57, %v1441
    %v1443 = vlaneseq
    %v1444 = vshrl.u32 %v1443, 7
    %v1445 = vsub.s32 0, %v1444
    %v1446 = vrot.slane %v58, %v1445
    %v1447 = vlaneseq
    %v1448 = vshrl.u32 %v1447, 7
    %v1449 = vsub.s32 0, %v1448
    %v1450 = vrot.slane %v59, %v1449
    %v1451 = vlaneseq
    %v1452 = vshrl.u32 %v1451, 7
    %v1453 = vsub.s32 0, %v1452
    %v1454 = vrot.slane %v60, %v1453
    %v1455 = vlaneseq
    %v1456 = vshrl.u32 %v1455, 7
    %v1457 = vsub.s32 0, %v1456
    %v1458 = vrot.slane %v61, %v1457
    %v1459 = vlaneseq
    %v1460 = vshrl.u32 %v1459, 7
    %v1461 = vsub.s32 0, %v1460
    %v1462 = vrot.slane %v62, %v1461
    %v1463 = vlaneseq
    %v1464 = vshrl.u32 %v1463, 7
    %v1465 = vsub.s32 0, %v1464
    %v1466 = vrot.slane %v63, %v1465
    %v1467 = vmul.f32 %v1427, %v1438
    %v1468 = vmul.f32 %v1419, %v1442
    %v1469 = vmul.f32 %v1411, %v1446
    %v1470 = vmul.f32 %v1403, %v1450
    %v1471 = vmul.f32 %v1395, %v1454
    %v1472 = vmul.f32 %v1387, %v1458
    %v1473 = vmul.f32 %v1379, %v1462
    %v1474 = vmul.f32 %v1371, %v1466
    %v1475 = vmul.f32 %v1428, %v1438
    %v1476 = vmul.f32 %v1420, %v1442
    %v1477 = vmul.f32 %v1412, %v1446
    %v1478 = vmul.f32 %v1404, %v1450
    %v1479 = vmul.f32 %v1396, %v1454
    %v1480 = vmul.f32 %v1388, %v1458
    %v1481 = vmul.f32 %v1380, %v1462
    %v1482 = vmul.f32 %v1372, %v1466
    %v1483 = vmul.f32 %v1429, %v1438
    %v1484 = vmul.f32 %v1421, %v1442
    %v1485 = vmul.f32 %v1413, %v1446
    %v1486 = vmul.f32 %v1405, %v1450
    %v1487 = vmul.f32 %v1397, %v1454
    %v1488 = vmul.f32 %v1389, %v1458
    %v1489 = vmul.f32 %v1381, %v1462
    %v1490 = vmul.f32 %v1373, %v1466
    %v1491 = vmul.f32 %v1430, %v1438
    %v1492 = vmul.f32 %v1422, %v1442
    %v1493 = vmul.f32 %v1414, %v1446
    %v1494 = vmul.f32 %v1406, %v1450
    %v1495 = vmul.f32 %v1398, %v1454
    %v1496 = vmul.f32 %v1390, %v1458
    %v1497 = vmul.f32 %v1382, %v1462
    %v1498 = vmul.f32 %v1374, %v1466
    %v1499 = vmul.f32 %v1431, %v1438
    %v1500 = vmul.f32 %v1423, %v1442
    %v1501 = vmul.f32 %v1415, %v1446
    %v1502 = vmul.f32 %v1407, %v1450
    %v1503 = vmul.f32 %v1399, %v1454
    %v1504 = vmul.f32 %v1391, %v1458
    %v1505 = vmul.f32 %v1383, %v1462
    %v1506 = vmul.f32 %v1375, %v1466
    %v1507 = vmul.f32 %v1432, %v1438
    %v1508 = vmul.f32 %v1424, %v1442
    %v1509 = vmul.f32 %v1416, %v1446
    %v1510 = vmul.f32 %v1408, %v1450
    %v1511 = vmul.f32 %v1400, %v1454
    %v1512 = vmul.f32 %v1392, %v1458
    %v1513 = vmul.f32 %v1384, %v1462
    %v1514 = vmul.f32 %v1376, %v1466
    %v1515 = vmul.f32 %v1433, %v1438
    %v1516 = vmul.f32 %v1425, %v1442
    %v1517 = vmul.f32 %v1417, %v1446
    %v1518 = vmul.f32 %v1409, %v1450
    %v1519 = vmul.f32 %v1401, %v1454
    %v1520 = vmul.f32 %v1393, %v1458
    %v1521 = vmul.f32 %v1385, %v1462
    %v1522 = vmul.f32 %v1377, %v1466
    %v1523 = vmul.f32 %v1434, %v1438
    %v1524 = vmul.f32 %v1426, %v1442
    %v1525 = vmul.f32 %v1418, %v1446
    %v1526 = vmul.f32 %v1410, %v1450
    %v1527 = vmul.f32 %v1402, %v1454
    %v1528 = vmul.f32 %v1394, %v1458
    %v1529 = vmul.f32 %v1386, %v1462
    %v1530 = vmul.f32 %v1378, %v1466
    %v1531 = vpack.c.bf16 %v1475, %v1467
    %v1532 = vpack.c.bf16 %v1476, %v1468
    %v1533 = vpack.c.bf16 %v1477, %v1469
    %v1534 = vpack.c.bf16 %v1478, %v1470
    %v1535 = vpack.c.bf16 %v1479, %v1471
    %v1536 = vpack.c.bf16 %v1480, %v1472
    %v1537 = vpack.c.bf16 %v1481, %v1473
    %v1538 = vpack.c.bf16 %v1482, %v1474
    %v1539 = vpack.c.bf16 %v1491, %v1483
    %v1540 = vpack.c.bf16 %v1492, %v1484
    %v1541 = vpack.c.bf16 %v1493, %v1485
    %v1542 = vpack.c.bf16 %v1494, %v1486
    %v1543 = vpack.c.bf16 %v1495, %v1487
    %v1544 = vpack.c.bf16 %v1496, %v1488
    %v1545 = vpack.c.bf16 %v1497, %v1489
    %v1546 = vpack.c.bf16 %v1498, %v1490
    %v1547 = vpack.c.bf16 %v1507, %v1499
    %v1548 = vpack.c.bf16 %v1508, %v1500
    %v1549 = vpack.c.bf16 %v1509, %v1501
    %v1550 = vpack.c.bf16 %v1510, %v1502
    %v1551 = vpack.c.bf16 %v1511, %v1503
    %v1552 = vpack.c.bf16 %v1512, %v1504
    %v1553 = vpack.c.bf16 %v1513, %v1505
    %v1554 = vpack.c.bf16 %v1514, %v1506
    %v1555 = vpack.c.bf16 %v1523, %v1515
    %v1556 = vpack.c.bf16 %v1524, %v1516
    %v1557 = vpack.c.bf16 %v1525, %v1517
    %v1558 = vpack.c.bf16 %v1526, %v1518
    %v1559 = vpack.c.bf16 %v1527, %v1519
    %v1560 = vpack.c.bf16 %v1528, %v1520
    %v1561 = vpack.c.bf16 %v1529, %v1521
    %v1562 = vpack.c.bf16 %v1530, %v1522
    %1563 = vrot.lane.b32.xlu0 %v1179, 16
    %v1564 = vpop.permute.xlu0 %1563
    %1565 = vrot.lane.b32.xlu0 %v1187, 16
    %v1566 = vpop.permute.xlu0 %1565
    %1567 = vrot.lane.b32.xlu0 %v1195, 16
    %v1568 = vpop.permute.xlu0 %1567
    %1569 = vrot.lane.b32.xlu0 %v1203, 16
    %v1570 = vpop.permute.xlu0 %1569
    %1571 = vrot.lane.b32.xlu0 %v1211, 16
    %v1572 = vpop.permute.xlu0 %1571
    %1573 = vrot.lane.b32.xlu0 %v1219, 16
    %v1574 = vpop.permute.xlu0 %1573
    %1575 = vrot.lane.b32.xlu0 %v1227, 16
    %v1576 = vpop.permute.xlu0 %1575
    %1577 = vrot.lane.b32.xlu0 %v1235, 16
    %v1578 = vpop.permute.xlu0 %1577
    %1579 = vrot.lane.b32.xlu0 %v1180, 16
    %v1580 = vpop.permute.xlu0 %1579
    %1581 = vrot.lane.b32.xlu0 %v1188, 16
    %v1582 = vpop.permute.xlu0 %1581
    %1583 = vrot.lane.b32.xlu0 %v1196, 16
    %v1584 = vpop.permute.xlu0 %1583
    %1585 = vrot.lane.b32.xlu0 %v1204, 16
    %v1586 = vpop.permute.xlu0 %1585
    %1587 = vrot.lane.b32.xlu0 %v1212, 16
    %v1588 = vpop.permute.xlu0 %1587
    %1589 = vrot.lane.b32.xlu0 %v1220, 16
    %v1590 = vpop.permute.xlu0 %1589
    %1591 = vrot.lane.b32.xlu0 %v1228, 16
    %v1592 = vpop.permute.xlu0 %1591
    %1593 = vrot.lane.b32.xlu0 %v1236, 16
    %v1594 = vpop.permute.xlu0 %1593
    %1595 = vrot.lane.b32.xlu0 %v1181, 16
    %v1596 = vpop.permute.xlu0 %1595
    %1597 = vrot.lane.b32.xlu0 %v1189, 16
    %v1598 = vpop.permute.xlu0 %1597
    %1599 = vrot.lane.b32.xlu0 %v1197, 16
    %v1600 = vpop.permute.xlu0 %1599
    %1601 = vrot.lane.b32.xlu0 %v1205, 16
    %v1602 = vpop.permute.xlu0 %1601
    %1603 = vrot.lane.b32.xlu0 %v1213, 16
    %v1604 = vpop.permute.xlu0 %1603
    %1605 = vrot.lane.b32.xlu0 %v1221, 16
    %v1606 = vpop.permute.xlu0 %1605
    %1607 = vrot.lane.b32.xlu0 %v1229, 16
    %v1608 = vpop.permute.xlu0 %1607
    %1609 = vrot.lane.b32.xlu0 %v1237, 16
    %v1610 = vpop.permute.xlu0 %1609
    %1611 = vrot.lane.b32.xlu0 %v1182, 16
    %v1612 = vpop.permute.xlu0 %1611
    %1613 = vrot.lane.b32.xlu0 %v1190, 16
    %v1614 = vpop.permute.xlu0 %1613
    %1615 = vrot.lane.b32.xlu0 %v1198, 16
    %v1616 = vpop.permute.xlu0 %1615
    %1617 = vrot.lane.b32.xlu0 %v1206, 16
    %v1618 = vpop.permute.xlu0 %1617
    %1619 = vrot.lane.b32.xlu0 %v1214, 16
    %v1620 = vpop.permute.xlu0 %1619
    %1621 = vrot.lane.b32.xlu0 %v1222, 16
    %v1622 = vpop.permute.xlu0 %1621
    %1623 = vrot.lane.b32.xlu0 %v1230, 16
    %v1624 = vpop.permute.xlu0 %1623
    %1625 = vrot.lane.b32.xlu0 %v1238, 16
    %v1626 = vpop.permute.xlu0 %1625
    %1627 = vrot.lane.b32.xlu0 %v1183, 16
    %v1628 = vpop.permute.xlu0 %1627
    %1629 = vrot.lane.b32.xlu0 %v1191, 16
    %v1630 = vpop.permute.xlu0 %1629
    %1631 = vrot.lane.b32.xlu0 %v1199, 16
    %v1632 = vpop.permute.xlu0 %1631
    %1633 = vrot.lane.b32.xlu0 %v1207, 16
    %v1634 = vpop.permute.xlu0 %1633
    %1635 = vrot.lane.b32.xlu0 %v1215, 16
    %v1636 = vpop.permute.xlu0 %1635
    %1637 = vrot.lane.b32.xlu0 %v1223, 16
    %v1638 = vpop.permute.xlu0 %1637
    %1639 = vrot.lane.b32.xlu0 %v1231, 16
    %v1640 = vpop.permute.xlu0 %1639
    %1641 = vrot.lane.b32.xlu0 %v1239, 16
    %v1642 = vpop.permute.xlu0 %1641
    %1643 = vrot.lane.b32.xlu0 %v1184, 16
    %v1644 = vpop.permute.xlu0 %1643
    %1645 = vrot.lane.b32.xlu0 %v1192, 16
    %v1646 = vpop.permute.xlu0 %1645
    %1647 = vrot.lane.b32.xlu0 %v1200, 16
    %v1648 = vpop.permute.xlu0 %1647
    %1649 = vrot.lane.b32.xlu0 %v1208, 16
    %v1650 = vpop.permute.xlu0 %1649
    %1651 = vrot.lane.b32.xlu0 %v1216, 16
    %v1652 = vpop.permute.xlu0 %1651
    %1653 = vrot.lane.b32.xlu0 %v1224, 16
    %v1654 = vpop.permute.xlu0 %1653
    %1655 = vrot.lane.b32.xlu0 %v1232, 16
    %v1656 = vpop.permute.xlu0 %1655
    %1657 = vrot.lane.b32.xlu0 %v1240, 16
    %v1658 = vpop.permute.xlu0 %1657
    %1659 = vrot.lane.b32.xlu0 %v1185, 16
    %v1660 = vpop.permute.xlu0 %1659
    %1661 = vrot.lane.b32.xlu0 %v1193, 16
    %v1662 = vpop.permute.xlu0 %1661
    %1663 = vrot.lane.b32.xlu0 %v1201, 16
    %v1664 = vpop.permute.xlu0 %1663
    %1665 = vrot.lane.b32.xlu0 %v1209, 16
    %v1666 = vpop.permute.xlu0 %1665
    %1667 = vrot.lane.b32.xlu0 %v1217, 16
    %v1668 = vpop.permute.xlu0 %1667
    %1669 = vrot.lane.b32.xlu0 %v1225, 16
    %v1670 = vpop.permute.xlu0 %1669
    %1671 = vrot.lane.b32.xlu0 %v1233, 16
    %v1672 = vpop.permute.xlu0 %1671
    %1673 = vrot.lane.b32.xlu0 %v1241, 16
    %v1674 = vpop.permute.xlu0 %1673
    %1675 = vrot.lane.b32.xlu0 %v1186, 16
    %v1676 = vpop.permute.xlu0 %1675
    %1677 = vrot.lane.b32.xlu0 %v1194, 16
    %v1678 = vpop.permute.xlu0 %1677
    %1679 = vrot.lane.b32.xlu0 %v1202, 16
    %v1680 = vpop.permute.xlu0 %1679
    %1681 = vrot.lane.b32.xlu0 %v1210, 16
    %v1682 = vpop.permute.xlu0 %1681
    %1683 = vrot.lane.b32.xlu0 %v1218, 16
    %v1684 = vpop.permute.xlu0 %1683
    %1685 = vrot.lane.b32.xlu0 %v1226, 16
    %v1686 = vpop.permute.xlu0 %1685
    %1687 = vrot.lane.b32.xlu0 %v1234, 16
    %v1688 = vpop.permute.xlu0 %1687
    %1689 = vrot.lane.b32.xlu0 %v1242, 16
    %v1690 = vpop.permute.xlu0 %1689
    %v1691 = vsel %vm164, %v1660, %v1676
    %v1692 = vsel %vm164, %v1662, %v1678
    %v1693 = vsel %vm164, %v1664, %v1680
    %v1694 = vsel %vm164, %v1666, %v1682
    %v1695 = vsel %vm164, %v1668, %v1684
    %v1696 = vsel %vm164, %v1670, %v1686
    %v1697 = vsel %vm164, %v1672, %v1688
    %v1698 = vsel %vm164, %v1674, %v1690
    %v1699 = vsel %vm164, %v1644, %v1660
    %v1700 = vsel %vm164, %v1646, %v1662
    %v1701 = vsel %vm164, %v1648, %v1664
    %v1702 = vsel %vm164, %v1650, %v1666
    %v1703 = vsel %vm164, %v1652, %v1668
    %v1704 = vsel %vm164, %v1654, %v1670
    %v1705 = vsel %vm164, %v1656, %v1672
    %v1706 = vsel %vm164, %v1658, %v1674
    %v1707 = vsel %vm164, %v1628, %v1644
    %v1708 = vsel %vm164, %v1630, %v1646
    %v1709 = vsel %vm164, %v1632, %v1648
    %v1710 = vsel %vm164, %v1634, %v1650
    %v1711 = vsel %vm164, %v1636, %v1652
    %v1712 = vsel %vm164, %v1638, %v1654
    %v1713 = vsel %vm164, %v1640, %v1656
    %v1714 = vsel %vm164, %v1642, %v1658
    %v1715 = vsel %vm164, %v1612, %v1628
    %v1716 = vsel %vm164, %v1614, %v1630
    %v1717 = vsel %vm164, %v1616, %v1632
    %v1718 = vsel %vm164, %v1618, %v1634
    %v1719 = vsel %vm164, %v1620, %v1636
    %v1720 = vsel %vm164, %v1622, %v1638
    %v1721 = vsel %vm164, %v1624, %v1640
    %v1722 = vsel %vm164, %v1626, %v1642
    %v1723 = vsel %vm164, %v1596, %v1612
    %v1724 = vsel %vm164, %v1598, %v1614
    %v1725 = vsel %vm164, %v1600, %v1616
    %v1726 = vsel %vm164, %v1602, %v1618
    %v1727 = vsel %vm164, %v1604, %v1620
    %v1728 = vsel %vm164, %v1606, %v1622
    %v1729 = vsel %vm164, %v1608, %v1624
    %v1730 = vsel %vm164, %v1610, %v1626
    %v1731 = vsel %vm164, %v1580, %v1596
    %v1732 = vsel %vm164, %v1582, %v1598
    %v1733 = vsel %vm164, %v1584, %v1600
    %v1734 = vsel %vm164, %v1586, %v1602
    %v1735 = vsel %vm164, %v1588, %v1604
    %v1736 = vsel %vm164, %v1590, %v1606
    %v1737 = vsel %vm164, %v1592, %v1608
    %v1738 = vsel %vm164, %v1594, %v1610
    %v1739 = vsel %vm164, %v1564, %v1580
    %v1740 = vsel %vm164, %v1566, %v1582
    %v1741 = vsel %vm164, %v1568, %v1584
    %v1742 = vsel %vm164, %v1570, %v1586
    %v1743 = vsel %vm164, %v1572, %v1588
    %v1744 = vsel %vm164, %v1574, %v1590
    %v1745 = vsel %vm164, %v1576, %v1592
    %v1746 = vsel %vm164, %v1578, %v1594
    %v1747 = vsel %vm164, %v1676, %v1564
    %v1748 = vsel %vm164, %v1678, %v1566
    %v1749 = vsel %vm164, %v1680, %v1568
    %v1750 = vsel %vm164, %v1682, %v1570
    %v1751 = vsel %vm164, %v1684, %v1572
    %v1752 = vsel %vm164, %v1686, %v1574
    %v1753 = vsel %vm164, %v1688, %v1576
    %v1754 = vsel %vm164, %v1690, %v1578
    %v1755 = vlaneseq
    %v1756 = vshrl.u32 %v1755, 7
    %v1757 = vsub.s32 1, %v1756
    %v1758 = vrot.slane %v56, %v1757
    %v1759 = vlaneseq
    %v1760 = vshrl.u32 %v1759, 7
    %v1761 = vsub.s32 1, %v1760
    %v1762 = vrot.slane %v57, %v1761
    %v1763 = vlaneseq
    %v1764 = vshrl.u32 %v1763, 7
    %v1765 = vsub.s32 1, %v1764
    %v1766 = vrot.slane %v58, %v1765
    %v1767 = vlaneseq
    %v1768 = vshrl.u32 %v1767, 7
    %v1769 = vsub.s32 1, %v1768
    %v1770 = vrot.slane %v59, %v1769
    %v1771 = vlaneseq
    %v1772 = vshrl.u32 %v1771, 7
    %v1773 = vsub.s32 1, %v1772
    %v1774 = vrot.slane %v60, %v1773
    %v1775 = vlaneseq
    %v1776 = vshrl.u32 %v1775, 7
    %v1777 = vsub.s32 1, %v1776
    %v1778 = vrot.slane %v61, %v1777
    %v1779 = vlaneseq
    %v1780 = vshrl.u32 %v1779, 7
    %v1781 = vsub.s32 1, %v1780
    %v1782 = vrot.slane %v62, %v1781
    %v1783 = vlaneseq
    %v1784 = vshrl.u32 %v1783, 7
    %v1785 = vsub.s32 1, %v1784
    %v1786 = vrot.slane %v63, %v1785
    %v1787 = vmul.f32 %v1747, %v1758
    %v1788 = vmul.f32 %v1739, %v1762
    %v1789 = vmul.f32 %v1731, %v1766
    %v1790 = vmul.f32 %v1723, %v1770
    %v1791 = vmul.f32 %v1715, %v1774
    %v1792 = vmul.f32 %v1707, %v1778
    %v1793 = vmul.f32 %v1699, %v1782
    %v1794 = vmul.f32 %v1691, %v1786
    %v1795 = vmul.f32 %v1748, %v1758
    %v1796 = vmul.f32 %v1740, %v1762
    %v1797 = vmul.f32 %v1732, %v1766
    %v1798 = vmul.f32 %v1724, %v1770
    %v1799 = vmul.f32 %v1716, %v1774
    %v1800 = vmul.f32 %v1708, %v1778
    %v1801 = vmul.f32 %v1700, %v1782
    %v1802 = vmul.f32 %v1692, %v1786
    %v1803 = vmul.f32 %v1749, %v1758
    %v1804 = vmul.f32 %v1741, %v1762
    %v1805 = vmul.f32 %v1733, %v1766
    %v1806 = vmul.f32 %v1725, %v1770
    %v1807 = vmul.f32 %v1717, %v1774
    %v1808 = vmul.f32 %v1709, %v1778
    %v1809 = vmul.f32 %v1701, %v1782
    %v1810 = vmul.f32 %v1693, %v1786
    %v1811 = vmul.f32 %v1750, %v1758
    %v1812 = vmul.f32 %v1742, %v1762
    %v1813 = vmul.f32 %v1734, %v1766
    %v1814 = vmul.f32 %v1726, %v1770
    %v1815 = vmul.f32 %v1718, %v1774
    %v1816 = vmul.f32 %v1710, %v1778
    %v1817 = vmul.f32 %v1702, %v1782
    %v1818 = vmul.f32 %v1694, %v1786
    %v1819 = vmul.f32 %v1751, %v1758
    %v1820 = vmul.f32 %v1743, %v1762
    %v1821 = vmul.f32 %v1735, %v1766
    %v1822 = vmul.f32 %v1727, %v1770
    %v1823 = vmul.f32 %v1719, %v1774
    %v1824 = vmul.f32 %v1711, %v1778
    %v1825 = vmul.f32 %v1703, %v1782
    %v1826 = vmul.f32 %v1695, %v1786
    %v1827 = vmul.f32 %v1752, %v1758
    %v1828 = vmul.f32 %v1744, %v1762
    %v1829 = vmul.f32 %v1736, %v1766
    %v1830 = vmul.f32 %v1728, %v1770
    %v1831 = vmul.f32 %v1720, %v1774
    %v1832 = vmul.f32 %v1712, %v1778
    %v1833 = vmul.f32 %v1704, %v1782
    %v1834 = vmul.f32 %v1696, %v1786
    %v1835 = vmul.f32 %v1753, %v1758
    %v1836 = vmul.f32 %v1745, %v1762
    %v1837 = vmul.f32 %v1737, %v1766
    %v1838 = vmul.f32 %v1729, %v1770
    %v1839 = vmul.f32 %v1721, %v1774
    %v1840 = vmul.f32 %v1713, %v1778
    %v1841 = vmul.f32 %v1705, %v1782
    %v1842 = vmul.f32 %v1697, %v1786
    %v1843 = vmul.f32 %v1754, %v1758
    %v1844 = vmul.f32 %v1746, %v1762
    %v1845 = vmul.f32 %v1738, %v1766
    %v1846 = vmul.f32 %v1730, %v1770
    %v1847 = vmul.f32 %v1722, %v1774
    %v1848 = vmul.f32 %v1714, %v1778
    %v1849 = vmul.f32 %v1706, %v1782
    %v1850 = vmul.f32 %v1698, %v1786
    %v1851 = vpack.c.bf16 %v1795, %v1787
    %v1852 = vpack.c.bf16 %v1796, %v1788
    %v1853 = vpack.c.bf16 %v1797, %v1789
    %v1854 = vpack.c.bf16 %v1798, %v1790
    %v1855 = vpack.c.bf16 %v1799, %v1791
    %v1856 = vpack.c.bf16 %v1800, %v1792
    %v1857 = vpack.c.bf16 %v1801, %v1793
    %v1858 = vpack.c.bf16 %v1802, %v1794
    %v1859 = vpack.c.bf16 %v1811, %v1803
    %v1860 = vpack.c.bf16 %v1812, %v1804
    %v1861 = vpack.c.bf16 %v1813, %v1805
    %v1862 = vpack.c.bf16 %v1814, %v1806
    %v1863 = vpack.c.bf16 %v1815, %v1807
    %v1864 = vpack.c.bf16 %v1816, %v1808
    %v1865 = vpack.c.bf16 %v1817, %v1809
    %v1866 = vpack.c.bf16 %v1818, %v1810
    %v1867 = vpack.c.bf16 %v1827, %v1819
    %v1868 = vpack.c.bf16 %v1828, %v1820
    %v1869 = vpack.c.bf16 %v1829, %v1821
    %v1870 = vpack.c.bf16 %v1830, %v1822
    %v1871 = vpack.c.bf16 %v1831, %v1823
    %v1872 = vpack.c.bf16 %v1832, %v1824
    %v1873 = vpack.c.bf16 %v1833, %v1825
    %v1874 = vpack.c.bf16 %v1834, %v1826
    %v1875 = vpack.c.bf16 %v1843, %v1835
    %v1876 = vpack.c.bf16 %v1844, %v1836
    %v1877 = vpack.c.bf16 %v1845, %v1837
    %v1878 = vpack.c.bf16 %v1846, %v1838
    %v1879 = vpack.c.bf16 %v1847, %v1839
    %v1880 = vpack.c.bf16 %v1848, %v1840
    %v1881 = vpack.c.bf16 %v1849, %v1841
    %v1882 = vpack.c.bf16 %v1850, %v1842
    %1883 = vrot.lane.b32.xlu0 %v1179, 15
    %v1884 = vpop.permute.xlu0 %1883
    %1885 = vrot.lane.b32.xlu0 %v1187, 15
    %v1886 = vpop.permute.xlu0 %1885
    %1887 = vrot.lane.b32.xlu0 %v1195, 15
    %v1888 = vpop.permute.xlu0 %1887
    %1889 = vrot.lane.b32.xlu0 %v1203, 15
    %v1890 = vpop.permute.xlu0 %1889
    %1891 = vrot.lane.b32.xlu0 %v1211, 15
    %v1892 = vpop.permute.xlu0 %1891
    %1893 = vrot.lane.b32.xlu0 %v1219, 15
    %v1894 = vpop.permute.xlu0 %1893
    %1895 = vrot.lane.b32.xlu0 %v1227, 15
    %v1896 = vpop.permute.xlu0 %1895
    %1897 = vrot.lane.b32.xlu0 %v1235, 15
    %v1898 = vpop.permute.xlu0 %1897
    %1899 = vrot.lane.b32.xlu0 %v1180, 15
    %v1900 = vpop.permute.xlu0 %1899
    %1901 = vrot.lane.b32.xlu0 %v1188, 15
    %v1902 = vpop.permute.xlu0 %1901
    %1903 = vrot.lane.b32.xlu0 %v1196, 15
    %v1904 = vpop.permute.xlu0 %1903
    %1905 = vrot.lane.b32.xlu0 %v1204, 15
    %v1906 = vpop.permute.xlu0 %1905
    %1907 = vrot.lane.b32.xlu0 %v1212, 15
    %v1908 = vpop.permute.xlu0 %1907
    %1909 = vrot.lane.b32.xlu0 %v1220, 15
    %v1910 = vpop.permute.xlu0 %1909
    %1911 = vrot.lane.b32.xlu0 %v1228, 15
    %v1912 = vpop.permute.xlu0 %1911
    %1913 = vrot.lane.b32.xlu0 %v1236, 15
    %v1914 = vpop.permute.xlu0 %1913
    %1915 = vrot.lane.b32.xlu0 %v1181, 15
    %v1916 = vpop.permute.xlu0 %1915
    %1917 = vrot.lane.b32.xlu0 %v1189, 15
    %v1918 = vpop.permute.xlu0 %1917
    %1919 = vrot.lane.b32.xlu0 %v1197, 15
    %v1920 = vpop.permute.xlu0 %1919
    %1921 = vrot.lane.b32.xlu0 %v1205, 15
    %v1922 = vpop.permute.xlu0 %1921
    %1923 = vrot.lane.b32.xlu0 %v1213, 15
    %v1924 = vpop.permute.xlu0 %1923
    %1925 = vrot.lane.b32.xlu0 %v1221, 15
    %v1926 = vpop.permute.xlu0 %1925
    %1927 = vrot.lane.b32.xlu0 %v1229, 15
    %v1928 = vpop.permute.xlu0 %1927
    %1929 = vrot.lane.b32.xlu0 %v1237, 15
    %v1930 = vpop.permute.xlu0 %1929
    %1931 = vrot.lane.b32.xlu0 %v1182, 15
    %v1932 = vpop.permute.xlu0 %1931
    %1933 = vrot.lane.b32.xlu0 %v1190, 15
    %v1934 = vpop.permute.xlu0 %1933
    %1935 = vrot.lane.b32.xlu0 %v1198, 15
    %v1936 = vpop.permute.xlu0 %1935
    %1937 = vrot.lane.b32.xlu0 %v1206, 15
    %v1938 = vpop.permute.xlu0 %1937
    %1939 = vrot.lane.b32.xlu0 %v1214, 15
    %v1940 = vpop.permute.xlu0 %1939
    %1941 = vrot.lane.b32.xlu0 %v1222, 15
    %v1942 = vpop.permute.xlu0 %1941
    %1943 = vrot.lane.b32.xlu0 %v1230, 15
    %v1944 = vpop.permute.xlu0 %1943
    %1945 = vrot.lane.b32.xlu0 %v1238, 15
    %v1946 = vpop.permute.xlu0 %1945
    %1947 = vrot.lane.b32.xlu0 %v1183, 15
    %v1948 = vpop.permute.xlu0 %1947
    %1949 = vrot.lane.b32.xlu0 %v1191, 15
    %v1950 = vpop.permute.xlu0 %1949
    %1951 = vrot.lane.b32.xlu0 %v1199, 15
    %v1952 = vpop.permute.xlu0 %1951
    %1953 = vrot.lane.b32.xlu0 %v1207, 15
    %v1954 = vpop.permute.xlu0 %1953
    %1955 = vrot.lane.b32.xlu0 %v1215, 15
    %v1956 = vpop.permute.xlu0 %1955
    %1957 = vrot.lane.b32.xlu0 %v1223, 15
    %v1958 = vpop.permute.xlu0 %1957
    %1959 = vrot.lane.b32.xlu0 %v1231, 15
    %v1960 = vpop.permute.xlu0 %1959
    %1961 = vrot.lane.b32.xlu0 %v1239, 15
    %v1962 = vpop.permute.xlu0 %1961
    %1963 = vrot.lane.b32.xlu0 %v1184, 15
    %v1964 = vpop.permute.xlu0 %1963
    %1965 = vrot.lane.b32.xlu0 %v1192, 15
    %v1966 = vpop.permute.xlu0 %1965
    %1967 = vrot.lane.b32.xlu0 %v1200, 15
    %v1968 = vpop.permute.xlu0 %1967
    %1969 = vrot.lane.b32.xlu0 %v1208, 15
    %v1970 = vpop.permute.xlu0 %1969
    %1971 = vrot.lane.b32.xlu0 %v1216, 15
    %v1972 = vpop.permute.xlu0 %1971
    %1973 = vrot.lane.b32.xlu0 %v1224, 15
    %v1974 = vpop.permute.xlu0 %1973
    %1975 = vrot.lane.b32.xlu0 %v1232, 15
    %v1976 = vpop.permute.xlu0 %1975
    %1977 = vrot.lane.b32.xlu0 %v1240, 15
    %v1978 = vpop.permute.xlu0 %1977
    %1979 = vrot.lane.b32.xlu0 %v1185, 15
    %v1980 = vpop.permute.xlu0 %1979
    %1981 = vrot.lane.b32.xlu0 %v1193, 15
    %v1982 = vpop.permute.xlu0 %1981
    %1983 = vrot.lane.b32.xlu0 %v1201, 15
    %v1984 = vpop.permute.xlu0 %1983
    %1985 = vrot.lane.b32.xlu0 %v1209, 15
    %v1986 = vpop.permute.xlu0 %1985
    %1987 = vrot.lane.b32.xlu0 %v1217, 15
    %v1988 = vpop.permute.xlu0 %1987
    %1989 = vrot.lane.b32.xlu0 %v1225, 15
    %v1990 = vpop.permute.xlu0 %1989
    %1991 = vrot.lane.b32.xlu0 %v1233, 15
    %v1992 = vpop.permute.xlu0 %1991
    %1993 = vrot.lane.b32.xlu0 %v1241, 15
    %v1994 = vpop.permute.xlu0 %1993
    %1995 = vrot.lane.b32.xlu0 %v1186, 15
    %v1996 = vpop.permute.xlu0 %1995
    %1997 = vrot.lane.b32.xlu0 %v1194, 15
    %v1998 = vpop.permute.xlu0 %1997
    %1999 = vrot.lane.b32.xlu0 %v1202, 15
    %v2000 = vpop.permute.xlu0 %1999
    %2001 = vrot.lane.b32.xlu0 %v1210, 15
    %v2002 = vpop.permute.xlu0 %2001
    %2003 = vrot.lane.b32.xlu0 %v1218, 15
    %v2004 = vpop.permute.xlu0 %2003
    %2005 = vrot.lane.b32.xlu0 %v1226, 15
    %v2006 = vpop.permute.xlu0 %2005
    %2007 = vrot.lane.b32.xlu0 %v1234, 15
    %v2008 = vpop.permute.xlu0 %2007
    %2009 = vrot.lane.b32.xlu0 %v1242, 15
    %v2010 = vpop.permute.xlu0 %2009
    %v2011 = vsel %vm221, %v1980, %v1996
    %v2012 = vsel %vm221, %v1982, %v1998
    %v2013 = vsel %vm221, %v1984, %v2000
    %v2014 = vsel %vm221, %v1986, %v2002
    %v2015 = vsel %vm221, %v1988, %v2004
    %v2016 = vsel %vm221, %v1990, %v2006
    %v2017 = vsel %vm221, %v1992, %v2008
    %v2018 = vsel %vm221, %v1994, %v2010
    %v2019 = vsel %vm221, %v1964, %v1980
    %v2020 = vsel %vm221, %v1966, %v1982
    %v2021 = vsel %vm221, %v1968, %v1984
    %v2022 = vsel %vm221, %v1970, %v1986
    %v2023 = vsel %vm221, %v1972, %v1988
    %v2024 = vsel %vm221, %v1974, %v1990
    %v2025 = vsel %vm221, %v1976, %v1992
    %v2026 = vsel %vm221, %v1978, %v1994
    %v2027 = vsel %vm221, %v1948, %v1964
    %v2028 = vsel %vm221, %v1950, %v1966
    %v2029 = vsel %vm221, %v1952, %v1968
    %v2030 = vsel %vm221, %v1954, %v1970
    %v2031 = vsel %vm221, %v1956, %v1972
    %v2032 = vsel %vm221, %v1958, %v1974
    %v2033 = vsel %vm221, %v1960, %v1976
    %v2034 = vsel %vm221, %v1962, %v1978
    %v2035 = vsel %vm221, %v1932, %v1948
    %v2036 = vsel %vm221, %v1934, %v1950
    %v2037 = vsel %vm221, %v1936, %v1952
    %v2038 = vsel %vm221, %v1938, %v1954
    %v2039 = vsel %vm221, %v1940, %v1956
    %v2040 = vsel %vm221, %v1942, %v1958
    %v2041 = vsel %vm221, %v1944, %v1960
    %v2042 = vsel %vm221, %v1946, %v1962
    %v2043 = vsel %vm221, %v1916, %v1932
    %v2044 = vsel %vm221, %v1918, %v1934
    %v2045 = vsel %vm221, %v1920, %v1936
    %v2046 = vsel %vm221, %v1922, %v1938
    %v2047 = vsel %vm221, %v1924, %v1940
    %v2048 = vsel %vm221, %v1926, %v1942
    %v2049 = vsel %vm221, %v1928, %v1944
    %v2050 = vsel %vm221, %v1930, %v1946
    %v2051 = vsel %vm221, %v1900, %v1916
    %v2052 = vsel %vm221, %v1902, %v1918
    %v2053 = vsel %vm221, %v1904, %v1920
    %v2054 = vsel %vm221, %v1906, %v1922
    %v2055 = vsel %vm221, %v1908, %v1924
    %v2056 = vsel %vm221, %v1910, %v1926
    %v2057 = vsel %vm221, %v1912, %v1928
    %v2058 = vsel %vm221, %v1914, %v1930
    %v2059 = vsel %vm221, %v1884, %v1900
    %v2060 = vsel %vm221, %v1886, %v1902
    %v2061 = vsel %vm221, %v1888, %v1904
    %v2062 = vsel %vm221, %v1890, %v1906
    %v2063 = vsel %vm221, %v1892, %v1908
    %v2064 = vsel %vm221, %v1894, %v1910
    %v2065 = vsel %vm221, %v1896, %v1912
    %v2066 = vsel %vm221, %v1898, %v1914
    %v2067 = vsel %vm221, %v1996, %v1884
    %v2068 = vsel %vm221, %v1998, %v1886
    %v2069 = vsel %vm221, %v2000, %v1888
    %v2070 = vsel %vm221, %v2002, %v1890
    %v2071 = vsel %vm221, %v2004, %v1892
    %v2072 = vsel %vm221, %v2006, %v1894
    %v2073 = vsel %vm221, %v2008, %v1896
    %v2074 = vsel %vm221, %v2010, %v1898
    %v2075 = vlaneseq
    %v2076 = vshrl.u32 %v2075, 7
    %v2077 = vsub.s32 2, %v2076
    %v2078 = vrot.slane %v56, %v2077
    %v2079 = vlaneseq
    %v2080 = vshrl.u32 %v2079, 7
    %v2081 = vsub.s32 2, %v2080
    %v2082 = vrot.slane %v57, %v2081
    %v2083 = vlaneseq
    %v2084 = vshrl.u32 %v2083, 7
    %v2085 = vsub.s32 2, %v2084
    %v2086 = vrot.slane %v58, %v2085
    %v2087 = vlaneseq
    %v2088 = vshrl.u32 %v2087, 7
    %v2089 = vsub.s32 2, %v2088
    %v2090 = vrot.slane %v59, %v2089
    %v2091 = vlaneseq
    %v2092 = vshrl.u32 %v2091, 7
    %v2093 = vsub.s32 2, %v2092
    %v2094 = vrot.slane %v60, %v2093
    %v2095 = vlaneseq
    %v2096 = vshrl.u32 %v2095, 7
    %v2097 = vsub.s32 2, %v2096
    %v2098 = vrot.slane %v61, %v2097
    %v2099 = vlaneseq
    %v2100 = vshrl.u32 %v2099, 7
    %v2101 = vsub.s32 2, %v2100
    %v2102 = vrot.slane %v62, %v2101
    %v2103 = vlaneseq
    %v2104 = vshrl.u32 %v2103, 7
    %v2105 = vsub.s32 2, %v2104
    %v2106 = vrot.slane %v63, %v2105
    %v2107 = vmul.f32 %v2067, %v2078
    %v2108 = vmul.f32 %v2059, %v2082
    %v2109 = vmul.f32 %v2051, %v2086
    %v2110 = vmul.f32 %v2043, %v2090
    %v2111 = vmul.f32 %v2035, %v2094
    %v2112 = vmul.f32 %v2027, %v2098
    %v2113 = vmul.f32 %v2019, %v2102
    %v2114 = vmul.f32 %v2011, %v2106
    %v2115 = vmul.f32 %v2068, %v2078
    %v2116 = vmul.f32 %v2060, %v2082
    %v2117 = vmul.f32 %v2052, %v2086
    %v2118 = vmul.f32 %v2044, %v2090
    %v2119 = vmul.f32 %v2036, %v2094
    %v2120 = vmul.f32 %v2028, %v2098
    %v2121 = vmul.f32 %v2020, %v2102
    %v2122 = vmul.f32 %v2012, %v2106
    %v2123 = vmul.f32 %v2069, %v2078
    %v2124 = vmul.f32 %v2061, %v2082
    %v2125 = vmul.f32 %v2053, %v2086
    %v2126 = vmul.f32 %v2045, %v2090
    %v2127 = vmul.f32 %v2037, %v2094
    %v2128 = vmul.f32 %v2029, %v2098
    %v2129 = vmul.f32 %v2021, %v2102
    %v2130 = vmul.f32 %v2013, %v2106
    %v2131 = vmul.f32 %v2070, %v2078
    %v2132 = vmul.f32 %v2062, %v2082
    %v2133 = vmul.f32 %v2054, %v2086
    %v2134 = vmul.f32 %v2046, %v2090
    %v2135 = vmul.f32 %v2038, %v2094
    %v2136 = vmul.f32 %v2030, %v2098
    %v2137 = vmul.f32 %v2022, %v2102
    %v2138 = vmul.f32 %v2014, %v2106
    %v2139 = vmul.f32 %v2071, %v2078
    %v2140 = vmul.f32 %v2063, %v2082
    %v2141 = vmul.f32 %v2055, %v2086
    %v2142 = vmul.f32 %v2047, %v2090
    %v2143 = vmul.f32 %v2039, %v2094
    %v2144 = vmul.f32 %v2031, %v2098
    %v2145 = vmul.f32 %v2023, %v2102
    %v2146 = vmul.f32 %v2015, %v2106
    %v2147 = vmul.f32 %v2072, %v2078
    %v2148 = vmul.f32 %v2064, %v2082
    %v2149 = vmul.f32 %v2056, %v2086
    %v2150 = vmul.f32 %v2048, %v2090
    %v2151 = vmul.f32 %v2040, %v2094
    %v2152 = vmul.f32 %v2032, %v2098
    %v2153 = vmul.f32 %v2024, %v2102
    %v2154 = vmul.f32 %v2016, %v2106
    %v2155 = vmul.f32 %v2073, %v2078
    %v2156 = vmul.f32 %v2065, %v2082
    %v2157 = vmul.f32 %v2057, %v2086
    %v2158 = vmul.f32 %v2049, %v2090
    %v2159 = vmul.f32 %v2041, %v2094
    %v2160 = vmul.f32 %v2033, %v2098
    %v2161 = vmul.f32 %v2025, %v2102
    %v2162 = vmul.f32 %v2017, %v2106
    %v2163 = vmul.f32 %v2074, %v2078
    %v2164 = vmul.f32 %v2066, %v2082
    %v2165 = vmul.f32 %v2058, %v2086
    %v2166 = vmul.f32 %v2050, %v2090
    %v2167 = vmul.f32 %v2042, %v2094
    %v2168 = vmul.f32 %v2034, %v2098
    %v2169 = vmul.f32 %v2026, %v2102
    %v2170 = vmul.f32 %v2018, %v2106
    %v2171 = vpack.c.bf16 %v2115, %v2107
    %v2172 = vpack.c.bf16 %v2116, %v2108
    %v2173 = vpack.c.bf16 %v2117, %v2109
    %v2174 = vpack.c.bf16 %v2118, %v2110
    %v2175 = vpack.c.bf16 %v2119, %v2111
    %v2176 = vpack.c.bf16 %v2120, %v2112
    %v2177 = vpack.c.bf16 %v2121, %v2113
    %v2178 = vpack.c.bf16 %v2122, %v2114
    %v2179 = vpack.c.bf16 %v2131, %v2123
    %v2180 = vpack.c.bf16 %v2132, %v2124
    %v2181 = vpack.c.bf16 %v2133, %v2125
    %v2182 = vpack.c.bf16 %v2134, %v2126
    %v2183 = vpack.c.bf16 %v2135, %v2127
    %v2184 = vpack.c.bf16 %v2136, %v2128
    %v2185 = vpack.c.bf16 %v2137, %v2129
    %v2186 = vpack.c.bf16 %v2138, %v2130
    %v2187 = vpack.c.bf16 %v2147, %v2139
    %v2188 = vpack.c.bf16 %v2148, %v2140
    %v2189 = vpack.c.bf16 %v2149, %v2141
    %v2190 = vpack.c.bf16 %v2150, %v2142
    %v2191 = vpack.c.bf16 %v2151, %v2143
    %v2192 = vpack.c.bf16 %v2152, %v2144
    %v2193 = vpack.c.bf16 %v2153, %v2145
    %v2194 = vpack.c.bf16 %v2154, %v2146
    %v2195 = vpack.c.bf16 %v2163, %v2155
    %v2196 = vpack.c.bf16 %v2164, %v2156
    %v2197 = vpack.c.bf16 %v2165, %v2157
    %v2198 = vpack.c.bf16 %v2166, %v2158
    %v2199 = vpack.c.bf16 %v2167, %v2159
    %v2200 = vpack.c.bf16 %v2168, %v2160
    %v2201 = vpack.c.bf16 %v2169, %v2161
    %v2202 = vpack.c.bf16 %v2170, %v2162
    %2203 = vrot.lane.b32.xlu0 %v1179, 1
    %v2204 = vpop.permute.xlu0 %2203
    %2205 = vrot.lane.b32.xlu0 %v1187, 1
    %v2206 = vpop.permute.xlu0 %2205
    %2207 = vrot.lane.b32.xlu0 %v1195, 1
    %v2208 = vpop.permute.xlu0 %2207
    %2209 = vrot.lane.b32.xlu0 %v1203, 1
    %v2210 = vpop.permute.xlu0 %2209
    %2211 = vrot.lane.b32.xlu0 %v1211, 1
    %v2212 = vpop.permute.xlu0 %2211
    %2213 = vrot.lane.b32.xlu0 %v1219, 1
    %v2214 = vpop.permute.xlu0 %2213
    %2215 = vrot.lane.b32.xlu0 %v1227, 1
    %v2216 = vpop.permute.xlu0 %2215
    %2217 = vrot.lane.b32.xlu0 %v1235, 1
    %v2218 = vpop.permute.xlu0 %2217
    %2219 = vrot.lane.b32.xlu0 %v1180, 1
    %v2220 = vpop.permute.xlu0 %2219
    %2221 = vrot.lane.b32.xlu0 %v1188, 1
    %v2222 = vpop.permute.xlu0 %2221
    %2223 = vrot.lane.b32.xlu0 %v1196, 1
    %v2224 = vpop.permute.xlu0 %2223
    %2225 = vrot.lane.b32.xlu0 %v1204, 1
    %v2226 = vpop.permute.xlu0 %2225
    %2227 = vrot.lane.b32.xlu0 %v1212, 1
    %v2228 = vpop.permute.xlu0 %2227
    %2229 = vrot.lane.b32.xlu0 %v1220, 1
    %v2230 = vpop.permute.xlu0 %2229
    %2231 = vrot.lane.b32.xlu0 %v1228, 1
    %v2232 = vpop.permute.xlu0 %2231
    %2233 = vrot.lane.b32.xlu0 %v1236, 1
    %v2234 = vpop.permute.xlu0 %2233
    %2235 = vrot.lane.b32.xlu0 %v1181, 1
    %v2236 = vpop.permute.xlu0 %2235
    %2237 = vrot.lane.b32.xlu0 %v1189, 1
    %v2238 = vpop.permute.xlu0 %2237
    %2239 = vrot.lane.b32.xlu0 %v1197, 1
    %v2240 = vpop.permute.xlu0 %2239
    %2241 = vrot.lane.b32.xlu0 %v1205, 1
    %v2242 = vpop.permute.xlu0 %2241
    %2243 = vrot.lane.b32.xlu0 %v1213, 1
    %v2244 = vpop.permute.xlu0 %2243
    %2245 = vrot.lane.b32.xlu0 %v1221, 1
    %v2246 = vpop.permute.xlu0 %2245
    %2247 = vrot.lane.b32.xlu0 %v1229, 1
    %v2248 = vpop.permute.xlu0 %2247
    %2249 = vrot.lane.b32.xlu0 %v1237, 1
    %v2250 = vpop.permute.xlu0 %2249
    %2251 = vrot.lane.b32.xlu0 %v1182, 1
    %v2252 = vpop.permute.xlu0 %2251
    %2253 = vrot.lane.b32.xlu0 %v1190, 1
    %v2254 = vpop.permute.xlu0 %2253
    %2255 = vrot.lane.b32.xlu0 %v1198, 1
    %v2256 = vpop.permute.xlu0 %2255
    %2257 = vrot.lane.b32.xlu0 %v1206, 1
    %v2258 = vpop.permute.xlu0 %2257
    %2259 = vrot.lane.b32.xlu0 %v1214, 1
    %v2260 = vpop.permute.xlu0 %2259
    %2261 = vrot.lane.b32.xlu0 %v1222, 1
    %v2262 = vpop.permute.xlu0 %2261
    %2263 = vrot.lane.b32.xlu0 %v1230, 1
    %v2264 = vpop.permute.xlu0 %2263
    %2265 = vrot.lane.b32.xlu0 %v1238, 1
    %v2266 = vpop.permute.xlu0 %2265
    %2267 = vrot.lane.b32.xlu0 %v1183, 1
    %v2268 = vpop.permute.xlu0 %2267
    %2269 = vrot.lane.b32.xlu0 %v1191, 1
    %v2270 = vpop.permute.xlu0 %2269
    %2271 = vrot.lane.b32.xlu0 %v1199, 1
    %v2272 = vpop.permute.xlu0 %2271
    %2273 = vrot.lane.b32.xlu0 %v1207, 1
    %v2274 = vpop.permute.xlu0 %2273
    %2275 = vrot.lane.b32.xlu0 %v1215, 1
    %v2276 = vpop.permute.xlu0 %2275
    %2277 = vrot.lane.b32.xlu0 %v1223, 1
    %v2278 = vpop.permute.xlu0 %2277
    %2279 = vrot.lane.b32.xlu0 %v1231, 1
    %v2280 = vpop.permute.xlu0 %2279
    %2281 = vrot.lane.b32.xlu0 %v1239, 1
    %v2282 = vpop.permute.xlu0 %2281
    %2283 = vrot.lane.b32.xlu0 %v1184, 1
    %v2284 = vpop.permute.xlu0 %2283
    %2285 = vrot.lane.b32.xlu0 %v1192, 1
    %v2286 = vpop.permute.xlu0 %2285
    %2287 = vrot.lane.b32.xlu0 %v1200, 1
    %v2288 = vpop.permute.xlu0 %2287
    %2289 = vrot.lane.b32.xlu0 %v1208, 1
    %v2290 = vpop.permute.xlu0 %2289
    %2291 = vrot.lane.b32.xlu0 %v1216, 1
    %v2292 = vpop.permute.xlu0 %2291
    %2293 = vrot.lane.b32.xlu0 %v1224, 1
    %v2294 = vpop.permute.xlu0 %2293
    %2295 = vrot.lane.b32.xlu0 %v1232, 1
    %v2296 = vpop.permute.xlu0 %2295
    %2297 = vrot.lane.b32.xlu0 %v1240, 1
    %v2298 = vpop.permute.xlu0 %2297
    %2299 = vrot.lane.b32.xlu0 %v1185, 1
    %v2300 = vpop.permute.xlu0 %2299
    %2301 = vrot.lane.b32.xlu0 %v1193, 1
    %v2302 = vpop.permute.xlu0 %2301
    %2303 = vrot.lane.b32.xlu0 %v1201, 1
    %v2304 = vpop.permute.xlu0 %2303
    %2305 = vrot.lane.b32.xlu0 %v1209, 1
    %v2306 = vpop.permute.xlu0 %2305
    %2307 = vrot.lane.b32.xlu0 %v1217, 1
    %v2308 = vpop.permute.xlu0 %2307
    %2309 = vrot.lane.b32.xlu0 %v1225, 1
    %v2310 = vpop.permute.xlu0 %2309
    %2311 = vrot.lane.b32.xlu0 %v1233, 1
    %v2312 = vpop.permute.xlu0 %2311
    %2313 = vrot.lane.b32.xlu0 %v1241, 1
    %v2314 = vpop.permute.xlu0 %2313
    %2315 = vrot.lane.b32.xlu0 %v1186, 1
    %v2316 = vpop.permute.xlu0 %2315
    %2317 = vrot.lane.b32.xlu0 %v1194, 1
    %v2318 = vpop.permute.xlu0 %2317
    %2319 = vrot.lane.b32.xlu0 %v1202, 1
    %v2320 = vpop.permute.xlu0 %2319
    %2321 = vrot.lane.b32.xlu0 %v1210, 1
    %v2322 = vpop.permute.xlu0 %2321
    %2323 = vrot.lane.b32.xlu0 %v1218, 1
    %v2324 = vpop.permute.xlu0 %2323
    %2325 = vrot.lane.b32.xlu0 %v1226, 1
    %v2326 = vpop.permute.xlu0 %2325
    %2327 = vrot.lane.b32.xlu0 %v1234, 1
    %v2328 = vpop.permute.xlu0 %2327
    %2329 = vrot.lane.b32.xlu0 %v1242, 1
    %v2330 = vpop.permute.xlu0 %2329
    %v2331 = vsel %vm270, %v2300, %v2316
    %v2332 = vsel %vm270, %v2302, %v2318
    %v2333 = vsel %vm270, %v2304, %v2320
    %v2334 = vsel %vm270, %v2306, %v2322
    %v2335 = vsel %vm270, %v2308, %v2324
    %v2336 = vsel %vm270, %v2310, %v2326
    %v2337 = vsel %vm270, %v2312, %v2328
    %v2338 = vsel %vm270, %v2314, %v2330
    %v2339 = vsel %vm270, %v2284, %v2300
    %v2340 = vsel %vm270, %v2286, %v2302
    %v2341 = vsel %vm270, %v2288, %v2304
    %v2342 = vsel %vm270, %v2290, %v2306
    %v2343 = vsel %vm270, %v2292, %v2308
    %v2344 = vsel %vm270, %v2294, %v2310
    %v2345 = vsel %vm270, %v2296, %v2312
    %v2346 = vsel %vm270, %v2298, %v2314
    %v2347 = vsel %vm270, %v2268, %v2284
    %v2348 = vsel %vm270, %v2270, %v2286
    %v2349 = vsel %vm270, %v2272, %v2288
    %v2350 = vsel %vm270, %v2274, %v2290
    %v2351 = vsel %vm270, %v2276, %v2292
    %v2352 = vsel %vm270, %v2278, %v2294
    %v2353 = vsel %vm270, %v2280, %v2296
    %v2354 = vsel %vm270, %v2282, %v2298
    %v2355 = vsel %vm270, %v2252, %v2268
    %v2356 = vsel %vm270, %v2254, %v2270
    %v2357 = vsel %vm270, %v2256, %v2272
    %v2358 = vsel %vm270, %v2258, %v2274
    %v2359 = vsel %vm270, %v2260, %v2276
    %v2360 = vsel %vm270, %v2262, %v2278
    %v2361 = vsel %vm270, %v2264, %v2280
    %v2362 = vsel %vm270, %v2266, %v2282
    %v2363 = vsel %vm270, %v2236, %v2252
    %v2364 = vsel %vm270, %v2238, %v2254
    %v2365 = vsel %vm270, %v2240, %v2256
    %v2366 = vsel %vm270, %v2242, %v2258
    %v2367 = vsel %vm270, %v2244, %v2260
    %v2368 = vsel %vm270, %v2246, %v2262
    %v2369 = vsel %vm270, %v2248, %v2264
    %v2370 = vsel %vm270, %v2250, %v2266
    %v2371 = vsel %vm270, %v2220, %v2236
    %v2372 = vsel %vm270, %v2222, %v2238
    %v2373 = vsel %vm270, %v2224, %v2240
    %v2374 = vsel %vm270, %v2226, %v2242
    %v2375 = vsel %vm270, %v2228, %v2244
    %v2376 = vsel %vm270, %v2230, %v2246
    %v2377 = vsel %vm270, %v2232, %v2248
    %v2378 = vsel %vm270, %v2234, %v2250
    %v2379 = vsel %vm270, %v2204, %v2220
    %v2380 = vsel %vm270, %v2206, %v2222
    %v2381 = vsel %vm270, %v2208, %v2224
    %v2382 = vsel %vm270, %v2210, %v2226
    %v2383 = vsel %vm270, %v2212, %v2228
    %v2384 = vsel %vm270, %v2214, %v2230
    %v2385 = vsel %vm270, %v2216, %v2232
    %v2386 = vsel %vm270, %v2218, %v2234
    %v2387 = vsel %vm270, %v2316, %v2204
    %v2388 = vsel %vm270, %v2318, %v2206
    %v2389 = vsel %vm270, %v2320, %v2208
    %v2390 = vsel %vm270, %v2322, %v2210
    %v2391 = vsel %vm270, %v2324, %v2212
    %v2392 = vsel %vm270, %v2326, %v2214
    %v2393 = vsel %vm270, %v2328, %v2216
    %v2394 = vsel %vm270, %v2330, %v2218
    %v2395 = vlaneseq
    %v2396 = vshrl.u32 %v2395, 7
    %v2397 = vsub.s32 3, %v2396
    %v2398 = vrot.slane %v56, %v2397
    %v2399 = vlaneseq
    %v2400 = vshrl.u32 %v2399, 7
    %v2401 = vsub.s32 3, %v2400
    %v2402 = vrot.slane %v57, %v2401
    %v2403 = vlaneseq
    %v2404 = vshrl.u32 %v2403, 7
    %v2405 = vsub.s32 3, %v2404
    %v2406 = vrot.slane %v58, %v2405
    %v2407 = vlaneseq
    %v2408 = vshrl.u32 %v2407, 7
    %v2409 = vsub.s32 3, %v2408
    %v2410 = vrot.slane %v59, %v2409
    %v2411 = vlaneseq
    %v2412 = vshrl.u32 %v2411, 7
    %v2413 = vsub.s32 3, %v2412
    %v2414 = vrot.slane %v60, %v2413
    %v2415 = vlaneseq
    %v2416 = vshrl.u32 %v2415, 7
    %v2417 = vsub.s32 3, %v2416
    %v2418 = vrot.slane %v61, %v2417
    %v2419 = vlaneseq
    %v2420 = vshrl.u32 %v2419, 7
    %v2421 = vsub.s32 3, %v2420
    %v2422 = vrot.slane %v62, %v2421
    %v2423 = vlaneseq
    %v2424 = vshrl.u32 %v2423, 7
    %v2425 = vsub.s32 3, %v2424
    %v2426 = vrot.slane %v63, %v2425
    %v2427 = vmul.f32 %v2387, %v2398
    %v2428 = vmul.f32 %v2379, %v2402
    %v2429 = vmul.f32 %v2371, %v2406
    %v2430 = vmul.f32 %v2363, %v2410
    %v2431 = vmul.f32 %v2355, %v2414
    %v2432 = vmul.f32 %v2347, %v2418
    %v2433 = vmul.f32 %v2339, %v2422
    %v2434 = vmul.f32 %v2331, %v2426
    %v2435 = vmul.f32 %v2388, %v2398
    %v2436 = vmul.f32 %v2380, %v2402
    %v2437 = vmul.f32 %v2372, %v2406
    %v2438 = vmul.f32 %v2364, %v2410
    %v2439 = vmul.f32 %v2356, %v2414
    %v2440 = vmul.f32 %v2348, %v2418
    %v2441 = vmul.f32 %v2340, %v2422
    %v2442 = vmul.f32 %v2332, %v2426
    %v2443 = vmul.f32 %v2389, %v2398
    %v2444 = vmul.f32 %v2381, %v2402
    %v2445 = vmul.f32 %v2373, %v2406
    %v2446 = vmul.f32 %v2365, %v2410
    %v2447 = vmul.f32 %v2357, %v2414
    %v2448 = vmul.f32 %v2349, %v2418
    %v2449 = vmul.f32 %v2341, %v2422
    %v2450 = vmul.f32 %v2333, %v2426
    %v2451 = vmul.f32 %v2390, %v2398
    %v2452 = vmul.f32 %v2382, %v2402
    %v2453 = vmul.f32 %v2374, %v2406
    %v2454 = vmul.f32 %v2366, %v2410
    %v2455 = vmul.f32 %v2358, %v2414
    %v2456 = vmul.f32 %v2350, %v2418
    %v2457 = vmul.f32 %v2342, %v2422
    %v2458 = vmul.f32 %v2334, %v2426
    %v2459 = vmul.f32 %v2391, %v2398
    %v2460 = vmul.f32 %v2383, %v2402
    %v2461 = vmul.f32 %v2375, %v2406
    %v2462 = vmul.f32 %v2367, %v2410
    %v2463 = vmul.f32 %v2359, %v2414
    %v2464 = vmul.f32 %v2351, %v2418
    %v2465 = vmul.f32 %v2343, %v2422
    %v2466 = vmul.f32 %v2335, %v2426
    %v2467 = vmul.f32 %v2392, %v2398
    %v2468 = vmul.f32 %v2384, %v2402
    %v2469 = vmul.f32 %v2376, %v2406
    %v2470 = vmul.f32 %v2368, %v2410
    %v2471 = vmul.f32 %v2360, %v2414
    %v2472 = vmul.f32 %v2352, %v2418
    %v2473 = vmul.f32 %v2344, %v2422
    %v2474 = vmul.f32 %v2336, %v2426
    %v2475 = vmul.f32 %v2393, %v2398
    %v2476 = vmul.f32 %v2385, %v2402
    %v2477 = vmul.f32 %v2377, %v2406
    %v2478 = vmul.f32 %v2369, %v2410
    %v2479 = vmul.f32 %v2361, %v2414
    %v2480 = vmul.f32 %v2353, %v2418
    %v2481 = vmul.f32 %v2345, %v2422
    %v2482 = vmul.f32 %v2337, %v2426
    %v2483 = vmul.f32 %v2394, %v2398
    %v2484 = vmul.f32 %v2386, %v2402
    %v2485 = vmul.f32 %v2378, %v2406
    %v2486 = vmul.f32 %v2370, %v2410
    %v2487 = vmul.f32 %v2362, %v2414
    %v2488 = vmul.f32 %v2354, %v2418
    %v2489 = vmul.f32 %v2346, %v2422
    %v2490 = vmul.f32 %v2338, %v2426
    %v2491 = vpack.c.bf16 %v2435, %v2427
    %v2492 = vpack.c.bf16 %v2436, %v2428
    %v2493 = vpack.c.bf16 %v2437, %v2429
    %v2494 = vpack.c.bf16 %v2438, %v2430
    %v2495 = vpack.c.bf16 %v2439, %v2431
    %v2496 = vpack.c.bf16 %v2440, %v2432
    %v2497 = vpack.c.bf16 %v2441, %v2433
    %v2498 = vpack.c.bf16 %v2442, %v2434
    %v2499 = vpack.c.bf16 %v2451, %v2443
    %v2500 = vpack.c.bf16 %v2452, %v2444
    %v2501 = vpack.c.bf16 %v2453, %v2445
    %v2502 = vpack.c.bf16 %v2454, %v2446
    %v2503 = vpack.c.bf16 %v2455, %v2447
    %v2504 = vpack.c.bf16 %v2456, %v2448
    %v2505 = vpack.c.bf16 %v2457, %v2449
    %v2506 = vpack.c.bf16 %v2458, %v2450
    %v2507 = vpack.c.bf16 %v2467, %v2459
    %v2508 = vpack.c.bf16 %v2468, %v2460
    %v2509 = vpack.c.bf16 %v2469, %v2461
    %v2510 = vpack.c.bf16 %v2470, %v2462
    %v2511 = vpack.c.bf16 %v2471, %v2463
    %v2512 = vpack.c.bf16 %v2472, %v2464
    %v2513 = vpack.c.bf16 %v2473, %v2465
    %v2514 = vpack.c.bf16 %v2474, %v2466
    %v2515 = vpack.c.bf16 %v2483, %v2475
    %v2516 = vpack.c.bf16 %v2484, %v2476
    %v2517 = vpack.c.bf16 %v2485, %v2477
    %v2518 = vpack.c.bf16 %v2486, %v2478
    %v2519 = vpack.c.bf16 %v2487, %v2479
    %v2520 = vpack.c.bf16 %v2488, %v2480
    %v2521 = vpack.c.bf16 %v2489, %v2481
    %v2522 = vpack.c.bf16 %v2490, %v2482
    %v2523 = vlaneseq
    %v2524 = vshrl.u32 %v2523, 7
    %v2525 = vsub.s32 4, %v2524
    %v2526 = vrot.slane %v56, %v2525
    %v2527 = vlaneseq
    %v2528 = vshrl.u32 %v2527, 7
    %v2529 = vsub.s32 4, %v2528
    %v2530 = vrot.slane %v57, %v2529
    %v2531 = vlaneseq
    %v2532 = vshrl.u32 %v2531, 7
    %v2533 = vsub.s32 4, %v2532
    %v2534 = vrot.slane %v58, %v2533
    %v2535 = vlaneseq
    %v2536 = vshrl.u32 %v2535, 7
    %v2537 = vsub.s32 4, %v2536
    %v2538 = vrot.slane %v59, %v2537
    %v2539 = vlaneseq
    %v2540 = vshrl.u32 %v2539, 7
    %v2541 = vsub.s32 4, %v2540
    %v2542 = vrot.slane %v60, %v2541
    %v2543 = vlaneseq
    %v2544 = vshrl.u32 %v2543, 7
    %v2545 = vsub.s32 4, %v2544
    %v2546 = vrot.slane %v61, %v2545
    %v2547 = vlaneseq
    %v2548 = vshrl.u32 %v2547, 7
    %v2549 = vsub.s32 4, %v2548
    %v2550 = vrot.slane %v62, %v2549
    %v2551 = vlaneseq
    %v2552 = vshrl.u32 %v2551, 7
    %v2553 = vsub.s32 4, %v2552
    %v2554 = vrot.slane %v63, %v2553
    %v2555 = vmul.f32 %v1179, %v2526
    %v2556 = vmul.f32 %v1180, %v2530
    %v2557 = vmul.f32 %v1181, %v2534
    %v2558 = vmul.f32 %v1182, %v2538
    %v2559 = vmul.f32 %v1183, %v2542
    %v2560 = vmul.f32 %v1184, %v2546
    %v2561 = vmul.f32 %v1185, %v2550
    %v2562 = vmul.f32 %v1186, %v2554
    %v2563 = vmul.f32 %v1187, %v2526
    %v2564 = vmul.f32 %v1188, %v2530
    %v2565 = vmul.f32 %v1189, %v2534
    %v2566 = vmul.f32 %v1190, %v2538
    %v2567 = vmul.f32 %v1191, %v2542
    %v2568 = vmul.f32 %v1192, %v2546
    %v2569 = vmul.f32 %v1193, %v2550
    %v2570 = vmul.f32 %v1194, %v2554
    %v2571 = vmul.f32 %v1195, %v2526
    %v2572 = vmul.f32 %v1196, %v2530
    %v2573 = vmul.f32 %v1197, %v2534
    %v2574 = vmul.f32 %v1198, %v2538
    %v2575 = vmul.f32 %v1199, %v2542
    %v2576 = vmul.f32 %v1200, %v2546
    %v2577 = vmul.f32 %v1201, %v2550
    %v2578 = vmul.f32 %v1202, %v2554
    %v2579 = vmul.f32 %v1203, %v2526
    %v2580 = vmul.f32 %v1204, %v2530
    %v2581 = vmul.f32 %v1205, %v2534
    %v2582 = vmul.f32 %v1206, %v2538
    %v2583 = vmul.f32 %v1207, %v2542
    %v2584 = vmul.f32 %v1208, %v2546
    %v2585 = vmul.f32 %v1209, %v2550
    %v2586 = vmul.f32 %v1210, %v2554
    %v2587 = vmul.f32 %v1211, %v2526
    %v2588 = vmul.f32 %v1212, %v2530
    %v2589 = vmul.f32 %v1213, %v2534
    %v2590 = vmul.f32 %v1214, %v2538
    %v2591 = vmul.f32 %v1215, %v2542
    %v2592 = vmul.f32 %v1216, %v2546
    %v2593 = vmul.f32 %v1217, %v2550
    %v2594 = vmul.f32 %v1218, %v2554
    %v2595 = vmul.f32 %v1219, %v2526
    %v2596 = vmul.f32 %v1220, %v2530
    %v2597 = vmul.f32 %v1221, %v2534
    %v2598 = vmul.f32 %v1222, %v2538
    %v2599 = vmul.f32 %v1223, %v2542
    %v2600 = vmul.f32 %v1224, %v2546
    %v2601 = vmul.f32 %v1225, %v2550
    %v2602 = vmul.f32 %v1226, %v2554
    %v2603 = vmul.f32 %v1227, %v2526
    %v2604 = vmul.f32 %v1228, %v2530
    %v2605 = vmul.f32 %v1229, %v2534
    %v2606 = vmul.f32 %v1230, %v2538
    %v2607 = vmul.f32 %v1231, %v2542
    %v2608 = vmul.f32 %v1232, %v2546
    %v2609 = vmul.f32 %v1233, %v2550
    %v2610 = vmul.f32 %v1234, %v2554
    %v2611 = vmul.f32 %v1235, %v2526
    %v2612 = vmul.f32 %v1236, %v2530
    %v2613 = vmul.f32 %v1237, %v2534
    %v2614 = vmul.f32 %v1238, %v2538
    %v2615 = vmul.f32 %v1239, %v2542
    %v2616 = vmul.f32 %v1240, %v2546
    %v2617 = vmul.f32 %v1241, %v2550
    %v2618 = vmul.f32 %v1242, %v2554
    %v2619 = vpack.c.bf16 %v2563, %v2555
    %v2620 = vpack.c.bf16 %v2564, %v2556
    %v2621 = vpack.c.bf16 %v2565, %v2557
    %v2622 = vpack.c.bf16 %v2566, %v2558
    %v2623 = vpack.c.bf16 %v2567, %v2559
    %v2624 = vpack.c.bf16 %v2568, %v2560
    %v2625 = vpack.c.bf16 %v2569, %v2561
    %v2626 = vpack.c.bf16 %v2570, %v2562
    %v2627 = vpack.c.bf16 %v2579, %v2571
    %v2628 = vpack.c.bf16 %v2580, %v2572
    %v2629 = vpack.c.bf16 %v2581, %v2573
    %v2630 = vpack.c.bf16 %v2582, %v2574
    %v2631 = vpack.c.bf16 %v2583, %v2575
    %v2632 = vpack.c.bf16 %v2584, %v2576
    %v2633 = vpack.c.bf16 %v2585, %v2577
    %v2634 = vpack.c.bf16 %v2586, %v2578
    %v2635 = vpack.c.bf16 %v2595, %v2587
    %v2636 = vpack.c.bf16 %v2596, %v2588
    %v2637 = vpack.c.bf16 %v2597, %v2589
    %v2638 = vpack.c.bf16 %v2598, %v2590
    %v2639 = vpack.c.bf16 %v2599, %v2591
    %v2640 = vpack.c.bf16 %v2600, %v2592
    %v2641 = vpack.c.bf16 %v2601, %v2593
    %v2642 = vpack.c.bf16 %v2602, %v2594
    %v2643 = vpack.c.bf16 %v2611, %v2603
    %v2644 = vpack.c.bf16 %v2612, %v2604
    %v2645 = vpack.c.bf16 %v2613, %v2605
    %v2646 = vpack.c.bf16 %v2614, %v2606
    %v2647 = vpack.c.bf16 %v2615, %v2607
    %v2648 = vpack.c.bf16 %v2616, %v2608
    %v2649 = vpack.c.bf16 %v2617, %v2609
    %v2650 = vpack.c.bf16 %v2618, %v2610
    %2651 = vrot.lane.b32.xlu0 %v1179, 127
    %v2652 = vpop.permute.xlu0 %2651
    %2653 = vrot.lane.b32.xlu0 %v1187, 127
    %v2654 = vpop.permute.xlu0 %2653
    %2655 = vrot.lane.b32.xlu0 %v1195, 127
    %v2656 = vpop.permute.xlu0 %2655
    %2657 = vrot.lane.b32.xlu0 %v1203, 127
    %v2658 = vpop.permute.xlu0 %2657
    %2659 = vrot.lane.b32.xlu0 %v1211, 127
    %v2660 = vpop.permute.xlu0 %2659
    %2661 = vrot.lane.b32.xlu0 %v1219, 127
    %v2662 = vpop.permute.xlu0 %2661
    %2663 = vrot.lane.b32.xlu0 %v1227, 127
    %v2664 = vpop.permute.xlu0 %2663
    %2665 = vrot.lane.b32.xlu0 %v1235, 127
    %v2666 = vpop.permute.xlu0 %2665
    %2667 = vrot.lane.b32.xlu0 %v1180, 127
    %v2668 = vpop.permute.xlu0 %2667
    %2669 = vrot.lane.b32.xlu0 %v1188, 127
    %v2670 = vpop.permute.xlu0 %2669
    %2671 = vrot.lane.b32.xlu0 %v1196, 127
    %v2672 = vpop.permute.xlu0 %2671
    %2673 = vrot.lane.b32.xlu0 %v1204, 127
    %v2674 = vpop.permute.xlu0 %2673
    %2675 = vrot.lane.b32.xlu0 %v1212, 127
    %v2676 = vpop.permute.xlu0 %2675
    %2677 = vrot.lane.b32.xlu0 %v1220, 127
    %v2678 = vpop.permute.xlu0 %2677
    %2679 = vrot.lane.b32.xlu0 %v1228, 127
    %v2680 = vpop.permute.xlu0 %2679
    %2681 = vrot.lane.b32.xlu0 %v1236, 127
    %v2682 = vpop.permute.xlu0 %2681
    %2683 = vrot.lane.b32.xlu0 %v1181, 127
    %v2684 = vpop.permute.xlu0 %2683
    %2685 = vrot.lane.b32.xlu0 %v1189, 127
    %v2686 = vpop.permute.xlu0 %2685
    %2687 = vrot.lane.b32.xlu0 %v1197, 127
    %v2688 = vpop.permute.xlu0 %2687
    %2689 = vrot.lane.b32.xlu0 %v1205, 127
    %v2690 = vpop.permute.xlu0 %2689
    %2691 = vrot.lane.b32.xlu0 %v1213, 127
    %v2692 = vpop.permute.xlu0 %2691
    %2693 = vrot.lane.b32.xlu0 %v1221, 127
    %v2694 = vpop.permute.xlu0 %2693
    %2695 = vrot.lane.b32.xlu0 %v1229, 127
    %v2696 = vpop.permute.xlu0 %2695
    %2697 = vrot.lane.b32.xlu0 %v1237, 127
    %v2698 = vpop.permute.xlu0 %2697
    %2699 = vrot.lane.b32.xlu0 %v1182, 127
    %v2700 = vpop.permute.xlu0 %2699
    %2701 = vrot.lane.b32.xlu0 %v1190, 127
    %v2702 = vpop.permute.xlu0 %2701
    %2703 = vrot.lane.b32.xlu0 %v1198, 127
    %v2704 = vpop.permute.xlu0 %2703
    %2705 = vrot.lane.b32.xlu0 %v1206, 127
    %v2706 = vpop.permute.xlu0 %2705
    %2707 = vrot.lane.b32.xlu0 %v1214, 127
    %v2708 = vpop.permute.xlu0 %2707
    %2709 = vrot.lane.b32.xlu0 %v1222, 127
    %v2710 = vpop.permute.xlu0 %2709
    %2711 = vrot.lane.b32.xlu0 %v1230, 127
    %v2712 = vpop.permute.xlu0 %2711
    %2713 = vrot.lane.b32.xlu0 %v1238, 127
    %v2714 = vpop.permute.xlu0 %2713
    %2715 = vrot.lane.b32.xlu0 %v1183, 127
    %v2716 = vpop.permute.xlu0 %2715
    %2717 = vrot.lane.b32.xlu0 %v1191, 127
    %v2718 = vpop.permute.xlu0 %2717
    %2719 = vrot.lane.b32.xlu0 %v1199, 127
    %v2720 = vpop.permute.xlu0 %2719
    %2721 = vrot.lane.b32.xlu0 %v1207, 127
    %v2722 = vpop.permute.xlu0 %2721
    %2723 = vrot.lane.b32.xlu0 %v1215, 127
    %v2724 = vpop.permute.xlu0 %2723
    %2725 = vrot.lane.b32.xlu0 %v1223, 127
    %v2726 = vpop.permute.xlu0 %2725
    %2727 = vrot.lane.b32.xlu0 %v1231, 127
    %v2728 = vpop.permute.xlu0 %2727
    %2729 = vrot.lane.b32.xlu0 %v1239, 127
    %v2730 = vpop.permute.xlu0 %2729
    %2731 = vrot.lane.b32.xlu0 %v1184, 127
    %v2732 = vpop.permute.xlu0 %2731
    %2733 = vrot.lane.b32.xlu0 %v1192, 127
    %v2734 = vpop.permute.xlu0 %2733
    %2735 = vrot.lane.b32.xlu0 %v1200, 127
    %v2736 = vpop.permute.xlu0 %2735
    %2737 = vrot.lane.b32.xlu0 %v1208, 127
    %v2738 = vpop.permute.xlu0 %2737
    %2739 = vrot.lane.b32.xlu0 %v1216, 127
    %v2740 = vpop.permute.xlu0 %2739
    %2741 = vrot.lane.b32.xlu0 %v1224, 127
    %v2742 = vpop.permute.xlu0 %2741
    %2743 = vrot.lane.b32.xlu0 %v1232, 127
    %v2744 = vpop.permute.xlu0 %2743
    %2745 = vrot.lane.b32.xlu0 %v1240, 127
    %v2746 = vpop.permute.xlu0 %2745
    %2747 = vrot.lane.b32.xlu0 %v1185, 127
    %v2748 = vpop.permute.xlu0 %2747
    %2749 = vrot.lane.b32.xlu0 %v1193, 127
    %v2750 = vpop.permute.xlu0 %2749
    %2751 = vrot.lane.b32.xlu0 %v1201, 127
    %v2752 = vpop.permute.xlu0 %2751
    %2753 = vrot.lane.b32.xlu0 %v1209, 127
    %v2754 = vpop.permute.xlu0 %2753
    %2755 = vrot.lane.b32.xlu0 %v1217, 127
    %v2756 = vpop.permute.xlu0 %2755
    %2757 = vrot.lane.b32.xlu0 %v1225, 127
    %v2758 = vpop.permute.xlu0 %2757
    %2759 = vrot.lane.b32.xlu0 %v1233, 127
    %v2760 = vpop.permute.xlu0 %2759
    %2761 = vrot.lane.b32.xlu0 %v1241, 127
    %v2762 = vpop.permute.xlu0 %2761
    %2763 = vrot.lane.b32.xlu0 %v1186, 127
    %v2764 = vpop.permute.xlu0 %2763
    %2765 = vrot.lane.b32.xlu0 %v1194, 127
    %v2766 = vpop.permute.xlu0 %2765
    %2767 = vrot.lane.b32.xlu0 %v1202, 127
    %v2768 = vpop.permute.xlu0 %2767
    %2769 = vrot.lane.b32.xlu0 %v1210, 127
    %v2770 = vpop.permute.xlu0 %2769
    %2771 = vrot.lane.b32.xlu0 %v1218, 127
    %v2772 = vpop.permute.xlu0 %2771
    %2773 = vrot.lane.b32.xlu0 %v1226, 127
    %v2774 = vpop.permute.xlu0 %2773
    %2775 = vrot.lane.b32.xlu0 %v1234, 127
    %v2776 = vpop.permute.xlu0 %2775
    %2777 = vrot.lane.b32.xlu0 %v1242, 127
    %v2778 = vpop.permute.xlu0 %2777
    %v2779 = vsel %vm370, %v2748, %v2764
    %v2780 = vsel %vm370, %v2750, %v2766
    %v2781 = vsel %vm370, %v2752, %v2768
    %v2782 = vsel %vm370, %v2754, %v2770
    %v2783 = vsel %vm370, %v2756, %v2772
    %v2784 = vsel %vm370, %v2758, %v2774
    %v2785 = vsel %vm370, %v2760, %v2776
    %v2786 = vsel %vm370, %v2762, %v2778
    %v2787 = vsel %vm370, %v2732, %v2748
    %v2788 = vsel %vm370, %v2734, %v2750
    %v2789 = vsel %vm370, %v2736, %v2752
    %v2790 = vsel %vm370, %v2738, %v2754
    %v2791 = vsel %vm370, %v2740, %v2756
    %v2792 = vsel %vm370, %v2742, %v2758
    %v2793 = vsel %vm370, %v2744, %v2760
    %v2794 = vsel %vm370, %v2746, %v2762
    %v2795 = vsel %vm370, %v2716, %v2732
    %v2796 = vsel %vm370, %v2718, %v2734
    %v2797 = vsel %vm370, %v2720, %v2736
    %v2798 = vsel %vm370, %v2722, %v2738
    %v2799 = vsel %vm370, %v2724, %v2740
    %v2800 = vsel %vm370, %v2726, %v2742
    %v2801 = vsel %vm370, %v2728, %v2744
    %v2802 = vsel %vm370, %v2730, %v2746
    %v2803 = vsel %vm370, %v2700, %v2716
    %v2804 = vsel %vm370, %v2702, %v2718
    %v2805 = vsel %vm370, %v2704, %v2720
    %v2806 = vsel %vm370, %v2706, %v2722
    %v2807 = vsel %vm370, %v2708, %v2724
    %v2808 = vsel %vm370, %v2710, %v2726
    %v2809 = vsel %vm370, %v2712, %v2728
    %v2810 = vsel %vm370, %v2714, %v2730
    %v2811 = vsel %vm370, %v2684, %v2700
    %v2812 = vsel %vm370, %v2686, %v2702
    %v2813 = vsel %vm370, %v2688, %v2704
    %v2814 = vsel %vm370, %v2690, %v2706
    %v2815 = vsel %vm370, %v2692, %v2708
    %v2816 = vsel %vm370, %v2694, %v2710
    %v2817 = vsel %vm370, %v2696, %v2712
    %v2818 = vsel %vm370, %v2698, %v2714
    %v2819 = vsel %vm370, %v2668, %v2684
    %v2820 = vsel %vm370, %v2670, %v2686
    %v2821 = vsel %vm370, %v2672, %v2688
    %v2822 = vsel %vm370, %v2674, %v2690
    %v2823 = vsel %vm370, %v2676, %v2692
    %v2824 = vsel %vm370, %v2678, %v2694
    %v2825 = vsel %vm370, %v2680, %v2696
    %v2826 = vsel %vm370, %v2682, %v2698
    %v2827 = vsel %vm370, %v2652, %v2668
    %v2828 = vsel %vm370, %v2654, %v2670
    %v2829 = vsel %vm370, %v2656, %v2672
    %v2830 = vsel %vm370, %v2658, %v2674
    %v2831 = vsel %vm370, %v2660, %v2676
    %v2832 = vsel %vm370, %v2662, %v2678
    %v2833 = vsel %vm370, %v2664, %v2680
    %v2834 = vsel %vm370, %v2666, %v2682
    %v2835 = vsel %vm370, %v2764, %v2652
    %v2836 = vsel %vm370, %v2766, %v2654
    %v2837 = vsel %vm370, %v2768, %v2656
    %v2838 = vsel %vm370, %v2770, %v2658
    %v2839 = vsel %vm370, %v2772, %v2660
    %v2840 = vsel %vm370, %v2774, %v2662
    %v2841 = vsel %vm370, %v2776, %v2664
    %v2842 = vsel %vm370, %v2778, %v2666
    %v2843 = vlaneseq
    %v2844 = vshrl.u32 %v2843, 7
    %v2845 = vsub.s32 5, %v2844
    %v2846 = vrot.slane %v56, %v2845
    %v2847 = vlaneseq
    %v2848 = vshrl.u32 %v2847, 7
    %v2849 = vsub.s32 5, %v2848
    %v2850 = vrot.slane %v57, %v2849
    %v2851 = vlaneseq
    %v2852 = vshrl.u32 %v2851, 7
    %v2853 = vsub.s32 5, %v2852
    %v2854 = vrot.slane %v58, %v2853
    %v2855 = vlaneseq
    %v2856 = vshrl.u32 %v2855, 7
    %v2857 = vsub.s32 5, %v2856
    %v2858 = vrot.slane %v59, %v2857
    %v2859 = vlaneseq
    %v2860 = vshrl.u32 %v2859, 7
    %v2861 = vsub.s32 5, %v2860
    %v2862 = vrot.slane %v60, %v2861
    %v2863 = vlaneseq
    %v2864 = vshrl.u32 %v2863, 7
    %v2865 = vsub.s32 5, %v2864
    %v2866 = vrot.slane %v61, %v2865
    %v2867 = vlaneseq
    %v2868 = vshrl.u32 %v2867, 7
    %v2869 = vsub.s32 5, %v2868
    %v2870 = vrot.slane %v62, %v2869
    %v2871 = vlaneseq
    %v2872 = vshrl.u32 %v2871, 7
    %v2873 = vsub.s32 5, %v2872
    %v2874 = vrot.slane %v63, %v2873
    %v2875 = vmul.f32 %v2827, %v2846
    %v2876 = vmul.f32 %v2819, %v2850
    %v2877 = vmul.f32 %v2811, %v2854
    %v2878 = vmul.f32 %v2803, %v2858
    %v2879 = vmul.f32 %v2795, %v2862
    %v2880 = vmul.f32 %v2787, %v2866
    %v2881 = vmul.f32 %v2779, %v2870
    %v2882 = vmul.f32 %v2835, %v2874
    %v2883 = vmul.f32 %v2828, %v2846
    %v2884 = vmul.f32 %v2820, %v2850
    %v2885 = vmul.f32 %v2812, %v2854
    %v2886 = vmul.f32 %v2804, %v2858
    %v2887 = vmul.f32 %v2796, %v2862
    %v2888 = vmul.f32 %v2788, %v2866
    %v2889 = vmul.f32 %v2780, %v2870
    %v2890 = vmul.f32 %v2836, %v2874
    %v2891 = vmul.f32 %v2829, %v2846
    %v2892 = vmul.f32 %v2821, %v2850
    %v2893 = vmul.f32 %v2813, %v2854
    %v2894 = vmul.f32 %v2805, %v2858
    %v2895 = vmul.f32 %v2797, %v2862
    %v2896 = vmul.f32 %v2789, %v2866
    %v2897 = vmul.f32 %v2781, %v2870
    %v2898 = vmul.f32 %v2837, %v2874
    %v2899 = vmul.f32 %v2830, %v2846
    %v2900 = vmul.f32 %v2822, %v2850
    %v2901 = vmul.f32 %v2814, %v2854
    %v2902 = vmul.f32 %v2806, %v2858
    %v2903 = vmul.f32 %v2798, %v2862
    %v2904 = vmul.f32 %v2790, %v2866
    %v2905 = vmul.f32 %v2782, %v2870
    %v2906 = vmul.f32 %v2838, %v2874
    %v2907 = vmul.f32 %v2831, %v2846
    %v2908 = vmul.f32 %v2823, %v2850
    %v2909 = vmul.f32 %v2815, %v2854
    %v2910 = vmul.f32 %v2807, %v2858
    %v2911 = vmul.f32 %v2799, %v2862
    %v2912 = vmul.f32 %v2791, %v2866
    %v2913 = vmul.f32 %v2783, %v2870
    %v2914 = vmul.f32 %v2839, %v2874
    %v2915 = vmul.f32 %v2832, %v2846
    %v2916 = vmul.f32 %v2824, %v2850
    %v2917 = vmul.f32 %v2816, %v2854
    %v2918 = vmul.f32 %v2808, %v2858
    %v2919 = vmul.f32 %v2800, %v2862
    %v2920 = vmul.f32 %v2792, %v2866
    %v2921 = vmul.f32 %v2784, %v2870
    %v2922 = vmul.f32 %v2840, %v2874
    %v2923 = vmul.f32 %v2833, %v2846
    %v2924 = vmul.f32 %v2825, %v2850
    %v2925 = vmul.f32 %v2817, %v2854
    %v2926 = vmul.f32 %v2809, %v2858
    %v2927 = vmul.f32 %v2801, %v2862
    %v2928 = vmul.f32 %v2793, %v2866
    %v2929 = vmul.f32 %v2785, %v2870
    %v2930 = vmul.f32 %v2841, %v2874
    %v2931 = vmul.f32 %v2834, %v2846
    %v2932 = vmul.f32 %v2826, %v2850
    %v2933 = vmul.f32 %v2818, %v2854
    %v2934 = vmul.f32 %v2810, %v2858
    %v2935 = vmul.f32 %v2802, %v2862
    %v2936 = vmul.f32 %v2794, %v2866
    %v2937 = vmul.f32 %v2786, %v2870
    %v2938 = vmul.f32 %v2842, %v2874
    %v2939 = vpack.c.bf16 %v2883, %v2875
    %v2940 = vpack.c.bf16 %v2884, %v2876
    %v2941 = vpack.c.bf16 %v2885, %v2877
    %v2942 = vpack.c.bf16 %v2886, %v2878
    %v2943 = vpack.c.bf16 %v2887, %v2879
    %v2944 = vpack.c.bf16 %v2888, %v2880
    %v2945 = vpack.c.bf16 %v2889, %v2881
    %v2946 = vpack.c.bf16 %v2890, %v2882
    %v2947 = vpack.c.bf16 %v2899, %v2891
    %v2948 = vpack.c.bf16 %v2900, %v2892
    %v2949 = vpack.c.bf16 %v2901, %v2893
    %v2950 = vpack.c.bf16 %v2902, %v2894
    %v2951 = vpack.c.bf16 %v2903, %v2895
    %v2952 = vpack.c.bf16 %v2904, %v2896
    %v2953 = vpack.c.bf16 %v2905, %v2897
    %v2954 = vpack.c.bf16 %v2906, %v2898
    %v2955 = vpack.c.bf16 %v2915, %v2907
    %v2956 = vpack.c.bf16 %v2916, %v2908
    %v2957 = vpack.c.bf16 %v2917, %v2909
    %v2958 = vpack.c.bf16 %v2918, %v2910
    %v2959 = vpack.c.bf16 %v2919, %v2911
    %v2960 = vpack.c.bf16 %v2920, %v2912
    %v2961 = vpack.c.bf16 %v2921, %v2913
    %v2962 = vpack.c.bf16 %v2922, %v2914
    %v2963 = vpack.c.bf16 %v2931, %v2923
    %v2964 = vpack.c.bf16 %v2932, %v2924
    %v2965 = vpack.c.bf16 %v2933, %v2925
    %v2966 = vpack.c.bf16 %v2934, %v2926
    %v2967 = vpack.c.bf16 %v2935, %v2927
    %v2968 = vpack.c.bf16 %v2936, %v2928
    %v2969 = vpack.c.bf16 %v2937, %v2929
    %v2970 = vpack.c.bf16 %v2938, %v2930
    %2971 = vrot.lane.b32.xlu0 %v1179, 113
    %v2972 = vpop.permute.xlu0 %2971
    %2973 = vrot.lane.b32.xlu0 %v1187, 113
    %v2974 = vpop.permute.xlu0 %2973
    %2975 = vrot.lane.b32.xlu0 %v1195, 113
    %v2976 = vpop.permute.xlu0 %2975
    %2977 = vrot.lane.b32.xlu0 %v1203, 113
    %v2978 = vpop.permute.xlu0 %2977
    %2979 = vrot.lane.b32.xlu0 %v1211, 113
    %v2980 = vpop.permute.xlu0 %2979
    %2981 = vrot.lane.b32.xlu0 %v1219, 113
    %v2982 = vpop.permute.xlu0 %2981
    %2983 = vrot.lane.b32.xlu0 %v1227, 113
    %v2984 = vpop.permute.xlu0 %2983
    %2985 = vrot.lane.b32.xlu0 %v1235, 113
    %v2986 = vpop.permute.xlu0 %2985
    %2987 = vrot.lane.b32.xlu0 %v1180, 113
    %v2988 = vpop.permute.xlu0 %2987
    %2989 = vrot.lane.b32.xlu0 %v1188, 113
    %v2990 = vpop.permute.xlu0 %2989
    %2991 = vrot.lane.b32.xlu0 %v1196, 113
    %v2992 = vpop.permute.xlu0 %2991
    %2993 = vrot.lane.b32.xlu0 %v1204, 113
    %v2994 = vpop.permute.xlu0 %2993
    %2995 = vrot.lane.b32.xlu0 %v1212, 113
    %v2996 = vpop.permute.xlu0 %2995
    %2997 = vrot.lane.b32.xlu0 %v1220, 113
    %v2998 = vpop.permute.xlu0 %2997
    %2999 = vrot.lane.b32.xlu0 %v1228, 113
    %v3000 = vpop.permute.xlu0 %2999
    %3001 = vrot.lane.b32.xlu0 %v1236, 113
    %v3002 = vpop.permute.xlu0 %3001
    %3003 = vrot.lane.b32.xlu0 %v1181, 113
    %v3004 = vpop.permute.xlu0 %3003
    %3005 = vrot.lane.b32.xlu0 %v1189, 113
    %v3006 = vpop.permute.xlu0 %3005
    %3007 = vrot.lane.b32.xlu0 %v1197, 113
    %v3008 = vpop.permute.xlu0 %3007
    %3009 = vrot.lane.b32.xlu0 %v1205, 113
    %v3010 = vpop.permute.xlu0 %3009
    %3011 = vrot.lane.b32.xlu0 %v1213, 113
    %v3012 = vpop.permute.xlu0 %3011
    %3013 = vrot.lane.b32.xlu0 %v1221, 113
    %v3014 = vpop.permute.xlu0 %3013
    %3015 = vrot.lane.b32.xlu0 %v1229, 113
    %v3016 = vpop.permute.xlu0 %3015
    %3017 = vrot.lane.b32.xlu0 %v1237, 113
    %v3018 = vpop.permute.xlu0 %3017
    %3019 = vrot.lane.b32.xlu0 %v1182, 113
    %v3020 = vpop.permute.xlu0 %3019
    %3021 = vrot.lane.b32.xlu0 %v1190, 113
    %v3022 = vpop.permute.xlu0 %3021
    %3023 = vrot.lane.b32.xlu0 %v1198, 113
    %v3024 = vpop.permute.xlu0 %3023
    %3025 = vrot.lane.b32.xlu0 %v1206, 113
    %v3026 = vpop.permute.xlu0 %3025
    %3027 = vrot.lane.b32.xlu0 %v1214, 113
    %v3028 = vpop.permute.xlu0 %3027
    %3029 = vrot.lane.b32.xlu0 %v1222, 113
    %v3030 = vpop.permute.xlu0 %3029
    %3031 = vrot.lane.b32.xlu0 %v1230, 113
    %v3032 = vpop.permute.xlu0 %3031
    %3033 = vrot.lane.b32.xlu0 %v1238, 113
    %v3034 = vpop.permute.xlu0 %3033
    %3035 = vrot.lane.b32.xlu0 %v1183, 113
    %v3036 = vpop.permute.xlu0 %3035
    %3037 = vrot.lane.b32.xlu0 %v1191, 113
    %v3038 = vpop.permute.xlu0 %3037
    %3039 = vrot.lane.b32.xlu0 %v1199, 113
    %v3040 = vpop.permute.xlu0 %3039
    %3041 = vrot.lane.b32.xlu0 %v1207, 113
    %v3042 = vpop.permute.xlu0 %3041
    %3043 = vrot.lane.b32.xlu0 %v1215, 113
    %v3044 = vpop.permute.xlu0 %3043
    %3045 = vrot.lane.b32.xlu0 %v1223, 113
    %v3046 = vpop.permute.xlu0 %3045
    %3047 = vrot.lane.b32.xlu0 %v1231, 113
    %v3048 = vpop.permute.xlu0 %3047
    %3049 = vrot.lane.b32.xlu0 %v1239, 113
    %v3050 = vpop.permute.xlu0 %3049
    %3051 = vrot.lane.b32.xlu0 %v1184, 113
    %v3052 = vpop.permute.xlu0 %3051
    %3053 = vrot.lane.b32.xlu0 %v1192, 113
    %v3054 = vpop.permute.xlu0 %3053
    %3055 = vrot.lane.b32.xlu0 %v1200, 113
    %v3056 = vpop.permute.xlu0 %3055
    %3057 = vrot.lane.b32.xlu0 %v1208, 113
    %v3058 = vpop.permute.xlu0 %3057
    %3059 = vrot.lane.b32.xlu0 %v1216, 113
    %v3060 = vpop.permute.xlu0 %3059
    %3061 = vrot.lane.b32.xlu0 %v1224, 113
    %v3062 = vpop.permute.xlu0 %3061
    %3063 = vrot.lane.b32.xlu0 %v1232, 113
    %v3064 = vpop.permute.xlu0 %3063
    %3065 = vrot.lane.b32.xlu0 %v1240, 113
    %v3066 = vpop.permute.xlu0 %3065
    %3067 = vrot.lane.b32.xlu0 %v1185, 113
    %v3068 = vpop.permute.xlu0 %3067
    %3069 = vrot.lane.b32.xlu0 %v1193, 113
    %v3070 = vpop.permute.xlu0 %3069
    %3071 = vrot.lane.b32.xlu0 %v1201, 113
    %v3072 = vpop.permute.xlu0 %3071
    %3073 = vrot.lane.b32.xlu0 %v1209, 113
    %v3074 = vpop.permute.xlu0 %3073
    %3075 = vrot.lane.b32.xlu0 %v1217, 113
    %v3076 = vpop.permute.xlu0 %3075
    %3077 = vrot.lane.b32.xlu0 %v1225, 113
    %v3078 = vpop.permute.xlu0 %3077
    %3079 = vrot.lane.b32.xlu0 %v1233, 113
    %v3080 = vpop.permute.xlu0 %3079
    %3081 = vrot.lane.b32.xlu0 %v1241, 113
    %v3082 = vpop.permute.xlu0 %3081
    %3083 = vrot.lane.b32.xlu0 %v1186, 113
    %v3084 = vpop.permute.xlu0 %3083
    %3085 = vrot.lane.b32.xlu0 %v1194, 113
    %v3086 = vpop.permute.xlu0 %3085
    %3087 = vrot.lane.b32.xlu0 %v1202, 113
    %v3088 = vpop.permute.xlu0 %3087
    %3089 = vrot.lane.b32.xlu0 %v1210, 113
    %v3090 = vpop.permute.xlu0 %3089
    %3091 = vrot.lane.b32.xlu0 %v1218, 113
    %v3092 = vpop.permute.xlu0 %3091
    %3093 = vrot.lane.b32.xlu0 %v1226, 113
    %v3094 = vpop.permute.xlu0 %3093
    %3095 = vrot.lane.b32.xlu0 %v1234, 113
    %v3096 = vpop.permute.xlu0 %3095
    %3097 = vrot.lane.b32.xlu0 %v1242, 113
    %v3098 = vpop.permute.xlu0 %3097
    %v3099 = vsel %vm419, %v3068, %v3084
    %v3100 = vsel %vm419, %v3070, %v3086
    %v3101 = vsel %vm419, %v3072, %v3088
    %v3102 = vsel %vm419, %v3074, %v3090
    %v3103 = vsel %vm419, %v3076, %v3092
    %v3104 = vsel %vm419, %v3078, %v3094
    %v3105 = vsel %vm419, %v3080, %v3096
    %v3106 = vsel %vm419, %v3082, %v3098
    %v3107 = vsel %vm419, %v3052, %v3068
    %v3108 = vsel %vm419, %v3054, %v3070
    %v3109 = vsel %vm419, %v3056, %v3072
    %v3110 = vsel %vm419, %v3058, %v3074
    %v3111 = vsel %vm419, %v3060, %v3076
    %v3112 = vsel %vm419, %v3062, %v3078
    %v3113 = vsel %vm419, %v3064, %v3080
    %v3114 = vsel %vm419, %v3066, %v3082
    %v3115 = vsel %vm419, %v3036, %v3052
    %v3116 = vsel %vm419, %v3038, %v3054
    %v3117 = vsel %vm419, %v3040, %v3056
    %v3118 = vsel %vm419, %v3042, %v3058
    %v3119 = vsel %vm419, %v3044, %v3060
    %v3120 = vsel %vm419, %v3046, %v3062
    %v3121 = vsel %vm419, %v3048, %v3064
    %v3122 = vsel %vm419, %v3050, %v3066
    %v3123 = vsel %vm419, %v3020, %v3036
    %v3124 = vsel %vm419, %v3022, %v3038
    %v3125 = vsel %vm419, %v3024, %v3040
    %v3126 = vsel %vm419, %v3026, %v3042
    %v3127 = vsel %vm419, %v3028, %v3044
    %v3128 = vsel %vm419, %v3030, %v3046
    %v3129 = vsel %vm419, %v3032, %v3048
    %v3130 = vsel %vm419, %v3034, %v3050
    %v3131 = vsel %vm419, %v3004, %v3020
    %v3132 = vsel %vm419, %v3006, %v3022
    %v3133 = vsel %vm419, %v3008, %v3024
    %v3134 = vsel %vm419, %v3010, %v3026
    %v3135 = vsel %vm419, %v3012, %v3028
    %v3136 = vsel %vm419, %v3014, %v3030
    %v3137 = vsel %vm419, %v3016, %v3032
    %v3138 = vsel %vm419, %v3018, %v3034
    %v3139 = vsel %vm419, %v2988, %v3004
    %v3140 = vsel %vm419, %v2990, %v3006
    %v3141 = vsel %vm419, %v2992, %v3008
    %v3142 = vsel %vm419, %v2994, %v3010
    %v3143 = vsel %vm419, %v2996, %v3012
    %v3144 = vsel %vm419, %v2998, %v3014
    %v3145 = vsel %vm419, %v3000, %v3016
    %v3146 = vsel %vm419, %v3002, %v3018
    %v3147 = vsel %vm419, %v2972, %v2988
    %v3148 = vsel %vm419, %v2974, %v2990
    %v3149 = vsel %vm419, %v2976, %v2992
    %v3150 = vsel %vm419, %v2978, %v2994
    %v3151 = vsel %vm419, %v2980, %v2996
    %v3152 = vsel %vm419, %v2982, %v2998
    %v3153 = vsel %vm419, %v2984, %v3000
    %v3154 = vsel %vm419, %v2986, %v3002
    %v3155 = vsel %vm419, %v3084, %v2972
    %v3156 = vsel %vm419, %v3086, %v2974
    %v3157 = vsel %vm419, %v3088, %v2976
    %v3158 = vsel %vm419, %v3090, %v2978
    %v3159 = vsel %vm419, %v3092, %v2980
    %v3160 = vsel %vm419, %v3094, %v2982
    %v3161 = vsel %vm419, %v3096, %v2984
    %v3162 = vsel %vm419, %v3098, %v2986
    %v3163 = vlaneseq
    %v3164 = vshrl.u32 %v3163, 7
    %v3165 = vsub.s32 6, %v3164
    %v3166 = vrot.slane %v56, %v3165
    %v3167 = vlaneseq
    %v3168 = vshrl.u32 %v3167, 7
    %v3169 = vsub.s32 6, %v3168
    %v3170 = vrot.slane %v57, %v3169
    %v3171 = vlaneseq
    %v3172 = vshrl.u32 %v3171, 7
    %v3173 = vsub.s32 6, %v3172
    %v3174 = vrot.slane %v58, %v3173
    %v3175 = vlaneseq
    %v3176 = vshrl.u32 %v3175, 7
    %v3177 = vsub.s32 6, %v3176
    %v3178 = vrot.slane %v59, %v3177
    %v3179 = vlaneseq
    %v3180 = vshrl.u32 %v3179, 7
    %v3181 = vsub.s32 6, %v3180
    %v3182 = vrot.slane %v60, %v3181
    %v3183 = vlaneseq
    %v3184 = vshrl.u32 %v3183, 7
    %v3185 = vsub.s32 6, %v3184
    %v3186 = vrot.slane %v61, %v3185
    %v3187 = vlaneseq
    %v3188 = vshrl.u32 %v3187, 7
    %v3189 = vsub.s32 6, %v3188
    %v3190 = vrot.slane %v62, %v3189
    %v3191 = vlaneseq
    %v3192 = vshrl.u32 %v3191, 7
    %v3193 = vsub.s32 6, %v3192
    %v3194 = vrot.slane %v63, %v3193
    %v3195 = vmul.f32 %v3147, %v3166
    %v3196 = vmul.f32 %v3139, %v3170
    %v3197 = vmul.f32 %v3131, %v3174
    %v3198 = vmul.f32 %v3123, %v3178
    %v3199 = vmul.f32 %v3115, %v3182
    %v3200 = vmul.f32 %v3107, %v3186
    %v3201 = vmul.f32 %v3099, %v3190
    %v3202 = vmul.f32 %v3155, %v3194
    %v3203 = vmul.f32 %v3148, %v3166
    %v3204 = vmul.f32 %v3140, %v3170
    %v3205 = vmul.f32 %v3132, %v3174
    %v3206 = vmul.f32 %v3124, %v3178
    %v3207 = vmul.f32 %v3116, %v3182
    %v3208 = vmul.f32 %v3108, %v3186
    %v3209 = vmul.f32 %v3100, %v3190
    %v3210 = vmul.f32 %v3156, %v3194
    %v3211 = vmul.f32 %v3149, %v3166
    %v3212 = vmul.f32 %v3141, %v3170
    %v3213 = vmul.f32 %v3133, %v3174
    %v3214 = vmul.f32 %v3125, %v3178
    %v3215 = vmul.f32 %v3117, %v3182
    %v3216 = vmul.f32 %v3109, %v3186
    %v3217 = vmul.f32 %v3101, %v3190
    %v3218 = vmul.f32 %v3157, %v3194
    %v3219 = vmul.f32 %v3150, %v3166
    %v3220 = vmul.f32 %v3142, %v3170
    %v3221 = vmul.f32 %v3134, %v3174
    %v3222 = vmul.f32 %v3126, %v3178
    %v3223 = vmul.f32 %v3118, %v3182
    %v3224 = vmul.f32 %v3110, %v3186
    %v3225 = vmul.f32 %v3102, %v3190
    %v3226 = vmul.f32 %v3158, %v3194
    %v3227 = vmul.f32 %v3151, %v3166
    %v3228 = vmul.f32 %v3143, %v3170
    %v3229 = vmul.f32 %v3135, %v3174
    %v3230 = vmul.f32 %v3127, %v3178
    %v3231 = vmul.f32 %v3119, %v3182
    %v3232 = vmul.f32 %v3111, %v3186
    %v3233 = vmul.f32 %v3103, %v3190
    %v3234 = vmul.f32 %v3159, %v3194
    %v3235 = vmul.f32 %v3152, %v3166
    %v3236 = vmul.f32 %v3144, %v3170
    %v3237 = vmul.f32 %v3136, %v3174
    %v3238 = vmul.f32 %v3128, %v3178
    %v3239 = vmul.f32 %v3120, %v3182
    %v3240 = vmul.f32 %v3112, %v3186
    %v3241 = vmul.f32 %v3104, %v3190
    %v3242 = vmul.f32 %v3160, %v3194
    %v3243 = vmul.f32 %v3153, %v3166
    %v3244 = vmul.f32 %v3145, %v3170
    %v3245 = vmul.f32 %v3137, %v3174
    %v3246 = vmul.f32 %v3129, %v3178
    %v3247 = vmul.f32 %v3121, %v3182
    %v3248 = vmul.f32 %v3113, %v3186
    %v3249 = vmul.f32 %v3105, %v3190
    %v3250 = vmul.f32 %v3161, %v3194
    %v3251 = vmul.f32 %v3154, %v3166
    %v3252 = vmul.f32 %v3146, %v3170
    %v3253 = vmul.f32 %v3138, %v3174
    %v3254 = vmul.f32 %v3130, %v3178
    %v3255 = vmul.f32 %v3122, %v3182
    %v3256 = vmul.f32 %v3114, %v3186
    %v3257 = vmul.f32 %v3106, %v3190
    %v3258 = vmul.f32 %v3162, %v3194
    %v3259 = vpack.c.bf16 %v3203, %v3195
    %v3260 = vpack.c.bf16 %v3204, %v3196
    %v3261 = vpack.c.bf16 %v3205, %v3197
    %v3262 = vpack.c.bf16 %v3206, %v3198
    %v3263 = vpack.c.bf16 %v3207, %v3199
    %v3264 = vpack.c.bf16 %v3208, %v3200
    %v3265 = vpack.c.bf16 %v3209, %v3201
    %v3266 = vpack.c.bf16 %v3210, %v3202
    %v3267 = vpack.c.bf16 %v3219, %v3211
    %v3268 = vpack.c.bf16 %v3220, %v3212
    %v3269 = vpack.c.bf16 %v3221, %v3213
    %v3270 = vpack.c.bf16 %v3222, %v3214
    %v3271 = vpack.c.bf16 %v3223, %v3215
    %v3272 = vpack.c.bf16 %v3224, %v3216
    %v3273 = vpack.c.bf16 %v3225, %v3217
    %v3274 = vpack.c.bf16 %v3226, %v3218
    %v3275 = vpack.c.bf16 %v3235, %v3227
    %v3276 = vpack.c.bf16 %v3236, %v3228
    %v3277 = vpack.c.bf16 %v3237, %v3229
    %v3278 = vpack.c.bf16 %v3238, %v3230
    %v3279 = vpack.c.bf16 %v3239, %v3231
    %v3280 = vpack.c.bf16 %v3240, %v3232
    %v3281 = vpack.c.bf16 %v3241, %v3233
    %v3282 = vpack.c.bf16 %v3242, %v3234
    %v3283 = vpack.c.bf16 %v3251, %v3243
    %v3284 = vpack.c.bf16 %v3252, %v3244
    %v3285 = vpack.c.bf16 %v3253, %v3245
    %v3286 = vpack.c.bf16 %v3254, %v3246
    %v3287 = vpack.c.bf16 %v3255, %v3247
    %v3288 = vpack.c.bf16 %v3256, %v3248
    %v3289 = vpack.c.bf16 %v3257, %v3249
    %v3290 = vpack.c.bf16 %v3258, %v3250
    %3291 = vrot.lane.b32.xlu0 %v1179, 112
    %v3292 = vpop.permute.xlu0 %3291
    %3293 = vrot.lane.b32.xlu0 %v1187, 112
    %v3294 = vpop.permute.xlu0 %3293
    %3295 = vrot.lane.b32.xlu0 %v1195, 112
    %v3296 = vpop.permute.xlu0 %3295
    %3297 = vrot.lane.b32.xlu0 %v1203, 112
    %v3298 = vpop.permute.xlu0 %3297
    %3299 = vrot.lane.b32.xlu0 %v1211, 112
    %v3300 = vpop.permute.xlu0 %3299
    %3301 = vrot.lane.b32.xlu0 %v1219, 112
    %v3302 = vpop.permute.xlu0 %3301
    %3303 = vrot.lane.b32.xlu0 %v1227, 112
    %v3304 = vpop.permute.xlu0 %3303
    %3305 = vrot.lane.b32.xlu0 %v1235, 112
    %v3306 = vpop.permute.xlu0 %3305
    %3307 = vrot.lane.b32.xlu0 %v1180, 112
    %v3308 = vpop.permute.xlu0 %3307
    %3309 = vrot.lane.b32.xlu0 %v1188, 112
    %v3310 = vpop.permute.xlu0 %3309
    %3311 = vrot.lane.b32.xlu0 %v1196, 112
    %v3312 = vpop.permute.xlu0 %3311
    %3313 = vrot.lane.b32.xlu0 %v1204, 112
    %v3314 = vpop.permute.xlu0 %3313
    %3315 = vrot.lane.b32.xlu0 %v1212, 112
    %v3316 = vpop.permute.xlu0 %3315
    %3317 = vrot.lane.b32.xlu0 %v1220, 112
    %v3318 = vpop.permute.xlu0 %3317
    %3319 = vrot.lane.b32.xlu0 %v1228, 112
    %v3320 = vpop.permute.xlu0 %3319
    %3321 = vrot.lane.b32.xlu0 %v1236, 112
    %v3322 = vpop.permute.xlu0 %3321
    %3323 = vrot.lane.b32.xlu0 %v1181, 112
    %v3324 = vpop.permute.xlu0 %3323
    %3325 = vrot.lane.b32.xlu0 %v1189, 112
    %v3326 = vpop.permute.xlu0 %3325
    %3327 = vrot.lane.b32.xlu0 %v1197, 112
    %v3328 = vpop.permute.xlu0 %3327
    %3329 = vrot.lane.b32.xlu0 %v1205, 112
    %v3330 = vpop.permute.xlu0 %3329
    %3331 = vrot.lane.b32.xlu0 %v1213, 112
    %v3332 = vpop.permute.xlu0 %3331
    %3333 = vrot.lane.b32.xlu0 %v1221, 112
    %v3334 = vpop.permute.xlu0 %3333
    %3335 = vrot.lane.b32.xlu0 %v1229, 112
    %v3336 = vpop.permute.xlu0 %3335
    %3337 = vrot.lane.b32.xlu0 %v1237, 112
    %v3338 = vpop.permute.xlu0 %3337
    %3339 = vrot.lane.b32.xlu0 %v1182, 112
    %v3340 = vpop.permute.xlu0 %3339
    %3341 = vrot.lane.b32.xlu0 %v1190, 112
    %v3342 = vpop.permute.xlu0 %3341
    %3343 = vrot.lane.b32.xlu0 %v1198, 112
    %v3344 = vpop.permute.xlu0 %3343
    %3345 = vrot.lane.b32.xlu0 %v1206, 112
    %v3346 = vpop.permute.xlu0 %3345
    %3347 = vrot.lane.b32.xlu0 %v1214, 112
    %v3348 = vpop.permute.xlu0 %3347
    %3349 = vrot.lane.b32.xlu0 %v1222, 112
    %v3350 = vpop.permute.xlu0 %3349
    %3351 = vrot.lane.b32.xlu0 %v1230, 112
    %v3352 = vpop.permute.xlu0 %3351
    %3353 = vrot.lane.b32.xlu0 %v1238, 112
    %v3354 = vpop.permute.xlu0 %3353
    %3355 = vrot.lane.b32.xlu0 %v1183, 112
    %v3356 = vpop.permute.xlu0 %3355
    %3357 = vrot.lane.b32.xlu0 %v1191, 112
    %v3358 = vpop.permute.xlu0 %3357
    %3359 = vrot.lane.b32.xlu0 %v1199, 112
    %v3360 = vpop.permute.xlu0 %3359
    %3361 = vrot.lane.b32.xlu0 %v1207, 112
    %v3362 = vpop.permute.xlu0 %3361
    %3363 = vrot.lane.b32.xlu0 %v1215, 112
    %v3364 = vpop.permute.xlu0 %3363
    %3365 = vrot.lane.b32.xlu0 %v1223, 112
    %v3366 = vpop.permute.xlu0 %3365
    %3367 = vrot.lane.b32.xlu0 %v1231, 112
    %v3368 = vpop.permute.xlu0 %3367
    %3369 = vrot.lane.b32.xlu0 %v1239, 112
    %v3370 = vpop.permute.xlu0 %3369
    %3371 = vrot.lane.b32.xlu0 %v1184, 112
    %v3372 = vpop.permute.xlu0 %3371
    %3373 = vrot.lane.b32.xlu0 %v1192, 112
    %v3374 = vpop.permute.xlu0 %3373
    %3375 = vrot.lane.b32.xlu0 %v1200, 112
    %v3376 = vpop.permute.xlu0 %3375
    %3377 = vrot.lane.b32.xlu0 %v1208, 112
    %v3378 = vpop.permute.xlu0 %3377
    %3379 = vrot.lane.b32.xlu0 %v1216, 112
    %v3380 = vpop.permute.xlu0 %3379
    %3381 = vrot.lane.b32.xlu0 %v1224, 112
    %v3382 = vpop.permute.xlu0 %3381
    %3383 = vrot.lane.b32.xlu0 %v1232, 112
    %v3384 = vpop.permute.xlu0 %3383
    %3385 = vrot.lane.b32.xlu0 %v1240, 112
    %v3386 = vpop.permute.xlu0 %3385
    %3387 = vrot.lane.b32.xlu0 %v1185, 112
    %v3388 = vpop.permute.xlu0 %3387
    %3389 = vrot.lane.b32.xlu0 %v1193, 112
    %v3390 = vpop.permute.xlu0 %3389
    %3391 = vrot.lane.b32.xlu0 %v1201, 112
    %v3392 = vpop.permute.xlu0 %3391
    %3393 = vrot.lane.b32.xlu0 %v1209, 112
    %v3394 = vpop.permute.xlu0 %3393
    %3395 = vrot.lane.b32.xlu0 %v1217, 112
    %v3396 = vpop.permute.xlu0 %3395
    %3397 = vrot.lane.b32.xlu0 %v1225, 112
    %v3398 = vpop.permute.xlu0 %3397
    %3399 = vrot.lane.b32.xlu0 %v1233, 112
    %v3400 = vpop.permute.xlu0 %3399
    %3401 = vrot.lane.b32.xlu0 %v1241, 112
    %v3402 = vpop.permute.xlu0 %3401
    %3403 = vrot.lane.b32.xlu0 %v1186, 112
    %v3404 = vpop.permute.xlu0 %3403
    %3405 = vrot.lane.b32.xlu0 %v1194, 112
    %v3406 = vpop.permute.xlu0 %3405
    %3407 = vrot.lane.b32.xlu0 %v1202, 112
    %v3408 = vpop.permute.xlu0 %3407
    %3409 = vrot.lane.b32.xlu0 %v1210, 112
    %v3410 = vpop.permute.xlu0 %3409
    %3411 = vrot.lane.b32.xlu0 %v1218, 112
    %v3412 = vpop.permute.xlu0 %3411
    %3413 = vrot.lane.b32.xlu0 %v1226, 112
    %v3414 = vpop.permute.xlu0 %3413
    %3415 = vrot.lane.b32.xlu0 %v1234, 112
    %v3416 = vpop.permute.xlu0 %3415
    %3417 = vrot.lane.b32.xlu0 %v1242, 112
    %v3418 = vpop.permute.xlu0 %3417
    %v3419 = vsel %vm468, %v3388, %v3404
    %v3420 = vsel %vm468, %v3390, %v3406
    %v3421 = vsel %vm468, %v3392, %v3408
    %v3422 = vsel %vm468, %v3394, %v3410
    %v3423 = vsel %vm468, %v3396, %v3412
    %v3424 = vsel %vm468, %v3398, %v3414
    %v3425 = vsel %vm468, %v3400, %v3416
    %v3426 = vsel %vm468, %v3402, %v3418
    %v3427 = vsel %vm468, %v3372, %v3388
    %v3428 = vsel %vm468, %v3374, %v3390
    %v3429 = vsel %vm468, %v3376, %v3392
    %v3430 = vsel %vm468, %v3378, %v3394
    %v3431 = vsel %vm468, %v3380, %v3396
    %v3432 = vsel %vm468, %v3382, %v3398
    %v3433 = vsel %vm468, %v3384, %v3400
    %v3434 = vsel %vm468, %v3386, %v3402
    %v3435 = vsel %vm468, %v3356, %v3372
    %v3436 = vsel %vm468, %v3358, %v3374
    %v3437 = vsel %vm468, %v3360, %v3376
    %v3438 = vsel %vm468, %v3362, %v3378
    %v3439 = vsel %vm468, %v3364, %v3380
    %v3440 = vsel %vm468, %v3366, %v3382
    %v3441 = vsel %vm468, %v3368, %v3384
    %v3442 = vsel %vm468, %v3370, %v3386
    %v3443 = vsel %vm468, %v3340, %v3356
    %v3444 = vsel %vm468, %v3342, %v3358
    %v3445 = vsel %vm468, %v3344, %v3360
    %v3446 = vsel %vm468, %v3346, %v3362
    %v3447 = vsel %vm468, %v3348, %v3364
    %v3448 = vsel %vm468, %v3350, %v3366
    %v3449 = vsel %vm468, %v3352, %v3368
    %v3450 = vsel %vm468, %v3354, %v3370
    %v3451 = vsel %vm468, %v3324, %v3340
    %v3452 = vsel %vm468, %v3326, %v3342
    %v3453 = vsel %vm468, %v3328, %v3344
    %v3454 = vsel %vm468, %v3330, %v3346
    %v3455 = vsel %vm468, %v3332, %v3348
    %v3456 = vsel %vm468, %v3334, %v3350
    %v3457 = vsel %vm468, %v3336, %v3352
    %v3458 = vsel %vm468, %v3338, %v3354
    %v3459 = vsel %vm468, %v3308, %v3324
    %v3460 = vsel %vm468, %v3310, %v3326
    %v3461 = vsel %vm468, %v3312, %v3328
    %v3462 = vsel %vm468, %v3314, %v3330
    %v3463 = vsel %vm468, %v3316, %v3332
    %v3464 = vsel %vm468, %v3318, %v3334
    %v3465 = vsel %vm468, %v3320, %v3336
    %v3466 = vsel %vm468, %v3322, %v3338
    %v3467 = vsel %vm468, %v3292, %v3308
    %v3468 = vsel %vm468, %v3294, %v3310
    %v3469 = vsel %vm468, %v3296, %v3312
    %v3470 = vsel %vm468, %v3298, %v3314
    %v3471 = vsel %vm468, %v3300, %v3316
    %v3472 = vsel %vm468, %v3302, %v3318
    %v3473 = vsel %vm468, %v3304, %v3320
    %v3474 = vsel %vm468, %v3306, %v3322
    %v3475 = vsel %vm468, %v3404, %v3292
    %v3476 = vsel %vm468, %v3406, %v3294
    %v3477 = vsel %vm468, %v3408, %v3296
    %v3478 = vsel %vm468, %v3410, %v3298
    %v3479 = vsel %vm468, %v3412, %v3300
    %v3480 = vsel %vm468, %v3414, %v3302
    %v3481 = vsel %vm468, %v3416, %v3304
    %v3482 = vsel %vm468, %v3418, %v3306
    %v3483 = vlaneseq
    %v3484 = vshrl.u32 %v3483, 7
    %v3485 = vsub.s32 7, %v3484
    %v3486 = vrot.slane %v56, %v3485
    %v3487 = vlaneseq
    %v3488 = vshrl.u32 %v3487, 7
    %v3489 = vsub.s32 7, %v3488
    %v3490 = vrot.slane %v57, %v3489
    %v3491 = vlaneseq
    %v3492 = vshrl.u32 %v3491, 7
    %v3493 = vsub.s32 7, %v3492
    %v3494 = vrot.slane %v58, %v3493
    %v3495 = vlaneseq
    %v3496 = vshrl.u32 %v3495, 7
    %v3497 = vsub.s32 7, %v3496
    %v3498 = vrot.slane %v59, %v3497
    %v3499 = vlaneseq
    %v3500 = vshrl.u32 %v3499, 7
    %v3501 = vsub.s32 7, %v3500
    %v3502 = vrot.slane %v60, %v3501
    %v3503 = vlaneseq
    %v3504 = vshrl.u32 %v3503, 7
    %v3505 = vsub.s32 7, %v3504
    %v3506 = vrot.slane %v61, %v3505
    %v3507 = vlaneseq
    %v3508 = vshrl.u32 %v3507, 7
    %v3509 = vsub.s32 7, %v3508
    %v3510 = vrot.slane %v62, %v3509
    %v3511 = vlaneseq
    %v3512 = vshrl.u32 %v3511, 7
    %v3513 = vsub.s32 7, %v3512
    %v3514 = vrot.slane %v63, %v3513
    %v3515 = vmul.f32 %v3467, %v3486
    %v3516 = vmul.f32 %v3459, %v3490
    %v3517 = vmul.f32 %v3451, %v3494
    %v3518 = vmul.f32 %v3443, %v3498
    %v3519 = vmul.f32 %v3435, %v3502
    %v3520 = vmul.f32 %v3427, %v3506
    %v3521 = vmul.f32 %v3419, %v3510
    %v3522 = vmul.f32 %v3475, %v3514
    %v3523 = vmul.f32 %v3468, %v3486
    %v3524 = vmul.f32 %v3460, %v3490
    %v3525 = vmul.f32 %v3452, %v3494
    %v3526 = vmul.f32 %v3444, %v3498
    %v3527 = vmul.f32 %v3436, %v3502
    %v3528 = vmul.f32 %v3428, %v3506
    %v3529 = vmul.f32 %v3420, %v3510
    %v3530 = vmul.f32 %v3476, %v3514
    %v3531 = vmul.f32 %v3469, %v3486
    %v3532 = vmul.f32 %v3461, %v3490
    %v3533 = vmul.f32 %v3453, %v3494
    %v3534 = vmul.f32 %v3445, %v3498
    %v3535 = vmul.f32 %v3437, %v3502
    %v3536 = vmul.f32 %v3429, %v3506
    %v3537 = vmul.f32 %v3421, %v3510
    %v3538 = vmul.f32 %v3477, %v3514
    %v3539 = vmul.f32 %v3470, %v3486
    %v3540 = vmul.f32 %v3462, %v3490
    %v3541 = vmul.f32 %v3454, %v3494
    %v3542 = vmul.f32 %v3446, %v3498
    %v3543 = vmul.f32 %v3438, %v3502
    %v3544 = vmul.f32 %v3430, %v3506
    %v3545 = vmul.f32 %v3422, %v3510
    %v3546 = vmul.f32 %v3478, %v3514
    %v3547 = vmul.f32 %v3471, %v3486
    %v3548 = vmul.f32 %v3463, %v3490
    %v3549 = vmul.f32 %v3455, %v3494
    %v3550 = vmul.f32 %v3447, %v3498
    %v3551 = vmul.f32 %v3439, %v3502
    %v3552 = vmul.f32 %v3431, %v3506
    %v3553 = vmul.f32 %v3423, %v3510
    %v3554 = vmul.f32 %v3479, %v3514
    %v3555 = vmul.f32 %v3472, %v3486
    %v3556 = vmul.f32 %v3464, %v3490
    %v3557 = vmul.f32 %v3456, %v3494
    %v3558 = vmul.f32 %v3448, %v3498
    %v3559 = vmul.f32 %v3440, %v3502
    %v3560 = vmul.f32 %v3432, %v3506
    %v3561 = vmul.f32 %v3424, %v3510
    %v3562 = vmul.f32 %v3480, %v3514
    %v3563 = vmul.f32 %v3473, %v3486
    %v3564 = vmul.f32 %v3465, %v3490
    %v3565 = vmul.f32 %v3457, %v3494
    %v3566 = vmul.f32 %v3449, %v3498
    %v3567 = vmul.f32 %v3441, %v3502
    %v3568 = vmul.f32 %v3433, %v3506
    %v3569 = vmul.f32 %v3425, %v3510
    %v3570 = vmul.f32 %v3481, %v3514
    %v3571 = vmul.f32 %v3474, %v3486
    %v3572 = vmul.f32 %v3466, %v3490
    %v3573 = vmul.f32 %v3458, %v3494
    %v3574 = vmul.f32 %v3450, %v3498
    %v3575 = vmul.f32 %v3442, %v3502
    %v3576 = vmul.f32 %v3434, %v3506
    %v3577 = vmul.f32 %v3426, %v3510
    %v3578 = vmul.f32 %v3482, %v3514
    %v3579 = vpack.c.bf16 %v3523, %v3515
    %v3580 = vpack.c.bf16 %v3524, %v3516
    %v3581 = vpack.c.bf16 %v3525, %v3517
    %v3582 = vpack.c.bf16 %v3526, %v3518
    %v3583 = vpack.c.bf16 %v3527, %v3519
    %v3584 = vpack.c.bf16 %v3528, %v3520
    %v3585 = vpack.c.bf16 %v3529, %v3521
    %v3586 = vpack.c.bf16 %v3530, %v3522
    %v3587 = vpack.c.bf16 %v3539, %v3531
    %v3588 = vpack.c.bf16 %v3540, %v3532
    %v3589 = vpack.c.bf16 %v3541, %v3533
    %v3590 = vpack.c.bf16 %v3542, %v3534
    %v3591 = vpack.c.bf16 %v3543, %v3535
    %v3592 = vpack.c.bf16 %v3544, %v3536
    %v3593 = vpack.c.bf16 %v3545, %v3537
    %v3594 = vpack.c.bf16 %v3546, %v3538
    %v3595 = vpack.c.bf16 %v3555, %v3547
    %v3596 = vpack.c.bf16 %v3556, %v3548
    %v3597 = vpack.c.bf16 %v3557, %v3549
    %v3598 = vpack.c.bf16 %v3558, %v3550
    %v3599 = vpack.c.bf16 %v3559, %v3551
    %v3600 = vpack.c.bf16 %v3560, %v3552
    %v3601 = vpack.c.bf16 %v3561, %v3553
    %v3602 = vpack.c.bf16 %v3562, %v3554
    %v3603 = vpack.c.bf16 %v3571, %v3563
    %v3604 = vpack.c.bf16 %v3572, %v3564
    %v3605 = vpack.c.bf16 %v3573, %v3565
    %v3606 = vpack.c.bf16 %v3574, %v3566
    %v3607 = vpack.c.bf16 %v3575, %v3567
    %v3608 = vpack.c.bf16 %v3576, %v3568
    %v3609 = vpack.c.bf16 %v3577, %v3569
    %v3610 = vpack.c.bf16 %v3578, %v3570
    %3611 = vrot.lane.b32.xlu0 %v1179, 111
    %v3612 = vpop.permute.xlu0 %3611
    %3613 = vrot.lane.b32.xlu0 %v1187, 111
    %v3614 = vpop.permute.xlu0 %3613
    %3615 = vrot.lane.b32.xlu0 %v1195, 111
    %v3616 = vpop.permute.xlu0 %3615
    %3617 = vrot.lane.b32.xlu0 %v1203, 111
    %v3618 = vpop.permute.xlu0 %3617
    %3619 = vrot.lane.b32.xlu0 %v1211, 111
    %v3620 = vpop.permute.xlu0 %3619
    %3621 = vrot.lane.b32.xlu0 %v1219, 111
    %v3622 = vpop.permute.xlu0 %3621
    %3623 = vrot.lane.b32.xlu0 %v1227, 111
    %v3624 = vpop.permute.xlu0 %3623
    %3625 = vrot.lane.b32.xlu0 %v1235, 111
    %v3626 = vpop.permute.xlu0 %3625
    %3627 = vrot.lane.b32.xlu0 %v1180, 111
    %v3628 = vpop.permute.xlu0 %3627
    %3629 = vrot.lane.b32.xlu0 %v1188, 111
    %v3630 = vpop.permute.xlu0 %3629
    %3631 = vrot.lane.b32.xlu0 %v1196, 111
    %v3632 = vpop.permute.xlu0 %3631
    %3633 = vrot.lane.b32.xlu0 %v1204, 111
    %v3634 = vpop.permute.xlu0 %3633
    %3635 = vrot.lane.b32.xlu0 %v1212, 111
    %v3636 = vpop.permute.xlu0 %3635
    %3637 = vrot.lane.b32.xlu0 %v1220, 111
    %v3638 = vpop.permute.xlu0 %3637
    %3639 = vrot.lane.b32.xlu0 %v1228, 111
    %v3640 = vpop.permute.xlu0 %3639
    %3641 = vrot.lane.b32.xlu0 %v1236, 111
    %v3642 = vpop.permute.xlu0 %3641
    %3643 = vrot.lane.b32.xlu0 %v1181, 111
    %v3644 = vpop.permute.xlu0 %3643
    %3645 = vrot.lane.b32.xlu0 %v1189, 111
    %v3646 = vpop.permute.xlu0 %3645
    %3647 = vrot.lane.b32.xlu0 %v1197, 111
    %v3648 = vpop.permute.xlu0 %3647
    %3649 = vrot.lane.b32.xlu0 %v1205, 111
    %v3650 = vpop.permute.xlu0 %3649
    %3651 = vrot.lane.b32.xlu0 %v1213, 111
    %v3652 = vpop.permute.xlu0 %3651
    %3653 = vrot.lane.b32.xlu0 %v1221, 111
    %v3654 = vpop.permute.xlu0 %3653
    %3655 = vrot.lane.b32.xlu0 %v1229, 111
    %v3656 = vpop.permute.xlu0 %3655
    %3657 = vrot.lane.b32.xlu0 %v1237, 111
    %v3658 = vpop.permute.xlu0 %3657
    %3659 = vrot.lane.b32.xlu0 %v1182, 111
    %v3660 = vpop.permute.xlu0 %3659
    %3661 = vrot.lane.b32.xlu0 %v1190, 111
    %v3662 = vpop.permute.xlu0 %3661
    %3663 = vrot.lane.b32.xlu0 %v1198, 111
    %v3664 = vpop.permute.xlu0 %3663
    %3665 = vrot.lane.b32.xlu0 %v1206, 111
    %v3666 = vpop.permute.xlu0 %3665
    %3667 = vrot.lane.b32.xlu0 %v1214, 111
    %v3668 = vpop.permute.xlu0 %3667
    %3669 = vrot.lane.b32.xlu0 %v1222, 111
    %v3670 = vpop.permute.xlu0 %3669
    %3671 = vrot.lane.b32.xlu0 %v1230, 111
    %v3672 = vpop.permute.xlu0 %3671
    %3673 = vrot.lane.b32.xlu0 %v1238, 111
    %v3674 = vpop.permute.xlu0 %3673
    %3675 = vrot.lane.b32.xlu0 %v1183, 111
    %v3676 = vpop.permute.xlu0 %3675
    %3677 = vrot.lane.b32.xlu0 %v1191, 111
    %v3678 = vpop.permute.xlu0 %3677
    %3679 = vrot.lane.b32.xlu0 %v1199, 111
    %v3680 = vpop.permute.xlu0 %3679
    %3681 = vrot.lane.b32.xlu0 %v1207, 111
    %v3682 = vpop.permute.xlu0 %3681
    %3683 = vrot.lane.b32.xlu0 %v1215, 111
    %v3684 = vpop.permute.xlu0 %3683
    %3685 = vrot.lane.b32.xlu0 %v1223, 111
    %v3686 = vpop.permute.xlu0 %3685
    %3687 = vrot.lane.b32.xlu0 %v1231, 111
    %v3688 = vpop.permute.xlu0 %3687
    %3689 = vrot.lane.b32.xlu0 %v1239, 111
    %v3690 = vpop.permute.xlu0 %3689
    %3691 = vrot.lane.b32.xlu0 %v1184, 111
    %v3692 = vpop.permute.xlu0 %3691
    %3693 = vrot.lane.b32.xlu0 %v1192, 111
    %v3694 = vpop.permute.xlu0 %3693
    %3695 = vrot.lane.b32.xlu0 %v1200, 111
    %v3696 = vpop.permute.xlu0 %3695
    %3697 = vrot.lane.b32.xlu0 %v1208, 111
    %v3698 = vpop.permute.xlu0 %3697
    %3699 = vrot.lane.b32.xlu0 %v1216, 111
    %v3700 = vpop.permute.xlu0 %3699
    %3701 = vrot.lane.b32.xlu0 %v1224, 111
    %v3702 = vpop.permute.xlu0 %3701
    %3703 = vrot.lane.b32.xlu0 %v1232, 111
    %v3704 = vpop.permute.xlu0 %3703
    %3705 = vrot.lane.b32.xlu0 %v1240, 111
    %v3706 = vpop.permute.xlu0 %3705
    %3707 = vrot.lane.b32.xlu0 %v1185, 111
    %v3708 = vpop.permute.xlu0 %3707
    %3709 = vrot.lane.b32.xlu0 %v1193, 111
    %v3710 = vpop.permute.xlu0 %3709
    %3711 = vrot.lane.b32.xlu0 %v1201, 111
    %v3712 = vpop.permute.xlu0 %3711
    %3713 = vrot.lane.b32.xlu0 %v1209, 111
    %v3714 = vpop.permute.xlu0 %3713
    %3715 = vrot.lane.b32.xlu0 %v1217, 111
    %v3716 = vpop.permute.xlu0 %3715
    %3717 = vrot.lane.b32.xlu0 %v1225, 111
    %v3718 = vpop.permute.xlu0 %3717
    %3719 = vrot.lane.b32.xlu0 %v1233, 111
    %v3720 = vpop.permute.xlu0 %3719
    %3721 = vrot.lane.b32.xlu0 %v1241, 111
    %v3722 = vpop.permute.xlu0 %3721
    %3723 = vrot.lane.b32.xlu0 %v1186, 111
    %v3724 = vpop.permute.xlu0 %3723
    %3725 = vrot.lane.b32.xlu0 %v1194, 111
    %v3726 = vpop.permute.xlu0 %3725
    %3727 = vrot.lane.b32.xlu0 %v1202, 111
    %v3728 = vpop.permute.xlu0 %3727
    %3729 = vrot.lane.b32.xlu0 %v1210, 111
    %v3730 = vpop.permute.xlu0 %3729
    %3731 = vrot.lane.b32.xlu0 %v1218, 111
    %v3732 = vpop.permute.xlu0 %3731
    %3733 = vrot.lane.b32.xlu0 %v1226, 111
    %v3734 = vpop.permute.xlu0 %3733
    %3735 = vrot.lane.b32.xlu0 %v1234, 111
    %v3736 = vpop.permute.xlu0 %3735
    %3737 = vrot.lane.b32.xlu0 %v1242, 111
    %v3738 = vpop.permute.xlu0 %3737
    %v3739 = vsel %vm517, %v3708, %v3724
    %v3740 = vsel %vm517, %v3710, %v3726
    %v3741 = vsel %vm517, %v3712, %v3728
    %v3742 = vsel %vm517, %v3714, %v3730
    %v3743 = vsel %vm517, %v3716, %v3732
    %v3744 = vsel %vm517, %v3718, %v3734
    %v3745 = vsel %vm517, %v3720, %v3736
    %v3746 = vsel %vm517, %v3722, %v3738
    %v3747 = vsel %vm517, %v3692, %v3708
    %v3748 = vsel %vm517, %v3694, %v3710
    %v3749 = vsel %vm517, %v3696, %v3712
    %v3750 = vsel %vm517, %v3698, %v3714
    %v3751 = vsel %vm517, %v3700, %v3716
    %v3752 = vsel %vm517, %v3702, %v3718
    %v3753 = vsel %vm517, %v3704, %v3720
    %v3754 = vsel %vm517, %v3706, %v3722
    %v3755 = vsel %vm517, %v3676, %v3692
    %v3756 = vsel %vm517, %v3678, %v3694
    %v3757 = vsel %vm517, %v3680, %v3696
    %v3758 = vsel %vm517, %v3682, %v3698
    %v3759 = vsel %vm517, %v3684, %v3700
    %v3760 = vsel %vm517, %v3686, %v3702
    %v3761 = vsel %vm517, %v3688, %v3704
    %v3762 = vsel %vm517, %v3690, %v3706
    %v3763 = vsel %vm517, %v3660, %v3676
    %v3764 = vsel %vm517, %v3662, %v3678
    %v3765 = vsel %vm517, %v3664, %v3680
    %v3766 = vsel %vm517, %v3666, %v3682
    %v3767 = vsel %vm517, %v3668, %v3684
    %v3768 = vsel %vm517, %v3670, %v3686
    %v3769 = vsel %vm517, %v3672, %v3688
    %v3770 = vsel %vm517, %v3674, %v3690
    %v3771 = vsel %vm517, %v3644, %v3660
    %v3772 = vsel %vm517, %v3646, %v3662
    %v3773 = vsel %vm517, %v3648, %v3664
    %v3774 = vsel %vm517, %v3650, %v3666
    %v3775 = vsel %vm517, %v3652, %v3668
    %v3776 = vsel %vm517, %v3654, %v3670
    %v3777 = vsel %vm517, %v3656, %v3672
    %v3778 = vsel %vm517, %v3658, %v3674
    %v3779 = vsel %vm517, %v3628, %v3644
    %v3780 = vsel %vm517, %v3630, %v3646
    %v3781 = vsel %vm517, %v3632, %v3648
    %v3782 = vsel %vm517, %v3634, %v3650
    %v3783 = vsel %vm517, %v3636, %v3652
    %v3784 = vsel %vm517, %v3638, %v3654
    %v3785 = vsel %vm517, %v3640, %v3656
    %v3786 = vsel %vm517, %v3642, %v3658
    %v3787 = vsel %vm517, %v3612, %v3628
    %v3788 = vsel %vm517, %v3614, %v3630
    %v3789 = vsel %vm517, %v3616, %v3632
    %v3790 = vsel %vm517, %v3618, %v3634
    %v3791 = vsel %vm517, %v3620, %v3636
    %v3792 = vsel %vm517, %v3622, %v3638
    %v3793 = vsel %vm517, %v3624, %v3640
    %v3794 = vsel %vm517, %v3626, %v3642
    %v3795 = vsel %vm517, %v3724, %v3612
    %v3796 = vsel %vm517, %v3726, %v3614
    %v3797 = vsel %vm517, %v3728, %v3616
    %v3798 = vsel %vm517, %v3730, %v3618
    %v3799 = vsel %vm517, %v3732, %v3620
    %v3800 = vsel %vm517, %v3734, %v3622
    %v3801 = vsel %vm517, %v3736, %v3624
    %v3802 = vsel %vm517, %v3738, %v3626
    %v3803 = vlaneseq
    %v3804 = vshrl.u32 %v3803, 7
    %v3805 = vsub.s32 0, %v3804
    %v3806 = vrot.slane %v64, %v3805
    %v3807 = vlaneseq
    %v3808 = vshrl.u32 %v3807, 7
    %v3809 = vsub.s32 0, %v3808
    %v3810 = vrot.slane %v65, %v3809
    %v3811 = vlaneseq
    %v3812 = vshrl.u32 %v3811, 7
    %v3813 = vsub.s32 0, %v3812
    %v3814 = vrot.slane %v66, %v3813
    %v3815 = vlaneseq
    %v3816 = vshrl.u32 %v3815, 7
    %v3817 = vsub.s32 0, %v3816
    %v3818 = vrot.slane %v67, %v3817
    %v3819 = vlaneseq
    %v3820 = vshrl.u32 %v3819, 7
    %v3821 = vsub.s32 0, %v3820
    %v3822 = vrot.slane %v68, %v3821
    %v3823 = vlaneseq
    %v3824 = vshrl.u32 %v3823, 7
    %v3825 = vsub.s32 0, %v3824
    %v3826 = vrot.slane %v69, %v3825
    %v3827 = vlaneseq
    %v3828 = vshrl.u32 %v3827, 7
    %v3829 = vsub.s32 0, %v3828
    %v3830 = vrot.slane %v70, %v3829
    %v3831 = vlaneseq
    %v3832 = vshrl.u32 %v3831, 7
    %v3833 = vsub.s32 0, %v3832
    %v3834 = vrot.slane %v71, %v3833
    %v3835 = vmul.f32 %v3787, %v3806
    %v3836 = vmul.f32 %v3779, %v3810
    %v3837 = vmul.f32 %v3771, %v3814
    %v3838 = vmul.f32 %v3763, %v3818
    %v3839 = vmul.f32 %v3755, %v3822
    %v3840 = vmul.f32 %v3747, %v3826
    %v3841 = vmul.f32 %v3739, %v3830
    %v3842 = vmul.f32 %v3795, %v3834
    %v3843 = vmul.f32 %v3788, %v3806
    %v3844 = vmul.f32 %v3780, %v3810
    %v3845 = vmul.f32 %v3772, %v3814
    %v3846 = vmul.f32 %v3764, %v3818
    %v3847 = vmul.f32 %v3756, %v3822
    %v3848 = vmul.f32 %v3748, %v3826
    %v3849 = vmul.f32 %v3740, %v3830
    %v3850 = vmul.f32 %v3796, %v3834
    %v3851 = vmul.f32 %v3789, %v3806
    %v3852 = vmul.f32 %v3781, %v3810
    %v3853 = vmul.f32 %v3773, %v3814
    %v3854 = vmul.f32 %v3765, %v3818
    %v3855 = vmul.f32 %v3757, %v3822
    %v3856 = vmul.f32 %v3749, %v3826
    %v3857 = vmul.f32 %v3741, %v3830
    %v3858 = vmul.f32 %v3797, %v3834
    %v3859 = vmul.f32 %v3790, %v3806
    %v3860 = vmul.f32 %v3782, %v3810
    %v3861 = vmul.f32 %v3774, %v3814
    %v3862 = vmul.f32 %v3766, %v3818
    %v3863 = vmul.f32 %v3758, %v3822
    %v3864 = vmul.f32 %v3750, %v3826
    %v3865 = vmul.f32 %v3742, %v3830
    %v3866 = vmul.f32 %v3798, %v3834
    %v3867 = vmul.f32 %v3791, %v3806
    %v3868 = vmul.f32 %v3783, %v3810
    %v3869 = vmul.f32 %v3775, %v3814
    %v3870 = vmul.f32 %v3767, %v3818
    %v3871 = vmul.f32 %v3759, %v3822
    %v3872 = vmul.f32 %v3751, %v3826
    %v3873 = vmul.f32 %v3743, %v3830
    %v3874 = vmul.f32 %v3799, %v3834
    %v3875 = vmul.f32 %v3792, %v3806
    %v3876 = vmul.f32 %v3784, %v3810
    %v3877 = vmul.f32 %v3776, %v3814
    %v3878 = vmul.f32 %v3768, %v3818
    %v3879 = vmul.f32 %v3760, %v3822
    %v3880 = vmul.f32 %v3752, %v3826
    %v3881 = vmul.f32 %v3744, %v3830
    %v3882 = vmul.f32 %v3800, %v3834
    %v3883 = vmul.f32 %v3793, %v3806
    %v3884 = vmul.f32 %v3785, %v3810
    %v3885 = vmul.f32 %v3777, %v3814
    %v3886 = vmul.f32 %v3769, %v3818
    %v3887 = vmul.f32 %v3761, %v3822
    %v3888 = vmul.f32 %v3753, %v3826
    %v3889 = vmul.f32 %v3745, %v3830
    %v3890 = vmul.f32 %v3801, %v3834
    %v3891 = vmul.f32 %v3794, %v3806
    %v3892 = vmul.f32 %v3786, %v3810
    %v3893 = vmul.f32 %v3778, %v3814
    %v3894 = vmul.f32 %v3770, %v3818
    %v3895 = vmul.f32 %v3762, %v3822
    %v3896 = vmul.f32 %v3754, %v3826
    %v3897 = vmul.f32 %v3746, %v3830
    %v3898 = vmul.f32 %v3802, %v3834
    %v3899 = vpack.c.bf16 %v3843, %v3835
    %v3900 = vpack.c.bf16 %v3844, %v3836
    %v3901 = vpack.c.bf16 %v3845, %v3837
    %v3902 = vpack.c.bf16 %v3846, %v3838
    %v3903 = vpack.c.bf16 %v3847, %v3839
    %v3904 = vpack.c.bf16 %v3848, %v3840
    %v3905 = vpack.c.bf16 %v3849, %v3841
    %v3906 = vpack.c.bf16 %v3850, %v3842
    %v3907 = vpack.c.bf16 %v3859, %v3851
    %v3908 = vpack.c.bf16 %v3860, %v3852
    %v3909 = vpack.c.bf16 %v3861, %v3853
    %v3910 = vpack.c.bf16 %v3862, %v3854
    %v3911 = vpack.c.bf16 %v3863, %v3855
    %v3912 = vpack.c.bf16 %v3864, %v3856
    %v3913 = vpack.c.bf16 %v3865, %v3857
    %v3914 = vpack.c.bf16 %v3866, %v3858
    %v3915 = vpack.c.bf16 %v3875, %v3867
    %v3916 = vpack.c.bf16 %v3876, %v3868
    %v3917 = vpack.c.bf16 %v3877, %v3869
    %v3918 = vpack.c.bf16 %v3878, %v3870
    %v3919 = vpack.c.bf16 %v3879, %v3871
    %v3920 = vpack.c.bf16 %v3880, %v3872
    %v3921 = vpack.c.bf16 %v3881, %v3873
    %v3922 = vpack.c.bf16 %v3882, %v3874
    %v3923 = vpack.c.bf16 %v3891, %v3883
    %v3924 = vpack.c.bf16 %v3892, %v3884
    %v3925 = vpack.c.bf16 %v3893, %v3885
    %v3926 = vpack.c.bf16 %v3894, %v3886
    %v3927 = vpack.c.bf16 %v3895, %v3887
    %v3928 = vpack.c.bf16 %v3896, %v3888
    %v3929 = vpack.c.bf16 %v3897, %v3889
    %v3930 = vpack.c.bf16 %v3898, %v3890
    %v3931 = vld [vmem:[#allocation4] sm:$0xff]
    %v3932 = vld [vmem:[#allocation4 + $0x8] sm:$0xff]
    %v3933 = vld [vmem:[#allocation4 + $0x10] sm:$0xf]
    %v3934 = vld [vmem:[#allocation4 + $0x14] sm:$0xff]
    %v3935 = vld [vmem:[#allocation4 + $0x1c] sm:$0xff]
    %v3936 = vld [vmem:[#allocation4 + $0x24] sm:$0xf]
    %v3937 = vld [vmem:[#allocation4 + $0x28] sm:$0xff]
    %v3938 = vld [vmem:[#allocation4 + $0x30] sm:$0xff]
    %v3939 = vld [vmem:[#allocation4 + $0x38] sm:$0xf]
    %v3940 = vld [vmem:[#allocation4 + $0x3c] sm:$0xff]
    %v3941 = vld [vmem:[#allocation4 + $0x44] sm:$0xff]
    %v3942 = vld [vmem:[#allocation4 + $0x4c] sm:$0xf]
    %v3943 = vld [vmem:[#allocation4 + $0x50] sm:$0xff]
    %v3944 = vld [vmem:[#allocation4 + $0x58] sm:$0xff]
    %v3945 = vld [vmem:[#allocation4 + $0x60] sm:$0xf]
    %v3946 = vld [vmem:[#allocation4 + $0x64] sm:$0xff]
    %v3947 = vld [vmem:[#allocation4 + $0x6c] sm:$0xff]
    %v3948 = vld [vmem:[#allocation4 + $0x74] sm:$0xf]
    %v3949 = vld [vmem:[#allocation4 + $0x78] sm:$0xff]
    %v3950 = vld [vmem:[#allocation4 + $0x80] sm:$0xff]
    %v3951 = vld [vmem:[#allocation4 + $0x88] sm:$0xf]
    %v3952 = vld [vmem:[#allocation4 + $0x8c] sm:$0xff]
    %v3953 = vld [vmem:[#allocation4 + $0x94] sm:$0xff]
    %v3954 = vld [vmem:[#allocation4 + $0x9c] sm:$0xf]
    %v3955 = vld [vmem:[%s5] sm:$0xff]
    %v3956 = vld [vmem:[%s5 + $0x8] sm:$0xff]
    %v3957 = vld [vmem:[%s5 + $0x10] sm:$0xff]
    %v3958 = vld [vmem:[%s5 + $0x18] sm:$0xff]
    %v3959 = vld [vmem:[%s5 + $0x20] sm:$0xff]
    %v3960 = vld [vmem:[%s5 + $0x28] sm:$0xff]
    %v3961 = vld [vmem:[%s5 + $0x30] sm:$0xff]
    %v3962 = vld [vmem:[%s5 + $0x38] sm:$0xff]
    %3964 = vset.pattern.permute.xlu0 0
    %3965 = vperm.xlu0 %3964, %v3955
    %v3966 = vpop.permute.xlu0 %3965
    %3969 = vset.pattern.permute.xlu0 0
    %3970 = vperm.xlu0 %3969, %v3956
    %v3971 = vpop.permute.xlu0 %3970
    %3974 = vset.pattern.permute.xlu0 0
    %3975 = vperm.xlu0 %3974, %v3957
    %v3976 = vpop.permute.xlu0 %3975
    %3979 = vset.pattern.permute.xlu0 0
    %3980 = vperm.xlu0 %3979, %v3958
    %v3981 = vpop.permute.xlu0 %3980
    %3984 = vset.pattern.permute.xlu0 0
    %3985 = vperm.xlu0 %3984, %v3959
    %v3986 = vpop.permute.xlu0 %3985
    %3989 = vset.pattern.permute.xlu0 0
    %3990 = vperm.xlu0 %3989, %v3960
    %v3991 = vpop.permute.xlu0 %3990
    %3994 = vset.pattern.permute.xlu0 0
    %3995 = vperm.xlu0 %3994, %v3961
    %v3996 = vpop.permute.xlu0 %3995
    %3999 = vset.pattern.permute.xlu0 0
    %4000 = vperm.xlu0 %3999, %v3962
    %v4001 = vpop.permute.xlu0 %4000
    %v4027 = vunpack.c.l.b16 %v3931
    %v4028 = vunpack.c.h.b16 %v3931
    %v4029 = vunpack.c.l.b16 %v3932
    %v4030 = vunpack.c.h.b16 %v3932
    %v4031 = vunpack.c.l.b16 %v3933
    %v4032 = vunpack.c.l.b16 %v3934
    %v4033 = vunpack.c.h.b16 %v3934
    %v4034 = vunpack.c.l.b16 %v3935
    %v4035 = vunpack.c.h.b16 %v3935
    %v4036 = vunpack.c.l.b16 %v3936
    %v4037 = vunpack.c.l.b16 %v3937
    %v4038 = vunpack.c.h.b16 %v3937
    %v4039 = vunpack.c.l.b16 %v3938
    %v4040 = vunpack.c.h.b16 %v3938
    %v4041 = vunpack.c.l.b16 %v3939
    %v4042 = vunpack.c.l.b16 %v3940
    %v4043 = vunpack.c.h.b16 %v3940
    %v4044 = vunpack.c.l.b16 %v3941
    %v4045 = vunpack.c.h.b16 %v3941
    %v4046 = vunpack.c.l.b16 %v3942
    %v4047 = vunpack.c.l.b16 %v3943
    %v4048 = vunpack.c.h.b16 %v3943
    %v4049 = vunpack.c.l.b16 %v3944
    %v4050 = vunpack.c.h.b16 %v3944
    %v4051 = vunpack.c.l.b16 %v3945
    %v4052 = vunpack.c.l.b16 %v3946
    %v4053 = vunpack.c.h.b16 %v3946
    %v4054 = vunpack.c.l.b16 %v3947
    %v4055 = vunpack.c.h.b16 %v3947
    %v4056 = vunpack.c.l.b16 %v3948
    %v4057 = vunpack.c.l.b16 %v3949
    %v4058 = vunpack.c.h.b16 %v3949
    %v4059 = vunpack.c.l.b16 %v3950
    %v4060 = vunpack.c.h.b16 %v3950
    %v4061 = vunpack.c.l.b16 %v3951
    %v4062 = vunpack.c.l.b16 %v3952
    %v4063 = vunpack.c.h.b16 %v3952
    %v4064 = vunpack.c.l.b16 %v3953
    %v4065 = vunpack.c.h.b16 %v3953
    %v4066 = vunpack.c.l.b16 %v3954
    %v4067 = vpack.c.b16 %v4032, %v4027
    %v4068 = vpack.c.b16 %v4033, %v4028
    %v4069 = vpack.c.b16 %v4034, %v4029
    %v4070 = vpack.c.b16 %v4035, %v4030
    %v4071 = vpack.c.b16 %v4036, %v4031
    %v4072 = vpack.c.b16 %v4042, %v4037
    %v4073 = vpack.c.b16 %v4043, %v4038
    %v4074 = vpack.c.b16 %v4044, %v4039
    %v4075 = vpack.c.b16 %v4045, %v4040
    %v4076 = vpack.c.b16 %v4046, %v4041
    %v4077 = vpack.c.b16 %v4052, %v4047
    %v4078 = vpack.c.b16 %v4053, %v4048
    %v4079 = vpack.c.b16 %v4054, %v4049
    %v4080 = vpack.c.b16 %v4055, %v4050
    %v4081 = vpack.c.b16 %v4056, %v4051
    %v4082 = vpack.c.b16 %v4062, %v4057
    %v4083 = vpack.c.b16 %v4063, %v4058
    %v4084 = vpack.c.b16 %v4064, %v4059
    %v4085 = vpack.c.b16 %v4065, %v4060
    %v4086 = vpack.c.b16 %v4066, %v4061
    %vm4103 = vcmask 523264
    %v4105 = vsel %vm4103, %v4071, 0
    %v4108 = vsel %vm4103, %v4076, 0
    %v4111 = vsel %vm4103, %v4081, 0
    %v4114 = vsel %vm4103, %v4086, 0
    %4116 = vmatprep.subr.bf16.mxu0 %v1532
    %4117 = vmatpush1.bf16.msra.mxu0 %v1531
    %4118 = vmatprep.subr.bf16.mxu0 %v1540
    %4119 = vmatpush1.bf16.msra.mxu0 %v1539
    %4120 = vmatprep.subr.bf16.mxu0 %v1548
    %4121 = vmatpush1.bf16.msra.mxu0 %v1547
    %4122 = vmatprep.subr.bf16.mxu0 %v1556
    %4123 = vmatpush1.bf16.msra.mxu0 %v1555
    %4124 = vmatprep.subr.bf16.mxu0 %v1852
    %4125 = vmatpush1.bf16.msra.mxu0 %v1851
    %4126 = vmatprep.subr.bf16.mxu0 %v1860
    %4127 = vmatpush1.bf16.msra.mxu0 %v1859
    %4128 = vmatprep.subr.bf16.mxu0 %v1868
    %4129 = vmatpush1.bf16.msra.mxu0 %v1867
    %4130 = vmatprep.subr.bf16.mxu0 %v1876
    %4131 = vmatpush1.bf16.msra.mxu0 %v1875
    %4132 = vmatprep.subr.bf16.mxu0 %v2172
    %4133 = vmatpush1.bf16.msra.mxu0 %v2171
    %4134 = vmatprep.subr.bf16.mxu0 %v2180
    %4135 = vmatpush1.bf16.msra.mxu0 %v2179
    %4136 = vmatprep.subr.bf16.mxu0 %v2188
    %4137 = vmatpush1.bf16.msra.mxu0 %v2187
    %4138 = vmatprep.subr.bf16.mxu0 %v2196
    %4139 = vmatpush1.bf16.msra.mxu0 %v2195
    %4140 = vmatprep.subr.bf16.mxu0 %v2492
    %4141 = vmatpush1.bf16.msra.mxu0 %v2491
    %4142 = vmatprep.subr.bf16.mxu0 %v2500
    %4143 = vmatpush1.bf16.msra.mxu0 %v2499
    %4144 = vmatprep.subr.bf16.mxu0 %v2508
    %4145 = vmatpush1.bf16.msra.mxu0 %v2507
    %4146 = vmatprep.subr.bf16.mxu0 %v2516
    %4147 = vmatpush1.bf16.msra.mxu0 %v2515
    %4148 = vmatprep.mubr.bf16.mxu0 %v4068
    %4149 = vmatmul.mubr.bf16.gmra.mrb[0].mxu0 %v4067
    %v4150 = vpop.f32.mrb[0].mxu0
    %v4151 = vadd.f32 %v3966, %v4150
    %v4152 = vpop.f32.mrb[0].mxu0
    %v4153 = vadd.f32 %v3966, %v4152
    %v4154 = vpop.f32.mrb[0].mxu0
    %v4155 = vadd.f32 %v3971, %v4154
    %v4156 = vpop.f32.mrb[0].mxu0
    %v4157 = vadd.f32 %v3971, %v4156
    %4158 = vmatprep.mubr.bf16.mxu0 %v4073
    %4159 = vmatmul.mubr.bf16.gmra.mrb[0].mxu0 %v4072
    %v4160 = vpop.f32.mrb[0].mxu0
    %v4161 = vadd.f32 %v3976, %v4160
    %v4162 = vpop.f32.mrb[0].mxu0
    %v4163 = vadd.f32 %v3976, %v4162
    %v4164 = vpop.f32.mrb[0].mxu0
    %v4165 = vadd.f32 %v3981, %v4164
    %v4166 = vpop.f32.mrb[0].mxu0
    %v4167 = vadd.f32 %v3981, %v4166
    %4168 = vmatprep.mubr.bf16.mxu0 %v4078
    %4169 = vmatmul.mubr.bf16.gmra.mrb[0].mxu0 %v4077
    %v4170 = vpop.f32.mrb[0].mxu0
    %v4171 = vadd.f32 %v3986, %v4170
    %v4172 = vpop.f32.mrb[0].mxu0
    %v4173 = vadd.f32 %v3986, %v4172
    %v4174 = vpop.f32.mrb[0].mxu0
    %v4175 = vadd.f32 %v3991, %v4174
    %v4176 = vpop.f32.mrb[0].mxu0
    %v4177 = vadd.f32 %v3991, %v4176
    %4178 = vmatprep.mubr.bf16.mxu0 %v4083
    %4179 = vmatmul.mubr.bf16.gmra.mrb[0].mxu0 %v4082
    %v4180 = vpop.f32.mrb[0].mxu0
    %v4181 = vadd.f32 %v3996, %v4180
    %v4182 = vpop.f32.mrb[0].mxu0
    %v4183 = vadd.f32 %v3996, %v4182
    %v4184 = vpop.f32.mrb[0].mxu0
    %v4185 = vadd.f32 %v4001, %v4184
    %v4186 = vpop.f32.mrb[0].mxu0
    %v4187 = vadd.f32 %v4001, %v4186
    %4188 = vdwg.mxu0
    %4189 = vmatprep.subr.bf16.mxu0 %v2620
    %4190 = vmatpush1.bf16.msra.mxu0 %v2619
    %4191 = vmatprep.subr.bf16.mxu0 %v2628
    %4192 = vmatpush1.bf16.msra.mxu0 %v2627
    %4193 = vmatprep.subr.bf16.mxu0 %v2636
    %4194 = vmatpush1.bf16.msra.mxu0 %v2635
    %4195 = vmatprep.subr.bf16.mxu0 %v2644
    %4196 = vmatpush1.bf16.msra.mxu0 %v2643
    %4197 = vmatprep.subr.bf16.mxu0 %v2940
    %4198 = vmatpush1.bf16.msra.mxu0 %v2939
    %4199 = vmatprep.subr.bf16.mxu0 %v2948
    %4200 = vmatpush1.bf16.msra.mxu0 %v2947
    %4201 = vmatprep.subr.bf16.mxu0 %v2956
    %4202 = vmatpush1.bf16.msra.mxu0 %v2955
    %4203 = vmatprep.subr.bf16.mxu0 %v2964
    %4204 = vmatpush1.bf16.msra.mxu0 %v2963
    %4205 = vmatprep.subr.bf16.mxu0 %v3260
    %4206 = vmatpush1.bf16.msra.mxu0 %v3259
    %4207 = vmatprep.subr.bf16.mxu0 %v3268
    %4208 = vmatpush1.bf16.msra.mxu0 %v3267
    %4209 = vmatprep.subr.bf16.mxu0 %v3276
    %4210 = vmatpush1.bf16.msra.mxu0 %v3275
    %4211 = vmatprep.subr.bf16.mxu0 %v3284
    %4212 = vmatpush1.bf16.msra.mxu0 %v3283
    %4213 = vmatprep.subr.bf16.mxu0 %v3580
    %4214 = vmatpush1.bf16.msra.mxu0 %v3579
    %4215 = vmatprep.subr.bf16.mxu0 %v3588
    %4216 = vmatpush1.bf16.msra.mxu0 %v3587
    %4217 = vmatprep.subr.bf16.mxu0 %v3596
    %4218 = vmatpush1.bf16.msra.mxu0 %v3595
    %4219 = vmatprep.subr.bf16.mxu0 %v3604
    %4220 = vmatpush1.bf16.msra.mxu0 %v3603
    %4221 = vmatprep.mubr.bf16.mxu0 %v4070
    %4222 = vmatmul.mubr.bf16.gmra.mrb[0].mxu0 %v4069
    %v4223 = vpop.f32.mrb[0].mxu0
    %v4224 = vadd.f32 %v4151, %v4223
    %v4225 = vpop.f32.mrb[0].mxu0
    %v4226 = vadd.f32 %v4153, %v4225
    %v4227 = vpop.f32.mrb[0].mxu0
    %v4228 = vadd.f32 %v4155, %v4227
    %v4229 = vpop.f32.mrb[0].mxu0
    %v4230 = vadd.f32 %v4157, %v4229
    %4231 = vmatprep.mubr.bf16.mxu0 %v4075
    %4232 = vmatmul.mubr.bf16.gmra.mrb[0].mxu0 %v4074
    %v4233 = vpop.f32.mrb[0].mxu0
    %v4234 = vadd.f32 %v4161, %v4233
    %v4235 = vpop.f32.mrb[0].mxu0
    %v4236 = vadd.f32 %v4163, %v4235
    %v4237 = vpop.f32.mrb[0].mxu0
    %v4238 = vadd.f32 %v4165, %v4237
    %v4239 = vpop.f32.mrb[0].mxu0
    %v4240 = vadd.f32 %v4167, %v4239
    %4241 = vmatprep.mubr.bf16.mxu0 %v4080
    %4242 = vmatmul.mubr.bf16.gmra.mrb[0].mxu0 %v4079
    %v4243 = vpop.f32.mrb[0].mxu0
    %v4244 = vadd.f32 %v4171, %v4243
    %v4245 = vpop.f32.mrb[0].mxu0
    %v4246 = vadd.f32 %v4173, %v4245
    %v4247 = vpop.f32.mrb[0].mxu0
    %v4248 = vadd.f32 %v4175, %v4247
    %v4249 = vpop.f32.mrb[0].mxu0
    %v4250 = vadd.f32 %v4177, %v4249
    %4251 = vmatprep.mubr.bf16.mxu0 %v4085
    %4252 = vmatmul.mubr.bf16.gmra.mrb[0].mxu0 %v4084
    %v4253 = vpop.f32.mrb[0].mxu0
    %v4254 = vadd.f32 %v4181, %v4253
    %v4255 = vpop.f32.mrb[0].mxu0
    %v4256 = vadd.f32 %v4183, %v4255
    %v4257 = vpop.f32.mrb[0].mxu0
    %v4258 = vadd.f32 %v4185, %v4257
    %v4259 = vpop.f32.mrb[0].mxu0
    %v4260 = vadd.f32 %v4187, %v4259
    %4261 = vdwg.mxu0
    %4262 = vmatprep.subr.bf16.mxu0 %v3900
    %4263 = vmatpush1.bf16.msra.mxu0 %v3899
    %4264 = vmatprep.subr.bf16.mxu0 %v3908
    %4265 = vmatpush1.bf16.msra.mxu0 %v3907
    %4266 = vmatprep.subr.bf16.mxu0 %v3916
    %4267 = vmatpush1.bf16.msra.mxu0 %v3915
    %4268 = vmatprep.subr.bf16.mxu0 %v3924
    %4269 = vmatpush1.bf16.msra.mxu0 %v3923
    %4270 = vmatprep.subr.bf16.mxu0 0
    %4271 = vmatpush1.bf16.msra.mxu0 0
    %4272 = vmatprep.subr.bf16.mxu0 0
    %4273 = vmatpush1.bf16.msra.mxu0 0
    %4274 = vmatprep.subr.bf16.mxu0 0
    %4275 = vmatpush1.bf16.msra.mxu0 0
    %4276 = vmatprep.subr.bf16.mxu0 0
    %4277 = vmatpush1.bf16.msra.mxu0 0
    %4278 = vmatprep.subr.bf16.mxu0 0
    %4279 = vmatpush1.bf16.msra.mxu0 0
    %4280 = vmatprep.subr.bf16.mxu0 0
    %4281 = vmatpush1.bf16.msra.mxu0 0
    %4282 = vmatprep.subr.bf16.mxu0 0
    %4283 = vmatpush1.bf16.msra.mxu0 0
    %4284 = vmatprep.subr.bf16.mxu0 0
    %4285 = vmatpush1.bf16.msra.mxu0 0
    %4286 = vmatprep.subr.bf16.mxu0 0
    %4287 = vmatpush1.bf16.msra.mxu0 0
    %4288 = vmatprep.subr.bf16.mxu0 0
    %4289 = vmatpush1.bf16.msra.mxu0 0
    %4290 = vmatprep.subr.bf16.mxu0 0
    %4291 = vmatpush1.bf16.msra.mxu0 0
    %4292 = vmatprep.subr.bf16.mxu0 0
    %4293 = vmatpush1.bf16.msra.mxu0 0
    %4294 = vmatprep.mubr.bf16.mxu0 0
    %4295 = vmatmul.mubr.bf16.gmra.mrb[0].mxu0 %v4105
    %v4296 = vpop.f32.mrb[0].mxu0
    %v4297 = vadd.f32 %v4224, %v4296
    %v4298 = vpop.f32.mrb[0].mxu0
    %v4299 = vadd.f32 %v4226, %v4298
    %v4300 = vpop.f32.mrb[0].mxu0
    %v4301 = vadd.f32 %v4228, %v4300
    %v4302 = vpop.f32.mrb[0].mxu0
    %v4303 = vadd.f32 %v4230, %v4302
    %4304 = vmatprep.mubr.bf16.mxu0 0
    %4305 = vmatmul.mubr.bf16.gmra.mrb[0].mxu0 %v4108
    %v4306 = vpop.f32.mrb[0].mxu0
    %v4307 = vadd.f32 %v4234, %v4306
    %v4308 = vpop.f32.mrb[0].mxu0
    %v4309 = vadd.f32 %v4236, %v4308
    %v4310 = vpop.f32.mrb[0].mxu0
    %v4311 = vadd.f32 %v4238, %v4310
    %v4312 = vpop.f32.mrb[0].mxu0
    %v4313 = vadd.f32 %v4240, %v4312
    %4314 = vmatprep.mubr.bf16.mxu0 0
    %4315 = vmatmul.mubr.bf16.gmra.mrb[0].mxu0 %v4111
    %v4316 = vpop.f32.mrb[0].mxu0
    %v4317 = vadd.f32 %v4244, %v4316
    %v4318 = vpop.f32.mrb[0].mxu0
    %v4319 = vadd.f32 %v4246, %v4318
    %v4320 = vpop.f32.mrb[0].mxu0
    %v4321 = vadd.f32 %v4248, %v4320
    %v4322 = vpop.f32.mrb[0].mxu0
    %v4323 = vadd.f32 %v4250, %v4322
    %4324 = vmatprep.mubr.bf16.mxu0 0
    %4325 = vmatmul.mubr.bf16.gmra.mrb[0].mxu0 %v4114
    %v4326 = vpop.f32.mrb[0].mxu0
    %v4327 = vadd.f32 %v4254, %v4326
    %v4328 = vpop.f32.mrb[0].mxu0
    %v4329 = vadd.f32 %v4256, %v4328
    %v4330 = vpop.f32.mrb[0].mxu0
    %v4331 = vadd.f32 %v4258, %v4330
    %v4332 = vpop.f32.mrb[0].mxu0
    %v4333 = vadd.f32 %v4260, %v4332
    %4334 = vdwg.mxu0
    %4335 = vmatprep.subr.bf16.mxu0 %v1534
    %4336 = vmatpush1.bf16.msra.mxu0 %v1533
    %4337 = vmatprep.subr.bf16.mxu0 %v1542
    %4338 = vmatpush1.bf16.msra.mxu0 %v1541
    %4339 = vmatprep.subr.bf16.mxu0 %v1550
    %4340 = vmatpush1.bf16.msra.mxu0 %v1549
    %4341 = vmatprep.subr.bf16.mxu0 %v1558
    %4342 = vmatpush1.bf16.msra.mxu0 %v1557
    %4343 = vmatprep.subr.bf16.mxu0 %v1854
    %4344 = vmatpush1.bf16.msra.mxu0 %v1853
    %4345 = vmatprep.subr.bf16.mxu0 %v1862
    %4346 = vmatpush1.bf16.msra.mxu0 %v1861
    %4347 = vmatprep.subr.bf16.mxu0 %v1870
    %4348 = vmatpush1.bf16.msra.mxu0 %v1869
    %4349 = vmatprep.subr.bf16.mxu0 %v1878
    %4350 = vmatpush1.bf16.msra.mxu0 %v1877
    %4351 = vmatprep.subr.bf16.mxu0 %v2174
    %4352 = vmatpush1.bf16.msra.mxu0 %v2173
    %4353 = vmatprep.subr.bf16.mxu0 %v2182
    %4354 = vmatpush1.bf16.msra.mxu0 %v2181
    %4355 = vmatprep.subr.bf16.mxu0 %v2190
    %4356 = vmatpush1.bf16.msra.mxu0 %v2189
    %4357 = vmatprep.subr.bf16.mxu0 %v2198
    %4358 = vmatpush1.bf16.msra.mxu0 %v2197
    %4359 = vmatprep.subr.bf16.mxu0 %v2494
    %4360 = vmatpush1.bf16.msra.mxu0 %v2493
    %4361 = vmatprep.subr.bf16.mxu0 %v2502
    %4362 = vmatpush1.bf16.msra.mxu0 %v2501
    %4363 = vmatprep.subr.bf16.mxu0 %v2510
    %4364 = vmatpush1.bf16.msra.mxu0 %v2509
    %4365 = vmatprep.subr.bf16.mxu0 %v2518
    %4366 = vmatpush1.bf16.msra.mxu0 %v2517
    %4367 = vmatprep.mubr.bf16.mxu0 %v4068
    %4368 = vmatmul.mubr.bf16.gmra.mrb[0].mxu0 %v4067
    %v4369 = vpop.f32.mrb[0].mxu0
    %v4370 = vadd.f32 %v3966, %v4369
    %v4371 = vpop.f32.mrb[0].mxu0
    %v4372 = vadd.f32 %v3966, %v4371
    %v4373 = vpop.f32.mrb[0].mxu0
    %v4374 = vadd.f32 %v3971, %v4373
    %v4375 = vpop.f32.mrb[0].mxu0
    %v4376 = vadd.f32 %v3971, %v4375
    %4377 = vmatprep.mubr.bf16.mxu0 %v4073
    %4378 = vmatmul.mubr.bf16.gmra.mrb[0].mxu0 %v4072
    %v4379 = vpop.f32.mrb[0].mxu0
    %v4380 = vadd.f32 %v3976, %v4379
    %v4381 = vpop.f32.mrb[0].mxu0
    %v4382 = vadd.f32 %v3976, %v4381
    %v4383 = vpop.f32.mrb[0].mxu0
    %v4384 = vadd.f32 %v3981, %v4383
    %v4385 = vpop.f32.mrb[0].mxu0
    %v4386 = vadd.f32 %v3981, %v4385
    %4387 = vmatprep.mubr.bf16.mxu0 %v4078
    %4388 = vmatmul.mubr.bf16.gmra.mrb[0].mxu0 %v4077
    %v4389 = vpop.f32.mrb[0].mxu0
    %v4390 = vadd.f32 %v3986, %v4389
    %v4391 = vpop.f32.mrb[0].mxu0
    %v4392 = vadd.f32 %v3986, %v4391
    %v4393 = vpop.f32.mrb[0].mxu0
    %v4394 = vadd.f32 %v3991, %v4393
    %v4395 = vpop.f32.mrb[0].mxu0
    %v4396 = vadd.f32 %v3991, %v4395
    %4397 = vmatprep.mubr.bf16.mxu0 %v4083
    %4398 = vmatmul.mubr.bf16.gmra.mrb[0].mxu0 %v4082
    %v4399 = vpop.f32.mrb[0].mxu0
    %v4400 = vadd.f32 %v3996, %v4399
    %v4401 = vpop.f32.mrb[0].mxu0
    %v4402 = vadd.f32 %v3996, %v4401
    %v4403 = vpop.f32.mrb[0].mxu0
    %v4404 = vadd.f32 %v4001, %v4403
    %v4405 = vpop.f32.mrb[0].mxu0
    %v4406 = vadd.f32 %v4001, %v4405
    %4407 = vdwg.mxu0
    %4408 = vmatprep.subr.bf16.mxu0 %v2622
    %4409 = vmatpush1.bf16.msra.mxu0 %v2621
    %4410 = vmatprep.subr.bf16.mxu0 %v2630
    %4411 = vmatpush1.bf16.msra.mxu0 %v2629
    %4412 = vmatprep.subr.bf16.mxu0 %v2638
    %4413 = vmatpush1.bf16.msra.mxu0 %v2637
    %4414 = vmatprep.subr.bf16.mxu0 %v2646
    %4415 = vmatpush1.bf16.msra.mxu0 %v2645
    %4416 = vmatprep.subr.bf16.mxu0 %v2942
    %4417 = vmatpush1.bf16.msra.mxu0 %v2941
    %4418 = vmatprep.subr.bf16.mxu0 %v2950
    %4419 = vmatpush1.bf16.msra.mxu0 %v2949
    %4420 = vmatprep.subr.bf16.mxu0 %v2958
    %4421 = vmatpush1.bf16.msra.mxu0 %v2957
    %4422 = vmatprep.subr.bf16.mxu0 %v2966
    %4423 = vmatpush1.bf16.msra.mxu0 %v2965
    %4424 = vmatprep.subr.bf16.mxu0 %v3262
    %4425 = vmatpush1.bf16.msra.mxu0 %v3261
    %4426 = vmatprep.subr.bf16.mxu0 %v3270
    %4427 = vmatpush1.bf16.msra.mxu0 %v3269
    %4428 = vmatprep.subr.bf16.mxu0 %v3278
    %4429 = vmatpush1.bf16.msra.mxu0 %v3277
    %4430 = vmatprep.subr.bf16.mxu0 %v3286
    %4431 = vmatpush1.bf16.msra.mxu0 %v3285
    %4432 = vmatprep.subr.bf16.mxu0 %v3582
    %4433 = vmatpush1.bf16.msra.mxu0 %v3581
    %4434 = vmatprep.subr.bf16.mxu0 %v3590
    %4435 = vmatpush1.bf16.msra.mxu0 %v3589
    %4436 = vmatprep.subr.bf16.mxu0 %v3598
    %4437 = vmatpush1.bf16.msra.mxu0 %v3597
    %4438 = vmatprep.subr.bf16.mxu0 %v3606
    %4439 = vmatpush1.bf16.msra.mxu0 %v3605
    %4440 = vmatprep.mubr.bf16.mxu0 %v4070
    %4441 = vmatmul.mubr.bf16.gmra.mrb[0].mxu0 %v4069
    %v4442 = vpop.f32.mrb[0].mxu0
    %v4443 = vadd.f32 %v4370, %v4442
    %v4444 = vpop.f32.mrb[0].mxu0
    %v4445 = vadd.f32 %v4372, %v4444
    %v4446 = vpop.f32.mrb[0].mxu0
    %v4447 = vadd.f32 %v4374, %v4446
    %v4448 = vpop.f32.mrb[0].mxu0
    %v4449 = vadd.f32 %v4376, %v4448
    %4450 = vmatprep.mubr.bf16.mxu0 %v4075
    %4451 = vmatmul.mubr.bf16.gmra.mrb[0].mxu0 %v4074
    %v4452 = vpop.f32.mrb[0].mxu0
    %v4453 = vadd.f32 %v4380, %v4452
    %v4454 = vpop.f32.mrb[0].mxu0
    %v4455 = vadd.f32 %v4382, %v4454
    %v4456 = vpop.f32.mrb[0].mxu0
    %v4457 = vadd.f32 %v4384, %v4456
    %v4458 = vpop.f32.mrb[0].mxu0
    %v4459 = vadd.f32 %v4386, %v4458
    %4460 = vmatprep.mubr.bf16.mxu0 %v4080
    %4461 = vmatmul.mubr.bf16.gmra.mrb[0].mxu0 %v4079
    %v4462 = vpop.f32.mrb[0].mxu0
    %v4463 = vadd.f32 %v4390, %v4462
    %v4464 = vpop.f32.mrb[0].mxu0
    %v4465 = vadd.f32 %v4392, %v4464
    %v4466 = vpop.f32.mrb[0].mxu0
    %v4467 = vadd.f32 %v4394, %v4466
    %v4468 = vpop.f32.mrb[0].mxu0
    %v4469 = vadd.f32 %v4396, %v4468
    %4470 = vmatprep.mubr.bf16.mxu0 %v4085
    %4471 = vmatmul.mubr.bf16.gmra.mrb[0].mxu0 %v4084
    %v4472 = vpop.f32.mrb[0].mxu0
    %v4473 = vadd.f32 %v4400, %v4472
    %v4474 = vpop.f32.mrb[0].mxu0
    %v4475 = vadd.f32 %v4402, %v4474
    %v4476 = vpop.f32.mrb[0].mxu0
    %v4477 = vadd.f32 %v4404, %v4476
    %v4478 = vpop.f32.mrb[0].mxu0
    %v4479 = vadd.f32 %v4406, %v4478
    %4480 = vdwg.mxu0
    %4481 = vmatprep.subr.bf16.mxu0 %v3902
    %4482 = vmatpush1.bf16.msra.mxu0 %v3901
    %4483 = vmatprep.subr.bf16.mxu0 %v3910
    %4484 = vmatpush1.bf16.msra.mxu0 %v3909
    %4485 = vmatprep.subr.bf16.mxu0 %v3918
    %4486 = vmatpush1.bf16.msra.mxu0 %v3917
    %4487 = vmatprep.subr.bf16.mxu0 %v3926
    %4488 = vmatpush1.bf16.msra.mxu0 %v3925
    %4489 = vmatprep.subr.bf16.mxu0 0
    %4490 = vmatpush1.bf16.msra.mxu0 0
    %4491 = vmatprep.subr.bf16.mxu0 0
    %4492 = vmatpush1.bf16.msra.mxu0 0
    %4493 = vmatprep.subr.bf16.mxu0 0
    %4494 = vmatpush1.bf16.msra.mxu0 0
    %4495 = vmatprep.subr.bf16.mxu0 0
    %4496 = vmatpush1.bf16.msra.mxu0 0
    %4497 = vmatprep.subr.bf16.mxu0 0
    %4498 = vmatpush1.bf16.msra.mxu0 0
    %4499 = vmatprep.subr.bf16.mxu0 0
    %4500 = vmatpush1.bf16.msra.mxu0 0
    %4501 = vmatprep.subr.bf16.mxu0 0
    %4502 = vmatpush1.bf16.msra.mxu0 0
    %4503 = vmatprep.subr.bf16.mxu0 0
    %4504 = vmatpush1.bf16.msra.mxu0 0
    %4505 = vmatprep.subr.bf16.mxu0 0
    %4506 = vmatpush1.bf16.msra.mxu0 0
    %4507 = vmatprep.subr.bf16.mxu0 0
    %4508 = vmatpush1.bf16.msra.mxu0 0
    %4509 = vmatprep.subr.bf16.mxu0 0
    %4510 = vmatpush1.bf16.msra.mxu0 0
    %4511 = vmatprep.subr.bf16.mxu0 0
    %4512 = vmatpush1.bf16.msra.mxu0 0
    %4513 = vmatprep.mubr.bf16.mxu0 0
    %4514 = vmatmul.mubr.bf16.gmra.mrb[0].mxu0 %v4105
    %v4515 = vpop.f32.mrb[0].mxu0
    %v4516 = vadd.f32 %v4443, %v4515
    %v4517 = vpop.f32.mrb[0].mxu0
    %v4518 = vadd.f32 %v4445, %v4517
    %v4519 = vpop.f32.mrb[0].mxu0
    %v4520 = vadd.f32 %v4447, %v4519
    %v4521 = vpop.f32.mrb[0].mxu0
    %v4522 = vadd.f32 %v4449, %v4521
    %4523 = vmatprep.mubr.bf16.mxu0 0
    %4524 = vmatmul.mubr.bf16.gmra.mrb[0].mxu0 %v4108
    %v4525 = vpop.f32.mrb[0].mxu0
    %v4526 = vadd.f32 %v4453, %v4525
    %v4527 = vpop.f32.mrb[0].mxu0
    %v4528 = vadd.f32 %v4455, %v4527
    %v4529 = vpop.f32.mrb[0].mxu0
    %v4530 = vadd.f32 %v4457, %v4529
    %v4531 = vpop.f32.mrb[0].mxu0
    %v4532 = vadd.f32 %v4459, %v4531
    %4533 = vmatprep.mubr.bf16.mxu0 0
    %4534 = vmatmul.mubr.bf16.gmra.mrb[0].mxu0 %v4111
    %v4535 = vpop.f32.mrb[0].mxu0
    %v4536 = vadd.f32 %v4463, %v4535
    %v4537 = vpop.f32.mrb[0].mxu0
    %v4538 = vadd.f32 %v4465, %v4537
    %v4539 = vpop.f32.mrb[0].mxu0
    %v4540 = vadd.f32 %v4467, %v4539
    %v4541 = vpop.f32.mrb[0].mxu0
    %v4542 = vadd.f32 %v4469, %v4541
    %4543 = vmatprep.mubr.bf16.mxu0 0
    %4544 = vmatmul.mubr.bf16.gmra.mrb[0].mxu0 %v4114
    %v4545 = vpop.f32.mrb[0].mxu0
    %v4546 = vadd.f32 %v4473, %v4545
    %v4547 = vpop.f32.mrb[0].mxu0
    %v4548 = vadd.f32 %v4475, %v4547
    %v4549 = vpop.f32.mrb[0].mxu0
    %v4550 = vadd.f32 %v4477, %v4549
    %v4551 = vpop.f32.mrb[0].mxu0
    %v4552 = vadd.f32 %v4479, %v4551
    %4553 = vdwg.mxu0
    %4554 = vmatprep.subr.bf16.mxu0 %v1536
    %4555 = vmatpush1.bf16.msra.mxu0 %v1535
    %4556 = vmatprep.subr.bf16.mxu0 %v1544
    %4557 = vmatpush1.bf16.msra.mxu0 %v1543
    %4558 = vmatprep.subr.bf16.mxu0 %v1552
    %4559 = vmatpush1.bf16.msra.mxu0 %v1551
    %4560 = vmatprep.subr.bf16.mxu0 %v1560
    %4561 = vmatpush1.bf16.msra.mxu0 %v1559
    %4562 = vmatprep.subr.bf16.mxu0 %v1856
    %4563 = vmatpush1.bf16.msra.mxu0 %v1855
    %4564 = vmatprep.subr.bf16.mxu0 %v1864
    %4565 = vmatpush1.bf16.msra.mxu0 %v1863
    %4566 = vmatprep.subr.bf16.mxu0 %v1872
    %4567 = vmatpush1.bf16.msra.mxu0 %v1871
    %4568 = vmatprep.subr.bf16.mxu0 %v1880
    %4569 = vmatpush1.bf16.msra.mxu0 %v1879
    %4570 = vmatprep.subr.bf16.mxu0 %v2176
    %4571 = vmatpush1.bf16.msra.mxu0 %v2175
    %4572 = vmatprep.subr.bf16.mxu0 %v2184
    %4573 = vmatpush1.bf16.msra.mxu0 %v2183
    %4574 = vmatprep.subr.bf16.mxu0 %v2192
    %4575 = vmatpush1.bf16.msra.mxu0 %v2191
    %4576 = vmatprep.subr.bf16.mxu0 %v2200
    %4577 = vmatpush1.bf16.msra.mxu0 %v2199
    %4578 = vmatprep.subr.bf16.mxu0 %v2496
    %4579 = vmatpush1.bf16.msra.mxu0 %v2495
    %4580 = vmatprep.subr.bf16.mxu0 %v2504
    %4581 = vmatpush1.bf16.msra.mxu0 %v2503
    %4582 = vmatprep.subr.bf16.mxu0 %v2512
    %4583 = vmatpush1.bf16.msra.mxu0 %v2511
    %4584 = vmatprep.subr.bf16.mxu0 %v2520
    %4585 = vmatpush1.bf16.msra.mxu0 %v2519
    %4586 = vmatprep.mubr.bf16.mxu0 %v4068
    %4587 = vmatmul.mubr.bf16.gmra.mrb[0].mxu0 %v4067
    %v4588 = vpop.f32.mrb[0].mxu0
    %v4589 = vadd.f32 %v3966, %v4588
    %v4590 = vpop.f32.mrb[0].mxu0
    %v4591 = vadd.f32 %v3966, %v4590
    %v4592 = vpop.f32.mrb[0].mxu0
    %v4593 = vadd.f32 %v3971, %v4592
    %v4594 = vpop.f32.mrb[0].mxu0
    %v4595 = vadd.f32 %v3971, %v4594
    %4596 = vmatprep.mubr.bf16.mxu0 %v4073
    %4597 = vmatmul.mubr.bf16.gmra.mrb[0].mxu0 %v4072
    %v4598 = vpop.f32.mrb[0].mxu0
    %v4599 = vadd.f32 %v3976, %v4598
    %v4600 = vpop.f32.mrb[0].mxu0
    %v4601 = vadd.f32 %v3976, %v4600
    %v4602 = vpop.f32.mrb[0].mxu0
    %v4603 = vadd.f32 %v3981, %v4602
    %v4604 = vpop.f32.mrb[0].mxu0
    %v4605 = vadd.f32 %v3981, %v4604
    %4606 = vmatprep.mubr.bf16.mxu0 %v4078
    %4607 = vmatmul.mubr.bf16.gmra.mrb[0].mxu0 %v4077
    %v4608 = vpop.f32.mrb[0].mxu0
    %v4609 = vadd.f32 %v3986, %v4608
    %v4610 = vpop.f32.mrb[0].mxu0
    %v4611 = vadd.f32 %v3986, %v4610
    %v4612 = vpop.f32.mrb[0].mxu0
    %v4613 = vadd.f32 %v3991, %v4612
    %v4614 = vpop.f32.mrb[0].mxu0
    %v4615 = vadd.f32 %v3991, %v4614
    %4616 = vmatprep.mubr.bf16.mxu0 %v4083
    %4617 = vmatmul.mubr.bf16.gmra.mrb[0].mxu0 %v4082
    %v4618 = vpop.f32.mrb[0].mxu0
    %v4619 = vadd.f32 %v3996, %v4618
    %v4620 = vpop.f32.mrb[0].mxu0
    %v4621 = vadd.f32 %v3996, %v4620
    %v4622 = vpop.f32.mrb[0].mxu0
    %v4623 = vadd.f32 %v4001, %v4622
    %v4624 = vpop.f32.mrb[0].mxu0
    %v4625 = vadd.f32 %v4001, %v4624
    %4626 = vdwg.mxu0
    %4627 = vmatprep.subr.bf16.mxu0 %v2624
    %4628 = vmatpush1.bf16.msra.mxu0 %v2623
    %4629 = vmatprep.subr.bf16.mxu0 %v2632
    %4630 = vmatpush1.bf16.msra.mxu0 %v2631
    %4631 = vmatprep.subr.bf16.mxu0 %v2640
    %4632 = vmatpush1.bf16.msra.mxu0 %v2639
    %4633 = vmatprep.subr.bf16.mxu0 %v2648
    %4634 = vmatpush1.bf16.msra.mxu0 %v2647
    %4635 = vmatprep.subr.bf16.mxu0 %v2944
    %4636 = vmatpush1.bf16.msra.mxu0 %v2943
    %4637 = vmatprep.subr.bf16.mxu0 %v2952
    %4638 = vmatpush1.bf16.msra.mxu0 %v2951
    %4639 = vmatprep.subr.bf16.mxu0 %v2960
    %4640 = vmatpush1.bf16.msra.mxu0 %v2959
    %4641 = vmatprep.subr.bf16.mxu0 %v2968
    %4642 = vmatpush1.bf16.msra.mxu0 %v2967
    %4643 = vmatprep.subr.bf16.mxu0 %v3264
    %4644 = vmatpush1.bf16.msra.mxu0 %v3263
    %4645 = vmatprep.subr.bf16.mxu0 %v3272
    %4646 = vmatpush1.bf16.msra.mxu0 %v3271
    %4647 = vmatprep.subr.bf16.mxu0 %v3280
    %4648 = vmatpush1.bf16.msra.mxu0 %v3279
    %4649 = vmatprep.subr.bf16.mxu0 %v3288
    %4650 = vmatpush1.bf16.msra.mxu0 %v3287
    %4651 = vmatprep.subr.bf16.mxu0 %v3584
    %4652 = vmatpush1.bf16.msra.mxu0 %v3583
    %4653 = vmatprep.subr.bf16.mxu0 %v3592
    %4654 = vmatpush1.bf16.msra.mxu0 %v3591
    %4655 = vmatprep.subr.bf16.mxu0 %v3600
    %4656 = vmatpush1.bf16.msra.mxu0 %v3599
    %4657 = vmatprep.subr.bf16.mxu0 %v3608
    %4658 = vmatpush1.bf16.msra.mxu0 %v3607
    %4659 = vmatprep.mubr.bf16.mxu0 %v4070
    %4660 = vmatmul.mubr.bf16.gmra.mrb[0].mxu0 %v4069
    %v4661 = vpop.f32.mrb[0].mxu0
    %v4662 = vadd.f32 %v4589, %v4661
    %v4663 = vpop.f32.mrb[0].mxu0
    %v4664 = vadd.f32 %v4591, %v4663
    %v4665 = vpop.f32.mrb[0].mxu0
    %v4666 = vadd.f32 %v4593, %v4665
    %v4667 = vpop.f32.mrb[0].mxu0
    %v4668 = vadd.f32 %v4595, %v4667
    %4669 = vmatprep.mubr.bf16.mxu0 %v4075
    %4670 = vmatmul.mubr.bf16.gmra.mrb[0].mxu0 %v4074
    %v4671 = vpop.f32.mrb[0].mxu0
    %v4672 = vadd.f32 %v4599, %v4671
    %v4673 = vpop.f32.mrb[0].mxu0
    %v4674 = vadd.f32 %v4601, %v4673
    %v4675 = vpop.f32.mrb[0].mxu0
    %v4676 = vadd.f32 %v4603, %v4675
    %v4677 = vpop.f32.mrb[0].mxu0
    %v4678 = vadd.f32 %v4605, %v4677
    %4679 = vmatprep.mubr.bf16.mxu0 %v4080
    %4680 = vmatmul.mubr.bf16.gmra.mrb[0].mxu0 %v4079
    %v4681 = vpop.f32.mrb[0].mxu0
    %v4682 = vadd.f32 %v4609, %v4681
    %v4683 = vpop.f32.mrb[0].mxu0
    %v4684 = vadd.f32 %v4611, %v4683
    %v4685 = vpop.f32.mrb[0].mxu0
    %v4686 = vadd.f32 %v4613, %v4685
    %v4687 = vpop.f32.mrb[0].mxu0
    %v4688 = vadd.f32 %v4615, %v4687
    %4689 = vmatprep.mubr.bf16.mxu0 %v4085
    %4690 = vmatmul.mubr.bf16.gmra.mrb[0].mxu0 %v4084
    %v4691 = vpop.f32.mrb[0].mxu0
    %v4692 = vadd.f32 %v4619, %v4691
    %v4693 = vpop.f32.mrb[0].mxu0
    %v4694 = vadd.f32 %v4621, %v4693
    %v4695 = vpop.f32.mrb[0].mxu0
    %v4696 = vadd.f32 %v4623, %v4695
    %v4697 = vpop.f32.mrb[0].mxu0
    %v4698 = vadd.f32 %v4625, %v4697
    %4699 = vdwg.mxu0
    %4700 = vmatprep.subr.bf16.mxu0 %v3904
    %4701 = vmatpush1.bf16.msra.mxu0 %v3903
    %4702 = vmatprep.subr.bf16.mxu0 %v3912
    %4703 = vmatpush1.bf16.msra.mxu0 %v3911
    %4704 = vmatprep.subr.bf16.mxu0 %v3920
    %4705 = vmatpush1.bf16.msra.mxu0 %v3919
    %4706 = vmatprep.subr.bf16.mxu0 %v3928
    %4707 = vmatpush1.bf16.msra.mxu0 %v3927
    %4708 = vmatprep.subr.bf16.mxu0 0
    %4709 = vmatpush1.bf16.msra.mxu0 0
    %4710 = vmatprep.subr.bf16.mxu0 0
    %4711 = vmatpush1.bf16.msra.mxu0 0
    %4712 = vmatprep.subr.bf16.mxu0 0
    %4713 = vmatpush1.bf16.msra.mxu0 0
    %4714 = vmatprep.subr.bf16.mxu0 0
    %4715 = vmatpush1.bf16.msra.mxu0 0
    %4716 = vmatprep.subr.bf16.mxu0 0
    %4717 = vmatpush1.bf16.msra.mxu0 0
    %4718 = vmatprep.subr.bf16.mxu0 0
    %4719 = vmatpush1.bf16.msra.mxu0 0
    %4720 = vmatprep.subr.bf16.mxu0 0
    %4721 = vmatpush1.bf16.msra.mxu0 0
    %4722 = vmatprep.subr.bf16.mxu0 0
    %4723 = vmatpush1.bf16.msra.mxu0 0
    %4724 = vmatprep.subr.bf16.mxu0 0
    %4725 = vmatpush1.bf16.msra.mxu0 0
    %4726 = vmatprep.subr.bf16.mxu0 0
    %4727 = vmatpush1.bf16.msra.mxu0 0
    %4728 = vmatprep.subr.bf16.mxu0 0
    %4729 = vmatpush1.bf16.msra.mxu0 0
    %4730 = vmatprep.subr.bf16.mxu0 0
    %4731 = vmatpush1.bf16.msra.mxu0 0
    %4732 = vmatprep.mubr.bf16.mxu0 0
    %4733 = vmatmul.mubr.bf16.gmra.mrb[0].mxu0 %v4105
    %v4734 = vpop.f32.mrb[0].mxu0
    %v4735 = vadd.f32 %v4662, %v4734
    %v4736 = vpop.f32.mrb[0].mxu0
    %v4737 = vadd.f32 %v4664, %v4736
    %v4738 = vpop.f32.mrb[0].mxu0
    %v4739 = vadd.f32 %v4666, %v4738
    %v4740 = vpop.f32.mrb[0].mxu0
    %v4741 = vadd.f32 %v4668, %v4740
    %4742 = vmatprep.mubr.bf16.mxu0 0
    %4743 = vmatmul.mubr.bf16.gmra.mrb[0].mxu0 %v4108
    %v4744 = vpop.f32.mrb[0].mxu0
    %v4745 = vadd.f32 %v4672, %v4744
    %v4746 = vpop.f32.mrb[0].mxu0
    %v4747 = vadd.f32 %v4674, %v4746
    %v4748 = vpop.f32.mrb[0].mxu0
    %v4749 = vadd.f32 %v4676, %v4748
    %v4750 = vpop.f32.mrb[0].mxu0
    %v4751 = vadd.f32 %v4678, %v4750
    %4752 = vmatprep.mubr.bf16.mxu0 0
    %4753 = vmatmul.mubr.bf16.gmra.mrb[0].mxu0 %v4111
    %v4754 = vpop.f32.mrb[0].mxu0
    %v4755 = vadd.f32 %v4682, %v4754
    %v4756 = vpop.f32.mrb[0].mxu0
    %v4757 = vadd.f32 %v4684, %v4756
    %v4758 = vpop.f32.mrb[0].mxu0
    %v4759 = vadd.f32 %v4686, %v4758
    %v4760 = vpop.f32.mrb[0].mxu0
    %v4761 = vadd.f32 %v4688, %v4760
    %4762 = vmatprep.mubr.bf16.mxu0 0
    %4763 = vmatmul.mubr.bf16.gmra.mrb[0].mxu0 %v4114
    %v4764 = vpop.f32.mrb[0].mxu0
    %v4765 = vadd.f32 %v4692, %v4764
    %v4766 = vpop.f32.mrb[0].mxu0
    %v4767 = vadd.f32 %v4694, %v4766
    %v4768 = vpop.f32.mrb[0].mxu0
    %v4769 = vadd.f32 %v4696, %v4768
    %v4770 = vpop.f32.mrb[0].mxu0
    %v4771 = vadd.f32 %v4698, %v4770
    %4772 = vdwg.mxu0
    %4773 = vmatprep.subr.bf16.mxu0 %v1538
    %4774 = vmatpush1.bf16.msra.mxu0 %v1537
    %4775 = vmatprep.subr.bf16.mxu0 %v1546
    %4776 = vmatpush1.bf16.msra.mxu0 %v1545
    %4777 = vmatprep.subr.bf16.mxu0 %v1554
    %4778 = vmatpush1.bf16.msra.mxu0 %v1553
    %4779 = vmatprep.subr.bf16.mxu0 %v1562
    %4780 = vmatpush1.bf16.msra.mxu0 %v1561
    %4781 = vmatprep.subr.bf16.mxu0 %v1858
    %4782 = vmatpush1.bf16.msra.mxu0 %v1857
    %4783 = vmatprep.subr.bf16.mxu0 %v1866
    %4784 = vmatpush1.bf16.msra.mxu0 %v1865
    %4785 = vmatprep.subr.bf16.mxu0 %v1874
    %4786 = vmatpush1.bf16.msra.mxu0 %v1873
    %4787 = vmatprep.subr.bf16.mxu0 %v1882
    %4788 = vmatpush1.bf16.msra.mxu0 %v1881
    %4789 = vmatprep.subr.bf16.mxu0 %v2178
    %4790 = vmatpush1.bf16.msra.mxu0 %v2177
    %4791 = vmatprep.subr.bf16.mxu0 %v2186
    %4792 = vmatpush1.bf16.msra.mxu0 %v2185
    %4793 = vmatprep.subr.bf16.mxu0 %v2194
    %4794 = vmatpush1.bf16.msra.mxu0 %v2193
    %4795 = vmatprep.subr.bf16.mxu0 %v2202
    %4796 = vmatpush1.bf16.msra.mxu0 %v2201
    %4797 = vmatprep.subr.bf16.mxu0 %v2498
    %4798 = vmatpush1.bf16.msra.mxu0 %v2497
    %4799 = vmatprep.subr.bf16.mxu0 %v2506
    %4800 = vmatpush1.bf16.msra.mxu0 %v2505
    %4801 = vmatprep.subr.bf16.mxu0 %v2514
    %4802 = vmatpush1.bf16.msra.mxu0 %v2513
    %4803 = vmatprep.subr.bf16.mxu0 %v2522
    %4804 = vmatpush1.bf16.msra.mxu0 %v2521
    %4805 = vmatprep.mubr.bf16.mxu0 %v4068
    %4806 = vmatmul.mubr.bf16.gmra.mrb[0].mxu0 %v4067
    %v4807 = vpop.f32.mrb[0].mxu0
    %v4808 = vadd.f32 %v3966, %v4807
    %v4809 = vpop.f32.mrb[0].mxu0
    %v4810 = vadd.f32 %v3966, %v4809
    %v4811 = vpop.f32.mrb[0].mxu0
    %v4812 = vadd.f32 %v3971, %v4811
    %v4813 = vpop.f32.mrb[0].mxu0
    %v4814 = vadd.f32 %v3971, %v4813
    %4815 = vmatprep.mubr.bf16.mxu0 %v4073
    %4816 = vmatmul.mubr.bf16.gmra.mrb[0].mxu0 %v4072
    %v4817 = vpop.f32.mrb[0].mxu0
    %v4818 = vadd.f32 %v3976, %v4817
    %v4819 = vpop.f32.mrb[0].mxu0
    %v4820 = vadd.f32 %v3976, %v4819
    %v4821 = vpop.f32.mrb[0].mxu0
    %v4822 = vadd.f32 %v3981, %v4821
    %v4823 = vpop.f32.mrb[0].mxu0
    %v4824 = vadd.f32 %v3981, %v4823
    %4825 = vmatprep.mubr.bf16.mxu0 %v4078
    %4826 = vmatmul.mubr.bf16.gmra.mrb[0].mxu0 %v4077
    %v4827 = vpop.f32.mrb[0].mxu0
    %v4828 = vadd.f32 %v3986, %v4827
    %v4829 = vpop.f32.mrb[0].mxu0
    %v4830 = vadd.f32 %v3986, %v4829
    %v4831 = vpop.f32.mrb[0].mxu0
    %v4832 = vadd.f32 %v3991, %v4831
    %v4833 = vpop.f32.mrb[0].mxu0
    %v4834 = vadd.f32 %v3991, %v4833
    %4835 = vmatprep.mubr.bf16.mxu0 %v4083
    %4836 = vmatmul.mubr.bf16.gmra.mrb[0].mxu0 %v4082
    %v4837 = vpop.f32.mrb[0].mxu0
    %v4838 = vadd.f32 %v3996, %v4837
    %v4839 = vpop.f32.mrb[0].mxu0
    %v4840 = vadd.f32 %v3996, %v4839
    %v4841 = vpop.f32.mrb[0].mxu0
    %v4842 = vadd.f32 %v4001, %v4841
    %v4843 = vpop.f32.mrb[0].mxu0
    %v4844 = vadd.f32 %v4001, %v4843
    %4845 = vdwg.mxu0
    %4846 = vmatprep.subr.bf16.mxu0 %v2626
    %4847 = vmatpush1.bf16.msra.mxu0 %v2625
    %4848 = vmatprep.subr.bf16.mxu0 %v2634
    %4849 = vmatpush1.bf16.msra.mxu0 %v2633
    %4850 = vmatprep.subr.bf16.mxu0 %v2642
    %4851 = vmatpush1.bf16.msra.mxu0 %v2641
    %4852 = vmatprep.subr.bf16.mxu0 %v2650
    %4853 = vmatpush1.bf16.msra.mxu0 %v2649
    %4854 = vmatprep.subr.bf16.mxu0 %v2946
    %4855 = vmatpush1.bf16.msra.mxu0 %v2945
    %4856 = vmatprep.subr.bf16.mxu0 %v2954
    %4857 = vmatpush1.bf16.msra.mxu0 %v2953
    %4858 = vmatprep.subr.bf16.mxu0 %v2962
    %4859 = vmatpush1.bf16.msra.mxu0 %v2961
    %4860 = vmatprep.subr.bf16.mxu0 %v2970
    %4861 = vmatpush1.bf16.msra.mxu0 %v2969
    %4862 = vmatprep.subr.bf16.mxu0 %v3266
    %4863 = vmatpush1.bf16.msra.mxu0 %v3265
    %4864 = vmatprep.subr.bf16.mxu0 %v3274
    %4865 = vmatpush1.bf16.msra.mxu0 %v3273
    %4866 = vmatprep.subr.bf16.mxu0 %v3282
    %4867 = vmatpush1.bf16.msra.mxu0 %v3281
    %4868 = vmatprep.subr.bf16.mxu0 %v3290
    %4869 = vmatpush1.bf16.msra.mxu0 %v3289
    %4870 = vmatprep.subr.bf16.mxu0 %v3586
    %4871 = vmatpush1.bf16.msra.mxu0 %v3585
    %4872 = vmatprep.subr.bf16.mxu0 %v3594
    %4873 = vmatpush1.bf16.msra.mxu0 %v3593
    %4874 = vmatprep.subr.bf16.mxu0 %v3602
    %4875 = vmatpush1.bf16.msra.mxu0 %v3601
    %4876 = vmatprep.subr.bf16.mxu0 %v3610
    %4877 = vmatpush1.bf16.msra.mxu0 %v3609
    %4878 = vmatprep.mubr.bf16.mxu0 %v4070
    %4879 = vmatmul.mubr.bf16.gmra.mrb[0].mxu0 %v4069
    %v4880 = vpop.f32.mrb[0].mxu0
    %v4881 = vadd.f32 %v4808, %v4880
    %v4882 = vpop.f32.mrb[0].mxu0
    %v4883 = vadd.f32 %v4810, %v4882
    %v4884 = vpop.f32.mrb[0].mxu0
    %v4885 = vadd.f32 %v4812, %v4884
    %v4886 = vpop.f32.mrb[0].mxu0
    %v4887 = vadd.f32 %v4814, %v4886
    %4888 = vmatprep.mubr.bf16.mxu0 %v4075
    %4889 = vmatmul.mubr.bf16.gmra.mrb[0].mxu0 %v4074
    %v4890 = vpop.f32.mrb[0].mxu0
    %v4891 = vadd.f32 %v4818, %v4890
    %v4892 = vpop.f32.mrb[0].mxu0
    %v4893 = vadd.f32 %v4820, %v4892
    %v4894 = vpop.f32.mrb[0].mxu0
    %v4895 = vadd.f32 %v4822, %v4894
    %v4896 = vpop.f32.mrb[0].mxu0
    %v4897 = vadd.f32 %v4824, %v4896
    %4898 = vmatprep.mubr.bf16.mxu0 %v4080
    %4899 = vmatmul.mubr.bf16.gmra.mrb[0].mxu0 %v4079
    %v4900 = vpop.f32.mrb[0].mxu0
    %v4901 = vadd.f32 %v4828, %v4900
    %v4902 = vpop.f32.mrb[0].mxu0
    %v4903 = vadd.f32 %v4830, %v4902
    %v4904 = vpop.f32.mrb[0].mxu0
    %v4905 = vadd.f32 %v4832, %v4904
    %v4906 = vpop.f32.mrb[0].mxu0
    %v4907 = vadd.f32 %v4834, %v4906
    %4908 = vmatprep.mubr.bf16.mxu0 %v4085
    %4909 = vmatmul.mubr.bf16.gmra.mrb[0].mxu0 %v4084
    %v4910 = vpop.f32.mrb[0].mxu0
    %v4911 = vadd.f32 %v4838, %v4910
    %v4912 = vpop.f32.mrb[0].mxu0
    %v4913 = vadd.f32 %v4840, %v4912
    %v4914 = vpop.f32.mrb[0].mxu0
    %v4915 = vadd.f32 %v4842, %v4914
    %v4916 = vpop.f32.mrb[0].mxu0
    %v4917 = vadd.f32 %v4844, %v4916
    %4918 = vdwg.mxu0
    %4919 = vmatprep.subr.bf16.mxu0 %v3906
    %4920 = vmatpush1.bf16.msra.mxu0 %v3905
    %4921 = vmatprep.subr.bf16.mxu0 %v3914
    %4922 = vmatpush1.bf16.msra.mxu0 %v3913
    %4923 = vmatprep.subr.bf16.mxu0 %v3922
    %4924 = vmatpush1.bf16.msra.mxu0 %v3921
    %4925 = vmatprep.subr.bf16.mxu0 %v3930
    %4926 = vmatpush1.bf16.msra.mxu0 %v3929
    %4927 = vmatprep.subr.bf16.mxu0 0
    %4928 = vmatpush1.bf16.msra.mxu0 0
    %4929 = vmatprep.subr.bf16.mxu0 0
    %4930 = vmatpush1.bf16.msra.mxu0 0
    %4931 = vmatprep.subr.bf16.mxu0 0
    %4932 = vmatpush1.bf16.msra.mxu0 0
    %4933 = vmatprep.subr.bf16.mxu0 0
    %4934 = vmatpush1.bf16.msra.mxu0 0
    %4935 = vmatprep.subr.bf16.mxu0 0
    %4936 = vmatpush1.bf16.msra.mxu0 0
    %4937 = vmatprep.subr.bf16.mxu0 0
    %4938 = vmatpush1.bf16.msra.mxu0 0
    %4939 = vmatprep.subr.bf16.mxu0 0
    %4940 = vmatpush1.bf16.msra.mxu0 0
    %4941 = vmatprep.subr.bf16.mxu0 0
    %4942 = vmatpush1.bf16.msra.mxu0 0
    %4943 = vmatprep.subr.bf16.mxu0 0
    %4944 = vmatpush1.bf16.msra.mxu0 0
    %4945 = vmatprep.subr.bf16.mxu0 0
    %4946 = vmatpush1.bf16.msra.mxu0 0
    %4947 = vmatprep.subr.bf16.mxu0 0
    %4948 = vmatpush1.bf16.msra.mxu0 0
    %4949 = vmatprep.subr.bf16.mxu0 0
    %4950 = vmatpush1.bf16.msra.mxu0 0
    %4951 = vmatprep.mubr.bf16.mxu0 0
    %4952 = vmatmul.mubr.bf16.gmra.mrb[0].mxu0 %v4105
    %v4953 = vpop.f32.mrb[0].mxu0
    %v4954 = vadd.f32 %v4881, %v4953
    %v4955 = vpop.f32.mrb[0].mxu0
    %v4956 = vadd.f32 %v4883, %v4955
    %v4957 = vpop.f32.mrb[0].mxu0
    %v4958 = vadd.f32 %v4885, %v4957
    %v4959 = vpop.f32.mrb[0].mxu0
    %v4960 = vadd.f32 %v4887, %v4959
    %4961 = vmatprep.mubr.bf16.mxu0 0
    %4962 = vmatmul.mubr.bf16.gmra.mrb[0].mxu0 %v4108
    %v4963 = vpop.f32.mrb[0].mxu0
    %v4964 = vadd.f32 %v4891, %v4963
    %v4965 = vpop.f32.mrb[0].mxu0
    %v4966 = vadd.f32 %v4893, %v4965
    %v4967 = vpop.f32.mrb[0].mxu0
    %v4968 = vadd.f32 %v4895, %v4967
    %v4969 = vpop.f32.mrb[0].mxu0
    %v4970 = vadd.f32 %v4897, %v4969
    %4971 = vmatprep.mubr.bf16.mxu0 0
    %4972 = vmatmul.mubr.bf16.gmra.mrb[0].mxu0 %v4111
    %v4973 = vpop.f32.mrb[0].mxu0
    %v4974 = vadd.f32 %v4901, %v4973
    %v4975 = vpop.f32.mrb[0].mxu0
    %v4976 = vadd.f32 %v4903, %v4975
    %v4977 = vpop.f32.mrb[0].mxu0
    %v4978 = vadd.f32 %v4905, %v4977
    %v4979 = vpop.f32.mrb[0].mxu0
    %v4980 = vadd.f32 %v4907, %v4979
    %4981 = vmatprep.mubr.bf16.mxu0 0
    %4982 = vmatmul.mubr.bf16.gmra.mrb[0].mxu0 %v4114
    %v4983 = vpop.f32.mrb[0].mxu0
    %v4984 = vadd.f32 %v4911, %v4983
    %v4985 = vpop.f32.mrb[0].mxu0
    %v4986 = vadd.f32 %v4913, %v4985
    %v4987 = vpop.f32.mrb[0].mxu0
    %v4988 = vadd.f32 %v4915, %v4987
    %v4989 = vpop.f32.mrb[0].mxu0
    %v4990 = vadd.f32 %v4917, %v4989
    %4991 = vdwg.mxu0
    %v4992 = vmax.f32 %v4297, 0.0
    %v4993 = vmax.f32 %v4299, 0.0
    %v4994 = vmax.f32 %v4516, 0.0
    %v4995 = vmax.f32 %v4518, 0.0
    %v4996 = vmax.f32 %v4735, 0.0
    %v4997 = vmax.f32 %v4737, 0.0
    %v4998 = vmax.f32 %v4954, 0.0
    %v4999 = vmax.f32 %v4956, 0.0
    %v5000 = vmax.f32 %v4301, 0.0
    %v5001 = vmax.f32 %v4303, 0.0
    %v5002 = vmax.f32 %v4520, 0.0
    %v5003 = vmax.f32 %v4522, 0.0
    %v5004 = vmax.f32 %v4739, 0.0
    %v5005 = vmax.f32 %v4741, 0.0
    %v5006 = vmax.f32 %v4958, 0.0
    %v5007 = vmax.f32 %v4960, 0.0
    %v5008 = vmax.f32 %v4307, 0.0
    %v5009 = vmax.f32 %v4309, 0.0
    %v5010 = vmax.f32 %v4526, 0.0
    %v5011 = vmax.f32 %v4528, 0.0
    %v5012 = vmax.f32 %v4745, 0.0
    %v5013 = vmax.f32 %v4747, 0.0
    %v5014 = vmax.f32 %v4964, 0.0
    %v5015 = vmax.f32 %v4966, 0.0
    %v5016 = vmax.f32 %v4311, 0.0
    %v5017 = vmax.f32 %v4313, 0.0
    %v5018 = vmax.f32 %v4530, 0.0
    %v5019 = vmax.f32 %v4532, 0.0
    %v5020 = vmax.f32 %v4749, 0.0
    %v5021 = vmax.f32 %v4751, 0.0
    %v5022 = vmax.f32 %v4968, 0.0
    %v5023 = vmax.f32 %v4970, 0.0
    %v5024 = vmax.f32 %v4317, 0.0
    %v5025 = vmax.f32 %v4319, 0.0
    %v5026 = vmax.f32 %v4536, 0.0
    %v5027 = vmax.f32 %v4538, 0.0
    %v5028 = vmax.f32 %v4755, 0.0
    %v5029 = vmax.f32 %v4757, 0.0
    %v5030 = vmax.f32 %v4974, 0.0
    %v5031 = vmax.f32 %v4976, 0.0
    %v5032 = vmax.f32 %v4321, 0.0
    %v5033 = vmax.f32 %v4323, 0.0
    %v5034 = vmax.f32 %v4540, 0.0
    %v5035 = vmax.f32 %v4542, 0.0
    %v5036 = vmax.f32 %v4759, 0.0
    %v5037 = vmax.f32 %v4761, 0.0
    %v5038 = vmax.f32 %v4978, 0.0
    %v5039 = vmax.f32 %v4980, 0.0
    %v5040 = vmax.f32 %v4327, 0.0
    %v5041 = vmax.f32 %v4329, 0.0
    %v5042 = vmax.f32 %v4546, 0.0
    %v5043 = vmax.f32 %v4548, 0.0
    %v5044 = vmax.f32 %v4765, 0.0
    %v5045 = vmax.f32 %v4767, 0.0
    %v5046 = vmax.f32 %v4984, 0.0
    %v5047 = vmax.f32 %v4986, 0.0
    %v5048 = vmax.f32 %v4331, 0.0
    %v5049 = vmax.f32 %v4333, 0.0
    %v5050 = vmax.f32 %v4550, 0.0
    %v5051 = vmax.f32 %v4552, 0.0
    %v5052 = vmax.f32 %v4769, 0.0
    %v5053 = vmax.f32 %v4771, 0.0
    %v5054 = vmax.f32 %v4988, 0.0
    %v5055 = vmax.f32 %v4990, 0.0
    %5056 = vrot.lane.b32.xlu0 %v4992, 127
    %v5057 = vpop.permute.xlu0 %5056
    %5058 = vrot.lane.b32.xlu0 %v5000, 127
    %v5059 = vpop.permute.xlu0 %5058
    %5060 = vrot.lane.b32.xlu0 %v5008, 127
    %v5061 = vpop.permute.xlu0 %5060
    %5062 = vrot.lane.b32.xlu0 %v5016, 127
    %v5063 = vpop.permute.xlu0 %5062
    %5064 = vrot.lane.b32.xlu0 %v5024, 127
    %v5065 = vpop.permute.xlu0 %5064
    %5066 = vrot.lane.b32.xlu0 %v5032, 127
    %v5067 = vpop.permute.xlu0 %5066
    %5068 = vrot.lane.b32.xlu0 %v5040, 127
    %v5069 = vpop.permute.xlu0 %5068
    %5070 = vrot.lane.b32.xlu0 %v5048, 127
    %v5071 = vpop.permute.xlu0 %5070
    %5072 = vrot.lane.b32.xlu0 %v4993, 127
    %v5073 = vpop.permute.xlu0 %5072
    %5074 = vrot.lane.b32.xlu0 %v5001, 127
    %v5075 = vpop.permute.xlu0 %5074
    %5076 = vrot.lane.b32.xlu0 %v5009, 127
    %v5077 = vpop.permute.xlu0 %5076
    %5078 = vrot.lane.b32.xlu0 %v5017, 127
    %v5079 = vpop.permute.xlu0 %5078
    %5080 = vrot.lane.b32.xlu0 %v5025, 127
    %v5081 = vpop.permute.xlu0 %5080
    %5082 = vrot.lane.b32.xlu0 %v5033, 127
    %v5083 = vpop.permute.xlu0 %5082
    %5084 = vrot.lane.b32.xlu0 %v5041, 127
    %v5085 = vpop.permute.xlu0 %5084
    %5086 = vrot.lane.b32.xlu0 %v5049, 127
    %v5087 = vpop.permute.xlu0 %5086
    %5088 = vrot.lane.b32.xlu0 %v4994, 127
    %v5089 = vpop.permute.xlu0 %5088
    %5090 = vrot.lane.b32.xlu0 %v5002, 127
    %v5091 = vpop.permute.xlu0 %5090
    %5092 = vrot.lane.b32.xlu0 %v5010, 127
    %v5093 = vpop.permute.xlu0 %5092
    %5094 = vrot.lane.b32.xlu0 %v5018, 127
    %v5095 = vpop.permute.xlu0 %5094
    %5096 = vrot.lane.b32.xlu0 %v5026, 127
    %v5097 = vpop.permute.xlu0 %5096
    %5098 = vrot.lane.b32.xlu0 %v5034, 127
    %v5099 = vpop.permute.xlu0 %5098
    %5100 = vrot.lane.b32.xlu0 %v5042, 127
    %v5101 = vpop.permute.xlu0 %5100
    %5102 = vrot.lane.b32.xlu0 %v5050, 127
    %v5103 = vpop.permute.xlu0 %5102
    %5104 = vrot.lane.b32.xlu0 %v4995, 127
    %v5105 = vpop.permute.xlu0 %5104
    %5106 = vrot.lane.b32.xlu0 %v5003, 127
    %v5107 = vpop.permute.xlu0 %5106
    %5108 = vrot.lane.b32.xlu0 %v5011, 127
    %v5109 = vpop.permute.xlu0 %5108
    %5110 = vrot.lane.b32.xlu0 %v5019, 127
    %v5111 = vpop.permute.xlu0 %5110
    %5112 = vrot.lane.b32.xlu0 %v5027, 127
    %v5113 = vpop.permute.xlu0 %5112
    %5114 = vrot.lane.b32.xlu0 %v5035, 127
    %v5115 = vpop.permute.xlu0 %5114
    %5116 = vrot.lane.b32.xlu0 %v5043, 127
    %v5117 = vpop.permute.xlu0 %5116
    %5118 = vrot.lane.b32.xlu0 %v5051, 127
    %v5119 = vpop.permute.xlu0 %5118
    %5120 = vrot.lane.b32.xlu0 %v4996, 127
    %v5121 = vpop.permute.xlu0 %5120
    %5122 = vrot.lane.b32.xlu0 %v5004, 127
    %v5123 = vpop.permute.xlu0 %5122
    %5124 = vrot.lane.b32.xlu0 %v5012, 127
    %v5125 = vpop.permute.xlu0 %5124
    %5126 = vrot.lane.b32.xlu0 %v5020, 127
    %v5127 = vpop.permute.xlu0 %5126
    %5128 = vrot.lane.b32.xlu0 %v5028, 127
    %v5129 = vpop.permute.xlu0 %5128
    %5130 = vrot.lane.b32.xlu0 %v5036, 127
    %v5131 = vpop.permute.xlu0 %5130
    %5132 = vrot.lane.b32.xlu0 %v5044, 127
    %v5133 = vpop.permute.xlu0 %5132
    %5134 = vrot.lane.b32.xlu0 %v5052, 127
    %v5135 = vpop.permute.xlu0 %5134
    %5136 = vrot.lane.b32.xlu0 %v4997, 127
    %v5137 = vpop.permute.xlu0 %5136
    %5138 = vrot.lane.b32.xlu0 %v5005, 127
    %v5139 = vpop.permute.xlu0 %5138
    %5140 = vrot.lane.b32.xlu0 %v5013, 127
    %v5141 = vpop.permute.xlu0 %5140
    %5142 = vrot.lane.b32.xlu0 %v5021, 127
    %v5143 = vpop.permute.xlu0 %5142
    %5144 = vrot.lane.b32.xlu0 %v5029, 127
    %v5145 = vpop.permute.xlu0 %5144
    %5146 = vrot.lane.b32.xlu0 %v5037, 127
    %v5147 = vpop.permute.xlu0 %5146
    %5148 = vrot.lane.b32.xlu0 %v5045, 127
    %v5149 = vpop.permute.xlu0 %5148
    %5150 = vrot.lane.b32.xlu0 %v5053, 127
    %v5151 = vpop.permute.xlu0 %5150
    %5152 = vrot.lane.b32.xlu0 %v4998, 127
    %v5153 = vpop.permute.xlu0 %5152
    %5154 = vrot.lane.b32.xlu0 %v5006, 127
    %v5155 = vpop.permute.xlu0 %5154
    %5156 = vrot.lane.b32.xlu0 %v5014, 127
    %v5157 = vpop.permute.xlu0 %5156
    %5158 = vrot.lane.b32.xlu0 %v5022, 127
    %v5159 = vpop.permute.xlu0 %5158
    %5160 = vrot.lane.b32.xlu0 %v5030, 127
    %v5161 = vpop.permute.xlu0 %5160
    %5162 = vrot.lane.b32.xlu0 %v5038, 127
    %v5163 = vpop.permute.xlu0 %5162
    %5164 = vrot.lane.b32.xlu0 %v5046, 127
    %v5165 = vpop.permute.xlu0 %5164
    %5166 = vrot.lane.b32.xlu0 %v5054, 127
    %v5167 = vpop.permute.xlu0 %5166
    %5168 = vrot.lane.b32.xlu0 %v4999, 127
    %v5169 = vpop.permute.xlu0 %5168
    %5170 = vrot.lane.b32.xlu0 %v5007, 127
    %v5171 = vpop.permute.xlu0 %5170
    %5172 = vrot.lane.b32.xlu0 %v5015, 127
    %v5173 = vpop.permute.xlu0 %5172
    %5174 = vrot.lane.b32.xlu0 %v5023, 127
    %v5175 = vpop.permute.xlu0 %5174
    %5176 = vrot.lane.b32.xlu0 %v5031, 127
    %v5177 = vpop.permute.xlu0 %5176
    %5178 = vrot.lane.b32.xlu0 %v5039, 127
    %v5179 = vpop.permute.xlu0 %5178
    %5180 = vrot.lane.b32.xlu0 %v5047, 127
    %v5181 = vpop.permute.xlu0 %5180
    %5182 = vrot.lane.b32.xlu0 %v5055, 127
    %v5183 = vpop.permute.xlu0 %5182
    %v5184 = vsel %vm370, %v5153, %v5169
    %v5185 = vsel %vm370, %v5155, %v5171
    %v5186 = vsel %vm370, %v5157, %v5173
    %v5187 = vsel %vm370, %v5159, %v5175
    %v5188 = vsel %vm370, %v5161, %v5177
    %v5189 = vsel %vm370, %v5163, %v5179
    %v5190 = vsel %vm370, %v5165, %v5181
    %v5191 = vsel %vm370, %v5167, %v5183
    %v5192 = vsel %vm370, %v5137, %v5153
    %v5193 = vsel %vm370, %v5139, %v5155
    %v5194 = vsel %vm370, %v5141, %v5157
    %v5195 = vsel %vm370, %v5143, %v5159
    %v5196 = vsel %vm370, %v5145, %v5161
    %v5197 = vsel %vm370, %v5147, %v5163
    %v5198 = vsel %vm370, %v5149, %v5165
    %v5199 = vsel %vm370, %v5151, %v5167
    %v5200 = vsel %vm370, %v5121, %v5137
    %v5201 = vsel %vm370, %v5123, %v5139
    %v5202 = vsel %vm370, %v5125, %v5141
    %v5203 = vsel %vm370, %v5127, %v5143
    %v5204 = vsel %vm370, %v5129, %v5145
    %v5205 = vsel %vm370, %v5131, %v5147
    %v5206 = vsel %vm370, %v5133, %v5149
    %v5207 = vsel %vm370, %v5135, %v5151
    %v5208 = vsel %vm370, %v5105, %v5121
    %v5209 = vsel %vm370, %v5107, %v5123
    %v5210 = vsel %vm370, %v5109, %v5125
    %v5211 = vsel %vm370, %v5111, %v5127
    %v5212 = vsel %vm370, %v5113, %v5129
    %v5213 = vsel %vm370, %v5115, %v5131
    %v5214 = vsel %vm370, %v5117, %v5133
    %v5215 = vsel %vm370, %v5119, %v5135
    %v5216 = vsel %vm370, %v5089, %v5105
    %v5217 = vsel %vm370, %v5091, %v5107
    %v5218 = vsel %vm370, %v5093, %v5109
    %v5219 = vsel %vm370, %v5095, %v5111
    %v5220 = vsel %vm370, %v5097, %v5113
    %v5221 = vsel %vm370, %v5099, %v5115
    %v5222 = vsel %vm370, %v5101, %v5117
    %v5223 = vsel %vm370, %v5103, %v5119
    %v5224 = vsel %vm370, %v5073, %v5089
    %v5225 = vsel %vm370, %v5075, %v5091
    %v5226 = vsel %vm370, %v5077, %v5093
    %v5227 = vsel %vm370, %v5079, %v5095
    %v5228 = vsel %vm370, %v5081, %v5097
    %v5229 = vsel %vm370, %v5083, %v5099
    %v5230 = vsel %vm370, %v5085, %v5101
    %v5231 = vsel %vm370, %v5087, %v5103
    %v5232 = vsel %vm370, %v5057, %v5073
    %v5233 = vsel %vm370, %v5059, %v5075
    %v5234 = vsel %vm370, %v5061, %v5077
    %v5235 = vsel %vm370, %v5063, %v5079
    %v5236 = vsel %vm370, %v5065, %v5081
    %v5237 = vsel %vm370, %v5067, %v5083
    %v5238 = vsel %vm370, %v5069, %v5085
    %v5239 = vsel %vm370, %v5071, %v5087
    %v5240 = vsel %vm370, %v5169, %v5057
    %v5241 = vsel %vm370, %v5171, %v5059
    %v5242 = vsel %vm370, %v5173, %v5061
    %v5243 = vsel %vm370, %v5175, %v5063
    %v5244 = vsel %vm370, %v5177, %v5065
    %v5245 = vsel %vm370, %v5179, %v5067
    %v5246 = vsel %vm370, %v5181, %v5069
    %v5247 = vsel %vm370, %v5183, %v5071
    %v5248 = vmax.f32 %v4992, %v5232
    %v5249 = vmax.f32 %v4993, %v5224
    %v5250 = vmax.f32 %v4994, %v5216
    %v5251 = vmax.f32 %v4995, %v5208
    %v5252 = vmax.f32 %v4996, %v5200
    %v5253 = vmax.f32 %v4997, %v5192
    %v5254 = vmax.f32 %v4998, %v5184
    %v5255 = vmax.f32 %v4999, %v5240
    %v5256 = vmax.f32 %v5000, %v5233
    %v5257 = vmax.f32 %v5001, %v5225
    %v5258 = vmax.f32 %v5002, %v5217
    %v5259 = vmax.f32 %v5003, %v5209
    %v5260 = vmax.f32 %v5004, %v5201
    %v5261 = vmax.f32 %v5005, %v5193
    %v5262 = vmax.f32 %v5006, %v5185
    %v5263 = vmax.f32 %v5007, %v5241
    %v5264 = vmax.f32 %v5008, %v5234
    %v5265 = vmax.f32 %v5009, %v5226
    %v5266 = vmax.f32 %v5010, %v5218
    %v5267 = vmax.f32 %v5011, %v5210
    %v5268 = vmax.f32 %v5012, %v5202
    %v5269 = vmax.f32 %v5013, %v5194
    %v5270 = vmax.f32 %v5014, %v5186
    %v5271 = vmax.f32 %v5015, %v5242
    %v5272 = vmax.f32 %v5016, %v5235
    %v5273 = vmax.f32 %v5017, %v5227
    %v5274 = vmax.f32 %v5018, %v5219
    %v5275 = vmax.f32 %v5019, %v5211
    %v5276 = vmax.f32 %v5020, %v5203
    %v5277 = vmax.f32 %v5021, %v5195
    %v5278 = vmax.f32 %v5022, %v5187
    %v5279 = vmax.f32 %v5023, %v5243
    %v5280 = vmax.f32 %v5024, %v5236
    %v5281 = vmax.f32 %v5025, %v5228
    %v5282 = vmax.f32 %v5026, %v5220
    %v5283 = vmax.f32 %v5027, %v5212
    %v5284 = vmax.f32 %v5028, %v5204
    %v5285 = vmax.f32 %v5029, %v5196
    %v5286 = vmax.f32 %v5030, %v5188
    %v5287 = vmax.f32 %v5031, %v5244
    %v5288 = vmax.f32 %v5032, %v5237
    %v5289 = vmax.f32 %v5033, %v5229
    %v5290 = vmax.f32 %v5034, %v5221
    %v5291 = vmax.f32 %v5035, %v5213
    %v5292 = vmax.f32 %v5036, %v5205
    %v5293 = vmax.f32 %v5037, %v5197
    %v5294 = vmax.f32 %v5038, %v5189
    %v5295 = vmax.f32 %v5039, %v5245
    %v5296 = vmax.f32 %v5040, %v5238
    %v5297 = vmax.f32 %v5041, %v5230
    %v5298 = vmax.f32 %v5042, %v5222
    %v5299 = vmax.f32 %v5043, %v5214
    %v5300 = vmax.f32 %v5044, %v5206
    %v5301 = vmax.f32 %v5045, %v5198
    %v5302 = vmax.f32 %v5046, %v5190
    %v5303 = vmax.f32 %v5047, %v5246
    %v5304 = vmax.f32 %v5048, %v5239
    %v5305 = vmax.f32 %v5049, %v5231
    %v5306 = vmax.f32 %v5050, %v5223
    %v5307 = vmax.f32 %v5051, %v5215
    %v5308 = vmax.f32 %v5052, %v5207
    %v5309 = vmax.f32 %v5053, %v5199
    %v5310 = vmax.f32 %v5054, %v5191
    %v5311 = vmax.f32 %v5055, %v5247
    %5312 = vrot.lane.b32.xlu0 %v5248, 112
    %v5313 = vpop.permute.xlu0 %5312
    %5314 = vrot.lane.b32.xlu0 %v5256, 112
    %v5315 = vpop.permute.xlu0 %5314
    %5316 = vrot.lane.b32.xlu0 %v5264, 112
    %v5317 = vpop.permute.xlu0 %5316
    %5318 = vrot.lane.b32.xlu0 %v5272, 112
    %v5319 = vpop.permute.xlu0 %5318
    %5320 = vrot.lane.b32.xlu0 %v5280, 112
    %v5321 = vpop.permute.xlu0 %5320
    %5322 = vrot.lane.b32.xlu0 %v5288, 112
    %v5323 = vpop.permute.xlu0 %5322
    %5324 = vrot.lane.b32.xlu0 %v5296, 112
    %v5325 = vpop.permute.xlu0 %5324
    %5326 = vrot.lane.b32.xlu0 %v5304, 112
    %v5327 = vpop.permute.xlu0 %5326
    %5328 = vrot.lane.b32.xlu0 %v5249, 112
    %v5329 = vpop.permute.xlu0 %5328
    %5330 = vrot.lane.b32.xlu0 %v5257, 112
    %v5331 = vpop.permute.xlu0 %5330
    %5332 = vrot.lane.b32.xlu0 %v5265, 112
    %v5333 = vpop.permute.xlu0 %5332
    %5334 = vrot.lane.b32.xlu0 %v5273, 112
    %v5335 = vpop.permute.xlu0 %5334
    %5336 = vrot.lane.b32.xlu0 %v5281, 112
    %v5337 = vpop.permute.xlu0 %5336
    %5338 = vrot.lane.b32.xlu0 %v5289, 112
    %v5339 = vpop.permute.xlu0 %5338
    %5340 = vrot.lane.b32.xlu0 %v5297, 112
    %v5341 = vpop.permute.xlu0 %5340
    %5342 = vrot.lane.b32.xlu0 %v5305, 112
    %v5343 = vpop.permute.xlu0 %5342
    %5344 = vrot.lane.b32.xlu0 %v5250, 112
    %v5345 = vpop.permute.xlu0 %5344
    %5346 = vrot.lane.b32.xlu0 %v5258, 112
    %v5347 = vpop.permute.xlu0 %5346
    %5348 = vrot.lane.b32.xlu0 %v5266, 112
    %v5349 = vpop.permute.xlu0 %5348
    %5350 = vrot.lane.b32.xlu0 %v5274, 112
    %v5351 = vpop.permute.xlu0 %5350
    %5352 = vrot.lane.b32.xlu0 %v5282, 112
    %v5353 = vpop.permute.xlu0 %5352
    %5354 = vrot.lane.b32.xlu0 %v5290, 112
    %v5355 = vpop.permute.xlu0 %5354
    %5356 = vrot.lane.b32.xlu0 %v5298, 112
    %v5357 = vpop.permute.xlu0 %5356
    %5358 = vrot.lane.b32.xlu0 %v5306, 112
    %v5359 = vpop.permute.xlu0 %5358
    %5360 = vrot.lane.b32.xlu0 %v5251, 112
    %v5361 = vpop.permute.xlu0 %5360
    %5362 = vrot.lane.b32.xlu0 %v5259, 112
    %v5363 = vpop.permute.xlu0 %5362
    %5364 = vrot.lane.b32.xlu0 %v5267, 112
    %v5365 = vpop.permute.xlu0 %5364
    %5366 = vrot.lane.b32.xlu0 %v5275, 112
    %v5367 = vpop.permute.xlu0 %5366
    %5368 = vrot.lane.b32.xlu0 %v5283, 112
    %v5369 = vpop.permute.xlu0 %5368
    %5370 = vrot.lane.b32.xlu0 %v5291, 112
    %v5371 = vpop.permute.xlu0 %5370
    %5372 = vrot.lane.b32.xlu0 %v5299, 112
    %v5373 = vpop.permute.xlu0 %5372
    %5374 = vrot.lane.b32.xlu0 %v5307, 112
    %v5375 = vpop.permute.xlu0 %5374
    %5376 = vrot.lane.b32.xlu0 %v5252, 112
    %v5377 = vpop.permute.xlu0 %5376
    %5378 = vrot.lane.b32.xlu0 %v5260, 112
    %v5379 = vpop.permute.xlu0 %5378
    %5380 = vrot.lane.b32.xlu0 %v5268, 112
    %v5381 = vpop.permute.xlu0 %5380
    %5382 = vrot.lane.b32.xlu0 %v5276, 112
    %v5383 = vpop.permute.xlu0 %5382
    %5384 = vrot.lane.b32.xlu0 %v5284, 112
    %v5385 = vpop.permute.xlu0 %5384
    %5386 = vrot.lane.b32.xlu0 %v5292, 112
    %v5387 = vpop.permute.xlu0 %5386
    %5388 = vrot.lane.b32.xlu0 %v5300, 112
    %v5389 = vpop.permute.xlu0 %5388
    %5390 = vrot.lane.b32.xlu0 %v5308, 112
    %v5391 = vpop.permute.xlu0 %5390
    %5392 = vrot.lane.b32.xlu0 %v5253, 112
    %v5393 = vpop.permute.xlu0 %5392
    %5394 = vrot.lane.b32.xlu0 %v5261, 112
    %v5395 = vpop.permute.xlu0 %5394
    %5396 = vrot.lane.b32.xlu0 %v5269, 112
    %v5397 = vpop.permute.xlu0 %5396
    %5398 = vrot.lane.b32.xlu0 %v5277, 112
    %v5399 = vpop.permute.xlu0 %5398
    %5400 = vrot.lane.b32.xlu0 %v5285, 112
    %v5401 = vpop.permute.xlu0 %5400
    %5402 = vrot.lane.b32.xlu0 %v5293, 112
    %v5403 = vpop.permute.xlu0 %5402
    %5404 = vrot.lane.b32.xlu0 %v5301, 112
    %v5405 = vpop.permute.xlu0 %5404
    %5406 = vrot.lane.b32.xlu0 %v5309, 112
    %v5407 = vpop.permute.xlu0 %5406
    %5408 = vrot.lane.b32.xlu0 %v5254, 112
    %v5409 = vpop.permute.xlu0 %5408
    %5410 = vrot.lane.b32.xlu0 %v5262, 112
    %v5411 = vpop.permute.xlu0 %5410
    %5412 = vrot.lane.b32.xlu0 %v5270, 112
    %v5413 = vpop.permute.xlu0 %5412
    %5414 = vrot.lane.b32.xlu0 %v5278, 112
    %v5415 = vpop.permute.xlu0 %5414
    %5416 = vrot.lane.b32.xlu0 %v5286, 112
    %v5417 = vpop.permute.xlu0 %5416
    %5418 = vrot.lane.b32.xlu0 %v5294, 112
    %v5419 = vpop.permute.xlu0 %5418
    %5420 = vrot.lane.b32.xlu0 %v5302, 112
    %v5421 = vpop.permute.xlu0 %5420
    %5422 = vrot.lane.b32.xlu0 %v5310, 112
    %v5423 = vpop.permute.xlu0 %5422
    %5424 = vrot.lane.b32.xlu0 %v5255, 112
    %v5425 = vpop.permute.xlu0 %5424
    %5426 = vrot.lane.b32.xlu0 %v5263, 112
    %v5427 = vpop.permute.xlu0 %5426
    %5428 = vrot.lane.b32.xlu0 %v5271, 112
    %v5429 = vpop.permute.xlu0 %5428
    %5430 = vrot.lane.b32.xlu0 %v5279, 112
    %v5431 = vpop.permute.xlu0 %5430
    %5432 = vrot.lane.b32.xlu0 %v5287, 112
    %v5433 = vpop.permute.xlu0 %5432
    %5434 = vrot.lane.b32.xlu0 %v5295, 112
    %v5435 = vpop.permute.xlu0 %5434
    %5436 = vrot.lane.b32.xlu0 %v5303, 112
    %v5437 = vpop.permute.xlu0 %5436
    %5438 = vrot.lane.b32.xlu0 %v5311, 112
    %v5439 = vpop.permute.xlu0 %5438
    %v5440 = vsel %vm468, %v5409, %v5425
    %v5441 = vsel %vm468, %v5411, %v5427
    %v5442 = vsel %vm468, %v5413, %v5429
    %v5443 = vsel %vm468, %v5415, %v5431
    %v5444 = vsel %vm468, %v5417, %v5433
    %v5445 = vsel %vm468, %v5419, %v5435
    %v5446 = vsel %vm468, %v5421, %v5437
    %v5447 = vsel %vm468, %v5423, %v5439
    %v5448 = vsel %vm468, %v5393, %v5409
    %v5449 = vsel %vm468, %v5395, %v5411
    %v5450 = vsel %vm468, %v5397, %v5413
    %v5451 = vsel %vm468, %v5399, %v5415
    %v5452 = vsel %vm468, %v5401, %v5417
    %v5453 = vsel %vm468, %v5403, %v5419
    %v5454 = vsel %vm468, %v5405, %v5421
    %v5455 = vsel %vm468, %v5407, %v5423
    %v5456 = vsel %vm468, %v5377, %v5393
    %v5457 = vsel %vm468, %v5379, %v5395
    %v5458 = vsel %vm468, %v5381, %v5397
    %v5459 = vsel %vm468, %v5383, %v5399
    %v5460 = vsel %vm468, %v5385, %v5401
    %v5461 = vsel %vm468, %v5387, %v5403
    %v5462 = vsel %vm468, %v5389, %v5405
    %v5463 = vsel %vm468, %v5391, %v5407
    %v5464 = vsel %vm468, %v5361, %v5377
    %v5465 = vsel %vm468, %v5363, %v5379
    %v5466 = vsel %vm468, %v5365, %v5381
    %v5467 = vsel %vm468, %v5367, %v5383
    %v5468 = vsel %vm468, %v5369, %v5385
    %v5469 = vsel %vm468, %v5371, %v5387
    %v5470 = vsel %vm468, %v5373, %v5389
    %v5471 = vsel %vm468, %v5375, %v5391
    %v5472 = vsel %vm468, %v5345, %v5361
    %v5473 = vsel %vm468, %v5347, %v5363
    %v5474 = vsel %vm468, %v5349, %v5365
    %v5475 = vsel %vm468, %v5351, %v5367
    %v5476 = vsel %vm468, %v5353, %v5369
    %v5477 = vsel %vm468, %v5355, %v5371
    %v5478 = vsel %vm468, %v5357, %v5373
    %v5479 = vsel %vm468, %v5359, %v5375
    %v5480 = vsel %vm468, %v5329, %v5345
    %v5481 = vsel %vm468, %v5331, %v5347
    %v5482 = vsel %vm468, %v5333, %v5349
    %v5483 = vsel %vm468, %v5335, %v5351
    %v5484 = vsel %vm468, %v5337, %v5353
    %v5485 = vsel %vm468, %v5339, %v5355
    %v5486 = vsel %vm468, %v5341, %v5357
    %v5487 = vsel %vm468, %v5343, %v5359
    %v5488 = vsel %vm468, %v5313, %v5329
    %v5489 = vsel %vm468, %v5315, %v5331
    %v5490 = vsel %vm468, %v5317, %v5333
    %v5491 = vsel %vm468, %v5319, %v5335
    %v5492 = vsel %vm468, %v5321, %v5337
    %v5493 = vsel %vm468, %v5323, %v5339
    %v5494 = vsel %vm468, %v5325, %v5341
    %v5495 = vsel %vm468, %v5327, %v5343
    %v5496 = vsel %vm468, %v5425, %v5313
    %v5497 = vsel %vm468, %v5427, %v5315
    %v5498 = vsel %vm468, %v5429, %v5317
    %v5499 = vsel %vm468, %v5431, %v5319
    %v5500 = vsel %vm468, %v5433, %v5321
    %v5501 = vsel %vm468, %v5435, %v5323
    %v5502 = vsel %vm468, %v5437, %v5325
    %v5503 = vsel %vm468, %v5439, %v5327
    %v5504 = vmax.f32 %v5248, %v5488
    %v5505 = vmax.f32 %v5249, %v5480
    %v5506 = vmax.f32 %v5250, %v5472
    %v5507 = vmax.f32 %v5251, %v5464
    %v5508 = vmax.f32 %v5252, %v5456
    %v5509 = vmax.f32 %v5253, %v5448
    %v5510 = vmax.f32 %v5254, %v5440
    %v5511 = vmax.f32 %v5255, %v5496
    %v5512 = vmax.f32 %v5256, %v5489
    %v5513 = vmax.f32 %v5257, %v5481
    %v5514 = vmax.f32 %v5258, %v5473
    %v5515 = vmax.f32 %v5259, %v5465
    %v5516 = vmax.f32 %v5260, %v5457
    %v5517 = vmax.f32 %v5261, %v5449
    %v5518 = vmax.f32 %v5262, %v5441
    %v5519 = vmax.f32 %v5263, %v5497
    %v5520 = vmax.f32 %v5264, %v5490
    %v5521 = vmax.f32 %v5265, %v5482
    %v5522 = vmax.f32 %v5266, %v5474
    %v5523 = vmax.f32 %v5267, %v5466
    %v5524 = vmax.f32 %v5268, %v5458
    %v5525 = vmax.f32 %v5269, %v5450
    %v5526 = vmax.f32 %v5270, %v5442
    %v5527 = vmax.f32 %v5271, %v5498
    %v5528 = vmax.f32 %v5272, %v5491
    %v5529 = vmax.f32 %v5273, %v5483
    %v5530 = vmax.f32 %v5274, %v5475
    %v5531 = vmax.f32 %v5275, %v5467
    %v5532 = vmax.f32 %v5276, %v5459
    %v5533 = vmax.f32 %v5277, %v5451
    %v5534 = vmax.f32 %v5278, %v5443
    %v5535 = vmax.f32 %v5279, %v5499
    %v5536 = vmax.f32 %v5280, %v5492
    %v5537 = vmax.f32 %v5281, %v5484
    %v5538 = vmax.f32 %v5282, %v5476
    %v5539 = vmax.f32 %v5283, %v5468
    %v5540 = vmax.f32 %v5284, %v5460
    %v5541 = vmax.f32 %v5285, %v5452
    %v5542 = vmax.f32 %v5286, %v5444
    %v5543 = vmax.f32 %v5287, %v5500
    %v5544 = vmax.f32 %v5288, %v5493
    %v5545 = vmax.f32 %v5289, %v5485
    %v5546 = vmax.f32 %v5290, %v5477
    %v5547 = vmax.f32 %v5291, %v5469
    %v5548 = vmax.f32 %v5292, %v5461
    %v5549 = vmax.f32 %v5293, %v5453
    %v5550 = vmax.f32 %v5294, %v5445
    %v5551 = vmax.f32 %v5295, %v5501
    %v5552 = vmax.f32 %v5296, %v5494
    %v5553 = vmax.f32 %v5297, %v5486
    %v5554 = vmax.f32 %v5298, %v5478
    %v5555 = vmax.f32 %v5299, %v5470
    %v5556 = vmax.f32 %v5300, %v5462
    %v5557 = vmax.f32 %v5301, %v5454
    %v5558 = vmax.f32 %v5302, %v5446
    %v5559 = vmax.f32 %v5303, %v5502
    %v5560 = vmax.f32 %v5304, %v5495
    %v5561 = vmax.f32 %v5305, %v5487
    %v5562 = vmax.f32 %v5306, %v5479
    %v5563 = vmax.f32 %v5307, %v5471
    %v5564 = vmax.f32 %v5308, %v5463
    %v5565 = vmax.f32 %v5309, %v5455
    %v5566 = vmax.f32 %v5310, %v5447
    %v5567 = vmax.f32 %v5311, %v5503
    %v5568 = vpack.c.bf16 %v5512, %v5504
    %v5569 = vpack.c.bf16 %v5513, %v5505
    %v5570 = vpack.c.bf16 %v5514, %v5506
    %v5571 = vpack.c.bf16 %v5515, %v5507
    %v5572 = vpack.c.bf16 %v5516, %v5508
    %v5573 = vpack.c.bf16 %v5517, %v5509
    %v5574 = vpack.c.bf16 %v5518, %v5510
    %v5575 = vpack.c.bf16 %v5519, %v5511
    %v5576 = vpack.c.bf16 %v5528, %v5520
    %v5577 = vpack.c.bf16 %v5529, %v5521
    %v5578 = vpack.c.bf16 %v5530, %v5522
    %v5579 = vpack.c.bf16 %v5531, %v5523
    %v5580 = vpack.c.bf16 %v5532, %v5524
    %v5581 = vpack.c.bf16 %v5533, %v5525
    %v5582 = vpack.c.bf16 %v5534, %v5526
    %v5583 = vpack.c.bf16 %v5535, %v5527
    %v5584 = vpack.c.bf16 %v5544, %v5536
    %v5585 = vpack.c.bf16 %v5545, %v5537
    %v5586 = vpack.c.bf16 %v5546, %v5538
    %v5587 = vpack.c.bf16 %v5547, %v5539
    %v5588 = vpack.c.bf16 %v5548, %v5540
    %v5589 = vpack.c.bf16 %v5549, %v5541
    %v5590 = vpack.c.bf16 %v5550, %v5542
    %v5591 = vpack.c.bf16 %v5551, %v5543
    %v5592 = vpack.c.bf16 %v5560, %v5552
    %v5593 = vpack.c.bf16 %v5561, %v5553
    %v5594 = vpack.c.bf16 %v5562, %v5554
    %v5595 = vpack.c.bf16 %v5563, %v5555
    %v5596 = vpack.c.bf16 %v5564, %v5556
    %v5597 = vpack.c.bf16 %v5565, %v5557
    %v5598 = vpack.c.bf16 %v5566, %v5558
    %v5599 = vpack.c.bf16 %v5567, %v5559
    %v5600 = vld [vmem:[%s6] sm:$0xf]
    %v5601 = vld [vmem:[%s6 + $0x4] sm:$0xf]
    %v5602 = vld [vmem:[%s6 + $0x8] sm:$0xf]
    %v5603 = vld [vmem:[%s6 + $0xc] sm:$0xf]
    %v5604 = vld [vmem:[%s6 + $0x10] sm:$0xf]
    %v5605 = vld [vmem:[%s6 + $0x14] sm:$0xf]
    %v5606 = vld [vmem:[%s6 + $0x18] sm:$0xf]
    %v5607 = vld [vmem:[%s6 + $0x1c] sm:$0xf]
    %v5608 = vld [vmem:[%s6 + $0x20] sm:$0xf]
    %v5609 = vld [vmem:[%s6 + $0x24] sm:$0xf]
    %v5610 = vld [vmem:[%s6 + $0x28] sm:$0xf]
    %v5611 = vld [vmem:[%s6 + $0x2c] sm:$0xf]
    %v5612 = vld [vmem:[%s6 + $0x30] sm:$0xf]
    %v5613 = vld [vmem:[%s6 + $0x34] sm:$0xf]
    %v5614 = vld [vmem:[%s6 + $0x38] sm:$0xf]
    %v5615 = vld [vmem:[%s6 + $0x3c] sm:$0xf]
    %v5616 = vld [vmem:[%s6 + $0x40] sm:$0xf]
    %v5617 = vld [vmem:[%s6 + $0x44] sm:$0xf]
    %v5618 = vld [vmem:[%s6 + $0x48] sm:$0xf]
    %v5619 = vld [vmem:[%s6 + $0x4c] sm:$0xf]
    %v5620 = vld [vmem:[%s6 + $0x50] sm:$0xf]
    %v5621 = vld [vmem:[%s6 + $0x54] sm:$0xf]
    %v5622 = vld [vmem:[%s6 + $0x58] sm:$0xf]
    %v5623 = vld [vmem:[%s6 + $0x5c] sm:$0xf]
    %v5624 = vld [vmem:[%s6 + $0x60] sm:$0xf]
    %v5625 = vld [vmem:[%s6 + $0x64] sm:$0xf]
    %v5626 = vld [vmem:[%s6 + $0x68] sm:$0xf]
    %v5627 = vld [vmem:[%s6 + $0x6c] sm:$0xf]
    %v5628 = vld [vmem:[%s6 + $0x70] sm:$0xf]
    %v5629 = vld [vmem:[%s6 + $0x74] sm:$0xf]
    %v5630 = vld [vmem:[%s6 + $0x78] sm:$0xf]
    %v5631 = vld [vmem:[%s6 + $0x7c] sm:$0xf]
    %v5664 = vunpack.c.l.b16 %v5600
    %v5665 = vunpack.c.l.b16 %v5601
    %v5666 = vunpack.c.l.b16 %v5602
    %v5667 = vunpack.c.l.b16 %v5603
    %v5668 = vunpack.c.l.b16 %v5604
    %v5669 = vunpack.c.l.b16 %v5605
    %v5670 = vunpack.c.l.b16 %v5606
    %v5671 = vunpack.c.l.b16 %v5607
    %v5672 = vunpack.c.l.b16 %v5608
    %v5673 = vunpack.c.l.b16 %v5609
    %v5674 = vunpack.c.l.b16 %v5610
    %v5675 = vunpack.c.l.b16 %v5611
    %v5676 = vunpack.c.l.b16 %v5612
    %v5677 = vunpack.c.l.b16 %v5613
    %v5678 = vunpack.c.l.b16 %v5614
    %v5679 = vunpack.c.l.b16 %v5615
    %v5680 = vunpack.c.l.b16 %v5616
    %v5681 = vunpack.c.l.b16 %v5617
    %v5682 = vunpack.c.l.b16 %v5618
    %v5683 = vunpack.c.l.b16 %v5619
    %v5684 = vunpack.c.l.b16 %v5620
    %v5685 = vunpack.c.l.b16 %v5621
    %v5686 = vunpack.c.l.b16 %v5622
    %v5687 = vunpack.c.l.b16 %v5623
    %v5688 = vunpack.c.l.b16 %v5624
    %v5689 = vunpack.c.l.b16 %v5625
    %v5690 = vunpack.c.l.b16 %v5626
    %v5691 = vunpack.c.l.b16 %v5627
    %v5692 = vunpack.c.l.b16 %v5628
    %v5693 = vunpack.c.l.b16 %v5629
    %v5694 = vunpack.c.l.b16 %v5630
    %v5695 = vunpack.c.l.b16 %v5631
    %v5696 = vpack.c.b16 %v5665, %v5664
    %v5697 = vpack.c.b16 %v5667, %v5666
    %v5698 = vpack.c.b16 %v5669, %v5668
    %v5699 = vpack.c.b16 %v5671, %v5670
    %v5700 = vpack.c.b16 %v5673, %v5672
    %v5701 = vpack.c.b16 %v5675, %v5674
    %v5702 = vpack.c.b16 %v5677, %v5676
    %v5703 = vpack.c.b16 %v5679, %v5678
    %v5704 = vpack.c.b16 %v5681, %v5680
    %v5705 = vpack.c.b16 %v5683, %v5682
    %v5706 = vpack.c.b16 %v5685, %v5684
    %v5707 = vpack.c.b16 %v5687, %v5686
    %v5708 = vpack.c.b16 %v5689, %v5688
    %v5709 = vpack.c.b16 %v5691, %v5690
    %v5710 = vpack.c.b16 %v5693, %v5692
    %v5711 = vpack.c.b16 %v5695, %v5694
    %5728 = vmatprep.subr.bf16.mxu0 0
    %5729 = vmatpush1.bf16.msra.mxu0 %v5696
    %5730 = vmatprep.subr.bf16.mxu0 0
    %5731 = vmatpush1.bf16.msra.mxu0 %v5697
    %5732 = vmatprep.subr.bf16.mxu0 0
    %5733 = vmatpush1.bf16.msra.mxu0 %v5698
    %5734 = vmatprep.subr.bf16.mxu0 0
    %5735 = vmatpush1.bf16.msra.mxu0 %v5699
    %5736 = vmatprep.subr.bf16.mxu0 0
    %5737 = vmatpush1.bf16.msra.mxu0 %v5700
    %5738 = vmatprep.subr.bf16.mxu0 0
    %5739 = vmatpush1.bf16.msra.mxu0 %v5701
    %5740 = vmatprep.subr.bf16.mxu0 0
    %5741 = vmatpush1.bf16.msra.mxu0 %v5702
    %5742 = vmatprep.subr.bf16.mxu0 0
    %5743 = vmatpush1.bf16.msra.mxu0 %v5703
    %5744 = vmatprep.subr.bf16.mxu0 0
    %5745 = vmatpush1.bf16.msra.mxu0 %v5704
    %5746 = vmatprep.subr.bf16.mxu0 0
    %5747 = vmatpush1.bf16.msra.mxu0 %v5705
    %5748 = vmatprep.subr.bf16.mxu0 0
    %5749 = vmatpush1.bf16.msra.mxu0 %v5706
    %5750 = vmatprep.subr.bf16.mxu0 0
    %5751 = vmatpush1.bf16.msra.mxu0 %v5707
    %5752 = vmatprep.subr.bf16.mxu0 0
    %5753 = vmatpush1.bf16.msra.mxu0 %v5708
    %5754 = vmatprep.subr.bf16.mxu0 0
    %5755 = vmatpush1.bf16.msra.mxu0 %v5709
    %5756 = vmatprep.subr.bf16.mxu0 0
    %5757 = vmatpush1.bf16.msra.mxu0 %v5710
    %5758 = vmatprep.subr.bf16.mxu0 0
    %5759 = vmatpush1.bf16.msra.mxu0 %v5711
    %5760 = vmatprep.mubr.bf16.mxu0 %v5569
    %5761 = vmatmul.mubr.bf16.gmra.mrb[0].mxu0 %v5568
    %v5762 = vpop.f32.mrb[0].mxu0
    %v5763 = vadd.f32 0.0, %v5762
    %v5764 = vpop.f32.mrb[0].mxu0
    %v5765 = vpop.f32.mrb[0].mxu0
    %v5766 = vadd.f32 0.0, %v5765
    %v5767 = vpop.f32.mrb[0].mxu0
    %5768 = vmatprep.mubr.bf16.mxu0 %v5577
    %5769 = vmatmul.mubr.bf16.gmra.mrb[0].mxu0 %v5576
    %v5770 = vpop.f32.mrb[0].mxu0
    %v5771 = vadd.f32 0.0, %v5770
    %v5772 = vpop.f32.mrb[0].mxu0
    %v5773 = vpop.f32.mrb[0].mxu0
    %v5774 = vadd.f32 0.0, %v5773
    %v5775 = vpop.f32.mrb[0].mxu0
    %5776 = vmatprep.mubr.bf16.mxu0 %v5585
    %5777 = vmatmul.mubr.bf16.gmra.mrb[0].mxu0 %v5584
    %v5778 = vpop.f32.mrb[0].mxu0
    %v5779 = vadd.f32 0.0, %v5778
    %v5780 = vpop.f32.mrb[0].mxu0
    %v5781 = vpop.f32.mrb[0].mxu0
    %v5782 = vadd.f32 0.0, %v5781
    %v5783 = vpop.f32.mrb[0].mxu0
    %5784 = vmatprep.mubr.bf16.mxu0 %v5593
    %5785 = vmatmul.mubr.bf16.gmra.mrb[0].mxu0 %v5592
    %v5786 = vpop.f32.mrb[0].mxu0
    %v5787 = vadd.f32 0.0, %v5786
    %v5788 = vpop.f32.mrb[0].mxu0
    %v5789 = vpop.f32.mrb[0].mxu0
    %v5790 = vadd.f32 0.0, %v5789
    %v5791 = vpop.f32.mrb[0].mxu0
    %5792 = vdwg.mxu0
    %v5793 = vpack.c.bf16 %v5766, %v5763
    %v5794 = vpack.c.bf16 %v5774, %v5771
    %v5795 = vpack.c.bf16 %v5782, %v5779
    %v5796 = vpack.c.bf16 %v5790, %v5787
    %v5801 = vunpack.c.l.b16 %v5793
    %v5802 = vunpack.c.h.b16 %v5793
    %v5803 = vunpack.c.l.b16 %v5794
    %v5804 = vunpack.c.h.b16 %v5794
    %v5805 = vunpack.c.l.b16 %v5795
    %v5806 = vunpack.c.h.b16 %v5795
    %v5807 = vunpack.c.l.b16 %v5796
    %v5808 = vunpack.c.h.b16 %v5796
    %v5809 = vpack.c.b16 %v5801, %v5801
    %v5810 = vpack.c.b16 %v5802, %v5802
    %v5811 = vpack.c.b16 %v5803, %v5803
    %v5812 = vpack.c.b16 %v5804, %v5804
    %v5813 = vpack.c.b16 %v5805, %v5805
    %v5814 = vpack.c.b16 %v5806, %v5806
    %v5815 = vpack.c.b16 %v5807, %v5807
    %v5816 = vpack.c.b16 %v5808, %v5808
    %vm5825 = vcmask 519168
    %5826 = vst.msk [vmem:[%s7] sm:$0xf] %vm5825, %v5809
    %5827 = vst.msk [vmem:[%s7 + $0x4] sm:$0xf] %vm5825, %v5810
    %5828 = vst.msk [vmem:[%s7 + $0x8] sm:$0xf] %vm5825, %v5811
    %5829 = vst.msk [vmem:[%s7 + $0xc] sm:$0xf] %vm5825, %v5812
    %5830 = vst.msk [vmem:[%s7 + $0x10] sm:$0xf] %vm5825, %v5813
    %5831 = vst.msk [vmem:[%s7 + $0x14] sm:$0xf] %vm5825, %v5814
    %5832 = vst.msk [vmem:[%s7 + $0x18] sm:$0xf] %vm5825, %v5815
    %5833 = vst.msk [vmem:[%s7 + $0x1c] sm:$0xf] %vm5825, %v5816
    %5834 = vmatprep.subr.bf16.mxu0 0
    %5835 = vmatpush1.bf16.msra.mxu0 %v5696
    %5836 = vmatprep.subr.bf16.mxu0 0
    %5837 = vmatpush1.bf16.msra.mxu0 %v5697
    %5838 = vmatprep.subr.bf16.mxu0 0
    %5839 = vmatpush1.bf16.msra.mxu0 %v5698
    %5840 = vmatprep.subr.bf16.mxu0 0
    %5841 = vmatpush1.bf16.msra.mxu0 %v5699
    %5842 = vmatprep.subr.bf16.mxu0 0
    %5843 = vmatpush1.bf16.msra.mxu0 %v5700
    %5844 = vmatprep.subr.bf16.mxu0 0
    %5845 = vmatpush1.bf16.msra.mxu0 %v5701
    %5846 = vmatprep.subr.bf16.mxu0 0
    %5847 = vmatpush1.bf16.msra.mxu0 %v5702
    %5848 = vmatprep.subr.bf16.mxu0 0
    %5849 = vmatpush1.bf16.msra.mxu0 %v5703
    %5850 = vmatprep.subr.bf16.mxu0 0
    %5851 = vmatpush1.bf16.msra.mxu0 %v5704
    %5852 = vmatprep.subr.bf16.mxu0 0
    %5853 = vmatpush1.bf16.msra.mxu0 %v5705
    %5854 = vmatprep.subr.bf16.mxu0 0
    %5855 = vmatpush1.bf16.msra.mxu0 %v5706
    %5856 = vmatprep.subr.bf16.mxu0 0
    %5857 = vmatpush1.bf16.msra.mxu0 %v5707
    %5858 = vmatprep.subr.bf16.mxu0 0
    %5859 = vmatpush1.bf16.msra.mxu0 %v5708
    %5860 = vmatprep.subr.bf16.mxu0 0
    %5861 = vmatpush1.bf16.msra.mxu0 %v5709
    %5862 = vmatprep.subr.bf16.mxu0 0
    %5863 = vmatpush1.bf16.msra.mxu0 %v5710
    %5864 = vmatprep.subr.bf16.mxu0 0
    %5865 = vmatpush1.bf16.msra.mxu0 %v5711
    %5866 = vmatprep.mubr.bf16.mxu0 %v5571
    %5867 = vmatmul.mubr.bf16.gmra.mrb[0].mxu0 %v5570
    %v5868 = vpop.f32.mrb[0].mxu0
    %v5869 = vadd.f32 0.0, %v5868
    %v5870 = vpop.f32.mrb[0].mxu0
    %v5871 = vpop.f32.mrb[0].mxu0
    %v5872 = vadd.f32 0.0, %v5871
    %v5873 = vpop.f32.mrb[0].mxu0
    %5874 = vmatprep.mubr.bf16.mxu0 %v5579
    %5875 = vmatmul.mubr.bf16.gmra.mrb[0].mxu0 %v5578
    %v5876 = vpop.f32.mrb[0].mxu0
    %v5877 = vadd.f32 0.0, %v5876
    %v5878 = vpop.f32.mrb[0].mxu0
    %v5879 = vpop.f32.mrb[0].mxu0
    %v5880 = vadd.f32 0.0, %v5879
    %v5881 = vpop.f32.mrb[0].mxu0
    %5882 = vmatprep.mubr.bf16.mxu0 %v5587
    %5883 = vmatmul.mubr.bf16.gmra.mrb[0].mxu0 %v5586
    %v5884 = vpop.f32.mrb[0].mxu0
    %v5885 = vadd.f32 0.0, %v5884
    %v5886 = vpop.f32.mrb[0].mxu0
    %v5887 = vpop.f32.mrb[0].mxu0
    %v5888 = vadd.f32 0.0, %v5887
    %v5889 = vpop.f32.mrb[0].mxu0
    %5890 = vmatprep.mubr.bf16.mxu0 %v5595
    %5891 = vmatmul.mubr.bf16.gmra.mrb[0].mxu0 %v5594
    %v5892 = vpop.f32.mrb[0].mxu0
    %v5893 = vadd.f32 0.0, %v5892
    %v5894 = vpop.f32.mrb[0].mxu0
    %v5895 = vpop.f32.mrb[0].mxu0
    %v5896 = vadd.f32 0.0, %v5895
    %v5897 = vpop.f32.mrb[0].mxu0
    %5898 = vdwg.mxu0
    %v5899 = vpack.c.bf16 %v5872, %v5869
    %v5900 = vpack.c.bf16 %v5880, %v5877
    %v5901 = vpack.c.bf16 %v5888, %v5885
    %v5902 = vpack.c.bf16 %v5896, %v5893
    %v5907 = vunpack.c.l.b16 %v5899
    %v5908 = vunpack.c.h.b16 %v5899
    %v5909 = vunpack.c.l.b16 %v5900
    %v5910 = vunpack.c.h.b16 %v5900
    %v5911 = vunpack.c.l.b16 %v5901
    %v5912 = vunpack.c.h.b16 %v5901
    %v5913 = vunpack.c.l.b16 %v5902
    %v5914 = vunpack.c.h.b16 %v5902
    %v5915 = vpack.c.b16 %v5907, %v5907
    %v5916 = vpack.c.b16 %v5908, %v5908
    %v5917 = vpack.c.b16 %v5909, %v5909
    %v5918 = vpack.c.b16 %v5910, %v5910
    %v5919 = vpack.c.b16 %v5911, %v5911
    %v5920 = vpack.c.b16 %v5912, %v5912
    %v5921 = vpack.c.b16 %v5913, %v5913
    %v5922 = vpack.c.b16 %v5914, %v5914
    %s5931 = scalar_lea.vmem %s7, 32
    %5932 = vst.msk [vmem:[%s5931] sm:$0xf] %vm5825, %v5915
    %5933 = vst.msk [vmem:[%s5931 + $0x4] sm:$0xf] %vm5825, %v5916
    %5934 = vst.msk [vmem:[%s5931 + $0x8] sm:$0xf] %vm5825, %v5917
    %5935 = vst.msk [vmem:[%s5931 + $0xc] sm:$0xf] %vm5825, %v5918
    %5936 = vst.msk [vmem:[%s5931 + $0x10] sm:$0xf] %vm5825, %v5919
    %5937 = vst.msk [vmem:[%s5931 + $0x14] sm:$0xf] %vm5825, %v5920
    %5938 = vst.msk [vmem:[%s5931 + $0x18] sm:$0xf] %vm5825, %v5921
    %5939 = vst.msk [vmem:[%s5931 + $0x1c] sm:$0xf] %vm5825, %v5922
    %5940 = vmatprep.subr.bf16.mxu0 0
    %5941 = vmatpush1.bf16.msra.mxu0 %v5696
    %5942 = vmatprep.subr.bf16.mxu0 0
    %5943 = vmatpush1.bf16.msra.mxu0 %v5697
    %5944 = vmatprep.subr.bf16.mxu0 0
    %5945 = vmatpush1.bf16.msra.mxu0 %v5698
    %5946 = vmatprep.subr.bf16.mxu0 0
    %5947 = vmatpush1.bf16.msra.mxu0 %v5699
    %5948 = vmatprep.subr.bf16.mxu0 0
    %5949 = vmatpush1.bf16.msra.mxu0 %v5700
    %5950 = vmatprep.subr.bf16.mxu0 0
    %5951 = vmatpush1.bf16.msra.mxu0 %v5701
    %5952 = vmatprep.subr.bf16.mxu0 0
    %5953 = vmatpush1.bf16.msra.mxu0 %v5702
    %5954 = vmatprep.subr.bf16.mxu0 0
    %5955 = vmatpush1.bf16.msra.mxu0 %v5703
    %5956 = vmatprep.subr.bf16.mxu0 0
    %5957 = vmatpush1.bf16.msra.mxu0 %v5704
    %5958 = vmatprep.subr.bf16.mxu0 0
    %5959 = vmatpush1.bf16.msra.mxu0 %v5705
    %5960 = vmatprep.subr.bf16.mxu0 0
    %5961 = vmatpush1.bf16.msra.mxu0 %v5706
    %5962 = vmatprep.subr.bf16.mxu0 0
    %5963 = vmatpush1.bf16.msra.mxu0 %v5707
    %5964 = vmatprep.subr.bf16.mxu0 0
    %5965 = vmatpush1.bf16.msra.mxu0 %v5708
    %5966 = vmatprep.subr.bf16.mxu0 0
    %5967 = vmatpush1.bf16.msra.mxu0 %v5709
    %5968 = vmatprep.subr.bf16.mxu0 0
    %5969 = vmatpush1.bf16.msra.mxu0 %v5710
    %5970 = vmatprep.subr.bf16.mxu0 0
    %5971 = vmatpush1.bf16.msra.mxu0 %v5711
    %5972 = vmatprep.mubr.bf16.mxu0 %v5573
    %5973 = vmatmul.mubr.bf16.gmra.mrb[0].mxu0 %v5572
    %v5974 = vpop.f32.mrb[0].mxu0
    %v5975 = vadd.f32 0.0, %v5974
    %v5976 = vpop.f32.mrb[0].mxu0
    %v5977 = vpop.f32.mrb[0].mxu0
    %v5978 = vadd.f32 0.0, %v5977
    %v5979 = vpop.f32.mrb[0].mxu0
    %5980 = vmatprep.mubr.bf16.mxu0 %v5581
    %5981 = vmatmul.mubr.bf16.gmra.mrb[0].mxu0 %v5580
    %v5982 = vpop.f32.mrb[0].mxu0
    %v5983 = vadd.f32 0.0, %v5982
    %v5984 = vpop.f32.mrb[0].mxu0
    %v5985 = vpop.f32.mrb[0].mxu0
    %v5986 = vadd.f32 0.0, %v5985
    %v5987 = vpop.f32.mrb[0].mxu0
    %5988 = vmatprep.mubr.bf16.mxu0 %v5589
    %5989 = vmatmul.mubr.bf16.gmra.mrb[0].mxu0 %v5588
    %v5990 = vpop.f32.mrb[0].mxu0
    %v5991 = vadd.f32 0.0, %v5990
    %v5992 = vpop.f32.mrb[0].mxu0
    %v5993 = vpop.f32.mrb[0].mxu0
    %v5994 = vadd.f32 0.0, %v5993
    %v5995 = vpop.f32.mrb[0].mxu0
    %5996 = vmatprep.mubr.bf16.mxu0 %v5597
    %5997 = vmatmul.mubr.bf16.gmra.mrb[0].mxu0 %v5596
    %v5998 = vpop.f32.mrb[0].mxu0
    %v5999 = vadd.f32 0.0, %v5998
    %v6000 = vpop.f32.mrb[0].mxu0
    %v6001 = vpop.f32.mrb[0].mxu0
    %v6002 = vadd.f32 0.0, %v6001
    %v6003 = vpop.f32.mrb[0].mxu0
    %6004 = vdwg.mxu0
    %v6005 = vpack.c.bf16 %v5978, %v5975
    %v6006 = vpack.c.bf16 %v5986, %v5983
    %v6007 = vpack.c.bf16 %v5994, %v5991
    %v6008 = vpack.c.bf16 %v6002, %v5999
    %v6013 = vunpack.c.l.b16 %v6005
    %v6014 = vunpack.c.h.b16 %v6005
    %v6015 = vunpack.c.l.b16 %v6006
    %v6016 = vunpack.c.h.b16 %v6006
    %v6017 = vunpack.c.l.b16 %v6007
    %v6018 = vunpack.c.h.b16 %v6007
    %v6019 = vunpack.c.l.b16 %v6008
    %v6020 = vunpack.c.h.b16 %v6008
    %v6021 = vpack.c.b16 %v6013, %v6013
    %v6022 = vpack.c.b16 %v6014, %v6014
    %v6023 = vpack.c.b16 %v6015, %v6015
    %v6024 = vpack.c.b16 %v6016, %v6016
    %v6025 = vpack.c.b16 %v6017, %v6017
    %v6026 = vpack.c.b16 %v6018, %v6018
    %v6027 = vpack.c.b16 %v6019, %v6019
    %v6028 = vpack.c.b16 %v6020, %v6020
    %s6037 = scalar_lea.vmem %s7, 64
    %6038 = vst.msk [vmem:[%s6037] sm:$0xf] %vm5825, %v6021
    %6039 = vst.msk [vmem:[%s6037 + $0x4] sm:$0xf] %vm5825, %v6022
    %6040 = vst.msk [vmem:[%s6037 + $0x8] sm:$0xf] %vm5825, %v6023
    %6041 = vst.msk [vmem:[%s6037 + $0xc] sm:$0xf] %vm5825, %v6024
    %6042 = vst.msk [vmem:[%s6037 + $0x10] sm:$0xf] %vm5825, %v6025
    %6043 = vst.msk [vmem:[%s6037 + $0x14] sm:$0xf] %vm5825, %v6026
    %6044 = vst.msk [vmem:[%s6037 + $0x18] sm:$0xf] %vm5825, %v6027
    %6045 = vst.msk [vmem:[%s6037 + $0x1c] sm:$0xf] %vm5825, %v6028
    %6046 = vmatprep.subr.bf16.mxu0 0
    %6047 = vmatpush1.bf16.msra.mxu0 %v5696
    %6048 = vmatprep.subr.bf16.mxu0 0
    %6049 = vmatpush1.bf16.msra.mxu0 %v5697
    %6050 = vmatprep.subr.bf16.mxu0 0
    %6051 = vmatpush1.bf16.msra.mxu0 %v5698
    %6052 = vmatprep.subr.bf16.mxu0 0
    %6053 = vmatpush1.bf16.msra.mxu0 %v5699
    %6054 = vmatprep.subr.bf16.mxu0 0
    %6055 = vmatpush1.bf16.msra.mxu0 %v5700
    %6056 = vmatprep.subr.bf16.mxu0 0
    %6057 = vmatpush1.bf16.msra.mxu0 %v5701
    %6058 = vmatprep.subr.bf16.mxu0 0
    %6059 = vmatpush1.bf16.msra.mxu0 %v5702
    %6060 = vmatprep.subr.bf16.mxu0 0
    %6061 = vmatpush1.bf16.msra.mxu0 %v5703
    %6062 = vmatprep.subr.bf16.mxu0 0
    %6063 = vmatpush1.bf16.msra.mxu0 %v5704
    %6064 = vmatprep.subr.bf16.mxu0 0
    %6065 = vmatpush1.bf16.msra.mxu0 %v5705
    %6066 = vmatprep.subr.bf16.mxu0 0
    %6067 = vmatpush1.bf16.msra.mxu0 %v5706
    %6068 = vmatprep.subr.bf16.mxu0 0
    %6069 = vmatpush1.bf16.msra.mxu0 %v5707
    %6070 = vmatprep.subr.bf16.mxu0 0
    %6071 = vmatpush1.bf16.msra.mxu0 %v5708
    %6072 = vmatprep.subr.bf16.mxu0 0
    %6073 = vmatpush1.bf16.msra.mxu0 %v5709
    %6074 = vmatprep.subr.bf16.mxu0 0
    %6075 = vmatpush1.bf16.msra.mxu0 %v5710
    %6076 = vmatprep.subr.bf16.mxu0 0
    %6077 = vmatpush1.bf16.msra.mxu0 %v5711
    %6078 = vmatprep.mubr.bf16.mxu0 %v5575
    %6079 = vmatmul.mubr.bf16.gmra.mrb[0].mxu0 %v5574
    %v6080 = vpop.f32.mrb[0].mxu0
    %v6081 = vadd.f32 0.0, %v6080
    %v6082 = vpop.f32.mrb[0].mxu0
    %v6083 = vpop.f32.mrb[0].mxu0
    %v6084 = vadd.f32 0.0, %v6083
    %v6085 = vpop.f32.mrb[0].mxu0
    %6086 = vmatprep.mubr.bf16.mxu0 %v5583
    %6087 = vmatmul.mubr.bf16.gmra.mrb[0].mxu0 %v5582
    %v6088 = vpop.f32.mrb[0].mxu0
    %v6089 = vadd.f32 0.0, %v6088
    %v6090 = vpop.f32.mrb[0].mxu0
    %v6091 = vpop.f32.mrb[0].mxu0
    %v6092 = vadd.f32 0.0, %v6091
    %v6093 = vpop.f32.mrb[0].mxu0
    %6094 = vmatprep.mubr.bf16.mxu0 %v5591
    %6095 = vmatmul.mubr.bf16.gmra.mrb[0].mxu0 %v5590
    %v6096 = vpop.f32.mrb[0].mxu0
    %v6097 = vadd.f32 0.0, %v6096
    %v6098 = vpop.f32.mrb[0].mxu0
    %v6099 = vpop.f32.mrb[0].mxu0
    %v6100 = vadd.f32 0.0, %v6099
    %v6101 = vpop.f32.mrb[0].mxu0
    %6102 = vmatprep.mubr.bf16.mxu0 %v5599
    %6103 = vmatmul.mubr.bf16.gmra.mrb[0].mxu0 %v5598
    %v6104 = vpop.f32.mrb[0].mxu0
    %v6105 = vadd.f32 0.0, %v6104
    %v6106 = vpop.f32.mrb[0].mxu0
    %v6107 = vpop.f32.mrb[0].mxu0
    %v6108 = vadd.f32 0.0, %v6107
    %v6109 = vpop.f32.mrb[0].mxu0
    %6110 = vdwg.mxu0
    %v6111 = vpack.c.bf16 %v6084, %v6081
    %v6112 = vpack.c.bf16 %v6092, %v6089
    %v6113 = vpack.c.bf16 %v6100, %v6097
    %v6114 = vpack.c.bf16 %v6108, %v6105
    %v6119 = vunpack.c.l.b16 %v6111
    %v6120 = vunpack.c.h.b16 %v6111
    %v6121 = vunpack.c.l.b16 %v6112
    %v6122 = vunpack.c.h.b16 %v6112
    %v6123 = vunpack.c.l.b16 %v6113
    %v6124 = vunpack.c.h.b16 %v6113
    %v6125 = vunpack.c.l.b16 %v6114
    %v6126 = vunpack.c.h.b16 %v6114
    %v6127 = vpack.c.b16 %v6119, %v6119
    %v6128 = vpack.c.b16 %v6120, %v6120
    %v6129 = vpack.c.b16 %v6121, %v6121
    %v6130 = vpack.c.b16 %v6122, %v6122
    %v6131 = vpack.c.b16 %v6123, %v6123
    %v6132 = vpack.c.b16 %v6124, %v6124
    %v6133 = vpack.c.b16 %v6125, %v6125
    %v6134 = vpack.c.b16 %v6126, %v6126
    %s6143 = scalar_lea.vmem %s7, 96
    %6144 = vst.msk [vmem:[%s6143] sm:$0xf] %vm5825, %v6127
    %6145 = vst.msk [vmem:[%s6143 + $0x4] sm:$0xf] %vm5825, %v6128
    %6146 = vst.msk [vmem:[%s6143 + $0x8] sm:$0xf] %vm5825, %v6129
    %6147 = vst.msk [vmem:[%s6143 + $0xc] sm:$0xf] %vm5825, %v6130
    %6148 = vst.msk [vmem:[%s6143 + $0x10] sm:$0xf] %vm5825, %v6131
    %6149 = vst.msk [vmem:[%s6143 + $0x14] sm:$0xf] %vm5825, %v6132
    %6150 = vst.msk [vmem:[%s6143 + $0x18] sm:$0xf] %vm5825, %v6133
    %6151 = vst.msk [vmem:[%s6143 + $0x1c] sm:$0xf] %vm5825, %v6134
    // Predicated region
    $region38: #{lenet5_forward.2} parent=1 // pred_check
      _
    $region39: #{lenet5_forward.2} parent=1 // pred_check_branch
      %6153 = sbr.rel (0) target = $region41
    $region40: #{lenet5_forward.2} parent=1 // pred_region
      _
    $region41: #{lenet5_forward.2} parent=1 // pred_fallthru
      _
    // Predicated region
    $region42: #{lenet5_forward.2} parent=1 // pred_check
      _
    $region43: #{lenet5_forward.2} parent=1 // pred_check_branch
      %6155 = sbr.rel (0) target = $region45
    $region44: #{lenet5_forward.2} parent=1 // pred_region
      _
    $region45: #{lenet5_forward.2} parent=1 // pred_fallthru
      _
    %6156 = vsyncpa [#allocation3], 1
    %6157 = vsyncpa [#allocation5], 1

// kernel: lenet5_forward.3
$region0: #{lenet5_forward.3}
  #allocation0 [shape = 'u32[]', space=smem, size = 0x4, offset = 0x4, fixed_abs, tag = 'smem constant byte address 0x4 - core index']
  #allocation1 [shape = 'u32[144,128]{1,0:T(1,128)}', space=vmem, size = 0x12000, scoped, tag = 'internal scratch']
  %s0 = inlined_call_operand.vmem [shape: bf16[4,4096], index: 0, kind: input, shape index: {}]
  %s1 = inlined_call_operand.hbm [shape: bf16[4096,256], index: 1, kind: input, shape index: {}]
  %s2 = inlined_call_operand.hbm [shape: f32[1,256], index: 2, kind: input, shape index: {}]
  %s3 = inlined_call_operand.hbm [shape: bf16[256,256], index: 3, kind: input, shape index: {}]
  %s4 = inlined_call_operand.hbm [shape: f32[1,256], index: 4, kind: input, shape index: {}]
  %s5 = inlined_call_operand.hbm [shape: bf16[256,128], index: 5, kind: input, shape index: {}]
  %s6 = inlined_call_operand.hbm [shape: f32[1,128], index: 6, kind: input, shape index: {}]
  %s7 = inlined_call_operand.hbm [shape: f32[4,128], index: 7, kind: output, shape index: {}]
  %s8 = sld [smem:[#allocation0]]
  $region62: #{lenet5_forward.3} parent=0
    _
  %s10 = ssub.s32 1, %s8
  %s11 = scalar_select 0, %s10, %s8
  $region1: #{lenet5_forward.3} parent=0
    #allocation2 [shape = 'u8[2097152]{0}', space=vmem, size = 0x200000, scoped, tag = 'input window, operand 1, single buffered']
    #allocation3 [shape = 's32[1]{0}', space=sflag, size = 0x4, scoped, tag = 'scoped memory for lenet5_forward.3']
    #allocation4 [shape = 's32[1]{0}', space=sflag, size = 0x4, scoped, tag = 'scoped memory for lenet5_forward.3']
    #allocation5 [shape = 'u8[1024]{0}', space=vmem, size = 0x400, scoped, tag = 'input window, operand 2, single buffered']
    #allocation6 [shape = 's32[1]{0}', space=sflag, size = 0x4, scoped, tag = 'scoped memory for lenet5_forward.3']
    #allocation7 [shape = 'u8[131072]{0}', space=vmem, size = 0x20000, scoped, tag = 'input window, operand 3, single buffered']
    #allocation8 [shape = 'u8[1024]{0}', space=vmem, size = 0x400, scoped, tag = 'input window, operand 4, single buffered']
    #allocation9 [shape = 's32[1]{0}', space=sflag, size = 0x4, scoped, tag = 'scoped memory for lenet5_forward.3']
    #allocation10 [shape = 'u8[65536]{0}', space=vmem, size = 0x10000, scoped, tag = 'input window, operand 5, single buffered']
    #allocation11 [shape = 'u8[512]{0}', space=vmem, size = 0x400, scoped, tag = 'input window, operand 6, single buffered']
    #allocation12 [shape = 's32[1]{0}', space=sflag, size = 0x4, scoped, tag = 'scoped memory for lenet5_forward.3']
    #allocation13 [shape = 'u8[2048]{0}', space=vmem, size = 0x800, scoped, tag = 'output window, operand 0, single buffered']
    %12 = vsyncpa [#allocation3], 0
    %13 = vsyncpa [#allocation6], 0
    %14 = vsyncpa [#allocation9], 0
    %15 = vsyncpa [#allocation12], 0
    %16 = vsyncpa [#allocation4], 0
    // Predicated region
    $region2: #{lenet5_forward.3} parent=1 // pred_check
      _
    $region3: #{lenet5_forward.3} parent=1 // pred_check_branch
      %18 = sbr.rel (0) target = $region5
    $region4: #{lenet5_forward.3} parent=1 // pred_region
      _
    $region5: #{lenet5_forward.3} parent=1 // pred_fallthru
      _
    // Predicated region
    $region6: #{lenet5_forward.3} parent=1 // pred_check
      _
    $region7: #{lenet5_forward.3} parent=1 // pred_check_branch
      %20 = sbr.rel (0) target = $region9
    $region8: #{lenet5_forward.3} parent=1 // pred_region
      %s22 = ssub.s32 65536, 65536
      %23 = vsyncadd [#allocation3], %s22
      %s24 = sshll.u32 [#allocation2], 4
      %s25 = int_to_ptr.vmem [resolvable:$true] %s24
      %30 = dma.hbm_to_vmem [thread:$0]  %s1, 65536, %s25, [#allocation3], 128, 128, 8
    $region9: #{lenet5_forward.3} parent=1 // pred_fallthru
      _
    // Predicated region
    $region10: #{lenet5_forward.3} parent=1 // pred_check
      _
    $region11: #{lenet5_forward.3} parent=1 // pred_check_branch
      %32 = sbr.rel (0) target = $region13
    $region12: #{lenet5_forward.3} parent=1 // pred_region
      %s34 = ssub.s32 32, 32
      %35 = vsyncadd [#allocation6], %s34
      %s37 = sshll.u32 [#allocation5], 4
      %s38 = int_to_ptr.vmem [resolvable:$true] %s37
      %40 = dma.hbm_to_vmem [thread:$0]  %s2, 32, %s38, [#allocation6]
    $region13: #{lenet5_forward.3} parent=1 // pred_fallthru
      _
    // Predicated region
    $region14: #{lenet5_forward.3} parent=1 // pred_check
      _
    $region15: #{lenet5_forward.3} parent=1 // pred_check_branch
      %42 = sbr.rel (0) target = $region17
    $region16: #{lenet5_forward.3} parent=1 // pred_region
      %s44 = ssub.s32 4096, 4096
      %45 = vsyncadd [#allocation6], %s44
      %s46 = sshll.u32 [#allocation7], 4
      %s47 = int_to_ptr.vmem [resolvable:$true] %s46
      %52 = dma.hbm_to_vmem [thread:$0]  %s3, 4096, %s47, [#allocation6], 128, 128, 8
    $region17: #{lenet5_forward.3} parent=1 // pred_fallthru
      _
    // Predicated region
    $region18: #{lenet5_forward.3} parent=1 // pred_check
      _
    $region19: #{lenet5_forward.3} parent=1 // pred_check_branch
      %54 = sbr.rel (0) target = $region21
    $region20: #{lenet5_forward.3} parent=1 // pred_region
      %s56 = ssub.s32 32, 32
      %57 = vsyncadd [#allocation9], %s56
      %s59 = sshll.u32 [#allocation8], 4
      %s60 = int_to_ptr.vmem [resolvable:$true] %s59
      %62 = dma.hbm_to_vmem [thread:$0]  %s4, 32, %s60, [#allocation9]
    $region21: #{lenet5_forward.3} parent=1 // pred_fallthru
      _
    // Predicated region
    $region22: #{lenet5_forward.3} parent=1 // pred_check
      _
    $region23: #{lenet5_forward.3} parent=1 // pred_check_branch
      %64 = sbr.rel (0) target = $region25
    $region24: #{lenet5_forward.3} parent=1 // pred_region
      %s66 = ssub.s32 2048, 2048
      %67 = vsyncadd [#allocation9], %s66
      %s68 = sshll.u32 [#allocation10], 4
      %s69 = int_to_ptr.vmem [resolvable:$true] %s68
      %74 = dma.hbm_to_vmem [thread:$0]  %s5, 2048, %s69, [#allocation9], 64, 64, 4
    $region25: #{lenet5_forward.3} parent=1 // pred_fallthru
      _
    // Predicated region
    $region26: #{lenet5_forward.3} parent=1 // pred_check
      _
    $region27: #{lenet5_forward.3} parent=1 // pred_check_branch
      %76 = sbr.rel (0) target = $region29
    $region28: #{lenet5_forward.3} parent=1 // pred_region
      %s78 = ssub.s32 16, 16
      %79 = vsyncadd [#allocation12], %s78
      %s81 = sshll.u32 [#allocation11], 4
      %s82 = int_to_ptr.vmem [resolvable:$true] %s81
      %84 = dma.hbm_to_vmem [thread:$0]  %s6, 16, %s82, [#allocation12]
    $region29: #{lenet5_forward.3} parent=1 // pred_fallthru
      _
    // Predicated region
    $region30: #{lenet5_forward.3} parent=1 // pred_check
      _
    $region31: #{lenet5_forward.3} parent=1 // pred_check_branch
      %86 = sbr.rel (0) target = $region33
    $region32: #{lenet5_forward.3} parent=1 // pred_region
      %87 = dma.done [#allocation3], 65536
    $region33: #{lenet5_forward.3} parent=1 // pred_fallthru
      _
    // Predicated region
    $region34: #{lenet5_forward.3} parent=1 // pred_check
      _
    $region35: #{lenet5_forward.3} parent=1 // pred_check_branch
      %89 = sbr.rel (0) target = $region37
    $region36: #{lenet5_forward.3} parent=1 // pred_region
      %90 = dma.done [#allocation6], 32
    $region37: #{lenet5_forward.3} parent=1 // pred_fallthru
      _
    // Predicated region
    $region38: #{lenet5_forward.3} parent=1 // pred_check
      _
    $region39: #{lenet5_forward.3} parent=1 // pred_check_branch
      %92 = sbr.rel (0) target = $region41
    $region40: #{lenet5_forward.3} parent=1 // pred_region
      %93 = dma.done [#allocation6], 4096
    $region41: #{lenet5_forward.3} parent=1 // pred_fallthru
      _
    // Predicated region
    $region42: #{lenet5_forward.3} parent=1 // pred_check
      _
    $region43: #{lenet5_forward.3} parent=1 // pred_check_branch
      %95 = sbr.rel (0) target = $region45
    $region44: #{lenet5_forward.3} parent=1 // pred_region
      %96 = dma.done [#allocation9], 32
    $region45: #{lenet5_forward.3} parent=1 // pred_fallthru
      _
    // Predicated region
    $region46: #{lenet5_forward.3} parent=1 // pred_check
      _
    $region47: #{lenet5_forward.3} parent=1 // pred_check_branch
      %98 = sbr.rel (0) target = $region49
    $region48: #{lenet5_forward.3} parent=1 // pred_region
      %99 = dma.done [#allocation9], 2048
    $region49: #{lenet5_forward.3} parent=1 // pred_fallthru
      _
    // Predicated region
    $region50: #{lenet5_forward.3} parent=1 // pred_check
      _
    $region51: #{lenet5_forward.3} parent=1 // pred_check_branch
      %101 = sbr.rel (0) target = $region53
    $region52: #{lenet5_forward.3} parent=1 // pred_region
      %102 = dma.done [#allocation12], 16
    $region53: #{lenet5_forward.3} parent=1 // pred_fallthru
      _
    %v104 = vld [vmem:[%s0] sm:$0xff]
    %v105 = vld [vmem:[%s0 + $0x8] sm:$0xff]
    %v106 = vld [vmem:[%s0 + $0x10] sm:$0xff]
    %v107 = vld [vmem:[%s0 + $0x18] sm:$0xff]
    %v108 = vld [vmem:[%s0 + $0x20] sm:$0xff]
    %v109 = vld [vmem:[%s0 + $0x28] sm:$0xff]
    %v110 = vld [vmem:[%s0 + $0x30] sm:$0xff]
    %v111 = vld [vmem:[%s0 + $0x38] sm:$0xff]
    %v112 = vld [vmem:[#allocation2] sm:$0xff]
    %v113 = vld [vmem:[#allocation2 + $0x8] sm:$0xff]
    %v114 = vld [vmem:[#allocation2 + $0x10] sm:$0xff]
    %v115 = vld [vmem:[#allocation2 + $0x18] sm:$0xff]
    %v116 = vld [vmem:[#allocation2 + $0x20] sm:$0xff]
    %v117 = vld [vmem:[#allocation2 + $0x28] sm:$0xff]
    %v118 = vld [vmem:[#allocation2 + $0x30] sm:$0xff]
    %v119 = vld [vmem:[#allocation2 + $0x38] sm:$0xff]
    %v120 = vld [vmem:[#allocation2 + $0x40] sm:$0xff]
    %v121 = vld [vmem:[#allocation2 + $0x48] sm:$0xff]
    %v122 = vld [vmem:[#allocation2 + $0x50] sm:$0xff]
    %v123 = vld [vmem:[#allocation2 + $0x58] sm:$0xff]
    %v124 = vld [vmem:[#allocation2 + $0x60] sm:$0xff]
    %v125 = vld [vmem:[#allocation2 + $0x68] sm:$0xff]
    %v126 = vld [vmem:[#allocation2 + $0x70] sm:$0xff]
    %v127 = vld [vmem:[#allocation2 + $0x78] sm:$0xff]
    %v128 = vld [vmem:[#allocation2 + $0x80] sm:$0xff]
    %v129 = vld [vmem:[#allocation2 + $0x88] sm:$0xff]
    %v130 = vld [vmem:[#allocation2 + $0x90] sm:$0xff]
    %v131 = vld [vmem:[#allocation2 + $0x98] sm:$0xff]
    %v132 = vld [vmem:[#allocation2 + $0xa0] sm:$0xff]
    %v133 = vld [vmem:[#allocation2 + $0xa8] sm:$0xff]
    %v134 = vld [vmem:[#allocation2 + $0xb0] sm:$0xff]
    %v135 = vld [vmem:[#allocation2 + $0xb8] sm:$0xff]
    %v136 = vld [vmem:[#allocation2 + $0xc0] sm:$0xff]
    %v137 = vld [vmem:[#allocation2 + $0xc8] sm:$0xff]
    %v138 = vld [vmem:[#allocation2 + $0xd0] sm:$0xff]
    %v139 = vld [vmem:[#allocation2 + $0xd8] sm:$0xff]
    %v140 = vld [vmem:[#allocation2 + $0xe0] sm:$0xff]
    %v141 = vld [vmem:[#allocation2 + $0xe8] sm:$0xff]
    %v142 = vld [vmem:[#allocation2 + $0xf0] sm:$0xff]
    %v143 = vld [vmem:[#allocation2 + $0xf8] sm:$0xff]
    %v144 = vld [vmem:[#allocation2 + $0x100] sm:$0xff]
    %v145 = vld [vmem:[#allocation2 + $0x108] sm:$0xff]
    %v146 = vld [vmem:[#allocation2 + $0x110] sm:$0xff]
    %v147 = vld [vmem:[#allocation2 + $0x118] sm:$0xff]
    %v148 = vld [vmem:[#allocation2 + $0x120] sm:$0xff]
    %v149 = vld [vmem:[#allocation2 + $0x128] sm:$0xff]
    %v150 = vld [vmem:[#allocation2 + $0x130] sm:$0xff]
    %v151 = vld [vmem:[#allocation2 + $0x138] sm:$0xff]
    %v152 = vld [vmem:[#allocation2 + $0x140] sm:$0xff]
    %v153 = vld [vmem:[#allocation2 + $0x148] sm:$0xff]
    %v154 = vld [vmem:[#allocation2 + $0x150] sm:$0xff]
    %v155 = vld [vmem:[#allocation2 + $0x158] sm:$0xff]
    %v156 = vld [vmem:[#allocation2 + $0x160] sm:$0xff]
    %v157 = vld [vmem:[#allocation2 + $0x168] sm:$0xff]
    %v158 = vld [vmem:[#allocation2 + $0x170] sm:$0xff]
    %v159 = vld [vmem:[#allocation2 + $0x178] sm:$0xff]
    %v160 = vld [vmem:[#allocation2 + $0x180] sm:$0xff]
    %v161 = vld [vmem:[#allocation2 + $0x188] sm:$0xff]
    %v162 = vld [vmem:[#allocation2 + $0x190] sm:$0xff]
    %v163 = vld [vmem:[#allocation2 + $0x198] sm:$0xff]
    %v164 = vld [vmem:[#allocation2 + $0x1a0] sm:$0xff]
    %v165 = vld [vmem:[#allocation2 + $0x1a8] sm:$0xff]
    %v166 = vld [vmem:[#allocation2 + $0x1b0] sm:$0xff]
    %v167 = vld [vmem:[#allocation2 + $0x1b8] sm:$0xff]
    %v168 = vld [vmem:[#allocation2 + $0x1c0] sm:$0xff]
    %v169 = vld [vmem:[#allocation2 + $0x1c8] sm:$0xff]
    %v170 = vld [vmem:[#allocation2 + $0x1d0] sm:$0xff]
    %v171 = vld [vmem:[#allocation2 + $0x1d8] sm:$0xff]
    %v172 = vld [vmem:[#allocation2 + $0x1e0] sm:$0xff]
    %v173 = vld [vmem:[#allocation2 + $0x1e8] sm:$0xff]
    %v174 = vld [vmem:[#allocation2 + $0x1f0] sm:$0xff]
    %v175 = vld [vmem:[#allocation2 + $0x1f8] sm:$0xff]
    %v176 = vld [vmem:[#allocation2 + $0x200] sm:$0xff]
    %v177 = vld [vmem:[#allocation2 + $0x208] sm:$0xff]
    %v178 = vld [vmem:[#allocation2 + $0x210] sm:$0xff]
    %v179 = vld [vmem:[#allocation2 + $0x218] sm:$0xff]
    %v180 = vld [vmem:[#allocation2 + $0x220] sm:$0xff]
    %v181 = vld [vmem:[#allocation2 + $0x228] sm:$0xff]
    %v182 = vld [vmem:[#allocation2 + $0x230] sm:$0xff]
    %v183 = vld [vmem:[#allocation2 + $0x238] sm:$0xff]
    %v184 = vld [vmem:[#allocation2 + $0x240] sm:$0xff]
    %v185 = vld [vmem:[#allocation2 + $0x248] sm:$0xff]
    %v186 = vld [vmem:[#allocation2 + $0x250] sm:$0xff]
    %v187 = vld [vmem:[#allocation2 + $0x258] sm:$0xff]
    %v188 = vld [vmem:[#allocation2 + $0x260] sm:$0xff]
    %v189 = vld [vmem:[#allocation2 + $0x268] sm:$0xff]
    %v190 = vld [vmem:[#allocation2 + $0x270] sm:$0xff]
    %v191 = vld [vmem:[#allocation2 + $0x278] sm:$0xff]
    %v192 = vld [vmem:[#allocation2 + $0x280] sm:$0xff]
    %v193 = vld [vmem:[#allocation2 + $0x288] sm:$0xff]
    %v194 = vld [vmem:[#allocation2 + $0x290] sm:$0xff]
    %v195 = vld [vmem:[#allocation2 + $0x298] sm:$0xff]
    %v196 = vld [vmem:[#allocation2 + $0x2a0] sm:$0xff]
    %v197 = vld [vmem:[#allocation2 + $0x2a8] sm:$0xff]
    %v198 = vld [vmem:[#allocation2 + $0x2b0] sm:$0xff]
    %v199 = vld [vmem:[#allocation2 + $0x2b8] sm:$0xff]
    %v200 = vld [vmem:[#allocation2 + $0x2c0] sm:$0xff]
    %v201 = vld [vmem:[#allocation2 + $0x2c8] sm:$0xff]
    %v202 = vld [vmem:[#allocation2 + $0x2d0] sm:$0xff]
    %v203 = vld [vmem:[#allocation2 + $0x2d8] sm:$0xff]
    %v204 = vld [vmem:[#allocation2 + $0x2e0] sm:$0xff]
    %v205 = vld [vmem:[#allocation2 + $0x2e8] sm:$0xff]
    %v206 = vld [vmem:[#allocation2 + $0x2f0] sm:$0xff]
    %v207 = vld [vmem:[#allocation2 + $0x2f8] sm:$0xff]
    %v208 = vld [vmem:[#allocation2 + $0x300] sm:$0xff]
    %v209 = vld [vmem:[#allocation2 + $0x308] sm:$0xff]
    %v210 = vld [vmem:[#allocation2 + $0x310] sm:$0xff]
    %v211 = vld [vmem:[#allocation2 + $0x318] sm:$0xff]
    %v212 = vld [vmem:[#allocation2 + $0x320] sm:$0xff]
    %v213 = vld [vmem:[#allocation2 + $0x328] sm:$0xff]
    %v214 = vld [vmem:[#allocation2 + $0x330] sm:$0xff]
    %v215 = vld [vmem:[#allocation2 + $0x338] sm:$0xff]
    %v216 = vld [vmem:[#allocation2 + $0x340] sm:$0xff]
    %v217 = vld [vmem:[#allocation2 + $0x348] sm:$0xff]
    %v218 = vld [vmem:[#allocation2 + $0x350] sm:$0xff]
    %v219 = vld [vmem:[#allocation2 + $0x358] sm:$0xff]
    %v220 = vld [vmem:[#allocation2 + $0x360] sm:$0xff]
    %v221 = vld [vmem:[#allocation2 + $0x368] sm:$0xff]
    %v222 = vld [vmem:[#allocation2 + $0x370] sm:$0xff]
    %v223 = vld [vmem:[#allocation2 + $0x378] sm:$0xff]
    %v224 = vld [vmem:[#allocation2 + $0x380] sm:$0xff]
    %v225 = vld [vmem:[#allocation2 + $0x388] sm:$0xff]
    %v226 = vld [vmem:[#allocation2 + $0x390] sm:$0xff]
    %v227 = vld [vmem:[#allocation2 + $0x398] sm:$0xff]
    %v228 = vld [vmem:[#allocation2 + $0x3a0] sm:$0xff]
    %v229 = vld [vmem:[#allocation2 + $0x3a8] sm:$0xff]
    %v230 = vld [vmem:[#allocation2 + $0x3b0] sm:$0xff]
    %v231 = vld [vmem:[#allocation2 + $0x3b8] sm:$0xff]
    %v232 = vld [vmem:[#allocation2 + $0x3c0] sm:$0xff]
    %v233 = vld [vmem:[#allocation2 + $0x3c8] sm:$0xff]
    %v234 = vld [vmem:[#allocation2 + $0x3d0] sm:$0xff]
    %v235 = vld [vmem:[#allocation2 + $0x3d8] sm:$0xff]
    %v236 = vld [vmem:[#allocation2 + $0x3e0] sm:$0xff]
    %v237 = vld [vmem:[#allocation2 + $0x3e8] sm:$0xff]
    %v238 = vld [vmem:[#allocation2 + $0x3f0] sm:$0xff]
    %v239 = vld [vmem:[#allocation2 + $0x3f8] sm:$0xff]
    %v240 = vld [vmem:[#allocation2 + $0x400] sm:$0xff]
    %v241 = vld [vmem:[#allocation2 + $0x408] sm:$0xff]
    %v242 = vld [vmem:[#allocation2 + $0x410] sm:$0xff]
    %v243 = vld [vmem:[#allocation2 + $0x418] sm:$0xff]
    %v244 = vld [vmem:[#allocation2 + $0x420] sm:$0xff]
    %v245 = vld [vmem:[#allocation2 + $0x428] sm:$0xff]
    %v246 = vld [vmem:[#allocation2 + $0x430] sm:$0xff]
    %v247 = vld [vmem:[#allocation2 + $0x438] sm:$0xff]
    %v248 = vld [vmem:[#allocation2 + $0x440] sm:$0xff]
    %v249 = vld [vmem:[#allocation2 + $0x448] sm:$0xff]
    %v250 = vld [vmem:[#allocation2 + $0x450] sm:$0xff]
    %v251 = vld [vmem:[#allocation2 + $0x458] sm:$0xff]
    %v252 = vld [vmem:[#allocation2 + $0x460] sm:$0xff]
    %v253 = vld [vmem:[#allocation2 + $0x468] sm:$0xff]
    %v254 = vld [vmem:[#allocation2 + $0x470] sm:$0xff]
    %v255 = vld [vmem:[#allocation2 + $0x478] sm:$0xff]
    %v256 = vld [vmem:[#allocation2 + $0x480] sm:$0xff]
    %v257 = vld [vmem:[#allocation2 + $0x488] sm:$0xff]
    %v258 = vld [vmem:[#allocation2 + $0x490] sm:$0xff]
    %v259 = vld [vmem:[#allocation2 + $0x498] sm:$0xff]
    %v260 = vld [vmem:[#allocation2 + $0x4a0] sm:$0xff]
    %v261 = vld [vmem:[#allocation2 + $0x4a8] sm:$0xff]
    %v262 = vld [vmem:[#allocation2 + $0x4b0] sm:$0xff]
    %v263 = vld [vmem:[#allocation2 + $0x4b8] sm:$0xff]
    %v264 = vld [vmem:[#allocation2 + $0x4c0] sm:$0xff]
    %v265 = vld [vmem:[#allocation2 + $0x4c8] sm:$0xff]
    %v266 = vld [vmem:[#allocation2 + $0x4d0] sm:$0xff]
    %v267 = vld [vmem:[#allocation2 + $0x4d8] sm:$0xff]
    %v268 = vld [vmem:[#allocation2 + $0x4e0] sm:$0xff]
    %v269 = vld [vmem:[#allocation2 + $0x4e8] sm:$0xff]
    %v270 = vld [vmem:[#allocation2 + $0x4f0] sm:$0xff]
    %v271 = vld [vmem:[#allocation2 + $0x4f8] sm:$0xff]
    %v272 = vld [vmem:[#allocation2 + $0x500] sm:$0xff]
    %v273 = vld [vmem:[#allocation2 + $0x508] sm:$0xff]
    %v274 = vld [vmem:[#allocation2 + $0x510] sm:$0xff]
    %v275 = vld [vmem:[#allocation2 + $0x518] sm:$0xff]
    %v276 = vld [vmem:[#allocation2 + $0x520] sm:$0xff]
    %v277 = vld [vmem:[#allocation2 + $0x528] sm:$0xff]
    %v278 = vld [vmem:[#allocation2 + $0x530] sm:$0xff]
    %v279 = vld [vmem:[#allocation2 + $0x538] sm:$0xff]
    %v280 = vld [vmem:[#allocation2 + $0x540] sm:$0xff]
    %v281 = vld [vmem:[#allocation2 + $0x548] sm:$0xff]
    %v282 = vld [vmem:[#allocation2 + $0x550] sm:$0xff]
    %v283 = vld [vmem:[#allocation2 + $0x558] sm:$0xff]
    %v284 = vld [vmem:[#allocation2 + $0x560] sm:$0xff]
    %v285 = vld [vmem:[#allocation2 + $0x568] sm:$0xff]
    %v286 = vld [vmem:[#allocation2 + $0x570] sm:$0xff]
    %v287 = vld [vmem:[#allocation2 + $0x578] sm:$0xff]
    %v288 = vld [vmem:[#allocation2 + $0x580] sm:$0xff]
    %v289 = vld [vmem:[#allocation2 + $0x588] sm:$0xff]
    %v290 = vld [vmem:[#allocation2 + $0x590] sm:$0xff]
    %v291 = vld [vmem:[#allocation2 + $0x598] sm:$0xff]
    %v292 = vld [vmem:[#allocation2 + $0x5a0] sm:$0xff]
    %v293 = vld [vmem:[#allocation2 + $0x5a8] sm:$0xff]
    %v294 = vld [vmem:[#allocation2 + $0x5b0] sm:$0xff]
    %v295 = vld [vmem:[#allocation2 + $0x5b8] sm:$0xff]
    %v296 = vld [vmem:[#allocation2 + $0x5c0] sm:$0xff]
    %v297 = vld [vmem:[#allocation2 + $0x5c8] sm:$0xff]
    %v298 = vld [vmem:[#allocation2 + $0x5d0] sm:$0xff]
    %v299 = vld [vmem:[#allocation2 + $0x5d8] sm:$0xff]
    %v300 = vld [vmem:[#allocation2 + $0x5e0] sm:$0xff]
    %v301 = vld [vmem:[#allocation2 + $0x5e8] sm:$0xff]
    %v302 = vld [vmem:[#allocation2 + $0x5f0] sm:$0xff]
    %v303 = vld [vmem:[#allocation2 + $0x5f8] sm:$0xff]
    %v304 = vld [vmem:[#allocation2 + $0x600] sm:$0xff]
    %v305 = vld [vmem:[#allocation2 + $0x608] sm:$0xff]
    %v306 = vld [vmem:[#allocation2 + $0x610] sm:$0xff]
    %v307 = vld [vmem:[#allocation2 + $0x618] sm:$0xff]
    %v308 = vld [vmem:[#allocation2 + $0x620] sm:$0xff]
    %v309 = vld [vmem:[#allocation2 + $0x628] sm:$0xff]
    %v310 = vld [vmem:[#allocation2 + $0x630] sm:$0xff]
    %v311 = vld [vmem:[#allocation2 + $0x638] sm:$0xff]
    %v312 = vld [vmem:[#allocation2 + $0x640] sm:$0xff]
    %v313 = vld [vmem:[#allocation2 + $0x648] sm:$0xff]
    %v314 = vld [vmem:[#allocation2 + $0x650] sm:$0xff]
    %v315 = vld [vmem:[#allocation2 + $0x658] sm:$0xff]
    %v316 = vld [vmem:[#allocation2 + $0x660] sm:$0xff]
    %v317 = vld [vmem:[#allocation2 + $0x668] sm:$0xff]
    %v318 = vld [vmem:[#allocation2 + $0x670] sm:$0xff]
    %v319 = vld [vmem:[#allocation2 + $0x678] sm:$0xff]
    %v320 = vld [vmem:[#allocation2 + $0x680] sm:$0xff]
    %v321 = vld [vmem:[#allocation2 + $0x688] sm:$0xff]
    %v322 = vld [vmem:[#allocation2 + $0x690] sm:$0xff]
    %v323 = vld [vmem:[#allocation2 + $0x698] sm:$0xff]
    %v324 = vld [vmem:[#allocation2 + $0x6a0] sm:$0xff]
    %v325 = vld [vmem:[#allocation2 + $0x6a8] sm:$0xff]
    %v326 = vld [vmem:[#allocation2 + $0x6b0] sm:$0xff]
    %v327 = vld [vmem:[#allocation2 + $0x6b8] sm:$0xff]
    %v328 = vld [vmem:[#allocation2 + $0x6c0] sm:$0xff]
    %v329 = vld [vmem:[#allocation2 + $0x6c8] sm:$0xff]
    %v330 = vld [vmem:[#allocation2 + $0x6d0] sm:$0xff]
    %v331 = vld [vmem:[#allocation2 + $0x6d8] sm:$0xff]
    %v332 = vld [vmem:[#allocation2 + $0x6e0] sm:$0xff]
    %v333 = vld [vmem:[#allocation2 + $0x6e8] sm:$0xff]
    %v334 = vld [vmem:[#allocation2 + $0x6f0] sm:$0xff]
    %v335 = vld [vmem:[#allocation2 + $0x6f8] sm:$0xff]
    %v336 = vld [vmem:[#allocation2 + $0x700] sm:$0xff]
    %v337 = vld [vmem:[#allocation2 + $0x708] sm:$0xff]
    %v338 = vld [vmem:[#allocation2 + $0x710] sm:$0xff]
    %v339 = vld [vmem:[#allocation2 + $0x718] sm:$0xff]
    %v340 = vld [vmem:[#allocation2 + $0x720] sm:$0xff]
    %v341 = vld [vmem:[#allocation2 + $0x728] sm:$0xff]
    %v342 = vld [vmem:[#allocation2 + $0x730] sm:$0xff]
    %v343 = vld [vmem:[#allocation2 + $0x738] sm:$0xff]
    %v344 = vld [vmem:[#allocation2 + $0x740] sm:$0xff]
    %v345 = vld [vmem:[#allocation2 + $0x748] sm:$0xff]
    %v346 = vld [vmem:[#allocation2 + $0x750] sm:$0xff]
    %v347 = vld [vmem:[#allocation2 + $0x758] sm:$0xff]
    %v348 = vld [vmem:[#allocation2 + $0x760] sm:$0xff]
    %v349 = vld [vmem:[#allocation2 + $0x768] sm:$0xff]
    %v350 = vld [vmem:[#allocation2 + $0x770] sm:$0xff]
    %v351 = vld [vmem:[#allocation2 + $0x778] sm:$0xff]
    %v352 = vld [vmem:[#allocation2 + $0x780] sm:$0xff]
    %v353 = vld [vmem:[#allocation2 + $0x788] sm:$0xff]
    %v354 = vld [vmem:[#allocation2 + $0x790] sm:$0xff]
    %v355 = vld [vmem:[#allocation2 + $0x798] sm:$0xff]
    %v356 = vld [vmem:[#allocation2 + $0x7a0] sm:$0xff]
    %v357 = vld [vmem:[#allocation2 + $0x7a8] sm:$0xff]
    %v358 = vld [vmem:[#allocation2 + $0x7b0] sm:$0xff]
    %v359 = vld [vmem:[#allocation2 + $0x7b8] sm:$0xff]
    %v360 = vld [vmem:[#allocation2 + $0x7c0] sm:$0xff]
    %v361 = vld [vmem:[#allocation2 + $0x7c8] sm:$0xff]
    %v362 = vld [vmem:[#allocation2 + $0x7d0] sm:$0xff]
    %v363 = vld [vmem:[#allocation2 + $0x7d8] sm:$0xff]
    %v364 = vld [vmem:[#allocation2 + $0x7e0] sm:$0xff]
    %v365 = vld [vmem:[#allocation2 + $0x7e8] sm:$0xff]
    %v366 = vld [vmem:[#allocation2 + $0x7f0] sm:$0xff]
    %v367 = vld [vmem:[#allocation2 + $0x7f8] sm:$0xff]
    %v368 = vld [vmem:[#allocation2 + $0x800] sm:$0xff]
    %v369 = vld [vmem:[#allocation2 + $0x808] sm:$0xff]
    %v370 = vld [vmem:[#allocation2 + $0x810] sm:$0xff]
    %v371 = vld [vmem:[#allocation2 + $0x818] sm:$0xff]
    %v372 = vld [vmem:[#allocation2 + $0x820] sm:$0xff]
    %v373 = vld [vmem:[#allocation2 + $0x828] sm:$0xff]
    %v374 = vld [vmem:[#allocation2 + $0x830] sm:$0xff]
    %v375 = vld [vmem:[#allocation2 + $0x838] sm:$0xff]
    %v376 = vld [vmem:[#allocation2 + $0x840] sm:$0xff]
    %v377 = vld [vmem:[#allocation2 + $0x848] sm:$0xff]
    %v378 = vld [vmem:[#allocation2 + $0x850] sm:$0xff]
    %v379 = vld [vmem:[#allocation2 + $0x858] sm:$0xff]
    %v380 = vld [vmem:[#allocation2 + $0x860] sm:$0xff]
    %v381 = vld [vmem:[#allocation2 + $0x868] sm:$0xff]
    %v382 = vld [vmem:[#allocation2 + $0x870] sm:$0xff]
    %v383 = vld [vmem:[#allocation2 + $0x878] sm:$0xff]
    %v384 = vld [vmem:[#allocation2 + $0x880] sm:$0xff]
    %v385 = vld [vmem:[#allocation2 + $0x888] sm:$0xff]
    %v386 = vld [vmem:[#allocation2 + $0x890] sm:$0xff]
    %v387 = vld [vmem:[#allocation2 + $0x898] sm:$0xff]
    %v388 = vld [vmem:[#allocation2 + $0x8a0] sm:$0xff]
    %v389 = vld [vmem:[#allocation2 + $0x8a8] sm:$0xff]
    %v390 = vld [vmem:[#allocation2 + $0x8b0] sm:$0xff]
    %v391 = vld [vmem:[#allocation2 + $0x8b8] sm:$0xff]
    %v392 = vld [vmem:[#allocation2 + $0x8c0] sm:$0xff]
    %v393 = vld [vmem:[#allocation2 + $0x8c8] sm:$0xff]
    %v394 = vld [vmem:[#allocation2 + $0x8d0] sm:$0xff]
    %v395 = vld [vmem:[#allocation2 + $0x8d8] sm:$0xff]
    %v396 = vld [vmem:[#allocation2 + $0x8e0] sm:$0xff]
    %v397 = vld [vmem:[#allocation2 + $0x8e8] sm:$0xff]
    %v398 = vld [vmem:[#allocation2 + $0x8f0] sm:$0xff]
    %v399 = vld [vmem:[#allocation2 + $0x8f8] sm:$0xff]
    %v400 = vld [vmem:[#allocation2 + $0x900] sm:$0xff]
    %v401 = vld [vmem:[#allocation2 + $0x908] sm:$0xff]
    %v402 = vld [vmem:[#allocation2 + $0x910] sm:$0xff]
    %v403 = vld [vmem:[#allocation2 + $0x918] sm:$0xff]
    %v404 = vld [vmem:[#allocation2 + $0x920] sm:$0xff]
    %v405 = vld [vmem:[#allocation2 + $0x928] sm:$0xff]
    %v406 = vld [vmem:[#allocation2 + $0x930] sm:$0xff]
    %v407 = vld [vmem:[#allocation2 + $0x938] sm:$0xff]
    %v408 = vld [vmem:[#allocation2 + $0x940] sm:$0xff]
    %v409 = vld [vmem:[#allocation2 + $0x948] sm:$0xff]
    %v410 = vld [vmem:[#allocation2 + $0x950] sm:$0xff]
    %v411 = vld [vmem:[#allocation2 + $0x958] sm:$0xff]
    %v412 = vld [vmem:[#allocation2 + $0x960] sm:$0xff]
    %v413 = vld [vmem:[#allocation2 + $0x968] sm:$0xff]
    %v414 = vld [vmem:[#allocation2 + $0x970] sm:$0xff]
    %v415 = vld [vmem:[#allocation2 + $0x978] sm:$0xff]
    %v416 = vld [vmem:[#allocation2 + $0x980] sm:$0xff]
    %v417 = vld [vmem:[#allocation2 + $0x988] sm:$0xff]
    %v418 = vld [vmem:[#allocation2 + $0x990] sm:$0xff]
    %v419 = vld [vmem:[#allocation2 + $0x998] sm:$0xff]
    %v420 = vld [vmem:[#allocation2 + $0x9a0] sm:$0xff]
    %v421 = vld [vmem:[#allocation2 + $0x9a8] sm:$0xff]
    %v422 = vld [vmem:[#allocation2 + $0x9b0] sm:$0xff]
    %v423 = vld [vmem:[#allocation2 + $0x9b8] sm:$0xff]
    %v424 = vld [vmem:[#allocation2 + $0x9c0] sm:$0xff]
    %v425 = vld [vmem:[#allocation2 + $0x9c8] sm:$0xff]
    %v426 = vld [vmem:[#allocation2 + $0x9d0] sm:$0xff]
    %v427 = vld [vmem:[#allocation2 + $0x9d8] sm:$0xff]
    %v428 = vld [vmem:[#allocation2 + $0x9e0] sm:$0xff]
    %v429 = vld [vmem:[#allocation2 + $0x9e8] sm:$0xff]
    %v430 = vld [vmem:[#allocation2 + $0x9f0] sm:$0xff]
    %v431 = vld [vmem:[#allocation2 + $0x9f8] sm:$0xff]
    %v432 = vld [vmem:[#allocation2 + $0xa00] sm:$0xff]
    %v433 = vld [vmem:[#allocation2 + $0xa08] sm:$0xff]
    %v434 = vld [vmem:[#allocation2 + $0xa10] sm:$0xff]
    %v435 = vld [vmem:[#allocation2 + $0xa18] sm:$0xff]
    %v436 = vld [vmem:[#allocation2 + $0xa20] sm:$0xff]
    %v437 = vld [vmem:[#allocation2 + $0xa28] sm:$0xff]
    %v438 = vld [vmem:[#allocation2 + $0xa30] sm:$0xff]
    %v439 = vld [vmem:[#allocation2 + $0xa38] sm:$0xff]
    %v440 = vld [vmem:[#allocation2 + $0xa40] sm:$0xff]
    %v441 = vld [vmem:[#allocation2 + $0xa48] sm:$0xff]
    %v442 = vld [vmem:[#allocation2 + $0xa50] sm:$0xff]
    %v443 = vld [vmem:[#allocation2 + $0xa58] sm:$0xff]
    %v444 = vld [vmem:[#allocation2 + $0xa60] sm:$0xff]
    %v445 = vld [vmem:[#allocation2 + $0xa68] sm:$0xff]
    %v446 = vld [vmem:[#allocation2 + $0xa70] sm:$0xff]
    %v447 = vld [vmem:[#allocation2 + $0xa78] sm:$0xff]
    %v448 = vld [vmem:[#allocation2 + $0xa80] sm:$0xff]
    %v449 = vld [vmem:[#allocation2 + $0xa88] sm:$0xff]
    %v450 = vld [vmem:[#allocation2 + $0xa90] sm:$0xff]
    %v451 = vld [vmem:[#allocation2 + $0xa98] sm:$0xff]
    %v452 = vld [vmem:[#allocation2 + $0xaa0] sm:$0xff]
    %v453 = vld [vmem:[#allocation2 + $0xaa8] sm:$0xff]
    %v454 = vld [vmem:[#allocation2 + $0xab0] sm:$0xff]
    %v455 = vld [vmem:[#allocation2 + $0xab8] sm:$0xff]
    %v456 = vld [vmem:[#allocation2 + $0xac0] sm:$0xff]
    %v457 = vld [vmem:[#allocation2 + $0xac8] sm:$0xff]
    %v458 = vld [vmem:[#allocation2 + $0xad0] sm:$0xff]
    %v459 = vld [vmem:[#allocation2 + $0xad8] sm:$0xff]
    %v460 = vld [vmem:[#allocation2 + $0xae0] sm:$0xff]
    %v461 = vld [vmem:[#allocation2 + $0xae8] sm:$0xff]
    %v462 = vld [vmem:[#allocation2 + $0xaf0] sm:$0xff]
    %v463 = vld [vmem:[#allocation2 + $0xaf8] sm:$0xff]
    %v464 = vld [vmem:[#allocation2 + $0xb00] sm:$0xff]
    %v465 = vld [vmem:[#allocation2 + $0xb08] sm:$0xff]
    %v466 = vld [vmem:[#allocation2 + $0xb10] sm:$0xff]
    %v467 = vld [vmem:[#allocation2 + $0xb18] sm:$0xff]
    %v468 = vld [vmem:[#allocation2 + $0xb20] sm:$0xff]
    %v469 = vld [vmem:[#allocation2 + $0xb28] sm:$0xff]
    %v470 = vld [vmem:[#allocation2 + $0xb30] sm:$0xff]
    %v471 = vld [vmem:[#allocation2 + $0xb38] sm:$0xff]
    %v472 = vld [vmem:[#allocation2 + $0xb40] sm:$0xff]
    %v473 = vld [vmem:[#allocation2 + $0xb48] sm:$0xff]
    %v474 = vld [vmem:[#allocation2 + $0xb50] sm:$0xff]
    %v475 = vld [vmem:[#allocation2 + $0xb58] sm:$0xff]
    %v476 = vld [vmem:[#allocation2 + $0xb60] sm:$0xff]
    %v477 = vld [vmem:[#allocation2 + $0xb68] sm:$0xff]
    %v478 = vld [vmem:[#allocation2 + $0xb70] sm:$0xff]
    %v479 = vld [vmem:[#allocation2 + $0xb78] sm:$0xff]
    %v480 = vld [vmem:[#allocation2 + $0xb80] sm:$0xff]
    %v481 = vld [vmem:[#allocation2 + $0xb88] sm:$0xff]
    %v482 = vld [vmem:[#allocation2 + $0xb90] sm:$0xff]
    %v483 = vld [vmem:[#allocation2 + $0xb98] sm:$0xff]
    %v484 = vld [vmem:[#allocation2 + $0xba0] sm:$0xff]
    %v485 = vld [vmem:[#allocation2 + $0xba8] sm:$0xff]
    %v486 = vld [vmem:[#allocation2 + $0xbb0] sm:$0xff]
    %v487 = vld [vmem:[#allocation2 + $0xbb8] sm:$0xff]
    %v488 = vld [vmem:[#allocation2 + $0xbc0] sm:$0xff]
    %v489 = vld [vmem:[#allocation2 + $0xbc8] sm:$0xff]
    %v490 = vld [vmem:[#allocation2 + $0xbd0] sm:$0xff]
    %v491 = vld [vmem:[#allocation2 + $0xbd8] sm:$0xff]
    %v492 = vld [vmem:[#allocation2 + $0xbe0] sm:$0xff]
    %v493 = vld [vmem:[#allocation2 + $0xbe8] sm:$0xff]
    %v494 = vld [vmem:[#allocation2 + $0xbf0] sm:$0xff]
    %v495 = vld [vmem:[#allocation2 + $0xbf8] sm:$0xff]
    %v496 = vld [vmem:[#allocation2 + $0xc00] sm:$0xff]
    %v497 = vld [vmem:[#allocation2 + $0xc08] sm:$0xff]
    %v498 = vld [vmem:[#allocation2 + $0xc10] sm:$0xff]
    %v499 = vld [vmem:[#allocation2 + $0xc18] sm:$0xff]
    %v500 = vld [vmem:[#allocation2 + $0xc20] sm:$0xff]
    %v501 = vld [vmem:[#allocation2 + $0xc28] sm:$0xff]
    %v502 = vld [vmem:[#allocation2 + $0xc30] sm:$0xff]
    %v503 = vld [vmem:[#allocation2 + $0xc38] sm:$0xff]
    %v504 = vld [vmem:[#allocation2 + $0xc40] sm:$0xff]
    %v505 = vld [vmem:[#allocation2 + $0xc48] sm:$0xff]
    %v506 = vld [vmem:[#allocation2 + $0xc50] sm:$0xff]
    %v507 = vld [vmem:[#allocation2 + $0xc58] sm:$0xff]
    %v508 = vld [vmem:[#allocation2 + $0xc60] sm:$0xff]
    %v509 = vld [vmem:[#allocation2 + $0xc68] sm:$0xff]
    %v510 = vld [vmem:[#allocation2 + $0xc70] sm:$0xff]
    %v511 = vld [vmem:[#allocation2 + $0xc78] sm:$0xff]
    %v512 = vld [vmem:[#allocation2 + $0xc80] sm:$0xff]
    %v513 = vld [vmem:[#allocation2 + $0xc88] sm:$0xff]
    %v514 = vld [vmem:[#allocation2 + $0xc90] sm:$0xff]
    %v515 = vld [vmem:[#allocation2 + $0xc98] sm:$0xff]
    %v516 = vld [vmem:[#allocation2 + $0xca0] sm:$0xff]
    %v517 = vld [vmem:[#allocation2 + $0xca8] sm:$0xff]
    %v518 = vld [vmem:[#allocation2 + $0xcb0] sm:$0xff]
    %v519 = vld [vmem:[#allocation2 + $0xcb8] sm:$0xff]
    %v520 = vld [vmem:[#allocation2 + $0xcc0] sm:$0xff]
    %v521 = vld [vmem:[#allocation2 + $0xcc8] sm:$0xff]
    %v522 = vld [vmem:[#allocation2 + $0xcd0] sm:$0xff]
    %v523 = vld [vmem:[#allocation2 + $0xcd8] sm:$0xff]
    %v524 = vld [vmem:[#allocation2 + $0xce0] sm:$0xff]
    %v525 = vld [vmem:[#allocation2 + $0xce8] sm:$0xff]
    %v526 = vld [vmem:[#allocation2 + $0xcf0] sm:$0xff]
    %v527 = vld [vmem:[#allocation2 + $0xcf8] sm:$0xff]
    %v528 = vld [vmem:[#allocation2 + $0xd00] sm:$0xff]
    %v529 = vld [vmem:[#allocation2 + $0xd08] sm:$0xff]
    %v530 = vld [vmem:[#allocation2 + $0xd10] sm:$0xff]
    %v531 = vld [vmem:[#allocation2 + $0xd18] sm:$0xff]
    %v532 = vld [vmem:[#allocation2 + $0xd20] sm:$0xff]
    %v533 = vld [vmem:[#allocation2 + $0xd28] sm:$0xff]
    %v534 = vld [vmem:[#allocation2 + $0xd30] sm:$0xff]
    %v535 = vld [vmem:[#allocation2 + $0xd38] sm:$0xff]
    %v536 = vld [vmem:[#allocation2 + $0xd40] sm:$0xff]
    %v537 = vld [vmem:[#allocation2 + $0xd48] sm:$0xff]
    %v538 = vld [vmem:[#allocation2 + $0xd50] sm:$0xff]
    %v539 = vld [vmem:[#allocation2 + $0xd58] sm:$0xff]
    %v540 = vld [vmem:[#allocation2 + $0xd60] sm:$0xff]
    %v541 = vld [vmem:[#allocation2 + $0xd68] sm:$0xff]
    %v542 = vld [vmem:[#allocation2 + $0xd70] sm:$0xff]
    %v543 = vld [vmem:[#allocation2 + $0xd78] sm:$0xff]
    %v544 = vld [vmem:[#allocation2 + $0xd80] sm:$0xff]
    %v545 = vld [vmem:[#allocation2 + $0xd88] sm:$0xff]
    %v546 = vld [vmem:[#allocation2 + $0xd90] sm:$0xff]
    %v547 = vld [vmem:[#allocation2 + $0xd98] sm:$0xff]
    %v548 = vld [vmem:[#allocation2 + $0xda0] sm:$0xff]
    %v549 = vld [vmem:[#allocation2 + $0xda8] sm:$0xff]
    %v550 = vld [vmem:[#allocation2 + $0xdb0] sm:$0xff]
    %v551 = vld [vmem:[#allocation2 + $0xdb8] sm:$0xff]
    %v552 = vld [vmem:[#allocation2 + $0xdc0] sm:$0xff]
    %v553 = vld [vmem:[#allocation2 + $0xdc8] sm:$0xff]
    %v554 = vld [vmem:[#allocation2 + $0xdd0] sm:$0xff]
    %v555 = vld [vmem:[#allocation2 + $0xdd8] sm:$0xff]
    %v556 = vld [vmem:[#allocation2 + $0xde0] sm:$0xff]
    %v557 = vld [vmem:[#allocation2 + $0xde8] sm:$0xff]
    %v558 = vld [vmem:[#allocation2 + $0xdf0] sm:$0xff]
    %v559 = vld [vmem:[#allocation2 + $0xdf8] sm:$0xff]
    %v560 = vld [vmem:[#allocation2 + $0xe00] sm:$0xff]
    %v561 = vld [vmem:[#allocation2 + $0xe08] sm:$0xff]
    %v562 = vld [vmem:[#allocation2 + $0xe10] sm:$0xff]
    %v563 = vld [vmem:[#allocation2 + $0xe18] sm:$0xff]
    %v564 = vld [vmem:[#allocation2 + $0xe20] sm:$0xff]
    %v565 = vld [vmem:[#allocation2 + $0xe28] sm:$0xff]
    %v566 = vld [vmem:[#allocation2 + $0xe30] sm:$0xff]
    %v567 = vld [vmem:[#allocation2 + $0xe38] sm:$0xff]
    %v568 = vld [vmem:[#allocation2 + $0xe40] sm:$0xff]
    %v569 = vld [vmem:[#allocation2 + $0xe48] sm:$0xff]
    %v570 = vld [vmem:[#allocation2 + $0xe50] sm:$0xff]
    %v571 = vld [vmem:[#allocation2 + $0xe58] sm:$0xff]
    %v572 = vld [vmem:[#allocation2 + $0xe60] sm:$0xff]
    %v573 = vld [vmem:[#allocation2 + $0xe68] sm:$0xff]
    %v574 = vld [vmem:[#allocation2 + $0xe70] sm:$0xff]
    %v575 = vld [vmem:[#allocation2 + $0xe78] sm:$0xff]
    %v576 = vld [vmem:[#allocation2 + $0xe80] sm:$0xff]
    %v577 = vld [vmem:[#allocation2 + $0xe88] sm:$0xff]
    %v578 = vld [vmem:[#allocation2 + $0xe90] sm:$0xff]
    %v579 = vld [vmem:[#allocation2 + $0xe98] sm:$0xff]
    %v580 = vld [vmem:[#allocation2 + $0xea0] sm:$0xff]
    %v581 = vld [vmem:[#allocation2 + $0xea8] sm:$0xff]
    %v582 = vld [vmem:[#allocation2 + $0xeb0] sm:$0xff]
    %v583 = vld [vmem:[#allocation2 + $0xeb8] sm:$0xff]
    %v584 = vld [vmem:[#allocation2 + $0xec0] sm:$0xff]
    %v585 = vld [vmem:[#allocation2 + $0xec8] sm:$0xff]
    %v586 = vld [vmem:[#allocation2 + $0xed0] sm:$0xff]
    %v587 = vld [vmem:[#allocation2 + $0xed8] sm:$0xff]
    %v588 = vld [vmem:[#allocation2 + $0xee0] sm:$0xff]
    %v589 = vld [vmem:[#allocation2 + $0xee8] sm:$0xff]
    %v590 = vld [vmem:[#allocation2 + $0xef0] sm:$0xff]
    %v591 = vld [vmem:[#allocation2 + $0xef8] sm:$0xff]
    %v592 = vld [vmem:[#allocation2 + $0xf00] sm:$0xff]
    %v593 = vld [vmem:[#allocation2 + $0xf08] sm:$0xff]
    %v594 = vld [vmem:[#allocation2 + $0xf10] sm:$0xff]
    %v595 = vld [vmem:[#allocation2 + $0xf18] sm:$0xff]
    %v596 = vld [vmem:[#allocation2 + $0xf20] sm:$0xff]
    %v597 = vld [vmem:[#allocation2 + $0xf28] sm:$0xff]
    %v598 = vld [vmem:[#allocation2 + $0xf30] sm:$0xff]
    %v599 = vld [vmem:[#allocation2 + $0xf38] sm:$0xff]
    %v600 = vld [vmem:[#allocation2 + $0xf40] sm:$0xff]
    %v601 = vld [vmem:[#allocation2 + $0xf48] sm:$0xff]
    %v602 = vld [vmem:[#allocation2 + $0xf50] sm:$0xff]
    %v603 = vld [vmem:[#allocation2 + $0xf58] sm:$0xff]
    %v604 = vld [vmem:[#allocation2 + $0xf60] sm:$0xff]
    %v605 = vld [vmem:[#allocation2 + $0xf68] sm:$0xff]
    %v606 = vld [vmem:[#allocation2 + $0xf70] sm:$0xff]
    %v607 = vld [vmem:[#allocation2 + $0xf78] sm:$0xff]
    %v608 = vld [vmem:[#allocation2 + $0xf80] sm:$0xff]
    %v609 = vld [vmem:[#allocation2 + $0xf88] sm:$0xff]
    %v610 = vld [vmem:[#allocation2 + $0xf90] sm:$0xff]
    %v611 = vld [vmem:[#allocation2 + $0xf98] sm:$0xff]
    %v612 = vld [vmem:[#allocation2 + $0xfa0] sm:$0xff]
    %v613 = vld [vmem:[#allocation2 + $0xfa8] sm:$0xff]
    %v614 = vld [vmem:[#allocation2 + $0xfb0] sm:$0xff]
    %v615 = vld [vmem:[#allocation2 + $0xfb8] sm:$0xff]
    %v616 = vld [vmem:[#allocation2 + $0xfc0] sm:$0xff]
    %v617 = vld [vmem:[#allocation2 + $0xfc8] sm:$0xff]
    %v618 = vld [vmem:[#allocation2 + $0xfd0] sm:$0xff]
    %v619 = vld [vmem:[#allocation2 + $0xfd8] sm:$0xff]
    %v620 = vld [vmem:[#allocation2 + $0xfe0] sm:$0xff]
    %v621 = vld [vmem:[#allocation2 + $0xfe8] sm:$0xff]
    %v622 = vld [vmem:[#allocation2 + $0xff0] sm:$0xff]
    %v623 = vld [vmem:[#allocation2 + $0xff8] sm:$0xff]
    %v624 = vld [vmem:[#allocation5] sm:$0x3]
    %v626 = vlaneseq
    %v627 = vshrl.u32 %v626, 7
    %v628 = vsub.s32 0, %v627
    %v629 = vrot.slane %v624, %v628
    %v630 = vlaneseq
    %v631 = vshrl.u32 %v630, 7
    %v632 = vsub.s32 1, %v631
    %v633 = vrot.slane %v624, %v632
    %v644 = vcombine.high %v104, %v104
    %v646 = vunpack.c.l.s4 1983009808
    %v647 = vunpack.c.0.s8 %v646
    %v648 = vlaneseq
    %v649 = vshrl.u32 %v648, 7
    %v650 = vsub.s32 %v647, %v649
    %v651 = vrot.slane %v104, %v650
    %v653 = vunpack.c.l.s4 1983009808
    %v654 = vunpack.c.0.s8 %v653
    %v655 = vlaneseq
    %v656 = vshrl.u32 %v655, 7
    %v657 = vsub.s32 %v654, %v656
    %v658 = vrot.slane %v644, %v657
    %v659 = vcombine.high %v651, %v651
    %v660 = vcombine.high %v658, %v658
    %v661 = vcombine.high %v105, %v105
    %v663 = vunpack.c.l.s4 1983009808
    %v664 = vunpack.c.0.s8 %v663
    %v665 = vlaneseq
    %v666 = vshrl.u32 %v665, 7
    %v667 = vsub.s32 %v664, %v666
    %v668 = vrot.slane %v105, %v667
    %v670 = vunpack.c.l.s4 1983009808
    %v671 = vunpack.c.0.s8 %v670
    %v672 = vlaneseq
    %v673 = vshrl.u32 %v672, 7
    %v674 = vsub.s32 %v671, %v673
    %v675 = vrot.slane %v661, %v674
    %v676 = vcombine.high %v668, %v668
    %v677 = vcombine.high %v675, %v675
    %v678 = vcombine.high %v106, %v106
    %v680 = vunpack.c.l.s4 1983009808
    %v681 = vunpack.c.0.s8 %v680
    %v682 = vlaneseq
    %v683 = vshrl.u32 %v682, 7
    %v684 = vsub.s32 %v681, %v683
    %v685 = vrot.slane %v106, %v684
    %v687 = vunpack.c.l.s4 1983009808
    %v688 = vunpack.c.0.s8 %v687
    %v689 = vlaneseq
    %v690 = vshrl.u32 %v689, 7
    %v691 = vsub.s32 %v688, %v690
    %v692 = vrot.slane %v678, %v691
    %v693 = vcombine.high %v685, %v685
    %v694 = vcombine.high %v692, %v692
    %v695 = vcombine.high %v107, %v107
    %v697 = vunpack.c.l.s4 1983009808
    %v698 = vunpack.c.0.s8 %v697
    %v699 = vlaneseq
    %v700 = vshrl.u32 %v699, 7
    %v701 = vsub.s32 %v698, %v700
    %v702 = vrot.slane %v107, %v701
    %v704 = vunpack.c.l.s4 1983009808
    %v705 = vunpack.c.0.s8 %v704
    %v706 = vlaneseq
    %v707 = vshrl.u32 %v706, 7
    %v708 = vsub.s32 %v705, %v707
    %v709 = vrot.slane %v695, %v708
    %v710 = vcombine.high %v702, %v702
    %v711 = vcombine.high %v709, %v709
    %v712 = vcombine.high %v108, %v108
    %v714 = vunpack.c.l.s4 1983009808
    %v715 = vunpack.c.0.s8 %v714
    %v716 = vlaneseq
    %v717 = vshrl.u32 %v716, 7
    %v718 = vsub.s32 %v715, %v717
    %v719 = vrot.slane %v108, %v718
    %v721 = vunpack.c.l.s4 1983009808
    %v722 = vunpack.c.0.s8 %v721
    %v723 = vlaneseq
    %v724 = vshrl.u32 %v723, 7
    %v725 = vsub.s32 %v722, %v724
    %v726 = vrot.slane %v712, %v725
    %v727 = vcombine.high %v719, %v719
    %v728 = vcombine.high %v726, %v726
    %v729 = vcombine.high %v109, %v109
    %v731 = vunpack.c.l.s4 1983009808
    %v732 = vunpack.c.0.s8 %v731
    %v733 = vlaneseq
    %v734 = vshrl.u32 %v733, 7
    %v735 = vsub.s32 %v732, %v734
    %v736 = vrot.slane %v109, %v735
    %v738 = vunpack.c.l.s4 1983009808
    %v739 = vunpack.c.0.s8 %v738
    %v740 = vlaneseq
    %v741 = vshrl.u32 %v740, 7
    %v742 = vsub.s32 %v739, %v741
    %v743 = vrot.slane %v729, %v742
    %v744 = vcombine.high %v736, %v736
    %v745 = vcombine.high %v743, %v743
    %v746 = vcombine.high %v110, %v110
    %v748 = vunpack.c.l.s4 1983009808
    %v749 = vunpack.c.0.s8 %v748
    %v750 = vlaneseq
    %v751 = vshrl.u32 %v750, 7
    %v752 = vsub.s32 %v749, %v751
    %v753 = vrot.slane %v110, %v752
    %v755 = vunpack.c.l.s4 1983009808
    %v756 = vunpack.c.0.s8 %v755
    %v757 = vlaneseq
    %v758 = vshrl.u32 %v757, 7
    %v759 = vsub.s32 %v756, %v758
    %v760 = vrot.slane %v746, %v759
    %v761 = vcombine.high %v753, %v753
    %v762 = vcombine.high %v760, %v760
    %v763 = vcombine.high %v111, %v111
    %v765 = vunpack.c.l.s4 1983009808
    %v766 = vunpack.c.0.s8 %v765
    %v767 = vlaneseq
    %v768 = vshrl.u32 %v767, 7
    %v769 = vsub.s32 %v766, %v768
    %v770 = vrot.slane %v111, %v769
    %v772 = vunpack.c.l.s4 1983009808
    %v773 = vunpack.c.0.s8 %v772
    %v774 = vlaneseq
    %v775 = vshrl.u32 %v774, 7
    %v776 = vsub.s32 %v773, %v775
    %v777 = vrot.slane %v763, %v776
    %v778 = vcombine.high %v770, %v770
    %v779 = vcombine.high %v777, %v777
    %v1324 = vunpack.c.l.b16 %v112
    %v1325 = vunpack.c.h.b16 %v112
    %v1326 = vunpack.c.l.b16 %v113
    %v1327 = vunpack.c.h.b16 %v113
    %v1328 = vunpack.c.l.b16 %v114
    %v1329 = vunpack.c.h.b16 %v114
    %v1330 = vunpack.c.l.b16 %v115
    %v1331 = vunpack.c.h.b16 %v115
    %v1332 = vunpack.c.l.b16 %v116
    %v1333 = vunpack.c.h.b16 %v116
    %v1334 = vunpack.c.l.b16 %v117
    %v1335 = vunpack.c.h.b16 %v117
    %v1336 = vunpack.c.l.b16 %v118
    %v1337 = vunpack.c.h.b16 %v118
    %v1338 = vunpack.c.l.b16 %v119
    %v1339 = vunpack.c.h.b16 %v119
    %v1340 = vunpack.c.l.b16 %v120
    %v1341 = vunpack.c.h.b16 %v120
    %v1342 = vunpack.c.l.b16 %v121
    %v1343 = vunpack.c.h.b16 %v121
    %v1344 = vunpack.c.l.b16 %v122
    %v1345 = vunpack.c.h.b16 %v122
    %v1346 = vunpack.c.l.b16 %v123
    %v1347 = vunpack.c.h.b16 %v123
    %v1348 = vunpack.c.l.b16 %v124
    %v1349 = vunpack.c.h.b16 %v124
    %v1350 = vunpack.c.l.b16 %v125
    %v1351 = vunpack.c.h.b16 %v125
    %v1352 = vunpack.c.l.b16 %v126
    %v1353 = vunpack.c.h.b16 %v126
    %v1354 = vunpack.c.l.b16 %v127
    %v1355 = vunpack.c.h.b16 %v127
    %v1356 = vunpack.c.l.b16 %v128
    %v1357 = vunpack.c.h.b16 %v128
    %v1358 = vunpack.c.l.b16 %v129
    %v1359 = vunpack.c.h.b16 %v129
    %v1360 = vunpack.c.l.b16 %v130
    %v1361 = vunpack.c.h.b16 %v130
    %v1362 = vunpack.c.l.b16 %v131
    %v1363 = vunpack.c.h.b16 %v131
    %v1364 = vunpack.c.l.b16 %v132
    %v1365 = vunpack.c.h.b16 %v132
    %v1366 = vunpack.c.l.b16 %v133
    %v1367 = vunpack.c.h.b16 %v133
    %v1368 = vunpack.c.l.b16 %v134
    %v1369 = vunpack.c.h.b16 %v134
    %v1370 = vunpack.c.l.b16 %v135
    %v1371 = vunpack.c.h.b16 %v135
    %v1372 = vunpack.c.l.b16 %v136
    %v1373 = vunpack.c.h.b16 %v136
    %v1374 = vunpack.c.l.b16 %v137
    %v1375 = vunpack.c.h.b16 %v137
    %v1376 = vunpack.c.l.b16 %v138
    %v1377 = vunpack.c.h.b16 %v138
    %v1378 = vunpack.c.l.b16 %v139
    %v1379 = vunpack.c.h.b16 %v139
    %v1380 = vunpack.c.l.b16 %v140
    %v1381 = vunpack.c.h.b16 %v140
    %v1382 = vunpack.c.l.b16 %v141
    %v1383 = vunpack.c.h.b16 %v141
    %v1384 = vunpack.c.l.b16 %v142
    %v1385 = vunpack.c.h.b16 %v142
    %v1386 = vunpack.c.l.b16 %v143
    %v1387 = vunpack.c.h.b16 %v143
    %v1388 = vunpack.c.l.b16 %v144
    %v1389 = vunpack.c.h.b16 %v144
    %v1390 = vunpack.c.l.b16 %v145
    %v1391 = vunpack.c.h.b16 %v145
    %v1392 = vunpack.c.l.b16 %v146
    %v1393 = vunpack.c.h.b16 %v146
    %v1394 = vunpack.c.l.b16 %v147
    %v1395 = vunpack.c.h.b16 %v147
    %v1396 = vunpack.c.l.b16 %v148
    %v1397 = vunpack.c.h.b16 %v148
    %v1398 = vunpack.c.l.b16 %v149
    %v1399 = vunpack.c.h.b16 %v149
    %v1400 = vunpack.c.l.b16 %v150
    %v1401 = vunpack.c.h.b16 %v150
    %v1402 = vunpack.c.l.b16 %v151
    %v1403 = vunpack.c.h.b16 %v151
    %v1404 = vunpack.c.l.b16 %v152
    %v1405 = vunpack.c.h.b16 %v152
    %v1406 = vunpack.c.l.b16 %v153
    %v1407 = vunpack.c.h.b16 %v153
    %v1408 = vunpack.c.l.b16 %v154
    %v1409 = vunpack.c.h.b16 %v154
    %v1410 = vunpack.c.l.b16 %v155
    %v1411 = vunpack.c.h.b16 %v155
    %v1412 = vunpack.c.l.b16 %v156
    %v1413 = vunpack.c.h.b16 %v156
    %v1414 = vunpack.c.l.b16 %v157
    %v1415 = vunpack.c.h.b16 %v157
    %v1416 = vunpack.c.l.b16 %v158
    %v1417 = vunpack.c.h.b16 %v158
    %v1418 = vunpack.c.l.b16 %v159
    %v1419 = vunpack.c.h.b16 %v159
    %v1420 = vunpack.c.l.b16 %v160
    %v1421 = vunpack.c.h.b16 %v160
    %v1422 = vunpack.c.l.b16 %v161
    %v1423 = vunpack.c.h.b16 %v161
    %v1424 = vunpack.c.l.b16 %v162
    %v1425 = vunpack.c.h.b16 %v162
    %v1426 = vunpack.c.l.b16 %v163
    %v1427 = vunpack.c.h.b16 %v163
    %v1428 = vunpack.c.l.b16 %v164
    %v1429 = vunpack.c.h.b16 %v164
    %v1430 = vunpack.c.l.b16 %v165
    %v1431 = vunpack.c.h.b16 %v165
    %v1432 = vunpack.c.l.b16 %v166
    %v1433 = vunpack.c.h.b16 %v166
    %v1434 = vunpack.c.l.b16 %v167
    %v1435 = vunpack.c.h.b16 %v167
    %v1436 = vunpack.c.l.b16 %v168
    %v1437 = vunpack.c.h.b16 %v168
    %v1438 = vunpack.c.l.b16 %v169
    %v1439 = vunpack.c.h.b16 %v169
    %v1440 = vunpack.c.l.b16 %v170
    %v1441 = vunpack.c.h.b16 %v170
    %v1442 = vunpack.c.l.b16 %v171
    %v1443 = vunpack.c.h.b16 %v171
    %v1444 = vunpack.c.l.b16 %v172
    %v1445 = vunpack.c.h.b16 %v172
    %v1446 = vunpack.c.l.b16 %v173
    %v1447 = vunpack.c.h.b16 %v173
    %v1448 = vunpack.c.l.b16 %v174
    %v1449 = vunpack.c.h.b16 %v174
    %v1450 = vunpack.c.l.b16 %v175
    %v1451 = vunpack.c.h.b16 %v175
    %v1452 = vunpack.c.l.b16 %v176
    %v1453 = vunpack.c.h.b16 %v176
    %v1454 = vunpack.c.l.b16 %v177
    %v1455 = vunpack.c.h.b16 %v177
    %v1456 = vunpack.c.l.b16 %v178
    %v1457 = vunpack.c.h.b16 %v178
    %v1458 = vunpack.c.l.b16 %v179
    %v1459 = vunpack.c.h.b16 %v179
    %v1460 = vunpack.c.l.b16 %v180
    %v1461 = vunpack.c.h.b16 %v180
    %v1462 = vunpack.c.l.b16 %v181
    %v1463 = vunpack.c.h.b16 %v181
    %v1464 = vunpack.c.l.b16 %v182
    %v1465 = vunpack.c.h.b16 %v182
    %v1466 = vunpack.c.l.b16 %v183
    %v1467 = vunpack.c.h.b16 %v183
    %v1468 = vunpack.c.l.b16 %v184
    %v1469 = vunpack.c.h.b16 %v184
    %v1470 = vunpack.c.l.b16 %v185
    %v1471 = vunpack.c.h.b16 %v185
    %v1472 = vunpack.c.l.b16 %v186
    %v1473 = vunpack.c.h.b16 %v186
    %v1474 = vunpack.c.l.b16 %v187
    %v1475 = vunpack.c.h.b16 %v187
    %v1476 = vunpack.c.l.b16 %v188
    %v1477 = vunpack.c.h.b16 %v188
    %v1478 = vunpack.c.l.b16 %v189
    %v1479 = vunpack.c.h.b16 %v189
    %v1480 = vunpack.c.l.b16 %v190
    %v1481 = vunpack.c.h.b16 %v190
    %v1482 = vunpack.c.l.b16 %v191
    %v1483 = vunpack.c.h.b16 %v191
    %v1484 = vunpack.c.l.b16 %v192
    %v1485 = vunpack.c.h.b16 %v192
    %v1486 = vunpack.c.l.b16 %v193
    %v1487 = vunpack.c.h.b16 %v193
    %v1488 = vunpack.c.l.b16 %v194
    %v1489 = vunpack.c.h.b16 %v194
    %v1490 = vunpack.c.l.b16 %v195
    %v1491 = vunpack.c.h.b16 %v195
    %v1492 = vunpack.c.l.b16 %v196
    %v1493 = vunpack.c.h.b16 %v196
    %v1494 = vunpack.c.l.b16 %v197
    %v1495 = vunpack.c.h.b16 %v197
    %v1496 = vunpack.c.l.b16 %v198
    %v1497 = vunpack.c.h.b16 %v198
    %v1498 = vunpack.c.l.b16 %v199
    %v1499 = vunpack.c.h.b16 %v199
    %v1500 = vunpack.c.l.b16 %v200
    %v1501 = vunpack.c.h.b16 %v200
    %v1502 = vunpack.c.l.b16 %v201
    %v1503 = vunpack.c.h.b16 %v201
    %v1504 = vunpack.c.l.b16 %v202
    %v1505 = vunpack.c.h.b16 %v202
    %v1506 = vunpack.c.l.b16 %v203
    %v1507 = vunpack.c.h.b16 %v203
    %v1508 = vunpack.c.l.b16 %v204
    %v1509 = vunpack.c.h.b16 %v204
    %v1510 = vunpack.c.l.b16 %v205
    %v1511 = vunpack.c.h.b16 %v205
    %v1512 = vunpack.c.l.b16 %v206
    %v1513 = vunpack.c.h.b16 %v206
    %v1514 = vunpack.c.l.b16 %v207
    %v1515 = vunpack.c.h.b16 %v207
    %v1516 = vunpack.c.l.b16 %v208
    %v1517 = vunpack.c.h.b16 %v208
    %v1518 = vunpack.c.l.b16 %v209
    %v1519 = vunpack.c.h.b16 %v209
    %v1520 = vunpack.c.l.b16 %v210
    %v1521 = vunpack.c.h.b16 %v210
    %v1522 = vunpack.c.l.b16 %v211
    %v1523 = vunpack.c.h.b16 %v211
    %v1524 = vunpack.c.l.b16 %v212
    %v1525 = vunpack.c.h.b16 %v212
    %v1526 = vunpack.c.l.b16 %v213
    %v1527 = vunpack.c.h.b16 %v213
    %v1528 = vunpack.c.l.b16 %v214
    %v1529 = vunpack.c.h.b16 %v214
    %v1530 = vunpack.c.l.b16 %v215
    %v1531 = vunpack.c.h.b16 %v215
    %v1532 = vunpack.c.l.b16 %v216
    %v1533 = vunpack.c.h.b16 %v216
    %v1534 = vunpack.c.l.b16 %v217
    %v1535 = vunpack.c.h.b16 %v217
    %v1536 = vunpack.c.l.b16 %v218
    %v1537 = vunpack.c.h.b16 %v218
    %v1538 = vunpack.c.l.b16 %v219
    %v1539 = vunpack.c.h.b16 %v219
    %v1540 = vunpack.c.l.b16 %v220
    %v1541 = vunpack.c.h.b16 %v220
    %v1542 = vunpack.c.l.b16 %v221
    %v1543 = vunpack.c.h.b16 %v221
    %v1544 = vunpack.c.l.b16 %v222
    %v1545 = vunpack.c.h.b16 %v222
    %v1546 = vunpack.c.l.b16 %v223
    %v1547 = vunpack.c.h.b16 %v223
    %v1548 = vunpack.c.l.b16 %v224
    %v1549 = vunpack.c.h.b16 %v224
    %v1550 = vunpack.c.l.b16 %v225
    %v1551 = vunpack.c.h.b16 %v225
    %v1552 = vunpack.c.l.b16 %v226
    %v1553 = vunpack.c.h.b16 %v226
    %v1554 = vunpack.c.l.b16 %v227
    %v1555 = vunpack.c.h.b16 %v227
    %v1556 = vunpack.c.l.b16 %v228
    %v1557 = vunpack.c.h.b16 %v228
    %v1558 = vunpack.c.l.b16 %v229
    %v1559 = vunpack.c.h.b16 %v229
    %v1560 = vunpack.c.l.b16 %v230
    %v1561 = vunpack.c.h.b16 %v230
    %v1562 = vunpack.c.l.b16 %v231
    %v1563 = vunpack.c.h.b16 %v231
    %v1564 = vunpack.c.l.b16 %v232
    %v1565 = vunpack.c.h.b16 %v232
    %v1566 = vunpack.c.l.b16 %v233
    %v1567 = vunpack.c.h.b16 %v233
    %v1568 = vunpack.c.l.b16 %v234
    %v1569 = vunpack.c.h.b16 %v234
    %v1570 = vunpack.c.l.b16 %v235
    %v1571 = vunpack.c.h.b16 %v235
    %v1572 = vunpack.c.l.b16 %v236
    %v1573 = vunpack.c.h.b16 %v236
    %v1574 = vunpack.c.l.b16 %v237
    %v1575 = vunpack.c.h.b16 %v237
    %v1576 = vunpack.c.l.b16 %v238
    %v1577 = vunpack.c.h.b16 %v238
    %v1578 = vunpack.c.l.b16 %v239
    %v1579 = vunpack.c.h.b16 %v239
    %v1580 = vunpack.c.l.b16 %v240
    %v1581 = vunpack.c.h.b16 %v240
    %v1582 = vunpack.c.l.b16 %v241
    %v1583 = vunpack.c.h.b16 %v241
    %v1584 = vunpack.c.l.b16 %v242
    %v1585 = vunpack.c.h.b16 %v242
    %v1586 = vunpack.c.l.b16 %v243
    %v1587 = vunpack.c.h.b16 %v243
    %v1588 = vunpack.c.l.b16 %v244
    %v1589 = vunpack.c.h.b16 %v244
    %v1590 = vunpack.c.l.b16 %v245
    %v1591 = vunpack.c.h.b16 %v245
    %v1592 = vunpack.c.l.b16 %v246
    %v1593 = vunpack.c.h.b16 %v246
    %v1594 = vunpack.c.l.b16 %v247
    %v1595 = vunpack.c.h.b16 %v247
    %v1596 = vunpack.c.l.b16 %v248
    %v1597 = vunpack.c.h.b16 %v248
    %v1598 = vunpack.c.l.b16 %v249
    %v1599 = vunpack.c.h.b16 %v249
    %v1600 = vunpack.c.l.b16 %v250
    %v1601 = vunpack.c.h.b16 %v250
    %v1602 = vunpack.c.l.b16 %v251
    %v1603 = vunpack.c.h.b16 %v251
    %v1604 = vunpack.c.l.b16 %v252
    %v1605 = vunpack.c.h.b16 %v252
    %v1606 = vunpack.c.l.b16 %v253
    %v1607 = vunpack.c.h.b16 %v253
    %v1608 = vunpack.c.l.b16 %v254
    %v1609 = vunpack.c.h.b16 %v254
    %v1610 = vunpack.c.l.b16 %v255
    %v1611 = vunpack.c.h.b16 %v255
    %v1612 = vunpack.c.l.b16 %v256
    %v1613 = vunpack.c.h.b16 %v256
    %v1614 = vunpack.c.l.b16 %v257
    %v1615 = vunpack.c.h.b16 %v257
    %v1616 = vunpack.c.l.b16 %v258
    %v1617 = vunpack.c.h.b16 %v258
    %v1618 = vunpack.c.l.b16 %v259
    %v1619 = vunpack.c.h.b16 %v259
    %v1620 = vunpack.c.l.b16 %v260
    %v1621 = vunpack.c.h.b16 %v260
    %v1622 = vunpack.c.l.b16 %v261
    %v1623 = vunpack.c.h.b16 %v261
    %v1624 = vunpack.c.l.b16 %v262
    %v1625 = vunpack.c.h.b16 %v262
    %v1626 = vunpack.c.l.b16 %v263
    %v1627 = vunpack.c.h.b16 %v263
    %v1628 = vunpack.c.l.b16 %v264
    %v1629 = vunpack.c.h.b16 %v264
    %v1630 = vunpack.c.l.b16 %v265
    %v1631 = vunpack.c.h.b16 %v265
    %v1632 = vunpack.c.l.b16 %v266
    %v1633 = vunpack.c.h.b16 %v266
    %v1634 = vunpack.c.l.b16 %v267
    %v1635 = vunpack.c.h.b16 %v267
    %v1636 = vunpack.c.l.b16 %v268
    %v1637 = vunpack.c.h.b16 %v268
    %v1638 = vunpack.c.l.b16 %v269
    %v1639 = vunpack.c.h.b16 %v269
    %v1640 = vunpack.c.l.b16 %v270
    %v1641 = vunpack.c.h.b16 %v270
    %v1642 = vunpack.c.l.b16 %v271
    %v1643 = vunpack.c.h.b16 %v271
    %v1644 = vunpack.c.l.b16 %v272
    %v1645 = vunpack.c.h.b16 %v272
    %v1646 = vunpack.c.l.b16 %v273
    %v1647 = vunpack.c.h.b16 %v273
    %v1648 = vunpack.c.l.b16 %v274
    %v1649 = vunpack.c.h.b16 %v274
    %v1650 = vunpack.c.l.b16 %v275
    %v1651 = vunpack.c.h.b16 %v275
    %v1652 = vunpack.c.l.b16 %v276
    %v1653 = vunpack.c.h.b16 %v276
    %v1654 = vunpack.c.l.b16 %v277
    %v1655 = vunpack.c.h.b16 %v277
    %v1656 = vunpack.c.l.b16 %v278
    %v1657 = vunpack.c.h.b16 %v278
    %v1658 = vunpack.c.l.b16 %v279
    %v1659 = vunpack.c.h.b16 %v279
    %v1660 = vunpack.c.l.b16 %v280
    %v1661 = vunpack.c.h.b16 %v280
    %v1662 = vunpack.c.l.b16 %v281
    %v1663 = vunpack.c.h.b16 %v281
    %v1664 = vunpack.c.l.b16 %v282
    %v1665 = vunpack.c.h.b16 %v282
    %v1666 = vunpack.c.l.b16 %v283
    %v1667 = vunpack.c.h.b16 %v283
    %v1668 = vunpack.c.l.b16 %v284
    %v1669 = vunpack.c.h.b16 %v284
    %v1670 = vunpack.c.l.b16 %v285
    %v1671 = vunpack.c.h.b16 %v285
    %v1672 = vunpack.c.l.b16 %v286
    %v1673 = vunpack.c.h.b16 %v286
    %v1674 = vunpack.c.l.b16 %v287
    %v1675 = vunpack.c.h.b16 %v287
    %v1676 = vunpack.c.l.b16 %v288
    %v1677 = vunpack.c.h.b16 %v288
    %v1678 = vunpack.c.l.b16 %v289
    %v1679 = vunpack.c.h.b16 %v289
    %v1680 = vunpack.c.l.b16 %v290
    %v1681 = vunpack.c.h.b16 %v290
    %v1682 = vunpack.c.l.b16 %v291
    %v1683 = vunpack.c.h.b16 %v291
    %v1684 = vunpack.c.l.b16 %v292
    %v1685 = vunpack.c.h.b16 %v292
    %v1686 = vunpack.c.l.b16 %v293
    %v1687 = vunpack.c.h.b16 %v293
    %v1688 = vunpack.c.l.b16 %v294
    %v1689 = vunpack.c.h.b16 %v294
    %v1690 = vunpack.c.l.b16 %v295
    %v1691 = vunpack.c.h.b16 %v295
    %v1692 = vunpack.c.l.b16 %v296
    %v1693 = vunpack.c.h.b16 %v296
    %v1694 = vunpack.c.l.b16 %v297
    %v1695 = vunpack.c.h.b16 %v297
    %v1696 = vunpack.c.l.b16 %v298
    %v1697 = vunpack.c.h.b16 %v298
    %v1698 = vunpack.c.l.b16 %v299
    %v1699 = vunpack.c.h.b16 %v299
    %v1700 = vunpack.c.l.b16 %v300
    %v1701 = vunpack.c.h.b16 %v300
    %v1702 = vunpack.c.l.b16 %v301
    %v1703 = vunpack.c.h.b16 %v301
    %v1704 = vunpack.c.l.b16 %v302
    %v1705 = vunpack.c.h.b16 %v302
    %v1706 = vunpack.c.l.b16 %v303
    %v1707 = vunpack.c.h.b16 %v303
    %v1708 = vunpack.c.l.b16 %v304
    %v1709 = vunpack.c.h.b16 %v304
    %v1710 = vunpack.c.l.b16 %v305
    %v1711 = vunpack.c.h.b16 %v305
    %v1712 = vunpack.c.l.b16 %v306
    %v1713 = vunpack.c.h.b16 %v306
    %v1714 = vunpack.c.l.b16 %v307
    %v1715 = vunpack.c.h.b16 %v307
    %v1716 = vunpack.c.l.b16 %v308
    %v1717 = vunpack.c.h.b16 %v308
    %v1718 = vunpack.c.l.b16 %v309
    %v1719 = vunpack.c.h.b16 %v309
    %v1720 = vunpack.c.l.b16 %v310
    %v1721 = vunpack.c.h.b16 %v310
    %v1722 = vunpack.c.l.b16 %v311
    %v1723 = vunpack.c.h.b16 %v311
    %v1724 = vunpack.c.l.b16 %v312
    %v1725 = vunpack.c.h.b16 %v312
    %v1726 = vunpack.c.l.b16 %v313
    %v1727 = vunpack.c.h.b16 %v313
    %v1728 = vunpack.c.l.b16 %v314
    %v1729 = vunpack.c.h.b16 %v314
    %v1730 = vunpack.c.l.b16 %v315
    %v1731 = vunpack.c.h.b16 %v315
    %v1732 = vunpack.c.l.b16 %v316
    %v1733 = vunpack.c.h.b16 %v316
    %v1734 = vunpack.c.l.b16 %v317
    %v1735 = vunpack.c.h.b16 %v317
    %v1736 = vunpack.c.l.b16 %v318
    %v1737 = vunpack.c.h.b16 %v318
    %v1738 = vunpack.c.l.b16 %v319
    %v1739 = vunpack.c.h.b16 %v319
    %v1740 = vunpack.c.l.b16 %v320
    %v1741 = vunpack.c.h.b16 %v320
    %v1742 = vunpack.c.l.b16 %v321
    %v1743 = vunpack.c.h.b16 %v321
    %v1744 = vunpack.c.l.b16 %v322
    %v1745 = vunpack.c.h.b16 %v322
    %v1746 = vunpack.c.l.b16 %v323
    %v1747 = vunpack.c.h.b16 %v323
    %v1748 = vunpack.c.l.b16 %v324
    %v1749 = vunpack.c.h.b16 %v324
    %v1750 = vunpack.c.l.b16 %v325
    %v1751 = vunpack.c.h.b16 %v325
    %v1752 = vunpack.c.l.b16 %v326
    %v1753 = vunpack.c.h.b16 %v326
    %v1754 = vunpack.c.l.b16 %v327
    %v1755 = vunpack.c.h.b16 %v327
    %v1756 = vunpack.c.l.b16 %v328
    %v1757 = vunpack.c.h.b16 %v328
    %v1758 = vunpack.c.l.b16 %v329
    %v1759 = vunpack.c.h.b16 %v329
    %v1760 = vunpack.c.l.b16 %v330
    %v1761 = vunpack.c.h.b16 %v330
    %v1762 = vunpack.c.l.b16 %v331
    %v1763 = vunpack.c.h.b16 %v331
    %v1764 = vunpack.c.l.b16 %v332
    %v1765 = vunpack.c.h.b16 %v332
    %v1766 = vunpack.c.l.b16 %v333
    %v1767 = vunpack.c.h.b16 %v333
    %v1768 = vunpack.c.l.b16 %v334
    %v1769 = vunpack.c.h.b16 %v334
    %v1770 = vunpack.c.l.b16 %v335
    %v1771 = vunpack.c.h.b16 %v335
    %v1772 = vunpack.c.l.b16 %v336
    %v1773 = vunpack.c.h.b16 %v336
    %v1774 = vunpack.c.l.b16 %v337
    %v1775 = vunpack.c.h.b16 %v337
    %v1776 = vunpack.c.l.b16 %v338
    %v1777 = vunpack.c.h.b16 %v338
    %v1778 = vunpack.c.l.b16 %v339
    %v1779 = vunpack.c.h.b16 %v339
    %v1780 = vunpack.c.l.b16 %v340
    %v1781 = vunpack.c.h.b16 %v340
    %v1782 = vunpack.c.l.b16 %v341
    %v1783 = vunpack.c.h.b16 %v341
    %v1784 = vunpack.c.l.b16 %v342
    %v1785 = vunpack.c.h.b16 %v342
    %v1786 = vunpack.c.l.b16 %v343
    %v1787 = vunpack.c.h.b16 %v343
    %v1788 = vunpack.c.l.b16 %v344
    %v1789 = vunpack.c.h.b16 %v344
    %v1790 = vunpack.c.l.b16 %v345
    %v1791 = vunpack.c.h.b16 %v345
    %v1792 = vunpack.c.l.b16 %v346
    %v1793 = vunpack.c.h.b16 %v346
    %v1794 = vunpack.c.l.b16 %v347
    %v1795 = vunpack.c.h.b16 %v347
    %v1796 = vunpack.c.l.b16 %v348
    %v1797 = vunpack.c.h.b16 %v348
    %v1798 = vunpack.c.l.b16 %v349
    %v1799 = vunpack.c.h.b16 %v349
    %v1800 = vunpack.c.l.b16 %v350
    %v1801 = vunpack.c.h.b16 %v350
    %v1802 = vunpack.c.l.b16 %v351
    %v1803 = vunpack.c.h.b16 %v351
    %v1804 = vunpack.c.l.b16 %v352
    %v1805 = vunpack.c.h.b16 %v352
    %v1806 = vunpack.c.l.b16 %v353
    %v1807 = vunpack.c.h.b16 %v353
    %v1808 = vunpack.c.l.b16 %v354
    %v1809 = vunpack.c.h.b16 %v354
    %v1810 = vunpack.c.l.b16 %v355
    %v1811 = vunpack.c.h.b16 %v355
    %v1812 = vunpack.c.l.b16 %v356
    %v1813 = vunpack.c.h.b16 %v356
    %v1814 = vunpack.c.l.b16 %v357
    %v1815 = vunpack.c.h.b16 %v357
    %v1816 = vunpack.c.l.b16 %v358
    %v1817 = vunpack.c.h.b16 %v358
    %v1818 = vunpack.c.l.b16 %v359
    %v1819 = vunpack.c.h.b16 %v359
    %v1820 = vunpack.c.l.b16 %v360
    %v1821 = vunpack.c.h.b16 %v360
    %v1822 = vunpack.c.l.b16 %v361
    %v1823 = vunpack.c.h.b16 %v361
    %v1824 = vunpack.c.l.b16 %v362
    %v1825 = vunpack.c.h.b16 %v362
    %v1826 = vunpack.c.l.b16 %v363
    %v1827 = vunpack.c.h.b16 %v363
    %v1828 = vunpack.c.l.b16 %v364
    %v1829 = vunpack.c.h.b16 %v364
    %v1830 = vunpack.c.l.b16 %v365
    %v1831 = vunpack.c.h.b16 %v365
    %v1832 = vunpack.c.l.b16 %v366
    %v1833 = vunpack.c.h.b16 %v366
    %v1834 = vunpack.c.l.b16 %v367
    %v1835 = vunpack.c.h.b16 %v367
    %v1836 = vunpack.c.l.b16 %v368
    %v1837 = vunpack.c.h.b16 %v368
    %v1838 = vunpack.c.l.b16 %v369
    %v1839 = vunpack.c.h.b16 %v369
    %v1840 = vunpack.c.l.b16 %v370
    %v1841 = vunpack.c.h.b16 %v370
    %v1842 = vunpack.c.l.b16 %v371
    %v1843 = vunpack.c.h.b16 %v371
    %v1844 = vunpack.c.l.b16 %v372
    %v1845 = vunpack.c.h.b16 %v372
    %v1846 = vunpack.c.l.b16 %v373
    %v1847 = vunpack.c.h.b16 %v373
    %v1848 = vunpack.c.l.b16 %v374
    %v1849 = vunpack.c.h.b16 %v374
    %v1850 = vunpack.c.l.b16 %v375
    %v1851 = vunpack.c.h.b16 %v375
    %v1852 = vunpack.c.l.b16 %v376
    %v1853 = vunpack.c.h.b16 %v376
    %v1854 = vunpack.c.l.b16 %v377
    %v1855 = vunpack.c.h.b16 %v377
    %v1856 = vunpack.c.l.b16 %v378
    %v1857 = vunpack.c.h.b16 %v378
    %v1858 = vunpack.c.l.b16 %v379
    %v1859 = vunpack.c.h.b16 %v379
    %v1860 = vunpack.c.l.b16 %v380
    %v1861 = vunpack.c.h.b16 %v380
    %v1862 = vunpack.c.l.b16 %v381
    %v1863 = vunpack.c.h.b16 %v381
    %v1864 = vunpack.c.l.b16 %v382
    %v1865 = vunpack.c.h.b16 %v382
    %v1866 = vunpack.c.l.b16 %v383
    %v1867 = vunpack.c.h.b16 %v383
    %v1868 = vunpack.c.l.b16 %v384
    %v1869 = vunpack.c.h.b16 %v384
    %v1870 = vunpack.c.l.b16 %v385
    %v1871 = vunpack.c.h.b16 %v385
    %v1872 = vunpack.c.l.b16 %v386
    %v1873 = vunpack.c.h.b16 %v386
    %v1874 = vunpack.c.l.b16 %v387
    %v1875 = vunpack.c.h.b16 %v387
    %v1876 = vunpack.c.l.b16 %v388
    %v1877 = vunpack.c.h.b16 %v388
    %v1878 = vunpack.c.l.b16 %v389
    %v1879 = vunpack.c.h.b16 %v389
    %v1880 = vunpack.c.l.b16 %v390
    %v1881 = vunpack.c.h.b16 %v390
    %v1882 = vunpack.c.l.b16 %v391
    %v1883 = vunpack.c.h.b16 %v391
    %v1884 = vunpack.c.l.b16 %v392
    %v1885 = vunpack.c.h.b16 %v392
    %v1886 = vunpack.c.l.b16 %v393
    %v1887 = vunpack.c.h.b16 %v393
    %v1888 = vunpack.c.l.b16 %v394
    %v1889 = vunpack.c.h.b16 %v394
    %v1890 = vunpack.c.l.b16 %v395
    %v1891 = vunpack.c.h.b16 %v395
    %v1892 = vunpack.c.l.b16 %v396
    %v1893 = vunpack.c.h.b16 %v396
    %v1894 = vunpack.c.l.b16 %v397
    %v1895 = vunpack.c.h.b16 %v397
    %v1896 = vunpack.c.l.b16 %v398
    %v1897 = vunpack.c.h.b16 %v398
    %v1898 = vunpack.c.l.b16 %v399
    %v1899 = vunpack.c.h.b16 %v399
    %v1900 = vunpack.c.l.b16 %v400
    %v1901 = vunpack.c.h.b16 %v400
    %v1902 = vunpack.c.l.b16 %v401
    %v1903 = vunpack.c.h.b16 %v401
    %v1904 = vunpack.c.l.b16 %v402
    %v1905 = vunpack.c.h.b16 %v402
    %v1906 = vunpack.c.l.b16 %v403
    %v1907 = vunpack.c.h.b16 %v403
    %v1908 = vunpack.c.l.b16 %v404
    %v1909 = vunpack.c.h.b16 %v404
    %v1910 = vunpack.c.l.b16 %v405
    %v1911 = vunpack.c.h.b16 %v405
    %v1912 = vunpack.c.l.b16 %v406
    %v1913 = vunpack.c.h.b16 %v406
    %v1914 = vunpack.c.l.b16 %v407
    %v1915 = vunpack.c.h.b16 %v407
    %v1916 = vunpack.c.l.b16 %v408
    %v1917 = vunpack.c.h.b16 %v408
    %v1918 = vunpack.c.l.b16 %v409
    %v1919 = vunpack.c.h.b16 %v409
    %v1920 = vunpack.c.l.b16 %v410
    %v1921 = vunpack.c.h.b16 %v410
    %v1922 = vunpack.c.l.b16 %v411
    %v1923 = vunpack.c.h.b16 %v411
    %v1924 = vunpack.c.l.b16 %v412
    %v1925 = vunpack.c.h.b16 %v412
    %v1926 = vunpack.c.l.b16 %v413
    %v1927 = vunpack.c.h.b16 %v413
    %v1928 = vunpack.c.l.b16 %v414
    %v1929 = vunpack.c.h.b16 %v414
    %v1930 = vunpack.c.l.b16 %v415
    %v1931 = vunpack.c.h.b16 %v415
    %v1932 = vunpack.c.l.b16 %v416
    %v1933 = vunpack.c.h.b16 %v416
    %v1934 = vunpack.c.l.b16 %v417
    %v1935 = vunpack.c.h.b16 %v417
    %v1936 = vunpack.c.l.b16 %v418
    %v1937 = vunpack.c.h.b16 %v418
    %v1938 = vunpack.c.l.b16 %v419
    %v1939 = vunpack.c.h.b16 %v419
    %v1940 = vunpack.c.l.b16 %v420
    %v1941 = vunpack.c.h.b16 %v420
    %v1942 = vunpack.c.l.b16 %v421
    %v1943 = vunpack.c.h.b16 %v421
    %v1944 = vunpack.c.l.b16 %v422
    %v1945 = vunpack.c.h.b16 %v422
    %v1946 = vunpack.c.l.b16 %v423
    %v1947 = vunpack.c.h.b16 %v423
    %v1948 = vunpack.c.l.b16 %v424
    %v1949 = vunpack.c.h.b16 %v424
    %v1950 = vunpack.c.l.b16 %v425
    %v1951 = vunpack.c.h.b16 %v425
    %v1952 = vunpack.c.l.b16 %v426
    %v1953 = vunpack.c.h.b16 %v426
    %v1954 = vunpack.c.l.b16 %v427
    %v1955 = vunpack.c.h.b16 %v427
    %v1956 = vunpack.c.l.b16 %v428
    %v1957 = vunpack.c.h.b16 %v428
    %v1958 = vunpack.c.l.b16 %v429
    %v1959 = vunpack.c.h.b16 %v429
    %v1960 = vunpack.c.l.b16 %v430
    %v1961 = vunpack.c.h.b16 %v430
    %v1962 = vunpack.c.l.b16 %v431
    %v1963 = vunpack.c.h.b16 %v431
    %v1964 = vunpack.c.l.b16 %v432
    %v1965 = vunpack.c.h.b16 %v432
    %v1966 = vunpack.c.l.b16 %v433
    %v1967 = vunpack.c.h.b16 %v433
    %v1968 = vunpack.c.l.b16 %v434
    %v1969 = vunpack.c.h.b16 %v434
    %v1970 = vunpack.c.l.b16 %v435
    %v1971 = vunpack.c.h.b16 %v435
    %v1972 = vunpack.c.l.b16 %v436
    %v1973 = vunpack.c.h.b16 %v436
    %v1974 = vunpack.c.l.b16 %v437
    %v1975 = vunpack.c.h.b16 %v437
    %v1976 = vunpack.c.l.b16 %v438
    %v1977 = vunpack.c.h.b16 %v438
    %v1978 = vunpack.c.l.b16 %v439
    %v1979 = vunpack.c.h.b16 %v439
    %v1980 = vunpack.c.l.b16 %v440
    %v1981 = vunpack.c.h.b16 %v440
    %v1982 = vunpack.c.l.b16 %v441
    %v1983 = vunpack.c.h.b16 %v441
    %v1984 = vunpack.c.l.b16 %v442
    %v1985 = vunpack.c.h.b16 %v442
    %v1986 = vunpack.c.l.b16 %v443
    %v1987 = vunpack.c.h.b16 %v443
    %v1988 = vunpack.c.l.b16 %v444
    %v1989 = vunpack.c.h.b16 %v444
    %v1990 = vunpack.c.l.b16 %v445
    %v1991 = vunpack.c.h.b16 %v445
    %v1992 = vunpack.c.l.b16 %v446
    %v1993 = vunpack.c.h.b16 %v446
    %v1994 = vunpack.c.l.b16 %v447
    %v1995 = vunpack.c.h.b16 %v447
    %v1996 = vunpack.c.l.b16 %v448
    %v1997 = vunpack.c.h.b16 %v448
    %v1998 = vunpack.c.l.b16 %v449
    %v1999 = vunpack.c.h.b16 %v449
    %v2000 = vunpack.c.l.b16 %v450
    %v2001 = vunpack.c.h.b16 %v450
    %v2002 = vunpack.c.l.b16 %v451
    %v2003 = vunpack.c.h.b16 %v451
    %v2004 = vunpack.c.l.b16 %v452
    %v2005 = vunpack.c.h.b16 %v452
    %v2006 = vunpack.c.l.b16 %v453
    %v2007 = vunpack.c.h.b16 %v453
    %v2008 = vunpack.c.l.b16 %v454
    %v2009 = vunpack.c.h.b16 %v454
    %v2010 = vunpack.c.l.b16 %v455
    %v2011 = vunpack.c.h.b16 %v455
    %v2012 = vunpack.c.l.b16 %v456
    %v2013 = vunpack.c.h.b16 %v456
    %v2014 = vunpack.c.l.b16 %v457
    %v2015 = vunpack.c.h.b16 %v457
    %v2016 = vunpack.c.l.b16 %v458
    %v2017 = vunpack.c.h.b16 %v458
    %v2018 = vunpack.c.l.b16 %v459
    %v2019 = vunpack.c.h.b16 %v459
    %v2020 = vunpack.c.l.b16 %v460
    %v2021 = vunpack.c.h.b16 %v460
    %v2022 = vunpack.c.l.b16 %v461
    %v2023 = vunpack.c.h.b16 %v461
    %v2024 = vunpack.c.l.b16 %v462
    %v2025 = vunpack.c.h.b16 %v462
    %v2026 = vunpack.c.l.b16 %v463
    %v2027 = vunpack.c.h.b16 %v463
    %v2028 = vunpack.c.l.b16 %v464
    %v2029 = vunpack.c.h.b16 %v464
    %v2030 = vunpack.c.l.b16 %v465
    %v2031 = vunpack.c.h.b16 %v465
    %v2032 = vunpack.c.l.b16 %v466
    %v2033 = vunpack.c.h.b16 %v466
    %v2034 = vunpack.c.l.b16 %v467
    %v2035 = vunpack.c.h.b16 %v467
    %v2036 = vunpack.c.l.b16 %v468
    %v2037 = vunpack.c.h.b16 %v468
    %v2038 = vunpack.c.l.b16 %v469
    %v2039 = vunpack.c.h.b16 %v469
    %v2040 = vunpack.c.l.b16 %v470
    %v2041 = vunpack.c.h.b16 %v470
    %v2042 = vunpack.c.l.b16 %v471
    %v2043 = vunpack.c.h.b16 %v471
    %v2044 = vunpack.c.l.b16 %v472
    %v2045 = vunpack.c.h.b16 %v472
    %v2046 = vunpack.c.l.b16 %v473
    %v2047 = vunpack.c.h.b16 %v473
    %v2048 = vunpack.c.l.b16 %v474
    %v2049 = vunpack.c.h.b16 %v474
    %v2050 = vunpack.c.l.b16 %v475
    %v2051 = vunpack.c.h.b16 %v475
    %v2052 = vunpack.c.l.b16 %v476
    %v2053 = vunpack.c.h.b16 %v476
    %v2054 = vunpack.c.l.b16 %v477
    %v2055 = vunpack.c.h.b16 %v477
    %v2056 = vunpack.c.l.b16 %v478
    %v2057 = vunpack.c.h.b16 %v478
    %v2058 = vunpack.c.l.b16 %v479
    %v2059 = vunpack.c.h.b16 %v479
    %v2060 = vunpack.c.l.b16 %v480
    %v2061 = vunpack.c.h.b16 %v480
    %v2062 = vunpack.c.l.b16 %v481
    %v2063 = vunpack.c.h.b16 %v481
    %v2064 = vunpack.c.l.b16 %v482
    %v2065 = vunpack.c.h.b16 %v482
    %v2066 = vunpack.c.l.b16 %v483
    %v2067 = vunpack.c.h.b16 %v483
    %v2068 = vunpack.c.l.b16 %v484
    %v2069 = vunpack.c.h.b16 %v484
    %v2070 = vunpack.c.l.b16 %v485
    %v2071 = vunpack.c.h.b16 %v485
    %v2072 = vunpack.c.l.b16 %v486
    %v2073 = vunpack.c.h.b16 %v486
    %v2074 = vunpack.c.l.b16 %v487
    %v2075 = vunpack.c.h.b16 %v487
    %v2076 = vunpack.c.l.b16 %v488
    %v2077 = vunpack.c.h.b16 %v488
    %v2078 = vunpack.c.l.b16 %v489
    %v2079 = vunpack.c.h.b16 %v489
    %v2080 = vunpack.c.l.b16 %v490
    %v2081 = vunpack.c.h.b16 %v490
    %v2082 = vunpack.c.l.b16 %v491
    %v2083 = vunpack.c.h.b16 %v491
    %v2084 = vunpack.c.l.b16 %v492
    %v2085 = vunpack.c.h.b16 %v492
    %v2086 = vunpack.c.l.b16 %v493
    %v2087 = vunpack.c.h.b16 %v493
    %v2088 = vunpack.c.l.b16 %v494
    %v2089 = vunpack.c.h.b16 %v494
    %v2090 = vunpack.c.l.b16 %v495
    %v2091 = vunpack.c.h.b16 %v495
    %v2092 = vunpack.c.l.b16 %v496
    %v2093 = vunpack.c.h.b16 %v496
    %v2094 = vunpack.c.l.b16 %v497
    %v2095 = vunpack.c.h.b16 %v497
    %v2096 = vunpack.c.l.b16 %v498
    %v2097 = vunpack.c.h.b16 %v498
    %v2098 = vunpack.c.l.b16 %v499
    %v2099 = vunpack.c.h.b16 %v499
    %v2100 = vunpack.c.l.b16 %v500
    %v2101 = vunpack.c.h.b16 %v500
    %v2102 = vunpack.c.l.b16 %v501
    %v2103 = vunpack.c.h.b16 %v501
    %v2104 = vunpack.c.l.b16 %v502
    %v2105 = vunpack.c.h.b16 %v502
    %v2106 = vunpack.c.l.b16 %v503
    %v2107 = vunpack.c.h.b16 %v503
    %v2108 = vunpack.c.l.b16 %v504
    %v2109 = vunpack.c.h.b16 %v504
    %v2110 = vunpack.c.l.b16 %v505
    %v2111 = vunpack.c.h.b16 %v505
    %v2112 = vunpack.c.l.b16 %v506
    %v2113 = vunpack.c.h.b16 %v506
    %v2114 = vunpack.c.l.b16 %v507
    %v2115 = vunpack.c.h.b16 %v507
    %v2116 = vunpack.c.l.b16 %v508
    %v2117 = vunpack.c.h.b16 %v508
    %v2118 = vunpack.c.l.b16 %v509
    %v2119 = vunpack.c.h.b16 %v509
    %v2120 = vunpack.c.l.b16 %v510
    %v2121 = vunpack.c.h.b16 %v510
    %v2122 = vunpack.c.l.b16 %v511
    %v2123 = vunpack.c.h.b16 %v511
    %v2124 = vunpack.c.l.b16 %v512
    %v2125 = vunpack.c.h.b16 %v512
    %v2126 = vunpack.c.l.b16 %v513
    %v2127 = vunpack.c.h.b16 %v513
    %v2128 = vunpack.c.l.b16 %v514
    %v2129 = vunpack.c.h.b16 %v514
    %v2130 = vunpack.c.l.b16 %v515
    %v2131 = vunpack.c.h.b16 %v515
    %v2132 = vunpack.c.l.b16 %v516
    %v2133 = vunpack.c.h.b16 %v516
    %v2134 = vunpack.c.l.b16 %v517
    %v2135 = vunpack.c.h.b16 %v517
    %v2136 = vunpack.c.l.b16 %v518
    %v2137 = vunpack.c.h.b16 %v518
    %v2138 = vunpack.c.l.b16 %v519
    %v2139 = vunpack.c.h.b16 %v519
    %v2140 = vunpack.c.l.b16 %v520
    %v2141 = vunpack.c.h.b16 %v520
    %v2142 = vunpack.c.l.b16 %v521
    %v2143 = vunpack.c.h.b16 %v521
    %v2144 = vunpack.c.l.b16 %v522
    %v2145 = vunpack.c.h.b16 %v522
    %v2146 = vunpack.c.l.b16 %v523
    %v2147 = vunpack.c.h.b16 %v523
    %v2148 = vunpack.c.l.b16 %v524
    %v2149 = vunpack.c.h.b16 %v524
    %v2150 = vunpack.c.l.b16 %v525
    %v2151 = vunpack.c.h.b16 %v525
    %v2152 = vunpack.c.l.b16 %v526
    %v2153 = vunpack.c.h.b16 %v526
    %v2154 = vunpack.c.l.b16 %v527
    %v2155 = vunpack.c.h.b16 %v527
    %v2156 = vunpack.c.l.b16 %v528
    %v2157 = vunpack.c.h.b16 %v528
    %v2158 = vunpack.c.l.b16 %v529
    %v2159 = vunpack.c.h.b16 %v529
    %v2160 = vunpack.c.l.b16 %v530
    %v2161 = vunpack.c.h.b16 %v530
    %v2162 = vunpack.c.l.b16 %v531
    %v2163 = vunpack.c.h.b16 %v531
    %v2164 = vunpack.c.l.b16 %v532
    %v2165 = vunpack.c.h.b16 %v532
    %v2166 = vunpack.c.l.b16 %v533
    %v2167 = vunpack.c.h.b16 %v533
    %v2168 = vunpack.c.l.b16 %v534
    %v2169 = vunpack.c.h.b16 %v534
    %v2170 = vunpack.c.l.b16 %v535
    %v2171 = vunpack.c.h.b16 %v535
    %v2172 = vunpack.c.l.b16 %v536
    %v2173 = vunpack.c.h.b16 %v536
    %v2174 = vunpack.c.l.b16 %v537
    %v2175 = vunpack.c.h.b16 %v537
    %v2176 = vunpack.c.l.b16 %v538
    %v2177 = vunpack.c.h.b16 %v538
    %v2178 = vunpack.c.l.b16 %v539
    %v2179 = vunpack.c.h.b16 %v539
    %v2180 = vunpack.c.l.b16 %v540
    %v2181 = vunpack.c.h.b16 %v540
    %v2182 = vunpack.c.l.b16 %v541
    %v2183 = vunpack.c.h.b16 %v541
    %v2184 = vunpack.c.l.b16 %v542
    %v2185 = vunpack.c.h.b16 %v542
    %v2186 = vunpack.c.l.b16 %v543
    %v2187 = vunpack.c.h.b16 %v543
    %v2188 = vunpack.c.l.b16 %v544
    %v2189 = vunpack.c.h.b16 %v544
    %v2190 = vunpack.c.l.b16 %v545
    %v2191 = vunpack.c.h.b16 %v545
    %v2192 = vunpack.c.l.b16 %v546
    %v2193 = vunpack.c.h.b16 %v546
    %v2194 = vunpack.c.l.b16 %v547
    %v2195 = vunpack.c.h.b16 %v547
    %v2196 = vunpack.c.l.b16 %v548
    %v2197 = vunpack.c.h.b16 %v548
    %v2198 = vunpack.c.l.b16 %v549
    %v2199 = vunpack.c.h.b16 %v549
    %v2200 = vunpack.c.l.b16 %v550
    %v2201 = vunpack.c.h.b16 %v550
    %v2202 = vunpack.c.l.b16 %v551
    %v2203 = vunpack.c.h.b16 %v551
    %v2204 = vunpack.c.l.b16 %v552
    %v2205 = vunpack.c.h.b16 %v552
    %v2206 = vunpack.c.l.b16 %v553
    %v2207 = vunpack.c.h.b16 %v553
    %v2208 = vunpack.c.l.b16 %v554
    %v2209 = vunpack.c.h.b16 %v554
    %v2210 = vunpack.c.l.b16 %v555
    %v2211 = vunpack.c.h.b16 %v555
    %v2212 = vunpack.c.l.b16 %v556
    %v2213 = vunpack.c.h.b16 %v556
    %v2214 = vunpack.c.l.b16 %v557
    %v2215 = vunpack.c.h.b16 %v557
    %v2216 = vunpack.c.l.b16 %v558
    %v2217 = vunpack.c.h.b16 %v558
    %v2218 = vunpack.c.l.b16 %v559
    %v2219 = vunpack.c.h.b16 %v559
    %v2220 = vunpack.c.l.b16 %v560
    %v2221 = vunpack.c.h.b16 %v560
    %v2222 = vunpack.c.l.b16 %v561
    %v2223 = vunpack.c.h.b16 %v561
    %v2224 = vunpack.c.l.b16 %v562
    %v2225 = vunpack.c.h.b16 %v562
    %v2226 = vunpack.c.l.b16 %v563
    %v2227 = vunpack.c.h.b16 %v563
    %v2228 = vunpack.c.l.b16 %v564
    %v2229 = vunpack.c.h.b16 %v564
    %v2230 = vunpack.c.l.b16 %v565
    %v2231 = vunpack.c.h.b16 %v565
    %v2232 = vunpack.c.l.b16 %v566
    %v2233 = vunpack.c.h.b16 %v566
    %v2234 = vunpack.c.l.b16 %v567
    %v2235 = vunpack.c.h.b16 %v567
    %v2236 = vunpack.c.l.b16 %v568
    %v2237 = vunpack.c.h.b16 %v568
    %v2238 = vunpack.c.l.b16 %v569
    %v2239 = vunpack.c.h.b16 %v569
    %v2240 = vunpack.c.l.b16 %v570
    %v2241 = vunpack.c.h.b16 %v570
    %v2242 = vunpack.c.l.b16 %v571
    %v2243 = vunpack.c.h.b16 %v571
    %v2244 = vunpack.c.l.b16 %v572
    %v2245 = vunpack.c.h.b16 %v572
    %v2246 = vunpack.c.l.b16 %v573
    %v2247 = vunpack.c.h.b16 %v573
    %v2248 = vunpack.c.l.b16 %v574
    %v2249 = vunpack.c.h.b16 %v574
    %v2250 = vunpack.c.l.b16 %v575
    %v2251 = vunpack.c.h.b16 %v575
    %v2252 = vunpack.c.l.b16 %v576
    %v2253 = vunpack.c.h.b16 %v576
    %v2254 = vunpack.c.l.b16 %v577
    %v2255 = vunpack.c.h.b16 %v577
    %v2256 = vunpack.c.l.b16 %v578
    %v2257 = vunpack.c.h.b16 %v578
    %v2258 = vunpack.c.l.b16 %v579
    %v2259 = vunpack.c.h.b16 %v579
    %v2260 = vunpack.c.l.b16 %v580
    %v2261 = vunpack.c.h.b16 %v580
    %v2262 = vunpack.c.l.b16 %v581
    %v2263 = vunpack.c.h.b16 %v581
    %v2264 = vunpack.c.l.b16 %v582
    %v2265 = vunpack.c.h.b16 %v582
    %v2266 = vunpack.c.l.b16 %v583
    %v2267 = vunpack.c.h.b16 %v583
    %v2268 = vunpack.c.l.b16 %v584
    %v2269 = vunpack.c.h.b16 %v584
    %v2270 = vunpack.c.l.b16 %v585
    %v2271 = vunpack.c.h.b16 %v585
    %v2272 = vunpack.c.l.b16 %v586
    %v2273 = vunpack.c.h.b16 %v586
    %v2274 = vunpack.c.l.b16 %v587
    %v2275 = vunpack.c.h.b16 %v587
    %v2276 = vunpack.c.l.b16 %v588
    %v2277 = vunpack.c.h.b16 %v588
    %v2278 = vunpack.c.l.b16 %v589
    %v2279 = vunpack.c.h.b16 %v589
    %v2280 = vunpack.c.l.b16 %v590
    %v2281 = vunpack.c.h.b16 %v590
    %v2282 = vunpack.c.l.b16 %v591
    %v2283 = vunpack.c.h.b16 %v591
    %v2284 = vunpack.c.l.b16 %v592
    %v2285 = vunpack.c.h.b16 %v592
    %v2286 = vunpack.c.l.b16 %v593
    %v2287 = vunpack.c.h.b16 %v593
    %v2288 = vunpack.c.l.b16 %v594
    %v2289 = vunpack.c.h.b16 %v594
    %v2290 = vunpack.c.l.b16 %v595
    %v2291 = vunpack.c.h.b16 %v595
    %v2292 = vunpack.c.l.b16 %v596
    %v2293 = vunpack.c.h.b16 %v596
    %v2294 = vunpack.c.l.b16 %v597
    %v2295 = vunpack.c.h.b16 %v597
    %v2296 = vunpack.c.l.b16 %v598
    %v2297 = vunpack.c.h.b16 %v598
    %v2298 = vunpack.c.l.b16 %v599
    %v2299 = vunpack.c.h.b16 %v599
    %v2300 = vunpack.c.l.b16 %v600
    %v2301 = vunpack.c.h.b16 %v600
    %v2302 = vunpack.c.l.b16 %v601
    %v2303 = vunpack.c.h.b16 %v601
    %v2304 = vunpack.c.l.b16 %v602
    %v2305 = vunpack.c.h.b16 %v602
    %v2306 = vunpack.c.l.b16 %v603
    %v2307 = vunpack.c.h.b16 %v603
    %v2308 = vunpack.c.l.b16 %v604
    %v2309 = vunpack.c.h.b16 %v604
    %v2310 = vunpack.c.l.b16 %v605
    %v2311 = vunpack.c.h.b16 %v605
    %v2312 = vunpack.c.l.b16 %v606
    %v2313 = vunpack.c.h.b16 %v606
    %v2314 = vunpack.c.l.b16 %v607
    %v2315 = vunpack.c.h.b16 %v607
    %v2316 = vunpack.c.l.b16 %v608
    %v2317 = vunpack.c.h.b16 %v608
    %v2318 = vunpack.c.l.b16 %v609
    %v2319 = vunpack.c.h.b16 %v609
    %v2320 = vunpack.c.l.b16 %v610
    %v2321 = vunpack.c.h.b16 %v610
    %v2322 = vunpack.c.l.b16 %v611
    %v2323 = vunpack.c.h.b16 %v611
    %v2324 = vunpack.c.l.b16 %v612
    %v2325 = vunpack.c.h.b16 %v612
    %v2326 = vunpack.c.l.b16 %v613
    %v2327 = vunpack.c.h.b16 %v613
    %v2328 = vunpack.c.l.b16 %v614
    %v2329 = vunpack.c.h.b16 %v614
    %v2330 = vunpack.c.l.b16 %v615
    %v2331 = vunpack.c.h.b16 %v615
    %v2332 = vunpack.c.l.b16 %v616
    %v2333 = vunpack.c.h.b16 %v616
    %v2334 = vunpack.c.l.b16 %v617
    %v2335 = vunpack.c.h.b16 %v617
    %v2336 = vunpack.c.l.b16 %v618
    %v2337 = vunpack.c.h.b16 %v618
    %v2338 = vunpack.c.l.b16 %v619
    %v2339 = vunpack.c.h.b16 %v619
    %v2340 = vunpack.c.l.b16 %v620
    %v2341 = vunpack.c.h.b16 %v620
    %v2342 = vunpack.c.l.b16 %v621
    %v2343 = vunpack.c.h.b16 %v621
    %v2344 = vunpack.c.l.b16 %v622
    %v2345 = vunpack.c.h.b16 %v622
    %v2346 = vunpack.c.l.b16 %v623
    %v2347 = vunpack.c.h.b16 %v623
    %v2348 = vpack.c.b16 %v1326, %v1324
    %v2349 = vpack.c.b16 %v1327, %v1325
    %v2350 = vpack.c.b16 %v1330, %v1328
    %v2351 = vpack.c.b16 %v1331, %v1329
    %v2352 = vpack.c.b16 %v1334, %v1332
    %v2353 = vpack.c.b16 %v1335, %v1333
    %v2354 = vpack.c.b16 %v1338, %v1336
    %v2355 = vpack.c.b16 %v1339, %v1337
    %v2356 = vpack.c.b16 %v1342, %v1340
    %v2357 = vpack.c.b16 %v1343, %v1341
    %v2358 = vpack.c.b16 %v1346, %v1344
    %v2359 = vpack.c.b16 %v1347, %v1345
    %v2360 = vpack.c.b16 %v1350, %v1348
    %v2361 = vpack.c.b16 %v1351, %v1349
    %v2362 = vpack.c.b16 %v1354, %v1352
    %v2363 = vpack.c.b16 %v1355, %v1353
    %v2364 = vpack.c.b16 %v1358, %v1356
    %v2365 = vpack.c.b16 %v1359, %v1357
    %v2366 = vpack.c.b16 %v1362, %v1360
    %v2367 = vpack.c.b16 %v1363, %v1361
    %v2368 = vpack.c.b16 %v1366, %v1364
    %v2369 = vpack.c.b16 %v1367, %v1365
    %v2370 = vpack.c.b16 %v1370, %v1368
    %v2371 = vpack.c.b16 %v1371, %v1369
    %v2372 = vpack.c.b16 %v1374, %v1372
    %v2373 = vpack.c.b16 %v1375, %v1373
    %v2374 = vpack.c.b16 %v1378, %v1376
    %v2375 = vpack.c.b16 %v1379, %v1377
    %v2376 = vpack.c.b16 %v1382, %v1380
    %v2377 = vpack.c.b16 %v1383, %v1381
    %v2378 = vpack.c.b16 %v1386, %v1384
    %v2379 = vpack.c.b16 %v1387, %v1385
    %v2380 = vpack.c.b16 %v1390, %v1388
    %v2381 = vpack.c.b16 %v1391, %v1389
    %v2382 = vpack.c.b16 %v1394, %v1392
    %v2383 = vpack.c.b16 %v1395, %v1393
    %v2384 = vpack.c.b16 %v1398, %v1396
    %v2385 = vpack.c.b16 %v1399, %v1397
    %v2386 = vpack.c.b16 %v1402, %v1400
    %v2387 = vpack.c.b16 %v1403, %v1401
    %v2388 = vpack.c.b16 %v1406, %v1404
    %v2389 = vpack.c.b16 %v1407, %v1405
    %v2390 = vpack.c.b16 %v1410, %v1408
    %v2391 = vpack.c.b16 %v1411, %v1409
    %v2392 = vpack.c.b16 %v1414, %v1412
    %v2393 = vpack.c.b16 %v1415, %v1413
    %v2394 = vpack.c.b16 %v1418, %v1416
    %v2395 = vpack.c.b16 %v1419, %v1417
    %v2396 = vpack.c.b16 %v1422, %v1420
    %v2397 = vpack.c.b16 %v1423, %v1421
    %v2398 = vpack.c.b16 %v1426, %v1424
    %v2399 = vpack.c.b16 %v1427, %v1425
    %v2400 = vpack.c.b16 %v1430, %v1428
    %v2401 = vpack.c.b16 %v1431, %v1429
    %v2402 = vpack.c.b16 %v1434, %v1432
    %v2403 = vpack.c.b16 %v1435, %v1433
    %v2404 = vpack.c.b16 %v1438, %v1436
    %v2405 = vpack.c.b16 %v1439, %v1437
    %v2406 = vpack.c.b16 %v1442, %v1440
    %v2407 = vpack.c.b16 %v1443, %v1441
    %v2408 = vpack.c.b16 %v1446, %v1444
    %v2409 = vpack.c.b16 %v1447, %v1445
    %v2410 = vpack.c.b16 %v1450, %v1448
    %v2411 = vpack.c.b16 %v1451, %v1449
    %v2412 = vpack.c.b16 %v1454, %v1452
    %v2413 = vpack.c.b16 %v1455, %v1453
    %v2414 = vpack.c.b16 %v1458, %v1456
    %v2415 = vpack.c.b16 %v1459, %v1457
    %v2416 = vpack.c.b16 %v1462, %v1460
    %v2417 = vpack.c.b16 %v1463, %v1461
    %v2418 = vpack.c.b16 %v1466, %v1464
    %v2419 = vpack.c.b16 %v1467, %v1465
    %v2420 = vpack.c.b16 %v1470, %v1468
    %v2421 = vpack.c.b16 %v1471, %v1469
    %v2422 = vpack.c.b16 %v1474, %v1472
    %v2423 = vpack.c.b16 %v1475, %v1473
    %v2424 = vpack.c.b16 %v1478, %v1476
    %v2425 = vpack.c.b16 %v1479, %v1477
    %v2426 = vpack.c.b16 %v1482, %v1480
    %v2427 = vpack.c.b16 %v1483, %v1481
    %v2428 = vpack.c.b16 %v1486, %v1484
    %v2429 = vpack.c.b16 %v1487, %v1485
    %v2430 = vpack.c.b16 %v1490, %v1488
    %v2431 = vpack.c.b16 %v1491, %v1489
    %v2432 = vpack.c.b16 %v1494, %v1492
    %v2433 = vpack.c.b16 %v1495, %v1493
    %v2434 = vpack.c.b16 %v1498, %v1496
    %v2435 = vpack.c.b16 %v1499, %v1497
    %v2436 = vpack.c.b16 %v1502, %v1500
    %v2437 = vpack.c.b16 %v1503, %v1501
    %v2438 = vpack.c.b16 %v1506, %v1504
    %v2439 = vpack.c.b16 %v1507, %v1505
    %v2440 = vpack.c.b16 %v1510, %v1508
    %v2441 = vpack.c.b16 %v1511, %v1509
    %v2442 = vpack.c.b16 %v1514, %v1512
    %v2443 = vpack.c.b16 %v1515, %v1513
    %v2444 = vpack.c.b16 %v1518, %v1516
    %v2445 = vpack.c.b16 %v1519, %v1517
    %v2446 = vpack.c.b16 %v1522, %v1520
    %v2447 = vpack.c.b16 %v1523, %v1521
    %v2448 = vpack.c.b16 %v1526, %v1524
    %v2449 = vpack.c.b16 %v1527, %v1525
    %v2450 = vpack.c.b16 %v1530, %v1528
    %v2451 = vpack.c.b16 %v1531, %v1529
    %v2452 = vpack.c.b16 %v1534, %v1532
    %v2453 = vpack.c.b16 %v1535, %v1533
    %v2454 = vpack.c.b16 %v1538, %v1536
    %v2455 = vpack.c.b16 %v1539, %v1537
    %v2456 = vpack.c.b16 %v1542, %v1540
    %v2457 = vpack.c.b16 %v1543, %v1541
    %v2458 = vpack.c.b16 %v1546, %v1544
    %v2459 = vpack.c.b16 %v1547, %v1545
    %v2460 = vpack.c.b16 %v1550, %v1548
    %v2461 = vpack.c.b16 %v1551, %v1549
    %v2462 = vpack.c.b16 %v1554, %v1552
    %v2463 = vpack.c.b16 %v1555, %v1553
    %v2464 = vpack.c.b16 %v1558, %v1556
    %v2465 = vpack.c.b16 %v1559, %v1557
    %v2466 = vpack.c.b16 %v1562, %v1560
    %v2467 = vpack.c.b16 %v1563, %v1561
    %v2468 = vpack.c.b16 %v1566, %v1564
    %v2469 = vpack.c.b16 %v1567, %v1565
    %v2470 = vpack.c.b16 %v1570, %v1568
    %v2471 = vpack.c.b16 %v1571, %v1569
    %v2472 = vpack.c.b16 %v1574, %v1572
    %v2473 = vpack.c.b16 %v1575, %v1573
    %v2474 = vpack.c.b16 %v1578, %v1576
    %v2475 = vpack.c.b16 %v1579, %v1577
    %v2476 = vpack.c.b16 %v1582, %v1580
    %v2477 = vpack.c.b16 %v1583, %v1581
    %v2478 = vpack.c.b16 %v1586, %v1584
    %v2479 = vpack.c.b16 %v1587, %v1585
    %v2480 = vpack.c.b16 %v1590, %v1588
    %v2481 = vpack.c.b16 %v1591, %v1589
    %v2482 = vpack.c.b16 %v1594, %v1592
    %v2483 = vpack.c.b16 %v1595, %v1593
    %v2484 = vpack.c.b16 %v1598, %v1596
    %v2485 = vpack.c.b16 %v1599, %v1597
    %v2486 = vpack.c.b16 %v1602, %v1600
    %v2487 = vpack.c.b16 %v1603, %v1601
    %v2488 = vpack.c.b16 %v1606, %v1604
    %v2489 = vpack.c.b16 %v1607, %v1605
    %v2490 = vpack.c.b16 %v1610, %v1608
    %v2491 = vpack.c.b16 %v1611, %v1609
    %v2492 = vpack.c.b16 %v1614, %v1612
    %v2493 = vpack.c.b16 %v1615, %v1613
    %v2494 = vpack.c.b16 %v1618, %v1616
    %v2495 = vpack.c.b16 %v1619, %v1617
    %v2496 = vpack.c.b16 %v1622, %v1620
    %v2497 = vpack.c.b16 %v1623, %v1621
    %v2498 = vpack.c.b16 %v1626, %v1624
    %v2499 = vpack.c.b16 %v1627, %v1625
    %v2500 = vpack.c.b16 %v1630, %v1628
    %v2501 = vpack.c.b16 %v1631, %v1629
    %v2502 = vpack.c.b16 %v1634, %v1632
    %v2503 = vpack.c.b16 %v1635, %v1633
    %v2504 = vpack.c.b16 %v1638, %v1636
    %v2505 = vpack.c.b16 %v1639, %v1637
    %v2506 = vpack.c.b16 %v1642, %v1640
    %v2507 = vpack.c.b16 %v1643, %v1641
    %v2508 = vpack.c.b16 %v1646, %v1644
    %v2509 = vpack.c.b16 %v1647, %v1645
    %v2510 = vpack.c.b16 %v1650, %v1648
    %v2511 = vpack.c.b16 %v1651, %v1649
    %v2512 = vpack.c.b16 %v1654, %v1652
    %v2513 = vpack.c.b16 %v1655, %v1653
    %v2514 = vpack.c.b16 %v1658, %v1656
    %v2515 = vpack.c.b16 %v1659, %v1657
    %v2516 = vpack.c.b16 %v1662, %v1660
    %v2517 = vpack.c.b16 %v1663, %v1661
    %v2518 = vpack.c.b16 %v1666, %v1664
    %v2519 = vpack.c.b16 %v1667, %v1665
    %v2520 = vpack.c.b16 %v1670, %v1668
    %v2521 = vpack.c.b16 %v1671, %v1669
    %v2522 = vpack.c.b16 %v1674, %v1672
    %v2523 = vpack.c.b16 %v1675, %v1673
    %v2524 = vpack.c.b16 %v1678, %v1676
    %v2525 = vpack.c.b16 %v1679, %v1677
    %v2526 = vpack.c.b16 %v1682, %v1680
    %v2527 = vpack.c.b16 %v1683, %v1681
    %v2528 = vpack.c.b16 %v1686, %v1684
    %v2529 = vpack.c.b16 %v1687, %v1685
    %v2530 = vpack.c.b16 %v1690, %v1688
    %v2531 = vpack.c.b16 %v1691, %v1689
    %v2532 = vpack.c.b16 %v1694, %v1692
    %v2533 = vpack.c.b16 %v1695, %v1693
    %v2534 = vpack.c.b16 %v1698, %v1696
    %v2535 = vpack.c.b16 %v1699, %v1697
    %v2536 = vpack.c.b16 %v1702, %v1700
    %v2537 = vpack.c.b16 %v1703, %v1701
    %v2538 = vpack.c.b16 %v1706, %v1704
    %v2539 = vpack.c.b16 %v1707, %v1705
    %v2540 = vpack.c.b16 %v1710, %v1708
    %v2541 = vpack.c.b16 %v1711, %v1709
    %v2542 = vpack.c.b16 %v1714, %v1712
    %v2543 = vpack.c.b16 %v1715, %v1713
    %v2544 = vpack.c.b16 %v1718, %v1716
    %v2545 = vpack.c.b16 %v1719, %v1717
    %v2546 = vpack.c.b16 %v1722, %v1720
    %v2547 = vpack.c.b16 %v1723, %v1721
    %v2548 = vpack.c.b16 %v1726, %v1724
    %v2549 = vpack.c.b16 %v1727, %v1725
    %v2550 = vpack.c.b16 %v1730, %v1728
    %v2551 = vpack.c.b16 %v1731, %v1729
    %v2552 = vpack.c.b16 %v1734, %v1732
    %v2553 = vpack.c.b16 %v1735, %v1733
    %v2554 = vpack.c.b16 %v1738, %v1736
    %v2555 = vpack.c.b16 %v1739, %v1737
    %v2556 = vpack.c.b16 %v1742, %v1740
    %v2557 = vpack.c.b16 %v1743, %v1741
    %v2558 = vpack.c.b16 %v1746, %v1744
    %v2559 = vpack.c.b16 %v1747, %v1745
    %v2560 = vpack.c.b16 %v1750, %v1748
    %v2561 = vpack.c.b16 %v1751, %v1749
    %v2562 = vpack.c.b16 %v1754, %v1752
    %v2563 = vpack.c.b16 %v1755, %v1753
    %v2564 = vpack.c.b16 %v1758, %v1756
    %v2565 = vpack.c.b16 %v1759, %v1757
    %v2566 = vpack.c.b16 %v1762, %v1760
    %v2567 = vpack.c.b16 %v1763, %v1761
    %v2568 = vpack.c.b16 %v1766, %v1764
    %v2569 = vpack.c.b16 %v1767, %v1765
    %v2570 = vpack.c.b16 %v1770, %v1768
    %v2571 = vpack.c.b16 %v1771, %v1769
    %v2572 = vpack.c.b16 %v1774, %v1772
    %v2573 = vpack.c.b16 %v1775, %v1773
    %v2574 = vpack.c.b16 %v1778, %v1776
    %v2575 = vpack.c.b16 %v1779, %v1777
    %v2576 = vpack.c.b16 %v1782, %v1780
    %v2577 = vpack.c.b16 %v1783, %v1781
    %v2578 = vpack.c.b16 %v1786, %v1784
    %v2579 = vpack.c.b16 %v1787, %v1785
    %v2580 = vpack.c.b16 %v1790, %v1788
    %v2581 = vpack.c.b16 %v1791, %v1789
    %v2582 = vpack.c.b16 %v1794, %v1792
    %v2583 = vpack.c.b16 %v1795, %v1793
    %v2584 = vpack.c.b16 %v1798, %v1796
    %v2585 = vpack.c.b16 %v1799, %v1797
    %v2586 = vpack.c.b16 %v1802, %v1800
    %v2587 = vpack.c.b16 %v1803, %v1801
    %v2588 = vpack.c.b16 %v1806, %v1804
    %v2589 = vpack.c.b16 %v1807, %v1805
    %v2590 = vpack.c.b16 %v1810, %v1808
    %v2591 = vpack.c.b16 %v1811, %v1809
    %v2592 = vpack.c.b16 %v1814, %v1812
    %v2593 = vpack.c.b16 %v1815, %v1813
    %v2594 = vpack.c.b16 %v1818, %v1816
    %v2595 = vpack.c.b16 %v1819, %v1817
    %v2596 = vpack.c.b16 %v1822, %v1820
    %v2597 = vpack.c.b16 %v1823, %v1821
    %v2598 = vpack.c.b16 %v1826, %v1824
    %v2599 = vpack.c.b16 %v1827, %v1825
    %v2600 = vpack.c.b16 %v1830, %v1828
    %v2601 = vpack.c.b16 %v1831, %v1829
    %v2602 = vpack.c.b16 %v1834, %v1832
    %v2603 = vpack.c.b16 %v1835, %v1833
    %v2604 = vpack.c.b16 %v1838, %v1836
    %v2605 = vpack.c.b16 %v1839, %v1837
    %v2606 = vpack.c.b16 %v1842, %v1840
    %v2607 = vpack.c.b16 %v1843, %v1841
    %v2608 = vpack.c.b16 %v1846, %v1844
    %v2609 = vpack.c.b16 %v1847, %v1845
    %v2610 = vpack.c.b16 %v1850, %v1848
    %v2611 = vpack.c.b16 %v1851, %v1849
    %v2612 = vpack.c.b16 %v1854, %v1852
    %v2613 = vpack.c.b16 %v1855, %v1853
    %v2614 = vpack.c.b16 %v1858, %v1856
    %v2615 = vpack.c.b16 %v1859, %v1857
    %v2616 = vpack.c.b16 %v1862, %v1860
    %v2617 = vpack.c.b16 %v1863, %v1861
    %v2618 = vpack.c.b16 %v1866, %v1864
    %v2619 = vpack.c.b16 %v1867, %v1865
    %v2620 = vpack.c.b16 %v1870, %v1868
    %v2621 = vpack.c.b16 %v1871, %v1869
    %v2622 = vpack.c.b16 %v1874, %v1872
    %v2623 = vpack.c.b16 %v1875, %v1873
    %v2624 = vpack.c.b16 %v1878, %v1876
    %v2625 = vpack.c.b16 %v1879, %v1877
    %v2626 = vpack.c.b16 %v1882, %v1880
    %v2627 = vpack.c.b16 %v1883, %v1881
    %v2628 = vpack.c.b16 %v1886, %v1884
    %v2629 = vpack.c.b16 %v1887, %v1885
    %v2630 = vpack.c.b16 %v1890, %v1888
    %v2631 = vpack.c.b16 %v1891, %v1889
    %v2632 = vpack.c.b16 %v1894, %v1892
    %v2633 = vpack.c.b16 %v1895, %v1893
    %v2634 = vpack.c.b16 %v1898, %v1896
    %v2635 = vpack.c.b16 %v1899, %v1897
    %v2636 = vpack.c.b16 %v1902, %v1900
    %v2637 = vpack.c.b16 %v1903, %v1901
    %v2638 = vpack.c.b16 %v1906, %v1904
    %v2639 = vpack.c.b16 %v1907, %v1905
    %v2640 = vpack.c.b16 %v1910, %v1908
    %v2641 = vpack.c.b16 %v1911, %v1909
    %v2642 = vpack.c.b16 %v1914, %v1912
    %v2643 = vpack.c.b16 %v1915, %v1913
    %v2644 = vpack.c.b16 %v1918, %v1916
    %v2645 = vpack.c.b16 %v1919, %v1917
    %v2646 = vpack.c.b16 %v1922, %v1920
    %v2647 = vpack.c.b16 %v1923, %v1921
    %v2648 = vpack.c.b16 %v1926, %v1924
    %v2649 = vpack.c.b16 %v1927, %v1925
    %v2650 = vpack.c.b16 %v1930, %v1928
    %v2651 = vpack.c.b16 %v1931, %v1929
    %v2652 = vpack.c.b16 %v1934, %v1932
    %v2653 = vpack.c.b16 %v1935, %v1933
    %v2654 = vpack.c.b16 %v1938, %v1936
    %v2655 = vpack.c.b16 %v1939, %v1937
    %v2656 = vpack.c.b16 %v1942, %v1940
    %v2657 = vpack.c.b16 %v1943, %v1941
    %v2658 = vpack.c.b16 %v1946, %v1944
    %v2659 = vpack.c.b16 %v1947, %v1945
    %v2660 = vpack.c.b16 %v1950, %v1948
    %v2661 = vpack.c.b16 %v1951, %v1949
    %v2662 = vpack.c.b16 %v1954, %v1952
    %v2663 = vpack.c.b16 %v1955, %v1953
    %v2664 = vpack.c.b16 %v1958, %v1956
    %v2665 = vpack.c.b16 %v1959, %v1957
    %v2666 = vpack.c.b16 %v1962, %v1960
    %v2667 = vpack.c.b16 %v1963, %v1961
    %v2668 = vpack.c.b16 %v1966, %v1964
    %v2669 = vpack.c.b16 %v1967, %v1965
    %v2670 = vpack.c.b16 %v1970, %v1968
    %v2671 = vpack.c.b16 %v1971, %v1969
    %v2672 = vpack.c.b16 %v1974, %v1972
    %v2673 = vpack.c.b16 %v1975, %v1973
    %v2674 = vpack.c.b16 %v1978, %v1976
    %v2675 = vpack.c.b16 %v1979, %v1977
    %v2676 = vpack.c.b16 %v1982, %v1980
    %v2677 = vpack.c.b16 %v1983, %v1981
    %v2678 = vpack.c.b16 %v1986, %v1984
    %v2679 = vpack.c.b16 %v1987, %v1985
    %v2680 = vpack.c.b16 %v1990, %v1988
    %v2681 = vpack.c.b16 %v1991, %v1989
    %v2682 = vpack.c.b16 %v1994, %v1992
    %v2683 = vpack.c.b16 %v1995, %v1993
    %v2684 = vpack.c.b16 %v1998, %v1996
    %v2685 = vpack.c.b16 %v1999, %v1997
    %v2686 = vpack.c.b16 %v2002, %v2000
    %v2687 = vpack.c.b16 %v2003, %v2001
    %v2688 = vpack.c.b16 %v2006, %v2004
    %v2689 = vpack.c.b16 %v2007, %v2005
    %v2690 = vpack.c.b16 %v2010, %v2008
    %v2691 = vpack.c.b16 %v2011, %v2009
    %v2692 = vpack.c.b16 %v2014, %v2012
    %v2693 = vpack.c.b16 %v2015, %v2013
    %v2694 = vpack.c.b16 %v2018, %v2016
    %v2695 = vpack.c.b16 %v2019, %v2017
    %v2696 = vpack.c.b16 %v2022, %v2020
    %v2697 = vpack.c.b16 %v2023, %v2021
    %v2698 = vpack.c.b16 %v2026, %v2024
    %v2699 = vpack.c.b16 %v2027, %v2025
    %v2700 = vpack.c.b16 %v2030, %v2028
    %v2701 = vpack.c.b16 %v2031, %v2029
    %v2702 = vpack.c.b16 %v2034, %v2032
    %v2703 = vpack.c.b16 %v2035, %v2033
    %v2704 = vpack.c.b16 %v2038, %v2036
    %v2705 = vpack.c.b16 %v2039, %v2037
    %v2706 = vpack.c.b16 %v2042, %v2040
    %v2707 = vpack.c.b16 %v2043, %v2041
    %v2708 = vpack.c.b16 %v2046, %v2044
    %v2709 = vpack.c.b16 %v2047, %v2045
    %v2710 = vpack.c.b16 %v2050, %v2048
    %v2711 = vpack.c.b16 %v2051, %v2049
    %v2712 = vpack.c.b16 %v2054, %v2052
    %v2713 = vpack.c.b16 %v2055, %v2053
    %v2714 = vpack.c.b16 %v2058, %v2056
    %v2715 = vpack.c.b16 %v2059, %v2057
    %v2716 = vpack.c.b16 %v2062, %v2060
    %v2717 = vpack.c.b16 %v2063, %v2061
    %v2718 = vpack.c.b16 %v2066, %v2064
    %v2719 = vpack.c.b16 %v2067, %v2065
    %v2720 = vpack.c.b16 %v2070, %v2068
    %v2721 = vpack.c.b16 %v2071, %v2069
    %v2722 = vpack.c.b16 %v2074, %v2072
    %v2723 = vpack.c.b16 %v2075, %v2073
    %v2724 = vpack.c.b16 %v2078, %v2076
    %v2725 = vpack.c.b16 %v2079, %v2077
    %v2726 = vpack.c.b16 %v2082, %v2080
    %v2727 = vpack.c.b16 %v2083, %v2081
    %v2728 = vpack.c.b16 %v2086, %v2084
    %v2729 = vpack.c.b16 %v2087, %v2085
    %v2730 = vpack.c.b16 %v2090, %v2088
    %v2731 = vpack.c.b16 %v2091, %v2089
    %v2732 = vpack.c.b16 %v2094, %v2092
    %v2733 = vpack.c.b16 %v2095, %v2093
    %v2734 = vpack.c.b16 %v2098, %v2096
    %v2735 = vpack.c.b16 %v2099, %v2097
    %v2736 = vpack.c.b16 %v2102, %v2100
    %v2737 = vpack.c.b16 %v2103, %v2101
    %v2738 = vpack.c.b16 %v2106, %v2104
    %v2739 = vpack.c.b16 %v2107, %v2105
    %v2740 = vpack.c.b16 %v2110, %v2108
    %v2741 = vpack.c.b16 %v2111, %v2109
    %v2742 = vpack.c.b16 %v2114, %v2112
    %v2743 = vpack.c.b16 %v2115, %v2113
    %v2744 = vpack.c.b16 %v2118, %v2116
    %v2745 = vpack.c.b16 %v2119, %v2117
    %v2746 = vpack.c.b16 %v2122, %v2120
    %v2747 = vpack.c.b16 %v2123, %v2121
    %v2748 = vpack.c.b16 %v2126, %v2124
    %v2749 = vpack.c.b16 %v2127, %v2125
    %v2750 = vpack.c.b16 %v2130, %v2128
    %v2751 = vpack.c.b16 %v2131, %v2129
    %v2752 = vpack.c.b16 %v2134, %v2132
    %v2753 = vpack.c.b16 %v2135, %v2133
    %v2754 = vpack.c.b16 %v2138, %v2136
    %v2755 = vpack.c.b16 %v2139, %v2137
    %v2756 = vpack.c.b16 %v2142, %v2140
    %v2757 = vpack.c.b16 %v2143, %v2141
    %v2758 = vpack.c.b16 %v2146, %v2144
    %v2759 = vpack.c.b16 %v2147, %v2145
    %v2760 = vpack.c.b16 %v2150, %v2148
    %v2761 = vpack.c.b16 %v2151, %v2149
    %v2762 = vpack.c.b16 %v2154, %v2152
    %v2763 = vpack.c.b16 %v2155, %v2153
    %v2764 = vpack.c.b16 %v2158, %v2156
    %v2765 = vpack.c.b16 %v2159, %v2157
    %v2766 = vpack.c.b16 %v2162, %v2160
    %v2767 = vpack.c.b16 %v2163, %v2161
    %v2768 = vpack.c.b16 %v2166, %v2164
    %v2769 = vpack.c.b16 %v2167, %v2165
    %v2770 = vpack.c.b16 %v2170, %v2168
    %v2771 = vpack.c.b16 %v2171, %v2169
    %v2772 = vpack.c.b16 %v2174, %v2172
    %v2773 = vpack.c.b16 %v2175, %v2173
    %v2774 = vpack.c.b16 %v2178, %v2176
    %v2775 = vpack.c.b16 %v2179, %v2177
    %v2776 = vpack.c.b16 %v2182, %v2180
    %v2777 = vpack.c.b16 %v2183, %v2181
    %v2778 = vpack.c.b16 %v2186, %v2184
    %v2779 = vpack.c.b16 %v2187, %v2185
    %v2780 = vpack.c.b16 %v2190, %v2188
    %v2781 = vpack.c.b16 %v2191, %v2189
    %v2782 = vpack.c.b16 %v2194, %v2192
    %v2783 = vpack.c.b16 %v2195, %v2193
    %v2784 = vpack.c.b16 %v2198, %v2196
    %v2785 = vpack.c.b16 %v2199, %v2197
    %v2786 = vpack.c.b16 %v2202, %v2200
    %v2787 = vpack.c.b16 %v2203, %v2201
    %v2788 = vpack.c.b16 %v2206, %v2204
    %v2789 = vpack.c.b16 %v2207, %v2205
    %v2790 = vpack.c.b16 %v2210, %v2208
    %v2791 = vpack.c.b16 %v2211, %v2209
    %v2792 = vpack.c.b16 %v2214, %v2212
    %v2793 = vpack.c.b16 %v2215, %v2213
    %v2794 = vpack.c.b16 %v2218, %v2216
    %v2795 = vpack.c.b16 %v2219, %v2217
    %v2796 = vpack.c.b16 %v2222, %v2220
    %v2797 = vpack.c.b16 %v2223, %v2221
    %v2798 = vpack.c.b16 %v2226, %v2224
    %v2799 = vpack.c.b16 %v2227, %v2225
    %v2800 = vpack.c.b16 %v2230, %v2228
    %v2801 = vpack.c.b16 %v2231, %v2229
    %v2802 = vpack.c.b16 %v2234, %v2232
    %v2803 = vpack.c.b16 %v2235, %v2233
    %v2804 = vpack.c.b16 %v2238, %v2236
    %v2805 = vpack.c.b16 %v2239, %v2237
    %v2806 = vpack.c.b16 %v2242, %v2240
    %v2807 = vpack.c.b16 %v2243, %v2241
    %v2808 = vpack.c.b16 %v2246, %v2244
    %v2809 = vpack.c.b16 %v2247, %v2245
    %v2810 = vpack.c.b16 %v2250, %v2248
    %v2811 = vpack.c.b16 %v2251, %v2249
    %v2812 = vpack.c.b16 %v2254, %v2252
    %v2813 = vpack.c.b16 %v2255, %v2253
    %v2814 = vpack.c.b16 %v2258, %v2256
    %v2815 = vpack.c.b16 %v2259, %v2257
    %v2816 = vpack.c.b16 %v2262, %v2260
    %v2817 = vpack.c.b16 %v2263, %v2261
    %v2818 = vpack.c.b16 %v2266, %v2264
    %v2819 = vpack.c.b16 %v2267, %v2265
    %v2820 = vpack.c.b16 %v2270, %v2268
    %v2821 = vpack.c.b16 %v2271, %v2269
    %v2822 = vpack.c.b16 %v2274, %v2272
    %v2823 = vpack.c.b16 %v2275, %v2273
    %v2824 = vpack.c.b16 %v2278, %v2276
    %v2825 = vpack.c.b16 %v2279, %v2277
    %v2826 = vpack.c.b16 %v2282, %v2280
    %v2827 = vpack.c.b16 %v2283, %v2281
    %v2828 = vpack.c.b16 %v2286, %v2284
    %v2829 = vpack.c.b16 %v2287, %v2285
    %v2830 = vpack.c.b16 %v2290, %v2288
    %v2831 = vpack.c.b16 %v2291, %v2289
    %v2832 = vpack.c.b16 %v2294, %v2292
    %v2833 = vpack.c.b16 %v2295, %v2293
    %v2834 = vpack.c.b16 %v2298, %v2296
    %v2835 = vpack.c.b16 %v2299, %v2297
    %v2836 = vpack.c.b16 %v2302, %v2300
    %v2837 = vpack.c.b16 %v2303, %v2301
    %v2838 = vpack.c.b16 %v2306, %v2304
    %v2839 = vpack.c.b16 %v2307, %v2305
    %v2840 = vpack.c.b16 %v2310, %v2308
    %v2841 = vpack.c.b16 %v2311, %v2309
    %v2842 = vpack.c.b16 %v2314, %v2312
    %v2843 = vpack.c.b16 %v2315, %v2313
    %v2844 = vpack.c.b16 %v2318, %v2316
    %v2845 = vpack.c.b16 %v2319, %v2317
    %v2846 = vpack.c.b16 %v2322, %v2320
    %v2847 = vpack.c.b16 %v2323, %v2321
    %v2848 = vpack.c.b16 %v2326, %v2324
    %v2849 = vpack.c.b16 %v2327, %v2325
    %v2850 = vpack.c.b16 %v2330, %v2328
    %v2851 = vpack.c.b16 %v2331, %v2329
    %v2852 = vpack.c.b16 %v2334, %v2332
    %v2853 = vpack.c.b16 %v2335, %v2333
    %v2854 = vpack.c.b16 %v2338, %v2336
    %v2855 = vpack.c.b16 %v2339, %v2337
    %v2856 = vpack.c.b16 %v2342, %v2340
    %v2857 = vpack.c.b16 %v2343, %v2341
    %v2858 = vpack.c.b16 %v2346, %v2344
    %v2859 = vpack.c.b16 %v2347, %v2345
    %3372 = vmatprep.subr.bf16.mxu0 %v2349
    %3373 = vmatpush1.bf16.msra.mxu0 %v2348
    %3374 = vmatprep.subr.bf16.mxu0 %v2351
    %3375 = vmatpush1.bf16.msra.mxu0 %v2350
    %3376 = vmatprep.subr.bf16.mxu0 %v2353
    %3377 = vmatpush1.bf16.msra.mxu0 %v2352
    %3378 = vmatprep.subr.bf16.mxu0 %v2355
    %3379 = vmatpush1.bf16.msra.mxu0 %v2354
    %3380 = vmatprep.subr.bf16.mxu0 %v2357
    %3381 = vmatpush1.bf16.msra.mxu0 %v2356
    %3382 = vmatprep.subr.bf16.mxu0 %v2359
    %3383 = vmatpush1.bf16.msra.mxu0 %v2358
    %3384 = vmatprep.subr.bf16.mxu0 %v2361
    %3385 = vmatpush1.bf16.msra.mxu0 %v2360
    %3386 = vmatprep.subr.bf16.mxu0 %v2363
    %3387 = vmatpush1.bf16.msra.mxu0 %v2362
    %3388 = vmatprep.subr.bf16.mxu0 %v2365
    %3389 = vmatpush1.bf16.msra.mxu0 %v2364
    %3390 = vmatprep.subr.bf16.mxu0 %v2367
    %3391 = vmatpush1.bf16.msra.mxu0 %v2366
    %3392 = vmatprep.subr.bf16.mxu0 %v2369
    %3393 = vmatpush1.bf16.msra.mxu0 %v2368
    %3394 = vmatprep.subr.bf16.mxu0 %v2371
    %3395 = vmatpush1.bf16.msra.mxu0 %v2370
    %3396 = vmatprep.subr.bf16.mxu0 %v2373
    %3397 = vmatpush1.bf16.msra.mxu0 %v2372
    %3398 = vmatprep.subr.bf16.mxu0 %v2375
    %3399 = vmatpush1.bf16.msra.mxu0 %v2374
    %3400 = vmatprep.subr.bf16.mxu0 %v2377
    %3401 = vmatpush1.bf16.msra.mxu0 %v2376
    %3402 = vmatprep.subr.bf16.mxu0 %v2379
    %3403 = vmatpush1.bf16.msra.mxu0 %v2378
    %3404 = vmatprep.mubr.bf16.mxu0 %v659
    %3405 = vmatmul.mubr.bf16.gmra.mrb[0].mxu0 %v651
    %v3406 = vpop.f32.mrb[0].mxu0
    %v3407 = vadd.f32 %v629, %v3406
    %v3408 = vpop.f32.mrb[0].mxu0
    %v3409 = vadd.f32 %v633, %v3408
    %v3410 = vpop.f32.mrb[0].mxu0
    %v3411 = vpop.f32.mrb[0].mxu0
    %3412 = vdwg.mxu0
    %3413 = vmatprep.subr.bf16.mxu0 %v2381
    %3414 = vmatpush1.bf16.msra.mxu0 %v2380
    %3415 = vmatprep.subr.bf16.mxu0 %v2383
    %3416 = vmatpush1.bf16.msra.mxu0 %v2382
    %3417 = vmatprep.subr.bf16.mxu0 %v2385
    %3418 = vmatpush1.bf16.msra.mxu0 %v2384
    %3419 = vmatprep.subr.bf16.mxu0 %v2387
    %3420 = vmatpush1.bf16.msra.mxu0 %v2386
    %3421 = vmatprep.subr.bf16.mxu0 %v2389
    %3422 = vmatpush1.bf16.msra.mxu0 %v2388
    %3423 = vmatprep.subr.bf16.mxu0 %v2391
    %3424 = vmatpush1.bf16.msra.mxu0 %v2390
    %3425 = vmatprep.subr.bf16.mxu0 %v2393
    %3426 = vmatpush1.bf16.msra.mxu0 %v2392
    %3427 = vmatprep.subr.bf16.mxu0 %v2395
    %3428 = vmatpush1.bf16.msra.mxu0 %v2394
    %3429 = vmatprep.subr.bf16.mxu0 %v2397
    %3430 = vmatpush1.bf16.msra.mxu0 %v2396
    %3431 = vmatprep.subr.bf16.mxu0 %v2399
    %3432 = vmatpush1.bf16.msra.mxu0 %v2398
    %3433 = vmatprep.subr.bf16.mxu0 %v2401
    %3434 = vmatpush1.bf16.msra.mxu0 %v2400
    %3435 = vmatprep.subr.bf16.mxu0 %v2403
    %3436 = vmatpush1.bf16.msra.mxu0 %v2402
    %3437 = vmatprep.subr.bf16.mxu0 %v2405
    %3438 = vmatpush1.bf16.msra.mxu0 %v2404
    %3439 = vmatprep.subr.bf16.mxu0 %v2407
    %3440 = vmatpush1.bf16.msra.mxu0 %v2406
    %3441 = vmatprep.subr.bf16.mxu0 %v2409
    %3442 = vmatpush1.bf16.msra.mxu0 %v2408
    %3443 = vmatprep.subr.bf16.mxu0 %v2411
    %3444 = vmatpush1.bf16.msra.mxu0 %v2410
    %3445 = vmatprep.mubr.bf16.mxu0 %v660
    %3446 = vmatmul.mubr.bf16.gmra.mrb[0].mxu0 %v658
    %v3447 = vpop.f32.mrb[0].mxu0
    %v3448 = vadd.f32 %v3407, %v3447
    %v3449 = vpop.f32.mrb[0].mxu0
    %v3450 = vadd.f32 %v3409, %v3449
    %v3451 = vpop.f32.mrb[0].mxu0
    %v3452 = vpop.f32.mrb[0].mxu0
    %3453 = vdwg.mxu0
    %3454 = vmatprep.subr.bf16.mxu0 %v2413
    %3455 = vmatpush1.bf16.msra.mxu0 %v2412
    %3456 = vmatprep.subr.bf16.mxu0 %v2415
    %3457 = vmatpush1.bf16.msra.mxu0 %v2414
    %3458 = vmatprep.subr.bf16.mxu0 %v2417
    %3459 = vmatpush1.bf16.msra.mxu0 %v2416
    %3460 = vmatprep.subr.bf16.mxu0 %v2419
    %3461 = vmatpush1.bf16.msra.mxu0 %v2418
    %3462 = vmatprep.subr.bf16.mxu0 %v2421
    %3463 = vmatpush1.bf16.msra.mxu0 %v2420
    %3464 = vmatprep.subr.bf16.mxu0 %v2423
    %3465 = vmatpush1.bf16.msra.mxu0 %v2422
    %3466 = vmatprep.subr.bf16.mxu0 %v2425
    %3467 = vmatpush1.bf16.msra.mxu0 %v2424
    %3468 = vmatprep.subr.bf16.mxu0 %v2427
    %3469 = vmatpush1.bf16.msra.mxu0 %v2426
    %3470 = vmatprep.subr.bf16.mxu0 %v2429
    %3471 = vmatpush1.bf16.msra.mxu0 %v2428
    %3472 = vmatprep.subr.bf16.mxu0 %v2431
    %3473 = vmatpush1.bf16.msra.mxu0 %v2430
    %3474 = vmatprep.subr.bf16.mxu0 %v2433
    %3475 = vmatpush1.bf16.msra.mxu0 %v2432
    %3476 = vmatprep.subr.bf16.mxu0 %v2435
    %3477 = vmatpush1.bf16.msra.mxu0 %v2434
    %3478 = vmatprep.subr.bf16.mxu0 %v2437
    %3479 = vmatpush1.bf16.msra.mxu0 %v2436
    %3480 = vmatprep.subr.bf16.mxu0 %v2439
    %3481 = vmatpush1.bf16.msra.mxu0 %v2438
    %3482 = vmatprep.subr.bf16.mxu0 %v2441
    %3483 = vmatpush1.bf16.msra.mxu0 %v2440
    %3484 = vmatprep.subr.bf16.mxu0 %v2443
    %3485 = vmatpush1.bf16.msra.mxu0 %v2442
    %3486 = vmatprep.mubr.bf16.mxu0 %v676
    %3487 = vmatmul.mubr.bf16.gmra.mrb[0].mxu0 %v668
    %v3488 = vpop.f32.mrb[0].mxu0
    %v3489 = vadd.f32 %v3448, %v3488
    %v3490 = vpop.f32.mrb[0].mxu0
    %v3491 = vadd.f32 %v3450, %v3490
    %v3492 = vpop.f32.mrb[0].mxu0
    %v3493 = vpop.f32.mrb[0].mxu0
    %3494 = vdwg.mxu0
    %3495 = vmatprep.subr.bf16.mxu0 %v2445
    %3496 = vmatpush1.bf16.msra.mxu0 %v2444
    %3497 = vmatprep.subr.bf16.mxu0 %v2447
    %3498 = vmatpush1.bf16.msra.mxu0 %v2446
    %3499 = vmatprep.subr.bf16.mxu0 %v2449
    %3500 = vmatpush1.bf16.msra.mxu0 %v2448
    %3501 = vmatprep.subr.bf16.mxu0 %v2451
    %3502 = vmatpush1.bf16.msra.mxu0 %v2450
    %3503 = vmatprep.subr.bf16.mxu0 %v2453
    %3504 = vmatpush1.bf16.msra.mxu0 %v2452
    %3505 = vmatprep.subr.bf16.mxu0 %v2455
    %3506 = vmatpush1.bf16.msra.mxu0 %v2454
    %3507 = vmatprep.subr.bf16.mxu0 %v2457
    %3508 = vmatpush1.bf16.msra.mxu0 %v2456
    %3509 = vmatprep.subr.bf16.mxu0 %v2459
    %3510 = vmatpush1.bf16.msra.mxu0 %v2458
    %3511 = vmatprep.subr.bf16.mxu0 %v2461
    %3512 = vmatpush1.bf16.msra.mxu0 %v2460
    %3513 = vmatprep.subr.bf16.mxu0 %v2463
    %3514 = vmatpush1.bf16.msra.mxu0 %v2462
    %3515 = vmatprep.subr.bf16.mxu0 %v2465
    %3516 = vmatpush1.bf16.msra.mxu0 %v2464
    %3517 = vmatprep.subr.bf16.mxu0 %v2467
    %3518 = vmatpush1.bf16.msra.mxu0 %v2466
    %3519 = vmatprep.subr.bf16.mxu0 %v2469
    %3520 = vmatpush1.bf16.msra.mxu0 %v2468
    %3521 = vmatprep.subr.bf16.mxu0 %v2471
    %3522 = vmatpush1.bf16.msra.mxu0 %v2470
    %3523 = vmatprep.subr.bf16.mxu0 %v2473
    %3524 = vmatpush1.bf16.msra.mxu0 %v2472
    %3525 = vmatprep.subr.bf16.mxu0 %v2475
    %3526 = vmatpush1.bf16.msra.mxu0 %v2474
    %3527 = vmatprep.mubr.bf16.mxu0 %v677
    %3528 = vmatmul.mubr.bf16.gmra.mrb[0].mxu0 %v675
    %v3529 = vpop.f32.mrb[0].mxu0
    %v3530 = vadd.f32 %v3489, %v3529
    %v3531 = vpop.f32.mrb[0].mxu0
    %v3532 = vadd.f32 %v3491, %v3531
    %v3533 = vpop.f32.mrb[0].mxu0
    %v3534 = vpop.f32.mrb[0].mxu0
    %3535 = vdwg.mxu0
    %3536 = vmatprep.subr.bf16.mxu0 %v2477
    %3537 = vmatpush1.bf16.msra.mxu0 %v2476
    %3538 = vmatprep.subr.bf16.mxu0 %v2479
    %3539 = vmatpush1.bf16.msra.mxu0 %v2478
    %3540 = vmatprep.subr.bf16.mxu0 %v2481
    %3541 = vmatpush1.bf16.msra.mxu0 %v2480
    %3542 = vmatprep.subr.bf16.mxu0 %v2483
    %3543 = vmatpush1.bf16.msra.mxu0 %v2482
    %3544 = vmatprep.subr.bf16.mxu0 %v2485
    %3545 = vmatpush1.bf16.msra.mxu0 %v2484
    %3546 = vmatprep.subr.bf16.mxu0 %v2487
    %3547 = vmatpush1.bf16.msra.mxu0 %v2486
    %3548 = vmatprep.subr.bf16.mxu0 %v2489
    %3549 = vmatpush1.bf16.msra.mxu0 %v2488
    %3550 = vmatprep.subr.bf16.mxu0 %v2491
    %3551 = vmatpush1.bf16.msra.mxu0 %v2490
    %3552 = vmatprep.subr.bf16.mxu0 %v2493
    %3553 = vmatpush1.bf16.msra.mxu0 %v2492
    %3554 = vmatprep.subr.bf16.mxu0 %v2495
    %3555 = vmatpush1.bf16.msra.mxu0 %v2494
    %3556 = vmatprep.subr.bf16.mxu0 %v2497
    %3557 = vmatpush1.bf16.msra.mxu0 %v2496
    %3558 = vmatprep.subr.bf16.mxu0 %v2499
    %3559 = vmatpush1.bf16.msra.mxu0 %v2498
    %3560 = vmatprep.subr.bf16.mxu0 %v2501
    %3561 = vmatpush1.bf16.msra.mxu0 %v2500
    %3562 = vmatprep.subr.bf16.mxu0 %v2503
    %3563 = vmatpush1.bf16.msra.mxu0 %v2502
    %3564 = vmatprep.subr.bf16.mxu0 %v2505
    %3565 = vmatpush1.bf16.msra.mxu0 %v2504
    %3566 = vmatprep.subr.bf16.mxu0 %v2507
    %3567 = vmatpush1.bf16.msra.mxu0 %v2506
    %3568 = vmatprep.mubr.bf16.mxu0 %v693
    %3569 = vmatmul.mubr.bf16.gmra.mrb[0].mxu0 %v685
    %v3570 = vpop.f32.mrb[0].mxu0
    %v3571 = vadd.f32 %v3530, %v3570
    %v3572 = vpop.f32.mrb[0].mxu0
    %v3573 = vadd.f32 %v3532, %v3572
    %v3574 = vpop.f32.mrb[0].mxu0
    %v3575 = vpop.f32.mrb[0].mxu0
    %3576 = vdwg.mxu0
    %3577 = vmatprep.subr.bf16.mxu0 %v2509
    %3578 = vmatpush1.bf16.msra.mxu0 %v2508
    %3579 = vmatprep.subr.bf16.mxu0 %v2511
    %3580 = vmatpush1.bf16.msra.mxu0 %v2510
    %3581 = vmatprep.subr.bf16.mxu0 %v2513
    %3582 = vmatpush1.bf16.msra.mxu0 %v2512
    %3583 = vmatprep.subr.bf16.mxu0 %v2515
    %3584 = vmatpush1.bf16.msra.mxu0 %v2514
    %3585 = vmatprep.subr.bf16.mxu0 %v2517
    %3586 = vmatpush1.bf16.msra.mxu0 %v2516
    %3587 = vmatprep.subr.bf16.mxu0 %v2519
    %3588 = vmatpush1.bf16.msra.mxu0 %v2518
    %3589 = vmatprep.subr.bf16.mxu0 %v2521
    %3590 = vmatpush1.bf16.msra.mxu0 %v2520
    %3591 = vmatprep.subr.bf16.mxu0 %v2523
    %3592 = vmatpush1.bf16.msra.mxu0 %v2522
    %3593 = vmatprep.subr.bf16.mxu0 %v2525
    %3594 = vmatpush1.bf16.msra.mxu0 %v2524
    %3595 = vmatprep.subr.bf16.mxu0 %v2527
    %3596 = vmatpush1.bf16.msra.mxu0 %v2526
    %3597 = vmatprep.subr.bf16.mxu0 %v2529
    %3598 = vmatpush1.bf16.msra.mxu0 %v2528
    %3599 = vmatprep.subr.bf16.mxu0 %v2531
    %3600 = vmatpush1.bf16.msra.mxu0 %v2530
    %3601 = vmatprep.subr.bf16.mxu0 %v2533
    %3602 = vmatpush1.bf16.msra.mxu0 %v2532
    %3603 = vmatprep.subr.bf16.mxu0 %v2535
    %3604 = vmatpush1.bf16.msra.mxu0 %v2534
    %3605 = vmatprep.subr.bf16.mxu0 %v2537
    %3606 = vmatpush1.bf16.msra.mxu0 %v2536
    %3607 = vmatprep.subr.bf16.mxu0 %v2539
    %3608 = vmatpush1.bf16.msra.mxu0 %v2538
    %3609 = vmatprep.mubr.bf16.mxu0 %v694
    %3610 = vmatmul.mubr.bf16.gmra.mrb[0].mxu0 %v692
    %v3611 = vpop.f32.mrb[0].mxu0
    %v3612 = vadd.f32 %v3571, %v3611
    %v3613 = vpop.f32.mrb[0].mxu0
    %v3614 = vadd.f32 %v3573, %v3613
    %v3615 = vpop.f32.mrb[0].mxu0
    %v3616 = vpop.f32.mrb[0].mxu0
    %3617 = vdwg.mxu0
    %3618 = vmatprep.subr.bf16.mxu0 %v2541
    %3619 = vmatpush1.bf16.msra.mxu0 %v2540
    %3620 = vmatprep.subr.bf16.mxu0 %v2543
    %3621 = vmatpush1.bf16.msra.mxu0 %v2542
    %3622 = vmatprep.subr.bf16.mxu0 %v2545
    %3623 = vmatpush1.bf16.msra.mxu0 %v2544
    %3624 = vmatprep.subr.bf16.mxu0 %v2547
    %3625 = vmatpush1.bf16.msra.mxu0 %v2546
    %3626 = vmatprep.subr.bf16.mxu0 %v2549
    %3627 = vmatpush1.bf16.msra.mxu0 %v2548
    %3628 = vmatprep.subr.bf16.mxu0 %v2551
    %3629 = vmatpush1.bf16.msra.mxu0 %v2550
    %3630 = vmatprep.subr.bf16.mxu0 %v2553
    %3631 = vmatpush1.bf16.msra.mxu0 %v2552
    %3632 = vmatprep.subr.bf16.mxu0 %v2555
    %3633 = vmatpush1.bf16.msra.mxu0 %v2554
    %3634 = vmatprep.subr.bf16.mxu0 %v2557
    %3635 = vmatpush1.bf16.msra.mxu0 %v2556
    %3636 = vmatprep.subr.bf16.mxu0 %v2559
    %3637 = vmatpush1.bf16.msra.mxu0 %v2558
    %3638 = vmatprep.subr.bf16.mxu0 %v2561
    %3639 = vmatpush1.bf16.msra.mxu0 %v2560
    %3640 = vmatprep.subr.bf16.mxu0 %v2563
    %3641 = vmatpush1.bf16.msra.mxu0 %v2562
    %3642 = vmatprep.subr.bf16.mxu0 %v2565
    %3643 = vmatpush1.bf16.msra.mxu0 %v2564
    %3644 = vmatprep.subr.bf16.mxu0 %v2567
    %3645 = vmatpush1.bf16.msra.mxu0 %v2566
    %3646 = vmatprep.subr.bf16.mxu0 %v2569
    %3647 = vmatpush1.bf16.msra.mxu0 %v2568
    %3648 = vmatprep.subr.bf16.mxu0 %v2571
    %3649 = vmatpush1.bf16.msra.mxu0 %v2570
    %3650 = vmatprep.mubr.bf16.mxu0 %v710
    %3651 = vmatmul.mubr.bf16.gmra.mrb[0].mxu0 %v702
    %v3652 = vpop.f32.mrb[0].mxu0
    %v3653 = vadd.f32 %v3612, %v3652
    %v3654 = vpop.f32.mrb[0].mxu0
    %v3655 = vadd.f32 %v3614, %v3654
    %v3656 = vpop.f32.mrb[0].mxu0
    %v3657 = vpop.f32.mrb[0].mxu0
    %3658 = vdwg.mxu0
    %3659 = vmatprep.subr.bf16.mxu0 %v2573
    %3660 = vmatpush1.bf16.msra.mxu0 %v2572
    %3661 = vmatprep.subr.bf16.mxu0 %v2575
    %3662 = vmatpush1.bf16.msra.mxu0 %v2574
    %3663 = vmatprep.subr.bf16.mxu0 %v2577
    %3664 = vmatpush1.bf16.msra.mxu0 %v2576
    %3665 = vmatprep.subr.bf16.mxu0 %v2579
    %3666 = vmatpush1.bf16.msra.mxu0 %v2578
    %3667 = vmatprep.subr.bf16.mxu0 %v2581
    %3668 = vmatpush1.bf16.msra.mxu0 %v2580
    %3669 = vmatprep.subr.bf16.mxu0 %v2583
    %3670 = vmatpush1.bf16.msra.mxu0 %v2582
    %3671 = vmatprep.subr.bf16.mxu0 %v2585
    %3672 = vmatpush1.bf16.msra.mxu0 %v2584
    %3673 = vmatprep.subr.bf16.mxu0 %v2587
    %3674 = vmatpush1.bf16.msra.mxu0 %v2586
    %3675 = vmatprep.subr.bf16.mxu0 %v2589
    %3676 = vmatpush1.bf16.msra.mxu0 %v2588
    %3677 = vmatprep.subr.bf16.mxu0 %v2591
    %3678 = vmatpush1.bf16.msra.mxu0 %v2590
    %3679 = vmatprep.subr.bf16.mxu0 %v2593
    %3680 = vmatpush1.bf16.msra.mxu0 %v2592
    %3681 = vmatprep.subr.bf16.mxu0 %v2595
    %3682 = vmatpush1.bf16.msra.mxu0 %v2594
    %3683 = vmatprep.subr.bf16.mxu0 %v2597
    %3684 = vmatpush1.bf16.msra.mxu0 %v2596
    %3685 = vmatprep.subr.bf16.mxu0 %v2599
    %3686 = vmatpush1.bf16.msra.mxu0 %v2598
    %3687 = vmatprep.subr.bf16.mxu0 %v2601
    %3688 = vmatpush1.bf16.msra.mxu0 %v2600
    %3689 = vmatprep.subr.bf16.mxu0 %v2603
    %3690 = vmatpush1.bf16.msra.mxu0 %v2602
    %3691 = vmatprep.mubr.bf16.mxu0 %v711
    %3692 = vmatmul.mubr.bf16.gmra.mrb[0].mxu0 %v709
    %v3693 = vpop.f32.mrb[0].mxu0
    %v3694 = vadd.f32 %v3653, %v3693
    %v3695 = vpop.f32.mrb[0].mxu0
    %v3696 = vadd.f32 %v3655, %v3695
    %v3697 = vpop.f32.mrb[0].mxu0
    %v3698 = vpop.f32.mrb[0].mxu0
    %3699 = vdwg.mxu0
    %3700 = vmatprep.subr.bf16.mxu0 %v2605
    %3701 = vmatpush1.bf16.msra.mxu0 %v2604
    %3702 = vmatprep.subr.bf16.mxu0 %v2607
    %3703 = vmatpush1.bf16.msra.mxu0 %v2606
    %3704 = vmatprep.subr.bf16.mxu0 %v2609
    %3705 = vmatpush1.bf16.msra.mxu0 %v2608
    %3706 = vmatprep.subr.bf16.mxu0 %v2611
    %3707 = vmatpush1.bf16.msra.mxu0 %v2610
    %3708 = vmatprep.subr.bf16.mxu0 %v2613
    %3709 = vmatpush1.bf16.msra.mxu0 %v2612
    %3710 = vmatprep.subr.bf16.mxu0 %v2615
    %3711 = vmatpush1.bf16.msra.mxu0 %v2614
    %3712 = vmatprep.subr.bf16.mxu0 %v2617
    %3713 = vmatpush1.bf16.msra.mxu0 %v2616
    %3714 = vmatprep.subr.bf16.mxu0 %v2619
    %3715 = vmatpush1.bf16.msra.mxu0 %v2618
    %3716 = vmatprep.subr.bf16.mxu0 %v2621
    %3717 = vmatpush1.bf16.msra.mxu0 %v2620
    %3718 = vmatprep.subr.bf16.mxu0 %v2623
    %3719 = vmatpush1.bf16.msra.mxu0 %v2622
    %3720 = vmatprep.subr.bf16.mxu0 %v2625
    %3721 = vmatpush1.bf16.msra.mxu0 %v2624
    %3722 = vmatprep.subr.bf16.mxu0 %v2627
    %3723 = vmatpush1.bf16.msra.mxu0 %v2626
    %3724 = vmatprep.subr.bf16.mxu0 %v2629
    %3725 = vmatpush1.bf16.msra.mxu0 %v2628
    %3726 = vmatprep.subr.bf16.mxu0 %v2631
    %3727 = vmatpush1.bf16.msra.mxu0 %v2630
    %3728 = vmatprep.subr.bf16.mxu0 %v2633
    %3729 = vmatpush1.bf16.msra.mxu0 %v2632
    %3730 = vmatprep.subr.bf16.mxu0 %v2635
    %3731 = vmatpush1.bf16.msra.mxu0 %v2634
    %3732 = vmatprep.mubr.bf16.mxu0 %v727
    %3733 = vmatmul.mubr.bf16.gmra.mrb[0].mxu0 %v719
    %v3734 = vpop.f32.mrb[0].mxu0
    %v3735 = vadd.f32 %v3694, %v3734
    %v3736 = vpop.f32.mrb[0].mxu0
    %v3737 = vadd.f32 %v3696, %v3736
    %v3738 = vpop.f32.mrb[0].mxu0
    %v3739 = vpop.f32.mrb[0].mxu0
    %3740 = vdwg.mxu0
    %3741 = vmatprep.subr.bf16.mxu0 %v2637
    %3742 = vmatpush1.bf16.msra.mxu0 %v2636
    %3743 = vmatprep.subr.bf16.mxu0 %v2639
    %3744 = vmatpush1.bf16.msra.mxu0 %v2638
    %3745 = vmatprep.subr.bf16.mxu0 %v2641
    %3746 = vmatpush1.bf16.msra.mxu0 %v2640
    %3747 = vmatprep.subr.bf16.mxu0 %v2643
    %3748 = vmatpush1.bf16.msra.mxu0 %v2642
    %3749 = vmatprep.subr.bf16.mxu0 %v2645
    %3750 = vmatpush1.bf16.msra.mxu0 %v2644
    %3751 = vmatprep.subr.bf16.mxu0 %v2647
    %3752 = vmatpush1.bf16.msra.mxu0 %v2646
    %3753 = vmatprep.subr.bf16.mxu0 %v2649
    %3754 = vmatpush1.bf16.msra.mxu0 %v2648
    %3755 = vmatprep.subr.bf16.mxu0 %v2651
    %3756 = vmatpush1.bf16.msra.mxu0 %v2650
    %3757 = vmatprep.subr.bf16.mxu0 %v2653
    %3758 = vmatpush1.bf16.msra.mxu0 %v2652
    %3759 = vmatprep.subr.bf16.mxu0 %v2655
    %3760 = vmatpush1.bf16.msra.mxu0 %v2654
    %3761 = vmatprep.subr.bf16.mxu0 %v2657
    %3762 = vmatpush1.bf16.msra.mxu0 %v2656
    %3763 = vmatprep.subr.bf16.mxu0 %v2659
    %3764 = vmatpush1.bf16.msra.mxu0 %v2658
    %3765 = vmatprep.subr.bf16.mxu0 %v2661
    %3766 = vmatpush1.bf16.msra.mxu0 %v2660
    %3767 = vmatprep.subr.bf16.mxu0 %v2663
    %3768 = vmatpush1.bf16.msra.mxu0 %v2662
    %3769 = vmatprep.subr.bf16.mxu0 %v2665
    %3770 = vmatpush1.bf16.msra.mxu0 %v2664
    %3771 = vmatprep.subr.bf16.mxu0 %v2667
    %3772 = vmatpush1.bf16.msra.mxu0 %v2666
    %3773 = vmatprep.mubr.bf16.mxu0 %v728
    %3774 = vmatmul.mubr.bf16.gmra.mrb[0].mxu0 %v726
    %v3775 = vpop.f32.mrb[0].mxu0
    %v3776 = vadd.f32 %v3735, %v3775
    %v3777 = vpop.f32.mrb[0].mxu0
    %v3778 = vadd.f32 %v3737, %v3777
    %v3779 = vpop.f32.mrb[0].mxu0
    %v3780 = vpop.f32.mrb[0].mxu0
    %3781 = vdwg.mxu0
    %3782 = vmatprep.subr.bf16.mxu0 %v2669
    %3783 = vmatpush1.bf16.msra.mxu0 %v2668
    %3784 = vmatprep.subr.bf16.mxu0 %v2671
    %3785 = vmatpush1.bf16.msra.mxu0 %v2670
    %3786 = vmatprep.subr.bf16.mxu0 %v2673
    %3787 = vmatpush1.bf16.msra.mxu0 %v2672
    %3788 = vmatprep.subr.bf16.mxu0 %v2675
    %3789 = vmatpush1.bf16.msra.mxu0 %v2674
    %3790 = vmatprep.subr.bf16.mxu0 %v2677
    %3791 = vmatpush1.bf16.msra.mxu0 %v2676
    %3792 = vmatprep.subr.bf16.mxu0 %v2679
    %3793 = vmatpush1.bf16.msra.mxu0 %v2678
    %3794 = vmatprep.subr.bf16.mxu0 %v2681
    %3795 = vmatpush1.bf16.msra.mxu0 %v2680
    %3796 = vmatprep.subr.bf16.mxu0 %v2683
    %3797 = vmatpush1.bf16.msra.mxu0 %v2682
    %3798 = vmatprep.subr.bf16.mxu0 %v2685
    %3799 = vmatpush1.bf16.msra.mxu0 %v2684
    %3800 = vmatprep.subr.bf16.mxu0 %v2687
    %3801 = vmatpush1.bf16.msra.mxu0 %v2686
    %3802 = vmatprep.subr.bf16.mxu0 %v2689
    %3803 = vmatpush1.bf16.msra.mxu0 %v2688
    %3804 = vmatprep.subr.bf16.mxu0 %v2691
    %3805 = vmatpush1.bf16.msra.mxu0 %v2690
    %3806 = vmatprep.subr.bf16.mxu0 %v2693
    %3807 = vmatpush1.bf16.msra.mxu0 %v2692
    %3808 = vmatprep.subr.bf16.mxu0 %v2695
    %3809 = vmatpush1.bf16.msra.mxu0 %v2694
    %3810 = vmatprep.subr.bf16.mxu0 %v2697
    %3811 = vmatpush1.bf16.msra.mxu0 %v2696
    %3812 = vmatprep.subr.bf16.mxu0 %v2699
    %3813 = vmatpush1.bf16.msra.mxu0 %v2698
    %3814 = vmatprep.mubr.bf16.mxu0 %v744
    %3815 = vmatmul.mubr.bf16.gmra.mrb[0].mxu0 %v736
    %v3816 = vpop.f32.mrb[0].mxu0
    %v3817 = vadd.f32 %v3776, %v3816
    %v3818 = vpop.f32.mrb[0].mxu0
    %v3819 = vadd.f32 %v3778, %v3818
    %v3820 = vpop.f32.mrb[0].mxu0
    %v3821 = vpop.f32.mrb[0].mxu0
    %3822 = vdwg.mxu0
    %3823 = vmatprep.subr.bf16.mxu0 %v2701
    %3824 = vmatpush1.bf16.msra.mxu0 %v2700
    %3825 = vmatprep.subr.bf16.mxu0 %v2703
    %3826 = vmatpush1.bf16.msra.mxu0 %v2702
    %3827 = vmatprep.subr.bf16.mxu0 %v2705
    %3828 = vmatpush1.bf16.msra.mxu0 %v2704
    %3829 = vmatprep.subr.bf16.mxu0 %v2707
    %3830 = vmatpush1.bf16.msra.mxu0 %v2706
    %3831 = vmatprep.subr.bf16.mxu0 %v2709
    %3832 = vmatpush1.bf16.msra.mxu0 %v2708
    %3833 = vmatprep.subr.bf16.mxu0 %v2711
    %3834 = vmatpush1.bf16.msra.mxu0 %v2710
    %3835 = vmatprep.subr.bf16.mxu0 %v2713
    %3836 = vmatpush1.bf16.msra.mxu0 %v2712
    %3837 = vmatprep.subr.bf16.mxu0 %v2715
    %3838 = vmatpush1.bf16.msra.mxu0 %v2714
    %3839 = vmatprep.subr.bf16.mxu0 %v2717
    %3840 = vmatpush1.bf16.msra.mxu0 %v2716
    %3841 = vmatprep.subr.bf16.mxu0 %v2719
    %3842 = vmatpush1.bf16.msra.mxu0 %v2718
    %3843 = vmatprep.subr.bf16.mxu0 %v2721
    %3844 = vmatpush1.bf16.msra.mxu0 %v2720
    %3845 = vmatprep.subr.bf16.mxu0 %v2723
    %3846 = vmatpush1.bf16.msra.mxu0 %v2722
    %3847 = vmatprep.subr.bf16.mxu0 %v2725
    %3848 = vmatpush1.bf16.msra.mxu0 %v2724
    %3849 = vmatprep.subr.bf16.mxu0 %v2727
    %3850 = vmatpush1.bf16.msra.mxu0 %v2726
    %3851 = vmatprep.subr.bf16.mxu0 %v2729
    %3852 = vmatpush1.bf16.msra.mxu0 %v2728
    %3853 = vmatprep.subr.bf16.mxu0 %v2731
    %3854 = vmatpush1.bf16.msra.mxu0 %v2730
    %3855 = vmatprep.mubr.bf16.mxu0 %v745
    %3856 = vmatmul.mubr.bf16.gmra.mrb[0].mxu0 %v743
    %v3857 = vpop.f32.mrb[0].mxu0
    %v3858 = vadd.f32 %v3817, %v3857
    %v3859 = vpop.f32.mrb[0].mxu0
    %v3860 = vadd.f32 %v3819, %v3859
    %v3861 = vpop.f32.mrb[0].mxu0
    %v3862 = vpop.f32.mrb[0].mxu0
    %3863 = vdwg.mxu0
    %3864 = vmatprep.subr.bf16.mxu0 %v2733
    %3865 = vmatpush1.bf16.msra.mxu0 %v2732
    %3866 = vmatprep.subr.bf16.mxu0 %v2735
    %3867 = vmatpush1.bf16.msra.mxu0 %v2734
    %3868 = vmatprep.subr.bf16.mxu0 %v2737
    %3869 = vmatpush1.bf16.msra.mxu0 %v2736
    %3870 = vmatprep.subr.bf16.mxu0 %v2739
    %3871 = vmatpush1.bf16.msra.mxu0 %v2738
    %3872 = vmatprep.subr.bf16.mxu0 %v2741
    %3873 = vmatpush1.bf16.msra.mxu0 %v2740
    %3874 = vmatprep.subr.bf16.mxu0 %v2743
    %3875 = vmatpush1.bf16.msra.mxu0 %v2742
    %3876 = vmatprep.subr.bf16.mxu0 %v2745
    %3877 = vmatpush1.bf16.msra.mxu0 %v2744
    %3878 = vmatprep.subr.bf16.mxu0 %v2747
    %3879 = vmatpush1.bf16.msra.mxu0 %v2746
    %3880 = vmatprep.subr.bf16.mxu0 %v2749
    %3881 = vmatpush1.bf16.msra.mxu0 %v2748
    %3882 = vmatprep.subr.bf16.mxu0 %v2751
    %3883 = vmatpush1.bf16.msra.mxu0 %v2750
    %3884 = vmatprep.subr.bf16.mxu0 %v2753
    %3885 = vmatpush1.bf16.msra.mxu0 %v2752
    %3886 = vmatprep.subr.bf16.mxu0 %v2755
    %3887 = vmatpush1.bf16.msra.mxu0 %v2754
    %3888 = vmatprep.subr.bf16.mxu0 %v2757
    %3889 = vmatpush1.bf16.msra.mxu0 %v2756
    %3890 = vmatprep.subr.bf16.mxu0 %v2759
    %3891 = vmatpush1.bf16.msra.mxu0 %v2758
    %3892 = vmatprep.subr.bf16.mxu0 %v2761
    %3893 = vmatpush1.bf16.msra.mxu0 %v2760
    %3894 = vmatprep.subr.bf16.mxu0 %v2763
    %3895 = vmatpush1.bf16.msra.mxu0 %v2762
    %3896 = vmatprep.mubr.bf16.mxu0 %v761
    %3897 = vmatmul.mubr.bf16.gmra.mrb[0].mxu0 %v753
    %v3898 = vpop.f32.mrb[0].mxu0
    %v3899 = vadd.f32 %v3858, %v3898
    %v3900 = vpop.f32.mrb[0].mxu0
    %v3901 = vadd.f32 %v3860, %v3900
    %v3902 = vpop.f32.mrb[0].mxu0
    %v3903 = vpop.f32.mrb[0].mxu0
    %3904 = vdwg.mxu0
    %3905 = vmatprep.subr.bf16.mxu0 %v2765
    %3906 = vmatpush1.bf16.msra.mxu0 %v2764
    %3907 = vmatprep.subr.bf16.mxu0 %v2767
    %3908 = vmatpush1.bf16.msra.mxu0 %v2766
    %3909 = vmatprep.subr.bf16.mxu0 %v2769
    %3910 = vmatpush1.bf16.msra.mxu0 %v2768
    %3911 = vmatprep.subr.bf16.mxu0 %v2771
    %3912 = vmatpush1.bf16.msra.mxu0 %v2770
    %3913 = vmatprep.subr.bf16.mxu0 %v2773
    %3914 = vmatpush1.bf16.msra.mxu0 %v2772
    %3915 = vmatprep.subr.bf16.mxu0 %v2775
    %3916 = vmatpush1.bf16.msra.mxu0 %v2774
    %3917 = vmatprep.subr.bf16.mxu0 %v2777
    %3918 = vmatpush1.bf16.msra.mxu0 %v2776
    %3919 = vmatprep.subr.bf16.mxu0 %v2779
    %3920 = vmatpush1.bf16.msra.mxu0 %v2778
    %3921 = vmatprep.subr.bf16.mxu0 %v2781
    %3922 = vmatpush1.bf16.msra.mxu0 %v2780
    %3923 = vmatprep.subr.bf16.mxu0 %v2783
    %3924 = vmatpush1.bf16.msra.mxu0 %v2782
    %3925 = vmatprep.subr.bf16.mxu0 %v2785
    %3926 = vmatpush1.bf16.msra.mxu0 %v2784
    %3927 = vmatprep.subr.bf16.mxu0 %v2787
    %3928 = vmatpush1.bf16.msra.mxu0 %v2786
    %3929 = vmatprep.subr.bf16.mxu0 %v2789
    %3930 = vmatpush1.bf16.msra.mxu0 %v2788
    %3931 = vmatprep.subr.bf16.mxu0 %v2791
    %3932 = vmatpush1.bf16.msra.mxu0 %v2790
    %3933 = vmatprep.subr.bf16.mxu0 %v2793
    %3934 = vmatpush1.bf16.msra.mxu0 %v2792
    %3935 = vmatprep.subr.bf16.mxu0 %v2795
    %3936 = vmatpush1.bf16.msra.mxu0 %v2794
    %3937 = vmatprep.mubr.bf16.mxu0 %v762
    %3938 = vmatmul.mubr.bf16.gmra.mrb[0].mxu0 %v760
    %v3939 = vpop.f32.mrb[0].mxu0
    %v3940 = vadd.f32 %v3899, %v3939
    %v3941 = vpop.f32.mrb[0].mxu0
    %v3942 = vadd.f32 %v3901, %v3941
    %v3943 = vpop.f32.mrb[0].mxu0
    %v3944 = vpop.f32.mrb[0].mxu0
    %3945 = vdwg.mxu0
    %3946 = vmatprep.subr.bf16.mxu0 %v2797
    %3947 = vmatpush1.bf16.msra.mxu0 %v2796
    %3948 = vmatprep.subr.bf16.mxu0 %v2799
    %3949 = vmatpush1.bf16.msra.mxu0 %v2798
    %3950 = vmatprep.subr.bf16.mxu0 %v2801
    %3951 = vmatpush1.bf16.msra.mxu0 %v2800
    %3952 = vmatprep.subr.bf16.mxu0 %v2803
    %3953 = vmatpush1.bf16.msra.mxu0 %v2802
    %3954 = vmatprep.subr.bf16.mxu0 %v2805
    %3955 = vmatpush1.bf16.msra.mxu0 %v2804
    %3956 = vmatprep.subr.bf16.mxu0 %v2807
    %3957 = vmatpush1.bf16.msra.mxu0 %v2806
    %3958 = vmatprep.subr.bf16.mxu0 %v2809
    %3959 = vmatpush1.bf16.msra.mxu0 %v2808
    %3960 = vmatprep.subr.bf16.mxu0 %v2811
    %3961 = vmatpush1.bf16.msra.mxu0 %v2810
    %3962 = vmatprep.subr.bf16.mxu0 %v2813
    %3963 = vmatpush1.bf16.msra.mxu0 %v2812
    %3964 = vmatprep.subr.bf16.mxu0 %v2815
    %3965 = vmatpush1.bf16.msra.mxu0 %v2814
    %3966 = vmatprep.subr.bf16.mxu0 %v2817
    %3967 = vmatpush1.bf16.msra.mxu0 %v2816
    %3968 = vmatprep.subr.bf16.mxu0 %v2819
    %3969 = vmatpush1.bf16.msra.mxu0 %v2818
    %3970 = vmatprep.subr.bf16.mxu0 %v2821
    %3971 = vmatpush1.bf16.msra.mxu0 %v2820
    %3972 = vmatprep.subr.bf16.mxu0 %v2823
    %3973 = vmatpush1.bf16.msra.mxu0 %v2822
    %3974 = vmatprep.subr.bf16.mxu0 %v2825
    %3975 = vmatpush1.bf16.msra.mxu0 %v2824
    %3976 = vmatprep.subr.bf16.mxu0 %v2827
    %3977 = vmatpush1.bf16.msra.mxu0 %v2826
    %3978 = vmatprep.mubr.bf16.mxu0 %v778
    %3979 = vmatmul.mubr.bf16.gmra.mrb[0].mxu0 %v770
    %v3980 = vpop.f32.mrb[0].mxu0
    %v3981 = vadd.f32 %v3940, %v3980
    %v3982 = vpop.f32.mrb[0].mxu0
    %v3983 = vadd.f32 %v3942, %v3982
    %v3984 = vpop.f32.mrb[0].mxu0
    %v3985 = vpop.f32.mrb[0].mxu0
    %3986 = vdwg.mxu0
    %3987 = vmatprep.subr.bf16.mxu0 %v2829
    %3988 = vmatpush1.bf16.msra.mxu0 %v2828
    %3989 = vmatprep.subr.bf16.mxu0 %v2831
    %3990 = vmatpush1.bf16.msra.mxu0 %v2830
    %3991 = vmatprep.subr.bf16.mxu0 %v2833
    %3992 = vmatpush1.bf16.msra.mxu0 %v2832
    %3993 = vmatprep.subr.bf16.mxu0 %v2835
    %3994 = vmatpush1.bf16.msra.mxu0 %v2834
    %3995 = vmatprep.subr.bf16.mxu0 %v2837
    %3996 = vmatpush1.bf16.msra.mxu0 %v2836
    %3997 = vmatprep.subr.bf16.mxu0 %v2839
    %3998 = vmatpush1.bf16.msra.mxu0 %v2838
    %3999 = vmatprep.subr.bf16.mxu0 %v2841
    %4000 = vmatpush1.bf16.msra.mxu0 %v2840
    %4001 = vmatprep.subr.bf16.mxu0 %v2843
    %4002 = vmatpush1.bf16.msra.mxu0 %v2842
    %4003 = vmatprep.subr.bf16.mxu0 %v2845
    %4004 = vmatpush1.bf16.msra.mxu0 %v2844
    %4005 = vmatprep.subr.bf16.mxu0 %v2847
    %4006 = vmatpush1.bf16.msra.mxu0 %v2846
    %4007 = vmatprep.subr.bf16.mxu0 %v2849
    %4008 = vmatpush1.bf16.msra.mxu0 %v2848
    %4009 = vmatprep.subr.bf16.mxu0 %v2851
    %4010 = vmatpush1.bf16.msra.mxu0 %v2850
    %4011 = vmatprep.subr.bf16.mxu0 %v2853
    %4012 = vmatpush1.bf16.msra.mxu0 %v2852
    %4013 = vmatprep.subr.bf16.mxu0 %v2855
    %4014 = vmatpush1.bf16.msra.mxu0 %v2854
    %4015 = vmatprep.subr.bf16.mxu0 %v2857
    %4016 = vmatpush1.bf16.msra.mxu0 %v2856
    %4017 = vmatprep.subr.bf16.mxu0 %v2859
    %4018 = vmatpush1.bf16.msra.mxu0 %v2858
    %4019 = vmatprep.mubr.bf16.mxu0 %v779
    %4020 = vmatmul.mubr.bf16.gmra.mrb[0].mxu0 %v777
    %v4021 = vpop.f32.mrb[0].mxu0
    %v4022 = vadd.f32 %v3981, %v4021
    %v4023 = vpop.f32.mrb[0].mxu0
    %v4024 = vadd.f32 %v3983, %v4023
    %v4025 = vpop.f32.mrb[0].mxu0
    %v4026 = vpop.f32.mrb[0].mxu0
    %4027 = vdwg.mxu0
    %v4028 = vmax.f32 %v4022, 0.0
    %v4029 = vmax.f32 %v4024, 0.0
    %v4030 = vpack.c.bf16 %v4028, %v4028
    %v4031 = vpack.c.bf16 %v4029, %v4029
    %v4032 = vld [vmem:[#allocation7] sm:$0xff]
    %v4033 = vld [vmem:[#allocation7 + $0x8] sm:$0xff]
    %v4034 = vld [vmem:[#allocation7 + $0x10] sm:$0xff]
    %v4035 = vld [vmem:[#allocation7 + $0x18] sm:$0xff]
    %v4036 = vld [vmem:[#allocation7 + $0x20] sm:$0xff]
    %v4037 = vld [vmem:[#allocation7 + $0x28] sm:$0xff]
    %v4038 = vld [vmem:[#allocation7 + $0x30] sm:$0xff]
    %v4039 = vld [vmem:[#allocation7 + $0x38] sm:$0xff]
    %v4040 = vld [vmem:[#allocation7 + $0x40] sm:$0xff]
    %v4041 = vld [vmem:[#allocation7 + $0x48] sm:$0xff]
    %v4042 = vld [vmem:[#allocation7 + $0x50] sm:$0xff]
    %v4043 = vld [vmem:[#allocation7 + $0x58] sm:$0xff]
    %v4044 = vld [vmem:[#allocation7 + $0x60] sm:$0xff]
    %v4045 = vld [vmem:[#allocation7 + $0x68] sm:$0xff]
    %v4046 = vld [vmem:[#allocation7 + $0x70] sm:$0xff]
    %v4047 = vld [vmem:[#allocation7 + $0x78] sm:$0xff]
    %v4048 = vld [vmem:[#allocation7 + $0x80] sm:$0xff]
    %v4049 = vld [vmem:[#allocation7 + $0x88] sm:$0xff]
    %v4050 = vld [vmem:[#allocation7 + $0x90] sm:$0xff]
    %v4051 = vld [vmem:[#allocation7 + $0x98] sm:$0xff]
    %v4052 = vld [vmem:[#allocation7 + $0xa0] sm:$0xff]
    %v4053 = vld [vmem:[#allocation7 + $0xa8] sm:$0xff]
    %v4054 = vld [vmem:[#allocation7 + $0xb0] sm:$0xff]
    %v4055 = vld [vmem:[#allocation7 + $0xb8] sm:$0xff]
    %v4056 = vld [vmem:[#allocation7 + $0xc0] sm:$0xff]
    %v4057 = vld [vmem:[#allocation7 + $0xc8] sm:$0xff]
    %v4058 = vld [vmem:[#allocation7 + $0xd0] sm:$0xff]
    %v4059 = vld [vmem:[#allocation7 + $0xd8] sm:$0xff]
    %v4060 = vld [vmem:[#allocation7 + $0xe0] sm:$0xff]
    %v4061 = vld [vmem:[#allocation7 + $0xe8] sm:$0xff]
    %v4062 = vld [vmem:[#allocation7 + $0xf0] sm:$0xff]
    %v4063 = vld [vmem:[#allocation7 + $0xf8] sm:$0xff]
    %v4064 = vld [vmem:[#allocation8] sm:$0x3]
    %v4066 = vlaneseq
    %v4067 = vshrl.u32 %v4066, 7
    %v4068 = vsub.s32 0, %v4067
    %v4069 = vrot.slane %v4064, %v4068
    %v4070 = vlaneseq
    %v4071 = vshrl.u32 %v4070, 7
    %v4072 = vsub.s32 1, %v4071
    %v4073 = vrot.slane %v4064, %v4072
    %v4108 = vunpack.c.l.b16 %v4032
    %v4109 = vunpack.c.h.b16 %v4032
    %v4110 = vunpack.c.l.b16 %v4033
    %v4111 = vunpack.c.h.b16 %v4033
    %v4112 = vunpack.c.l.b16 %v4034
    %v4113 = vunpack.c.h.b16 %v4034
    %v4114 = vunpack.c.l.b16 %v4035
    %v4115 = vunpack.c.h.b16 %v4035
    %v4116 = vunpack.c.l.b16 %v4036
    %v4117 = vunpack.c.h.b16 %v4036
    %v4118 = vunpack.c.l.b16 %v4037
    %v4119 = vunpack.c.h.b16 %v4037
    %v4120 = vunpack.c.l.b16 %v4038
    %v4121 = vunpack.c.h.b16 %v4038
    %v4122 = vunpack.c.l.b16 %v4039
    %v4123 = vunpack.c.h.b16 %v4039
    %v4124 = vunpack.c.l.b16 %v4040
    %v4125 = vunpack.c.h.b16 %v4040
    %v4126 = vunpack.c.l.b16 %v4041
    %v4127 = vunpack.c.h.b16 %v4041
    %v4128 = vunpack.c.l.b16 %v4042
    %v4129 = vunpack.c.h.b16 %v4042
    %v4130 = vunpack.c.l.b16 %v4043
    %v4131 = vunpack.c.h.b16 %v4043
    %v4132 = vunpack.c.l.b16 %v4044
    %v4133 = vunpack.c.h.b16 %v4044
    %v4134 = vunpack.c.l.b16 %v4045
    %v4135 = vunpack.c.h.b16 %v4045
    %v4136 = vunpack.c.l.b16 %v4046
    %v4137 = vunpack.c.h.b16 %v4046
    %v4138 = vunpack.c.l.b16 %v4047
    %v4139 = vunpack.c.h.b16 %v4047
    %v4140 = vunpack.c.l.b16 %v4048
    %v4141 = vunpack.c.h.b16 %v4048
    %v4142 = vunpack.c.l.b16 %v4049
    %v4143 = vunpack.c.h.b16 %v4049
    %v4144 = vunpack.c.l.b16 %v4050
    %v4145 = vunpack.c.h.b16 %v4050
    %v4146 = vunpack.c.l.b16 %v4051
    %v4147 = vunpack.c.h.b16 %v4051
    %v4148 = vunpack.c.l.b16 %v4052
    %v4149 = vunpack.c.h.b16 %v4052
    %v4150 = vunpack.c.l.b16 %v4053
    %v4151 = vunpack.c.h.b16 %v4053
    %v4152 = vunpack.c.l.b16 %v4054
    %v4153 = vunpack.c.h.b16 %v4054
    %v4154 = vunpack.c.l.b16 %v4055
    %v4155 = vunpack.c.h.b16 %v4055
    %v4156 = vunpack.c.l.b16 %v4056
    %v4157 = vunpack.c.h.b16 %v4056
    %v4158 = vunpack.c.l.b16 %v4057
    %v4159 = vunpack.c.h.b16 %v4057
    %v4160 = vunpack.c.l.b16 %v4058
    %v4161 = vunpack.c.h.b16 %v4058
    %v4162 = vunpack.c.l.b16 %v4059
    %v4163 = vunpack.c.h.b16 %v4059
    %v4164 = vunpack.c.l.b16 %v4060
    %v4165 = vunpack.c.h.b16 %v4060
    %v4166 = vunpack.c.l.b16 %v4061
    %v4167 = vunpack.c.h.b16 %v4061
    %v4168 = vunpack.c.l.b16 %v4062
    %v4169 = vunpack.c.h.b16 %v4062
    %v4170 = vunpack.c.l.b16 %v4063
    %v4171 = vunpack.c.h.b16 %v4063
    %v4172 = vpack.c.b16 %v4110, %v4108
    %v4173 = vpack.c.b16 %v4111, %v4109
    %v4174 = vpack.c.b16 %v4114, %v4112
    %v4175 = vpack.c.b16 %v4115, %v4113
    %v4176 = vpack.c.b16 %v4118, %v4116
    %v4177 = vpack.c.b16 %v4119, %v4117
    %v4178 = vpack.c.b16 %v4122, %v4120
    %v4179 = vpack.c.b16 %v4123, %v4121
    %v4180 = vpack.c.b16 %v4126, %v4124
    %v4181 = vpack.c.b16 %v4127, %v4125
    %v4182 = vpack.c.b16 %v4130, %v4128
    %v4183 = vpack.c.b16 %v4131, %v4129
    %v4184 = vpack.c.b16 %v4134, %v4132
    %v4185 = vpack.c.b16 %v4135, %v4133
    %v4186 = vpack.c.b16 %v4138, %v4136
    %v4187 = vpack.c.b16 %v4139, %v4137
    %v4188 = vpack.c.b16 %v4142, %v4140
    %v4189 = vpack.c.b16 %v4143, %v4141
    %v4190 = vpack.c.b16 %v4146, %v4144
    %v4191 = vpack.c.b16 %v4147, %v4145
    %v4192 = vpack.c.b16 %v4150, %v4148
    %v4193 = vpack.c.b16 %v4151, %v4149
    %v4194 = vpack.c.b16 %v4154, %v4152
    %v4195 = vpack.c.b16 %v4155, %v4153
    %v4196 = vpack.c.b16 %v4158, %v4156
    %v4197 = vpack.c.b16 %v4159, %v4157
    %v4198 = vpack.c.b16 %v4162, %v4160
    %v4199 = vpack.c.b16 %v4163, %v4161
    %v4200 = vpack.c.b16 %v4166, %v4164
    %v4201 = vpack.c.b16 %v4167, %v4165
    %v4202 = vpack.c.b16 %v4170, %v4168
    %v4203 = vpack.c.b16 %v4171, %v4169
    %4236 = vmatprep.subr.bf16.mxu0 %v4173
    %4237 = vmatpush1.bf16.msra.mxu0 %v4172
    %4238 = vmatprep.subr.bf16.mxu0 %v4175
    %4239 = vmatpush1.bf16.msra.mxu0 %v4174
    %4240 = vmatprep.subr.bf16.mxu0 %v4177
    %4241 = vmatpush1.bf16.msra.mxu0 %v4176
    %4242 = vmatprep.subr.bf16.mxu0 %v4179
    %4243 = vmatpush1.bf16.msra.mxu0 %v4178
    %4244 = vmatprep.subr.bf16.mxu0 %v4181
    %4245 = vmatpush1.bf16.msra.mxu0 %v4180
    %4246 = vmatprep.subr.bf16.mxu0 %v4183
    %4247 = vmatpush1.bf16.msra.mxu0 %v4182
    %4248 = vmatprep.subr.bf16.mxu0 %v4185
    %4249 = vmatpush1.bf16.msra.mxu0 %v4184
    %4250 = vmatprep.subr.bf16.mxu0 %v4187
    %4251 = vmatpush1.bf16.msra.mxu0 %v4186
    %4252 = vmatprep.subr.bf16.mxu0 %v4189
    %4253 = vmatpush1.bf16.msra.mxu0 %v4188
    %4254 = vmatprep.subr.bf16.mxu0 %v4191
    %4255 = vmatpush1.bf16.msra.mxu0 %v4190
    %4256 = vmatprep.subr.bf16.mxu0 %v4193
    %4257 = vmatpush1.bf16.msra.mxu0 %v4192
    %4258 = vmatprep.subr.bf16.mxu0 %v4195
    %4259 = vmatpush1.bf16.msra.mxu0 %v4194
    %4260 = vmatprep.subr.bf16.mxu0 %v4197
    %4261 = vmatpush1.bf16.msra.mxu0 %v4196
    %4262 = vmatprep.subr.bf16.mxu0 %v4199
    %4263 = vmatpush1.bf16.msra.mxu0 %v4198
    %4264 = vmatprep.subr.bf16.mxu0 %v4201
    %4265 = vmatpush1.bf16.msra.mxu0 %v4200
    %4266 = vmatprep.subr.bf16.mxu0 %v4203
    %4267 = vmatpush1.bf16.msra.mxu0 %v4202
    %4268 = vmatprep.mubr.bf16.mxu0 %v4031
    %4269 = vmatmul.mubr.bf16.gmra.mrb[0].mxu0 %v4030
    %v4270 = vpop.f32.mrb[0].mxu0
    %v4271 = vadd.f32 %v4069, %v4270
    %v4272 = vpop.f32.mrb[0].mxu0
    %v4273 = vadd.f32 %v4073, %v4272
    %v4274 = vpop.f32.mrb[0].mxu0
    %v4275 = vpop.f32.mrb[0].mxu0
    %4276 = vdwg.mxu0
    %v4277 = vmax.f32 %v4271, 0.0
    %v4278 = vmax.f32 %v4273, 0.0
    %v4279 = vpack.c.bf16 %v4277, %v4277
    %v4280 = vpack.c.bf16 %v4278, %v4278
    %v4281 = vld [vmem:[#allocation10] sm:$0xf]
    %v4282 = vld [vmem:[#allocation10 + $0x4] sm:$0xf]
    %v4283 = vld [vmem:[#allocation10 + $0x8] sm:$0xf]
    %v4284 = vld [vmem:[#allocation10 + $0xc] sm:$0xf]
    %v4285 = vld [vmem:[#allocation10 + $0x10] sm:$0xf]
    %v4286 = vld [vmem:[#allocation10 + $0x14] sm:$0xf]
    %v4287 = vld [vmem:[#allocation10 + $0x18] sm:$0xf]
    %v4288 = vld [vmem:[#allocation10 + $0x1c] sm:$0xf]
    %v4289 = vld [vmem:[#allocation10 + $0x20] sm:$0xf]
    %v4290 = vld [vmem:[#allocation10 + $0x24] sm:$0xf]
    %v4291 = vld [vmem:[#allocation10 + $0x28] sm:$0xf]
    %v4292 = vld [vmem:[#allocation10 + $0x2c] sm:$0xf]
    %v4293 = vld [vmem:[#allocation10 + $0x30] sm:$0xf]
    %v4294 = vld [vmem:[#allocation10 + $0x34] sm:$0xf]
    %v4295 = vld [vmem:[#allocation10 + $0x38] sm:$0xf]
    %v4296 = vld [vmem:[#allocation10 + $0x3c] sm:$0xf]
    %v4297 = vld [vmem:[#allocation10 + $0x40] sm:$0xf]
    %v4298 = vld [vmem:[#allocation10 + $0x44] sm:$0xf]
    %v4299 = vld [vmem:[#allocation10 + $0x48] sm:$0xf]
    %v4300 = vld [vmem:[#allocation10 + $0x4c] sm:$0xf]
    %v4301 = vld [vmem:[#allocation10 + $0x50] sm:$0xf]
    %v4302 = vld [vmem:[#allocation10 + $0x54] sm:$0xf]
    %v4303 = vld [vmem:[#allocation10 + $0x58] sm:$0xf]
    %v4304 = vld [vmem:[#allocation10 + $0x5c] sm:$0xf]
    %v4305 = vld [vmem:[#allocation10 + $0x60] sm:$0xf]
    %v4306 = vld [vmem:[#allocation10 + $0x64] sm:$0xf]
    %v4307 = vld [vmem:[#allocation10 + $0x68] sm:$0xf]
    %v4308 = vld [vmem:[#allocation10 + $0x6c] sm:$0xf]
    %v4309 = vld [vmem:[#allocation10 + $0x70] sm:$0xf]
    %v4310 = vld [vmem:[#allocation10 + $0x74] sm:$0xf]
    %v4311 = vld [vmem:[#allocation10 + $0x78] sm:$0xf]
    %v4312 = vld [vmem:[#allocation10 + $0x7c] sm:$0xf]
    %v4313 = vld [vmem:[#allocation11] sm:$0x1]
    %v4315 = vlaneseq
    %v4316 = vshrl.u32 %v4315, 7
    %v4317 = vsub.s32 0, %v4316
    %v4318 = vrot.slane %v4313, %v4317
    %v4352 = vunpack.c.l.b16 %v4281
    %v4353 = vunpack.c.l.b16 %v4282
    %v4354 = vunpack.c.l.b16 %v4283
    %v4355 = vunpack.c.l.b16 %v4284
    %v4356 = vunpack.c.l.b16 %v4285
    %v4357 = vunpack.c.l.b16 %v4286
    %v4358 = vunpack.c.l.b16 %v4287
    %v4359 = vunpack.c.l.b16 %v4288
    %v4360 = vunpack.c.l.b16 %v4289
    %v4361 = vunpack.c.l.b16 %v4290
    %v4362 = vunpack.c.l.b16 %v4291
    %v4363 = vunpack.c.l.b16 %v4292
    %v4364 = vunpack.c.l.b16 %v4293
    %v4365 = vunpack.c.l.b16 %v4294
    %v4366 = vunpack.c.l.b16 %v4295
    %v4367 = vunpack.c.l.b16 %v4296
    %v4368 = vunpack.c.l.b16 %v4297
    %v4369 = vunpack.c.l.b16 %v4298
    %v4370 = vunpack.c.l.b16 %v4299
    %v4371 = vunpack.c.l.b16 %v4300
    %v4372 = vunpack.c.l.b16 %v4301
    %v4373 = vunpack.c.l.b16 %v4302
    %v4374 = vunpack.c.l.b16 %v4303
    %v4375 = vunpack.c.l.b16 %v4304
    %v4376 = vunpack.c.l.b16 %v4305
    %v4377 = vunpack.c.l.b16 %v4306
    %v4378 = vunpack.c.l.b16 %v4307
    %v4379 = vunpack.c.l.b16 %v4308
    %v4380 = vunpack.c.l.b16 %v4309
    %v4381 = vunpack.c.l.b16 %v4310
    %v4382 = vunpack.c.l.b16 %v4311
    %v4383 = vunpack.c.l.b16 %v4312
    %v4384 = vpack.c.b16 %v4353, %v4352
    %v4385 = vpack.c.b16 %v4355, %v4354
    %v4386 = vpack.c.b16 %v4357, %v4356
    %v4387 = vpack.c.b16 %v4359, %v4358
    %v4388 = vpack.c.b16 %v4361, %v4360
    %v4389 = vpack.c.b16 %v4363, %v4362
    %v4390 = vpack.c.b16 %v4365, %v4364
    %v4391 = vpack.c.b16 %v4367, %v4366
    %v4392 = vpack.c.b16 %v4369, %v4368
    %v4393 = vpack.c.b16 %v4371, %v4370
    %v4394 = vpack.c.b16 %v4373, %v4372
    %v4395 = vpack.c.b16 %v4375, %v4374
    %v4396 = vpack.c.b16 %v4377, %v4376
    %v4397 = vpack.c.b16 %v4379, %v4378
    %v4398 = vpack.c.b16 %v4381, %v4380
    %v4399 = vpack.c.b16 %v4383, %v4382
    %4416 = vmatprep.subr.bf16.mxu0 0
    %4417 = vmatpush1.bf16.msra.mxu0 %v4384
    %4418 = vmatprep.subr.bf16.mxu0 0
    %4419 = vmatpush1.bf16.msra.mxu0 %v4385
    %4420 = vmatprep.subr.bf16.mxu0 0
    %4421 = vmatpush1.bf16.msra.mxu0 %v4386
    %4422 = vmatprep.subr.bf16.mxu0 0
    %4423 = vmatpush1.bf16.msra.mxu0 %v4387
    %4424 = vmatprep.subr.bf16.mxu0 0
    %4425 = vmatpush1.bf16.msra.mxu0 %v4388
    %4426 = vmatprep.subr.bf16.mxu0 0
    %4427 = vmatpush1.bf16.msra.mxu0 %v4389
    %4428 = vmatprep.subr.bf16.mxu0 0
    %4429 = vmatpush1.bf16.msra.mxu0 %v4390
    %4430 = vmatprep.subr.bf16.mxu0 0
    %4431 = vmatpush1.bf16.msra.mxu0 %v4391
    %4432 = vmatprep.subr.bf16.mxu0 0
    %4433 = vmatpush1.bf16.msra.mxu0 %v4392
    %4434 = vmatprep.subr.bf16.mxu0 0
    %4435 = vmatpush1.bf16.msra.mxu0 %v4393
    %4436 = vmatprep.subr.bf16.mxu0 0
    %4437 = vmatpush1.bf16.msra.mxu0 %v4394
    %4438 = vmatprep.subr.bf16.mxu0 0
    %4439 = vmatpush1.bf16.msra.mxu0 %v4395
    %4440 = vmatprep.subr.bf16.mxu0 0
    %4441 = vmatpush1.bf16.msra.mxu0 %v4396
    %4442 = vmatprep.subr.bf16.mxu0 0
    %4443 = vmatpush1.bf16.msra.mxu0 %v4397
    %4444 = vmatprep.subr.bf16.mxu0 0
    %4445 = vmatpush1.bf16.msra.mxu0 %v4398
    %4446 = vmatprep.subr.bf16.mxu0 0
    %4447 = vmatpush1.bf16.msra.mxu0 %v4399
    %4448 = vmatprep.mubr.bf16.mxu0 %v4280
    %4449 = vmatmul.mubr.bf16.gmra.mrb[0].mxu0 %v4279
    %v4450 = vpop.f32.mrb[0].mxu0
    %v4451 = vadd.f32 %v4318, %v4450
    %v4452 = vpop.f32.mrb[0].mxu0
    %v4453 = vpop.f32.mrb[0].mxu0
    %v4454 = vpop.f32.mrb[0].mxu0
    %4455 = vdwg.mxu0
    %4456 = vst [vmem:[#allocation13] sm:$0xf] %v4451
    // Predicated region
    $region54: #{lenet5_forward.3} parent=1 // pred_check
      _
    $region55: #{lenet5_forward.3} parent=1 // pred_check_branch
      %4458 = sbr.rel (0) target = $region57
    $region56: #{lenet5_forward.3} parent=1 // pred_region
      %s4460 = ssub.s32 64, 64
      %4461 = vsyncadd [#allocation4], %s4460
      %s4463 = sshll.u32 [#allocation13], 4
      %s4464 = int_to_ptr.vmem [resolvable:$true] %s4463
      %4466 = dma.vmem_to_hbm [thread:$0]  %s4464, 64, %s7, [#allocation4]
    $region57: #{lenet5_forward.3} parent=1 // pred_fallthru
      _
    // Predicated region
    $region58: #{lenet5_forward.3} parent=1 // pred_check
      _
    $region59: #{lenet5_forward.3} parent=1 // pred_check_branch
      %4468 = sbr.rel (0) target = $region61
    $region60: #{lenet5_forward.3} parent=1 // pred_region
      %4469 = dma.done [#allocation4], 64
    $region61: #{lenet5_forward.3} parent=1 // pred_fallthru
      _
    %4470 = vsyncpa [#allocation3], 1
    %4471 = vsyncpa [#allocation6], 1
    %4472 = vsyncpa [#allocation9], 1
    %4473 = vsyncpa [#allocation12], 1
    %4474 = vsyncpa [#allocation4], 1

</llo_original>
